<compile_context>
chip_gen: v7x
topology: tpu7x:2x2x1
jax: 0.10.0
libtpu: 0.0.40
codegen_flags: <defaults>
</compile_context>

<pallas_src>
import jax
import jax.numpy as jnp
from jax.experimental import pallas as pl
from jax.experimental.pallas import tpu as pltpu


# ---------------------------------------------------------------------------
# Fully-fused kernel: 4 x (conv3x3 + folded-BN + ReLU + maxpool2) + classifier
# ---------------------------------------------------------------------------
def _fused_cnn_kernel(p1_ref,                       # (NT*H*W, 9) bf16 layer-1 im2col
                      w1_ref, s1_ref, b1_ref,       # (9,32) bf16, (1,32) f32 x2
                      w2_ref, s2_ref, b2_ref,       # (288,64), ...
                      w3_ref, s3_ref, b3_ref,       # (576,128), ...
                      w4_ref, s4_ref, b4_ref,       # (1152,256), ...
                      fw1_ref, fb1_ref, fw2_ref, fb2_ref,   # head weights
                      o_ref,                        # (NT, 1) f32
                      a1_ref, a2_ref, a3_ref):      # halo-padded f32 activations
    n = a1_ref.shape[0]
    H = (a1_ref.shape[1] - 2) * 2
    W = (a1_ref.shape[2] - 2) * 2

    def bn_relu_pool(acc, scale_ref, bias_ref, h, w):
        # acc: (n*h*w, cout) f32, rows ordered (n, y, x).  Folded-BN + ReLU + 2x2 pool.
        cout = acc.shape[-1]
        y = jnp.maximum(acc * scale_ref[...] + bias_ref[...], 0.0)
        if h == 2 and w == 2:
            # pool window covers the whole map: max over the 4 rows of each sample
            y4 = y.reshape(n, 4, cout)
            y = jnp.maximum(jnp.maximum(y4[:, 0, :], y4[:, 1, :]),
                            jnp.maximum(y4[:, 2, :], y4[:, 3, :]))
            return y.reshape(n, 1, 1, cout)
        # consecutive rows are horizontal neighbours (W even at every stage), so the
        # W-pool is a pairwise max of adjacent rows; then pair rows along H.
        y = y.reshape(n * h * (w // 2), 2, cout)
        y = jnp.maximum(y[:, 0, :], y[:, 1, :])                   # pool along W
        y = y.reshape(n, h // 2, 2, w // 2, cout)
        return jnp.maximum(y[:, :, 0, :, :], y[:, :, 1, :, :])    # pool along H

    def store_with_halo(y, out_ref):
        # write pooled activation into the interior of a zeroed 1-px halo buffer,
        # so the next conv block needs no separate padding op.
        hh, ww = y.shape[1], y.shape[2]
        out_ref[...] = jnp.zeros(out_ref.shape, out_ref.dtype)
        out_ref[:, 1:hh + 1, 1:ww + 1, :] = y

    def im2col_matmul(in_ref, w_ref):
        # Single conv matmul with the 3x3 taps folded into K (K = 9*cin).
        h = in_ref.shape[1] - 2
        w = in_ref.shape[2] - 2
        cin = in_ref.shape[3]
        m = n * h * w
        x = in_ref[...]                                           # one load, f32
        taps = [x[:, dy:dy + h, dx:dx + w, :].reshape(m, cin)
                for dy in range(3) for dx in range(3)]
        patch = jnp.concatenate(taps, axis=-1).astype(jnp.bfloat16)   # (m, 9*cin)
        acc = jnp.dot(patch, w_ref[...], preferred_element_type=jnp.float32)
        return acc, h, w

    # ---- layer 1: im2col patch comes pre-built from the wrapper ----
    acc1 = jnp.dot(p1_ref[...], w1_ref[...], preferred_element_type=jnp.float32)
    y1 = bn_relu_pool(acc1, s1_ref, b1_ref, H, W)
    store_with_halo(y1, a1_ref)

    # ---- layers 2-4: in-kernel im2col, one matmul each ----
    acc2, h, w = im2col_matmul(a1_ref, w2_ref)
    y2 = bn_relu_pool(acc2, s2_ref, b2_ref, h, w)
    store_with_halo(y2, a2_ref)

    acc3, h, w = im2col_matmul(a2_ref, w3_ref)
    y3 = bn_relu_pool(acc3, s3_ref, b3_ref, h, w)
    store_with_halo(y3, a3_ref)

    acc4, h, w = im2col_matmul(a3_ref, w4_ref)
    y4 = bn_relu_pool(acc4, s4_ref, b4_ref, h, w)                 # (n, hf, wf, 256)

    # ---- classifier head: AdaptiveAvgPool2d((1,1)) -> Flatten -> Linear ->
    #      (Dropout: eval identity) -> ReLU -> Linear -> Sigmoid ----
    hf, wf, cf = y4.shape[1], y4.shape[2], y4.shape[3]
    if hf * wf == 1:
        feat = y4.reshape(n, cf)          # GAP is identity after 4 pools of 16x16
    else:
        feat = jnp.mean(y4, axis=(1, 2))

    z1 = jnp.dot(feat.astype(jnp.bfloat16), fw1_ref[...],
                 preferred_element_type=jnp.float32) + fb1_ref[...]
    # TODO(synk): Dropout is eval-mode identity here (no stochastic masking).
    z1 = jnp.maximum(z1, 0.0)
    z2 = jnp.dot(z1.astype(jnp.bfloat16), fw2_ref[...],
                 preferred_element_type=jnp.float32) + fb2_ref[...]
    o_ref[...] = (1.0 / (1.0 + jnp.exp(-z2))).astype(o_ref.dtype)   # sigmoid


# ---------------------------------------------------------------------------
# Wrapper
# ---------------------------------------------------------------------------
def enhanced_cnn_forward(x_nchw, params, *, batch_tile=None):
    # x_nchw: (N, 1, H, W) as in PyTorch.  H, W must be multiples of 16 (4 maxpools).
    N, C, H, W = x_nchw.shape
    assert C == 1 and H % 16 == 0 and W % 16 == 0
    nt = N if batch_tile is None else batch_tile
    assert N % nt == 0

    # One-time input prep (fused into XLA before the single kernel launch):
    # drop the channel dim, zero-halo pad, and build the layer-1 im2col patch
    # (N*H*W, 9) so layer 1 is a single (M, 9) x (9, 32) MXU matmul in-kernel.
    x = x_nchw[:, 0, :, :].astype(jnp.float32)
    xp = jnp.pad(x, ((0, 0), (1, 1), (1, 1)))
    taps = [xp[:, dy:dy + H, dx:dx + W] for dy in range(3) for dx in range(3)]
    p1 = jnp.stack(taps, axis=-1).reshape(N * H * W, 9).astype(jnp.bfloat16)

    args = [p1]
    for (w, s, b) in params["convs"]:
        args += [w, s, b]
    args += [params["w1"], params["b1"], params["w2"], params["b2"]]

    def const_spec(a):
        # weights / BN params: constant index map -> fetched once, VMEM resident
        nd = a.ndim
        return pl.BlockSpec(a.shape, lambda b: (0,) * nd)

    in_specs = [pl.BlockSpec((nt * H * W, 9), lambda b: (b, 0))]
    in_specs += [const_spec(a) for a in args[1:]]

    return pl.pallas_call(
        _fused_cnn_kernel,
        out_shape=jax.ShapeDtypeStruct((N, 1), jnp.float32),
        grid=(N // nt,),                               # batch-tile grid
        in_specs=in_specs,
        out_specs=pl.BlockSpec((nt, 1), lambda b: (b, 0)),
        scratch_shapes=[
            pltpu.VMEM((nt, H // 2 + 2, W // 2 + 2, 32), jnp.float32),
            pltpu.VMEM((nt, H // 4 + 2, W // 4 + 2, 64), jnp.float32),
            pltpu.VMEM((nt, H // 8 + 2, W // 8 + 2, 128), jnp.float32),
        ],
        compiler_params=pltpu.CompilerParams(
            # batch tiles are independent -> shard across v7x's 2 TensorCores
            dimension_semantics=("parallel",),
            # ~2 MB actually used; explicit limit keeps headroom on v7x's 64 MiB VMEM
            vmem_limit_bytes=32 * 1024 * 1024,
        ),
    )(*args)


# ---------------------------------------------------------------------------
# Parameter init (deterministic, synthetic): weights bf16, BN folded to f32.
# Conv weights are stored as (9*Cin, Cout), rows ordered (tap=dy*3+dx, cin).
# ---------------------------------------------------------------------------
def init_params(key):
    eps = 1e-5
    chans = [(1, 32), (32, 64), (64, 128), (128, 256)]
    keys = list(jax.random.split(key, 4 * 5 + 4))
    it = iter(keys)
    convs = []
    for cin, cout in chans:
        k = 9 * cin
        w = (jax.random.normal(next(it), (k, cout), jnp.float32)
             / jnp.sqrt(float(k))).astype(jnp.bfloat16)
        gamma = 1.0 + 0.1 * jax.random.normal(next(it), (1, cout), jnp.float32)
        beta = 0.1 * jax.random.normal(next(it), (1, cout), jnp.float32)
        rmean = 0.1 * jax.random.normal(next(it), (1, cout), jnp.float32)
        rvar = 1.0 + 0.1 * jax.random.uniform(next(it), (1, cout), jnp.float32)
        scale = gamma / jnp.sqrt(rvar + eps)          # f32 folded BN (eval mode)
        bias = beta - rmean * scale
        convs.append((w, scale, bias))
    w1 = (jax.random.normal(next(it), (256, 512), jnp.float32)
          / jnp.sqrt(256.0)).astype(jnp.bfloat16)
    b1 = 0.01 * jax.random.normal(next(it), (1, 512), jnp.float32)
    w2 = (jax.random.normal(next(it), (512, 1), jnp.float32)
          / jnp.sqrt(512.0)).astype(jnp.bfloat16)
    b2 = 0.01 * jax.random.normal(next(it), (1, 1), jnp.float32)
    return {"convs": convs, "w1": w1, "b1": b1, "w2": w2, "b2": b2}


if __name__ == "__main__":
    key = jax.random.PRNGKey(0)
    kx, kp = jax.random.split(key)
    x = jax.random.normal(kx, (2, 1, 16, 16), jnp.float32)   # (N, C, H, W) like PyTorch
    params = init_params(kp)
    fwd = jax.jit(enhanced_cnn_forward)
    out = jax.block_until_ready(fwd(x, params))
    assert out.shape == (2, 1), out.shape
    assert bool(jnp.all(jnp.isfinite(out)))
    assert bool(jnp.all((out > 0.0) & (out < 1.0)))           # sigmoid range
    print("KERNEL_OK")
</pallas_src>

<mosaic_0001>
module attributes {stable_mosaic.version = 11 : i64} {
  func.func @_fused_cnn_kernel(%arg0: i32, %arg1: memref<512x9xbf16, #tpu.memory_space<vmem>>, %arg2: memref<9x32xbf16, #tpu.memory_space<vmem>>, %arg3: memref<1x32xf32, #tpu.memory_space<vmem>>, %arg4: memref<1x32xf32, #tpu.memory_space<vmem>>, %arg5: memref<288x64xbf16, #tpu.memory_space<vmem>>, %arg6: memref<1x64xf32, #tpu.memory_space<vmem>>, %arg7: memref<1x64xf32, #tpu.memory_space<vmem>>, %arg8: memref<576x128xbf16, #tpu.memory_space<vmem>>, %arg9: memref<1x128xf32, #tpu.memory_space<vmem>>, %arg10: memref<1x128xf32, #tpu.memory_space<vmem>>, %arg11: memref<1152x256xbf16, #tpu.memory_space<vmem>>, %arg12: memref<1x256xf32, #tpu.memory_space<vmem>>, %arg13: memref<1x256xf32, #tpu.memory_space<vmem>>, %arg14: memref<256x512xbf16, #tpu.memory_space<vmem>>, %arg15: memref<1x512xf32, #tpu.memory_space<vmem>>, %arg16: memref<512x1xbf16, #tpu.memory_space<vmem>>, %arg17: memref<1x1xf32, #tpu.memory_space<vmem>>, %arg18: memref<2x1xf32, #tpu.memory_space<vmem>>, %arg19: memref<2x10x10x32xf32, #tpu.memory_space<vmem>>, %arg20: memref<2x6x6x64xf32, #tpu.memory_space<vmem>>, %arg21: memref<2x4x4x128xf32, #tpu.memory_space<vmem>>) attributes {dimension_semantics = [#tpu.dimension_semantics<parallel>], iteration_bounds = array<i64: 1>, scalar_prefetch = 0 : i64, scratch_operands = 3 : i64, tpu.core_type = #tpu.core_type<tc>, window_params = [{transform_indices = @transform_0, window_bounds = array<i64: 512, 9>}, {pipeline_mode = #tpu.pipeline_mode<synchronous>, transform_indices = @transform_1, window_bounds = array<i64: 9, 32>}, {pipeline_mode = #tpu.pipeline_mode<synchronous>, transform_indices = @transform_2, window_bounds = array<i64: 1, 32>}, {pipeline_mode = #tpu.pipeline_mode<synchronous>, transform_indices = @transform_3, window_bounds = array<i64: 1, 32>}, {pipeline_mode = #tpu.pipeline_mode<synchronous>, transform_indices = @transform_4, window_bounds = array<i64: 288, 64>}, {pipeline_mode = #tpu.pipeline_mode<synchronous>, transform_indices = @transform_5, window_bounds = array<i64: 1, 64>}, {pipeline_mode = #tpu.pipeline_mode<synchronous>, transform_indices = @transform_6, window_bounds = array<i64: 1, 64>}, {pipeline_mode = #tpu.pipeline_mode<synchronous>, transform_indices = @transform_7, window_bounds = array<i64: 576, 128>}, {pipeline_mode = #tpu.pipeline_mode<synchronous>, transform_indices = @transform_8, window_bounds = array<i64: 1, 128>}, {pipeline_mode = #tpu.pipeline_mode<synchronous>, transform_indices = @transform_9, window_bounds = array<i64: 1, 128>}, {pipeline_mode = #tpu.pipeline_mode<synchronous>, transform_indices = @transform_10, window_bounds = array<i64: 1152, 256>}, {pipeline_mode = #tpu.pipeline_mode<synchronous>, transform_indices = @transform_11, window_bounds = array<i64: 1, 256>}, {pipeline_mode = #tpu.pipeline_mode<synchronous>, transform_indices = @transform_12, window_bounds = array<i64: 1, 256>}, {pipeline_mode = #tpu.pipeline_mode<synchronous>, transform_indices = @transform_13, window_bounds = array<i64: 256, 512>}, {pipeline_mode = #tpu.pipeline_mode<synchronous>, transform_indices = @transform_14, window_bounds = array<i64: 1, 512>}, {pipeline_mode = #tpu.pipeline_mode<synchronous>, transform_indices = @transform_15, window_bounds = array<i64: 512, 1>}, {pipeline_mode = #tpu.pipeline_mode<synchronous>, transform_indices = @transform_16, window_bounds = array<i64: 1, 1>}, {transform_indices = @transform_17, window_bounds = array<i64: 2, 1>}]} {
    %c0 = arith.constant 0 : index
    %c0_0 = arith.constant 0 : index
    %0 = vector.load %arg1[%c0, %c0_0] : memref<512x9xbf16, #tpu.memory_space<vmem>>, vector<512x9xbf16>
    %c0_1 = arith.constant 0 : index
    %c0_2 = arith.constant 0 : index
    %1 = vector.load %arg2[%c0_1, %c0_2] : memref<9x32xbf16, #tpu.memory_space<vmem>>, vector<9x32xbf16>
    %cst = arith.constant dense<0.000000e+00> : vector<512x32xf32>
    %2 = tpu.matmul %0, %1, %cst {dimension_numbers = #tpu.dot_dimension_numbers<[1], [0], [0], [1], [0, 0, 1, 1], [], []>} : vector<512x9xbf16>, vector<9x32xbf16>, vector<512x32xf32> -> vector<512x32xf32>
    %c0_3 = arith.constant 0 : index
    %c0_4 = arith.constant 0 : index
    %3 = vector.load %arg3[%c0_3, %c0_4] : memref<1x32xf32, #tpu.memory_space<vmem>>, vector<1x32xf32>
    %4 = vector.broadcast %3 : vector<1x32xf32> to vector<512x32xf32>
    %5 = arith.mulf %2, %4 : vector<512x32xf32>
    %c0_5 = arith.constant 0 : index
    %c0_6 = arith.constant 0 : index
    %6 = vector.load %arg4[%c0_5, %c0_6] : memref<1x32xf32, #tpu.memory_space<vmem>>, vector<1x32xf32>
    %7 = vector.broadcast %6 : vector<1x32xf32> to vector<512x32xf32>
    %8 = arith.addf %5, %7 : vector<512x32xf32>
    %cst_7 = arith.constant 0.000000e+00 : f32
    %9 = vector.broadcast %cst_7 : f32 to vector<512x32xf32>
    %10 = arith.maximumf %8, %9 : vector<512x32xf32>
    %11 = vector.shape_cast %10 : vector<512x32xf32> to vector<256x2x32xf32>
    %12 = vector.extract_strided_slice %11 {offsets = [0, 0, 0], sizes = [256, 1, 32], strides = [1, 1, 1]} : vector<256x2x32xf32> to vector<256x1x32xf32>
    %13 = vector.shape_cast %12 : vector<256x1x32xf32> to vector<256x32xf32>
    %14 = vector.extract_strided_slice %11 {offsets = [0, 1, 0], sizes = [256, 1, 32], strides = [1, 1, 1]} : vector<256x2x32xf32> to vector<256x1x32xf32>
    %15 = vector.shape_cast %14 : vector<256x1x32xf32> to vector<256x32xf32>
    %16 = arith.maximumf %13, %15 : vector<256x32xf32>
    %17 = vector.shape_cast %16 : vector<256x32xf32> to vector<2x8x2x8x32xf32>
    %18 = vector.extract_strided_slice %17 {offsets = [0, 0, 0, 0, 0], sizes = [2, 8, 1, 8, 32], strides = [1, 1, 1, 1, 1]} : vector<2x8x2x8x32xf32> to vector<2x8x1x8x32xf32>
    %19 = vector.shape_cast %18 : vector<2x8x1x8x32xf32> to vector<2x8x8x32xf32>
    %20 = vector.extract_strided_slice %17 {offsets = [0, 0, 1, 0, 0], sizes = [2, 8, 1, 8, 32], strides = [1, 1, 1, 1, 1]} : vector<2x8x2x8x32xf32> to vector<2x8x1x8x32xf32>
    %21 = vector.shape_cast %20 : vector<2x8x1x8x32xf32> to vector<2x8x8x32xf32>
    %22 = arith.maximumf %19, %21 : vector<2x8x8x32xf32>
    %cst_8 = arith.constant 0.000000e+00 : f32
    %23 = vector.broadcast %cst_8 : f32 to vector<2x10x10x32xf32>
    %c0_9 = arith.constant 0 : index
    %c0_10 = arith.constant 0 : index
    %c0_11 = arith.constant 0 : index
    %c0_12 = arith.constant 0 : index
    %24 = vector.load %arg19[%c0_9, %c0_10, %c0_11, %c0_12] : memref<2x10x10x32xf32, #tpu.memory_space<vmem>>, vector<2x10x10x32xf32>
    tpu.vector_store %arg19[%c0_9, %c0_10, %c0_11, %c0_12], %23 {strides = array<i32>} : memref<2x10x10x32xf32, #tpu.memory_space<vmem>>, vector<2x10x10x32xf32>,
    %c0_13 = arith.constant 0 : index
    %c1 = arith.constant 1 : index
    %c1_14 = arith.constant 1 : index
    %c0_15 = arith.constant 0 : index
    %25 = vector.load %arg19[%c0_13, %c1, %c1_14, %c0_15] : memref<2x10x10x32xf32, #tpu.memory_space<vmem>>, vector<2x8x8x32xf32>
    tpu.vector_store %arg19[%c0_13, %c1, %c1_14, %c0_15], %22 {strides = array<i32>} : memref<2x10x10x32xf32, #tpu.memory_space<vmem>>, vector<2x8x8x32xf32>,
    %c0_16 = arith.constant 0 : index
    %c0_17 = arith.constant 0 : index
    %c0_18 = arith.constant 0 : index
    %c0_19 = arith.constant 0 : index
    %26 = vector.load %arg19[%c0_16, %c0_17, %c0_18, %c0_19] : memref<2x10x10x32xf32, #tpu.memory_space<vmem>>, vector<2x10x10x32xf32>
    %27 = vector.extract_strided_slice %26 {offsets = [0, 0, 0, 0], sizes = [2, 8, 8, 32], strides = [1, 1, 1, 1]} : vector<2x10x10x32xf32> to vector<2x8x8x32xf32>
    %28 = vector.shape_cast %27 : vector<2x8x8x32xf32> to vector<128x32xf32>
    %29 = vector.extract_strided_slice %26 {offsets = [0, 0, 1, 0], sizes = [2, 8, 8, 32], strides = [1, 1, 1, 1]} : vector<2x10x10x32xf32> to vector<2x8x8x32xf32>
    %30 = vector.shape_cast %29 : vector<2x8x8x32xf32> to vector<128x32xf32>
    %31 = vector.extract_strided_slice %26 {offsets = [0, 0, 2, 0], sizes = [2, 8, 8, 32], strides = [1, 1, 1, 1]} : vector<2x10x10x32xf32> to vector<2x8x8x32xf32>
    %32 = vector.shape_cast %31 : vector<2x8x8x32xf32> to vector<128x32xf32>
    %33 = vector.extract_strided_slice %26 {offsets = [0, 1, 0, 0], sizes = [2, 8, 8, 32], strides = [1, 1, 1, 1]} : vector<2x10x10x32xf32> to vector<2x8x8x32xf32>
    %34 = vector.shape_cast %33 : vector<2x8x8x32xf32> to vector<128x32xf32>
    %35 = vector.extract_strided_slice %26 {offsets = [0, 1, 1, 0], sizes = [2, 8, 8, 32], strides = [1, 1, 1, 1]} : vector<2x10x10x32xf32> to vector<2x8x8x32xf32>
    %36 = vector.shape_cast %35 : vector<2x8x8x32xf32> to vector<128x32xf32>
    %37 = vector.extract_strided_slice %26 {offsets = [0, 1, 2, 0], sizes = [2, 8, 8, 32], strides = [1, 1, 1, 1]} : vector<2x10x10x32xf32> to vector<2x8x8x32xf32>
    %38 = vector.shape_cast %37 : vector<2x8x8x32xf32> to vector<128x32xf32>
    %39 = vector.extract_strided_slice %26 {offsets = [0, 2, 0, 0], sizes = [2, 8, 8, 32], strides = [1, 1, 1, 1]} : vector<2x10x10x32xf32> to vector<2x8x8x32xf32>
    %40 = vector.shape_cast %39 : vector<2x8x8x32xf32> to vector<128x32xf32>
    %41 = vector.extract_strided_slice %26 {offsets = [0, 2, 1, 0], sizes = [2, 8, 8, 32], strides = [1, 1, 1, 1]} : vector<2x10x10x32xf32> to vector<2x8x8x32xf32>
    %42 = vector.shape_cast %41 : vector<2x8x8x32xf32> to vector<128x32xf32>
    %43 = vector.extract_strided_slice %26 {offsets = [0, 2, 2, 0], sizes = [2, 8, 8, 32], strides = [1, 1, 1, 1]} : vector<2x10x10x32xf32> to vector<2x8x8x32xf32>
    %44 = vector.shape_cast %43 : vector<2x8x8x32xf32> to vector<128x32xf32>
    %45 = tpu.concatenate %28, %30, %32, %34, %36, %38, %40, %42, %44 in 1 : vector<128x32xf32>, vector<128x32xf32>, vector<128x32xf32>, vector<128x32xf32>, vector<128x32xf32>, vector<128x32xf32>, vector<128x32xf32>, vector<128x32xf32>, vector<128x32xf32> -> vector<128x288xf32>
    %46 = arith.truncf %45 : vector<128x288xf32> to vector<128x288xbf16>
    %c0_20 = arith.constant 0 : index
    %c0_21 = arith.constant 0 : index
    %47 = vector.load %arg5[%c0_20, %c0_21] : memref<288x64xbf16, #tpu.memory_space<vmem>>, vector<288x64xbf16>
    %cst_22 = arith.constant dense<0.000000e+00> : vector<128x64xf32>
    %48 = tpu.matmul %46, %47, %cst_22 {dimension_numbers = #tpu.dot_dimension_numbers<[1], [0], [0], [1], [0, 0, 1, 1], [], []>} : vector<128x288xbf16>, vector<288x64xbf16>, vector<128x64xf32> -> vector<128x64xf32>
    %c0_23 = arith.constant 0 : index
    %c0_24 = arith.constant 0 : index
    %49 = vector.load %arg6[%c0_23, %c0_24] : memref<1x64xf32, #tpu.memory_space<vmem>>, vector<1x64xf32>
    %50 = vector.broadcast %49 : vector<1x64xf32> to vector<128x64xf32>
    %51 = arith.mulf %48, %50 : vector<128x64xf32>
    %c0_25 = arith.constant 0 : index
    %c0_26 = arith.constant 0 : index
    %52 = vector.load %arg7[%c0_25, %c0_26] : memref<1x64xf32, #tpu.memory_space<vmem>>, vector<1x64xf32>
    %53 = vector.broadcast %52 : vector<1x64xf32> to vector<128x64xf32>
    %54 = arith.addf %51, %53 : vector<128x64xf32>
    %cst_27 = arith.constant 0.000000e+00 : f32
    %55 = vector.broadcast %cst_27 : f32 to vector<128x64xf32>
    %56 = arith.maximumf %54, %55 : vector<128x64xf32>
    %57 = vector.shape_cast %56 : vector<128x64xf32> to vector<64x2x64xf32>
    %58 = vector.extract_strided_slice %57 {offsets = [0, 0, 0], sizes = [64, 1, 64], strides = [1, 1, 1]} : vector<64x2x64xf32> to vector<64x1x64xf32>
    %59 = vector.shape_cast %58 : vector<64x1x64xf32> to vector<64x64xf32>
    %60 = vector.extract_strided_slice %57 {offsets = [0, 1, 0], sizes = [64, 1, 64], strides = [1, 1, 1]} : vector<64x2x64xf32> to vector<64x1x64xf32>
    %61 = vector.shape_cast %60 : vector<64x1x64xf32> to vector<64x64xf32>
    %62 = arith.maximumf %59, %61 : vector<64x64xf32>
    %63 = vector.shape_cast %62 : vector<64x64xf32> to vector<2x4x2x4x64xf32>
    %64 = vector.extract_strided_slice %63 {offsets = [0, 0, 0, 0, 0], sizes = [2, 4, 1, 4, 64], strides = [1, 1, 1, 1, 1]} : vector<2x4x2x4x64xf32> to vector<2x4x1x4x64xf32>
    %65 = vector.shape_cast %64 : vector<2x4x1x4x64xf32> to vector<2x4x4x64xf32>
    %66 = vector.extract_strided_slice %63 {offsets = [0, 0, 1, 0, 0], sizes = [2, 4, 1, 4, 64], strides = [1, 1, 1, 1, 1]} : vector<2x4x2x4x64xf32> to vector<2x4x1x4x64xf32>
    %67 = vector.shape_cast %66 : vector<2x4x1x4x64xf32> to vector<2x4x4x64xf32>
    %68 = arith.maximumf %65, %67 : vector<2x4x4x64xf32>
    %cst_28 = arith.constant 0.000000e+00 : f32
    %69 = vector.broadcast %cst_28 : f32 to vector<2x6x6x64xf32>
    %c0_29 = arith.constant 0 : index
    %c0_30 = arith.constant 0 : index
    %c0_31 = arith.constant 0 : index
    %c0_32 = arith.constant 0 : index
    %70 = vector.load %arg20[%c0_29, %c0_30, %c0_31, %c0_32] : memref<2x6x6x64xf32, #tpu.memory_space<vmem>>, vector<2x6x6x64xf32>
    tpu.vector_store %arg20[%c0_29, %c0_30, %c0_31, %c0_32], %69 {strides = array<i32>} : memref<2x6x6x64xf32, #tpu.memory_space<vmem>>, vector<2x6x6x64xf32>,
    %c0_33 = arith.constant 0 : index
    %c1_34 = arith.constant 1 : index
    %c1_35 = arith.constant 1 : index
    %c0_36 = arith.constant 0 : index
    %71 = vector.load %arg20[%c0_33, %c1_34, %c1_35, %c0_36] : memref<2x6x6x64xf32, #tpu.memory_space<vmem>>, vector<2x4x4x64xf32>
    tpu.vector_store %arg20[%c0_33, %c1_34, %c1_35, %c0_36], %68 {strides = array<i32>} : memref<2x6x6x64xf32, #tpu.memory_space<vmem>>, vector<2x4x4x64xf32>,
    %c0_37 = arith.constant 0 : index
    %c0_38 = arith.constant 0 : index
    %c0_39 = arith.constant 0 : index
    %c0_40 = arith.constant 0 : index
    %72 = vector.load %arg20[%c0_37, %c0_38, %c0_39, %c0_40] : memref<2x6x6x64xf32, #tpu.memory_space<vmem>>, vector<2x6x6x64xf32>
    %73 = vector.extract_strided_slice %72 {offsets = [0, 0, 0, 0], sizes = [2, 4, 4, 64], strides = [1, 1, 1, 1]} : vector<2x6x6x64xf32> to vector<2x4x4x64xf32>
    %74 = vector.shape_cast %73 : vector<2x4x4x64xf32> to vector<32x64xf32>
    %75 = vector.extract_strided_slice %72 {offsets = [0, 0, 1, 0], sizes = [2, 4, 4, 64], strides = [1, 1, 1, 1]} : vector<2x6x6x64xf32> to vector<2x4x4x64xf32>
    %76 = vector.shape_cast %75 : vector<2x4x4x64xf32> to vector<32x64xf32>
    %77 = vector.extract_strided_slice %72 {offsets = [0, 0, 2, 0], sizes = [2, 4, 4, 64], strides = [1, 1, 1, 1]} : vector<2x6x6x64xf32> to vector<2x4x4x64xf32>
    %78 = vector.shape_cast %77 : vector<2x4x4x64xf32> to vector<32x64xf32>
    %79 = vector.extract_strided_slice %72 {offsets = [0, 1, 0, 0], sizes = [2, 4, 4, 64], strides = [1, 1, 1, 1]} : vector<2x6x6x64xf32> to vector<2x4x4x64xf32>
    %80 = vector.shape_cast %79 : vector<2x4x4x64xf32> to vector<32x64xf32>
    %81 = vector.extract_strided_slice %72 {offsets = [0, 1, 1, 0], sizes = [2, 4, 4, 64], strides = [1, 1, 1, 1]} : vector<2x6x6x64xf32> to vector<2x4x4x64xf32>
    %82 = vector.shape_cast %81 : vector<2x4x4x64xf32> to vector<32x64xf32>
    %83 = vector.extract_strided_slice %72 {offsets = [0, 1, 2, 0], sizes = [2, 4, 4, 64], strides = [1, 1, 1, 1]} : vector<2x6x6x64xf32> to vector<2x4x4x64xf32>
    %84 = vector.shape_cast %83 : vector<2x4x4x64xf32> to vector<32x64xf32>
    %85 = vector.extract_strided_slice %72 {offsets = [0, 2, 0, 0], sizes = [2, 4, 4, 64], strides = [1, 1, 1, 1]} : vector<2x6x6x64xf32> to vector<2x4x4x64xf32>
    %86 = vector.shape_cast %85 : vector<2x4x4x64xf32> to vector<32x64xf32>
    %87 = vector.extract_strided_slice %72 {offsets = [0, 2, 1, 0], sizes = [2, 4, 4, 64], strides = [1, 1, 1, 1]} : vector<2x6x6x64xf32> to vector<2x4x4x64xf32>
    %88 = vector.shape_cast %87 : vector<2x4x4x64xf32> to vector<32x64xf32>
    %89 = vector.extract_strided_slice %72 {offsets = [0, 2, 2, 0], sizes = [2, 4, 4, 64], strides = [1, 1, 1, 1]} : vector<2x6x6x64xf32> to vector<2x4x4x64xf32>
    %90 = vector.shape_cast %89 : vector<2x4x4x64xf32> to vector<32x64xf32>
    %91 = tpu.concatenate %74, %76, %78, %80, %82, %84, %86, %88, %90 in 1 : vector<32x64xf32>, vector<32x64xf32>, vector<32x64xf32>, vector<32x64xf32>, vector<32x64xf32>, vector<32x64xf32>, vector<32x64xf32>, vector<32x64xf32>, vector<32x64xf32> -> vector<32x576xf32>
    %92 = arith.truncf %91 : vector<32x576xf32> to vector<32x576xbf16>
    %c0_41 = arith.constant 0 : index
    %c0_42 = arith.constant 0 : index
    %93 = vector.load %arg8[%c0_41, %c0_42] : memref<576x128xbf16, #tpu.memory_space<vmem>>, vector<576x128xbf16>
    %cst_43 = arith.constant dense<0.000000e+00> : vector<32x128xf32>
    %94 = tpu.matmul %92, %93, %cst_43 {dimension_numbers = #tpu.dot_dimension_numbers<[1], [0], [0], [1], [0, 0, 1, 1], [], []>} : vector<32x576xbf16>, vector<576x128xbf16>, vector<32x128xf32> -> vector<32x128xf32>
    %c0_44 = arith.constant 0 : index
    %c0_45 = arith.constant 0 : index
    %95 = vector.load %arg9[%c0_44, %c0_45] : memref<1x128xf32, #tpu.memory_space<vmem>>, vector<1x128xf32>
    %96 = vector.broadcast %95 : vector<1x128xf32> to vector<32x128xf32>
    %97 = arith.mulf %94, %96 : vector<32x128xf32>
    %c0_46 = arith.constant 0 : index
    %c0_47 = arith.constant 0 : index
    %98 = vector.load %arg10[%c0_46, %c0_47] : memref<1x128xf32, #tpu.memory_space<vmem>>, vector<1x128xf32>
    %99 = vector.broadcast %98 : vector<1x128xf32> to vector<32x128xf32>
    %100 = arith.addf %97, %99 : vector<32x128xf32>
    %cst_48 = arith.constant 0.000000e+00 : f32
    %101 = vector.broadcast %cst_48 : f32 to vector<32x128xf32>
    %102 = arith.maximumf %100, %101 : vector<32x128xf32>
    %103 = vector.shape_cast %102 : vector<32x128xf32> to vector<16x2x128xf32>
    %104 = vector.extract_strided_slice %103 {offsets = [0, 0, 0], sizes = [16, 1, 128], strides = [1, 1, 1]} : vector<16x2x128xf32> to vector<16x1x128xf32>
    %105 = vector.shape_cast %104 : vector<16x1x128xf32> to vector<16x128xf32>
    %106 = vector.extract_strided_slice %103 {offsets = [0, 1, 0], sizes = [16, 1, 128], strides = [1, 1, 1]} : vector<16x2x128xf32> to vector<16x1x128xf32>
    %107 = vector.shape_cast %106 : vector<16x1x128xf32> to vector<16x128xf32>
    %108 = arith.maximumf %105, %107 : vector<16x128xf32>
    %109 = vector.shape_cast %108 : vector<16x128xf32> to vector<2x2x2x2x128xf32>
    %110 = vector.extract_strided_slice %109 {offsets = [0, 0, 0, 0, 0], sizes = [2, 2, 1, 2, 128], strides = [1, 1, 1, 1, 1]} : vector<2x2x2x2x128xf32> to vector<2x2x1x2x128xf32>
    %111 = vector.shape_cast %110 : vector<2x2x1x2x128xf32> to vector<2x2x2x128xf32>
    %112 = vector.extract_strided_slice %109 {offsets = [0, 0, 1, 0, 0], sizes = [2, 2, 1, 2, 128], strides = [1, 1, 1, 1, 1]} : vector<2x2x2x2x128xf32> to vector<2x2x1x2x128xf32>
    %113 = vector.shape_cast %112 : vector<2x2x1x2x128xf32> to vector<2x2x2x128xf32>
    %114 = arith.maximumf %111, %113 : vector<2x2x2x128xf32>
    %cst_49 = arith.constant 0.000000e+00 : f32
    %115 = vector.broadcast %cst_49 : f32 to vector<2x4x4x128xf32>
    %c0_50 = arith.constant 0 : index
    %c0_51 = arith.constant 0 : index
    %c0_52 = arith.constant 0 : index
    %c0_53 = arith.constant 0 : index
    %116 = vector.load %arg21[%c0_50, %c0_51, %c0_52, %c0_53] : memref<2x4x4x128xf32, #tpu.memory_space<vmem>>, vector<2x4x4x128xf32>
    tpu.vector_store %arg21[%c0_50, %c0_51, %c0_52, %c0_53], %115 {strides = array<i32>} : memref<2x4x4x128xf32, #tpu.memory_space<vmem>>, vector<2x4x4x128xf32>,
    %c0_54 = arith.constant 0 : index
    %c1_55 = arith.constant 1 : index
    %c1_56 = arith.constant 1 : index
    %c0_57 = arith.constant 0 : index
    %117 = vector.load %arg21[%c0_54, %c1_55, %c1_56, %c0_57] : memref<2x4x4x128xf32, #tpu.memory_space<vmem>>, vector<2x2x2x128xf32>
    tpu.vector_store %arg21[%c0_54, %c1_55, %c1_56, %c0_57], %114 {strides = array<i32>} : memref<2x4x4x128xf32, #tpu.memory_space<vmem>>, vector<2x2x2x128xf32>,
    %c0_58 = arith.constant 0 : index
    %c0_59 = arith.constant 0 : index
    %c0_60 = arith.constant 0 : index
    %c0_61 = arith.constant 0 : index
    %118 = vector.load %arg21[%c0_58, %c0_59, %c0_60, %c0_61] : memref<2x4x4x128xf32, #tpu.memory_space<vmem>>, vector<2x4x4x128xf32>
    %119 = vector.extract_strided_slice %118 {offsets = [0, 0, 0, 0], sizes = [2, 2, 2, 128], strides = [1, 1, 1, 1]} : vector<2x4x4x128xf32> to vector<2x2x2x128xf32>
    %120 = vector.shape_cast %119 : vector<2x2x2x128xf32> to vector<8x128xf32>
    %121 = vector.extract_strided_slice %118 {offsets = [0, 0, 1, 0], sizes = [2, 2, 2, 128], strides = [1, 1, 1, 1]} : vector<2x4x4x128xf32> to vector<2x2x2x128xf32>
    %122 = vector.shape_cast %121 : vector<2x2x2x128xf32> to vector<8x128xf32>
    %123 = vector.extract_strided_slice %118 {offsets = [0, 0, 2, 0], sizes = [2, 2, 2, 128], strides = [1, 1, 1, 1]} : vector<2x4x4x128xf32> to vector<2x2x2x128xf32>
    %124 = vector.shape_cast %123 : vector<2x2x2x128xf32> to vector<8x128xf32>
    %125 = vector.extract_strided_slice %118 {offsets = [0, 1, 0, 0], sizes = [2, 2, 2, 128], strides = [1, 1, 1, 1]} : vector<2x4x4x128xf32> to vector<2x2x2x128xf32>
    %126 = vector.shape_cast %125 : vector<2x2x2x128xf32> to vector<8x128xf32>
    %127 = vector.extract_strided_slice %118 {offsets = [0, 1, 1, 0], sizes = [2, 2, 2, 128], strides = [1, 1, 1, 1]} : vector<2x4x4x128xf32> to vector<2x2x2x128xf32>
    %128 = vector.shape_cast %127 : vector<2x2x2x128xf32> to vector<8x128xf32>
    %129 = vector.extract_strided_slice %118 {offsets = [0, 1, 2, 0], sizes = [2, 2, 2, 128], strides = [1, 1, 1, 1]} : vector<2x4x4x128xf32> to vector<2x2x2x128xf32>
    %130 = vector.shape_cast %129 : vector<2x2x2x128xf32> to vector<8x128xf32>
    %131 = vector.extract_strided_slice %118 {offsets = [0, 2, 0, 0], sizes = [2, 2, 2, 128], strides = [1, 1, 1, 1]} : vector<2x4x4x128xf32> to vector<2x2x2x128xf32>
    %132 = vector.shape_cast %131 : vector<2x2x2x128xf32> to vector<8x128xf32>
    %133 = vector.extract_strided_slice %118 {offsets = [0, 2, 1, 0], sizes = [2, 2, 2, 128], strides = [1, 1, 1, 1]} : vector<2x4x4x128xf32> to vector<2x2x2x128xf32>
    %134 = vector.shape_cast %133 : vector<2x2x2x128xf32> to vector<8x128xf32>
    %135 = vector.extract_strided_slice %118 {offsets = [0, 2, 2, 0], sizes = [2, 2, 2, 128], strides = [1, 1, 1, 1]} : vector<2x4x4x128xf32> to vector<2x2x2x128xf32>
    %136 = vector.shape_cast %135 : vector<2x2x2x128xf32> to vector<8x128xf32>
    %137 = tpu.concatenate %120, %122, %124, %126, %128, %130, %132, %134, %136 in 1 : vector<8x128xf32>, vector<8x128xf32>, vector<8x128xf32>, vector<8x128xf32>, vector<8x128xf32>, vector<8x128xf32>, vector<8x128xf32>, vector<8x128xf32>, vector<8x128xf32> -> vector<8x1152xf32>
    %138 = arith.truncf %137 : vector<8x1152xf32> to vector<8x1152xbf16>
    %c0_62 = arith.constant 0 : index
    %c0_63 = arith.constant 0 : index
    %139 = vector.load %arg11[%c0_62, %c0_63] : memref<1152x256xbf16, #tpu.memory_space<vmem>>, vector<1152x256xbf16>
    %cst_64 = arith.constant dense<0.000000e+00> : vector<8x256xf32>
    %140 = tpu.matmul %138, %139, %cst_64 {dimension_numbers = #tpu.dot_dimension_numbers<[1], [0], [0], [1], [0, 0, 1, 1], [], []>} : vector<8x1152xbf16>, vector<1152x256xbf16>, vector<8x256xf32> -> vector<8x256xf32>
    %c0_65 = arith.constant 0 : index
    %c0_66 = arith.constant 0 : index
    %141 = vector.load %arg12[%c0_65, %c0_66] : memref<1x256xf32, #tpu.memory_space<vmem>>, vector<1x256xf32>
    %142 = vector.broadcast %141 : vector<1x256xf32> to vector<8x256xf32>
    %143 = arith.mulf %140, %142 : vector<8x256xf32>
    %c0_67 = arith.constant 0 : index
    %c0_68 = arith.constant 0 : index
    %144 = vector.load %arg13[%c0_67, %c0_68] : memref<1x256xf32, #tpu.memory_space<vmem>>, vector<1x256xf32>
    %145 = vector.broadcast %144 : vector<1x256xf32> to vector<8x256xf32>
    %146 = arith.addf %143, %145 : vector<8x256xf32>
    %cst_69 = arith.constant 0.000000e+00 : f32
    %147 = vector.broadcast %cst_69 : f32 to vector<8x256xf32>
    %148 = arith.maximumf %146, %147 : vector<8x256xf32>
    %149 = vector.shape_cast %148 : vector<8x256xf32> to vector<2x4x256xf32>
    %150 = vector.extract_strided_slice %149 {offsets = [0, 0, 0], sizes = [2, 1, 256], strides = [1, 1, 1]} : vector<2x4x256xf32> to vector<2x1x256xf32>
    %151 = vector.shape_cast %150 : vector<2x1x256xf32> to vector<2x256xf32>
    %152 = vector.extract_strided_slice %149 {offsets = [0, 1, 0], sizes = [2, 1, 256], strides = [1, 1, 1]} : vector<2x4x256xf32> to vector<2x1x256xf32>
    %153 = vector.shape_cast %152 : vector<2x1x256xf32> to vector<2x256xf32>
    %154 = arith.maximumf %151, %153 : vector<2x256xf32>
    %155 = vector.extract_strided_slice %149 {offsets = [0, 2, 0], sizes = [2, 1, 256], strides = [1, 1, 1]} : vector<2x4x256xf32> to vector<2x1x256xf32>
    %156 = vector.shape_cast %155 : vector<2x1x256xf32> to vector<2x256xf32>
    %157 = vector.extract_strided_slice %149 {offsets = [0, 3, 0], sizes = [2, 1, 256], strides = [1, 1, 1]} : vector<2x4x256xf32> to vector<2x1x256xf32>
    %158 = vector.shape_cast %157 : vector<2x1x256xf32> to vector<2x256xf32>
    %159 = arith.maximumf %156, %158 : vector<2x256xf32>
    %160 = arith.maximumf %154, %159 : vector<2x256xf32>
    %161 = vector.shape_cast %160 : vector<2x256xf32> to vector<2x1x1x256xf32>
    %162 = vector.shape_cast %161 : vector<2x1x1x256xf32> to vector<2x256xf32>
    %163 = arith.truncf %162 : vector<2x256xf32> to vector<2x256xbf16>
    %c0_70 = arith.constant 0 : index
    %c0_71 = arith.constant 0 : index
    %164 = vector.load %arg14[%c0_70, %c0_71] : memref<256x512xbf16, #tpu.memory_space<vmem>>, vector<256x512xbf16>
    %cst_72 = arith.constant dense<0.000000e+00> : vector<2x512xf32>
    %165 = tpu.matmul %163, %164, %cst_72 {dimension_numbers = #tpu.dot_dimension_numbers<[1], [0], [0], [1], [0, 0, 1, 1], [], []>} : vector<2x256xbf16>, vector<256x512xbf16>, vector<2x512xf32> -> vector<2x512xf32>
    %c0_73 = arith.constant 0 : index
    %c0_74 = arith.constant 0 : index
    %166 = vector.load %arg15[%c0_73, %c0_74] : memref<1x512xf32, #tpu.memory_space<vmem>>, vector<1x512xf32>
    %167 = vector.broadcast %166 : vector<1x512xf32> to vector<2x512xf32>
    %168 = arith.addf %165, %167 : vector<2x512xf32>
    %cst_75 = arith.constant 0.000000e+00 : f32
    %169 = vector.broadcast %cst_75 : f32 to vector<2x512xf32>
    %170 = arith.maximumf %168, %169 : vector<2x512xf32>
    %171 = arith.truncf %170 : vector<2x512xf32> to vector<2x512xbf16>
    %c0_76 = arith.constant 0 : index
    %c0_77 = arith.constant 0 : index
    %172 = vector.load %arg16[%c0_76, %c0_77] : memref<512x1xbf16, #tpu.memory_space<vmem>>, vector<512x1xbf16>
    %cst_78 = arith.constant dense<0.000000e+00> : vector<2x1xf32>
    %173 = tpu.matmul %171, %172, %cst_78 {dimension_numbers = #tpu.dot_dimension_numbers<[1], [0], [0], [1], [0, 0, 1, 1], [], []>} : vector<2x512xbf16>, vector<512x1xbf16>, vector<2x1xf32> -> vector<2x1xf32>
    %c0_79 = arith.constant 0 : index
    %c0_80 = arith.constant 0 : index
    %174 = vector.load %arg17[%c0_79, %c0_80] : memref<1x1xf32, #tpu.memory_space<vmem>>, vector<1x1xf32>
    %175 = vector.broadcast %174 : vector<1x1xf32> to vector<2x1xf32>
    %176 = arith.addf %173, %175 : vector<2x1xf32>
    %cst_81 = arith.constant 0.000000e+00 : f32
    %177 = vector.broadcast %cst_81 : f32 to vector<2x1xf32>
    %178 = arith.subf %177, %176 : vector<2x1xf32>
    %179 = math.exp %178 : vector<2x1xf32>
    %cst_82 = arith.constant 1.000000e+00 : f32
    %180 = vector.broadcast %cst_82 : f32 to vector<2x1xf32>
    %181 = arith.addf %180, %179 : vector<2x1xf32>
    %cst_83 = arith.constant 1.000000e+00 : f32
    %182 = vector.broadcast %cst_83 : f32 to vector<2x1xf32>
    %183 = arith.divf %182, %181 : vector<2x1xf32>
    %c0_84 = arith.constant 0 : index
    %c0_85 = arith.constant 0 : index
    %184 = vector.load %arg18[%c0_84, %c0_85] : memref<2x1xf32, #tpu.memory_space<vmem>>, vector<2x1xf32>
    tpu.vector_store %arg18[%c0_84, %c0_85], %183 {strides = array<i32>} : memref<2x1xf32, #tpu.memory_space<vmem>>, vector<2x1xf32>,
    return
  }
  func.func @transform_0(%arg0: i32) -> (i32, i32) {
    %c0_i32 = arith.constant 0 : i32
    %c0_i32_0 = arith.constant 0 : i32
    return %arg0, %c0_i32 : i32, i32
  }
  func.func @transform_1(%arg0: i32) -> (i32, i32) {
    %c0_i32 = arith.constant 0 : i32
    %c0_i32_0 = arith.constant 0 : i32
    %c0_i32_1 = arith.constant 0 : i32
    return %c0_i32, %c0_i32_0 : i32, i32
  }
  func.func @transform_2(%arg0: i32) -> (i32, i32) {
    %c0_i32 = arith.constant 0 : i32
    %c0_i32_0 = arith.constant 0 : i32
    %c0_i32_1 = arith.constant 0 : i32
    return %c0_i32, %c0_i32_0 : i32, i32
  }
  func.func @transform_3(%arg0: i32) -> (i32, i32) {
    %c0_i32 = arith.constant 0 : i32
    %c0_i32_0 = arith.constant 0 : i32
    %c0_i32_1 = arith.constant 0 : i32
    return %c0_i32, %c0_i32_0 : i32, i32
  }
  func.func @transform_4(%arg0: i32) -> (i32, i32) {
    %c0_i32 = arith.constant 0 : i32
    %c0_i32_0 = arith.constant 0 : i32
    %c0_i32_1 = arith.constant 0 : i32
    return %c0_i32, %c0_i32_0 : i32, i32
  }
  func.func @transform_5(%arg0: i32) -> (i32, i32) {
    %c0_i32 = arith.constant 0 : i32
    %c0_i32_0 = arith.constant 0 : i32
    %c0_i32_1 = arith.constant 0 : i32
    return %c0_i32, %c0_i32_0 : i32, i32
  }
  func.func @transform_6(%arg0: i32) -> (i32, i32) {
    %c0_i32 = arith.constant 0 : i32
    %c0_i32_0 = arith.constant 0 : i32
    %c0_i32_1 = arith.constant 0 : i32
    return %c0_i32, %c0_i32_0 : i32, i32
  }
  func.func @transform_7(%arg0: i32) -> (i32, i32) {
    %c0_i32 = arith.constant 0 : i32
    %c0_i32_0 = arith.constant 0 : i32
    %c0_i32_1 = arith.constant 0 : i32
    return %c0_i32, %c0_i32_0 : i32, i32
  }
  func.func @transform_8(%arg0: i32) -> (i32, i32) {
    %c0_i32 = arith.constant 0 : i32
    %c0_i32_0 = arith.constant 0 : i32
    %c0_i32_1 = arith.constant 0 : i32
    return %c0_i32, %c0_i32_0 : i32, i32
  }
  func.func @transform_9(%arg0: i32) -> (i32, i32) {
    %c0_i32 = arith.constant 0 : i32
    %c0_i32_0 = arith.constant 0 : i32
    %c0_i32_1 = arith.constant 0 : i32
    return %c0_i32, %c0_i32_0 : i32, i32
  }
  func.func @transform_10(%arg0: i32) -> (i32, i32) {
    %c0_i32 = arith.constant 0 : i32
    %c0_i32_0 = arith.constant 0 : i32
    %c0_i32_1 = arith.constant 0 : i32
    return %c0_i32, %c0_i32_0 : i32, i32
  }
  func.func @transform_11(%arg0: i32) -> (i32, i32) {
    %c0_i32 = arith.constant 0 : i32
    %c0_i32_0 = arith.constant 0 : i32
    %c0_i32_1 = arith.constant 0 : i32
    return %c0_i32, %c0_i32_0 : i32, i32
  }
  func.func @transform_12(%arg0: i32) -> (i32, i32) {
    %c0_i32 = arith.constant 0 : i32
    %c0_i32_0 = arith.constant 0 : i32
    %c0_i32_1 = arith.constant 0 : i32
    return %c0_i32, %c0_i32_0 : i32, i32
  }
  func.func @transform_13(%arg0: i32) -> (i32, i32) {
    %c0_i32 = arith.constant 0 : i32
    %c0_i32_0 = arith.constant 0 : i32
    %c0_i32_1 = arith.constant 0 : i32
    return %c0_i32, %c0_i32_0 : i32, i32
  }
  func.func @transform_14(%arg0: i32) -> (i32, i32) {
    %c0_i32 = arith.constant 0 : i32
    %c0_i32_0 = arith.constant 0 : i32
    %c0_i32_1 = arith.constant 0 : i32
    return %c0_i32, %c0_i32_0 : i32, i32
  }
  func.func @transform_15(%arg0: i32) -> (i32, i32) {
    %c0_i32 = arith.constant 0 : i32
    %c0_i32_0 = arith.constant 0 : i32
    %c0_i32_1 = arith.constant 0 : i32
    return %c0_i32, %c0_i32_0 : i32, i32
  }
  func.func @transform_16(%arg0: i32) -> (i32, i32) {
    %c0_i32 = arith.constant 0 : i32
    %c0_i32_0 = arith.constant 0 : i32
    %c0_i32_1 = arith.constant 0 : i32
    return %c0_i32, %c0_i32_0 : i32, i32
  }
  func.func @transform_17(%arg0: i32) -> (i32, i32) {
    %c0_i32 = arith.constant 0 : i32
    %c0_i32_0 = arith.constant 0 : i32
    return %arg0, %c0_i32 : i32, i32
  }
}

</mosaic_0001>

<llo_original>
// kernel: enhanced_cnn_forward.1
$region0: #{enhanced_cnn_forward.1}
  #allocation0 [shape = 'u32[]', space=smem, size = 0x4, offset = 0x4, fixed_abs, tag = 'smem constant byte address 0x4 - core index']
  #allocation1 [shape = 'u32[144,128]{1,0:T(1,128)}', space=vmem, size = 0x12000, scoped, tag = 'internal scratch']
  #allocation2 [shape = 'f32[2,10,10,32]{3,2,1,0:T(8,128)}', space=vmem, size = 0x28000, scoped, tag = 'scratch operand']
  #allocation3 [shape = 'f32[2,6,6,64]{3,2,1,0:T(8,128)}', space=vmem, size = 0xc000, scoped, tag = 'scratch operand']
  #allocation4 [shape = 'f32[2,4,4,128]{3,2,1,0:T(4,128)}', space=vmem, size = 0x4000, scoped, tag = 'scratch operand']
  #allocation5 [shape = 'f32[1,1]{1,0:T(1,128)S(1)}', space=vmem, size = 0x200, scoped, tag = 'scoped memory for enhanced_cnn_forward.1']
  %s0 = inlined_call_operand.vmem [shape: bf16[512,9], index: 0, kind: input, shape index: {}]
  %s1 = inlined_call_operand.vmem [shape: bf16[9,32], index: 1, kind: input, shape index: {}]
  %s2 = inlined_call_operand.hbm [shape: f32[1,32], index: 2, kind: input, shape index: {}]
  %s3 = inlined_call_operand.hbm [shape: f32[1,32], index: 3, kind: input, shape index: {}]
  %s4 = inlined_call_operand.vmem [shape: bf16[288,64], index: 4, kind: input, shape index: {}]
  %s5 = inlined_call_operand.hbm [shape: f32[1,64], index: 5, kind: input, shape index: {}]
  %s6 = inlined_call_operand.hbm [shape: f32[1,64], index: 6, kind: input, shape index: {}]
  %s7 = inlined_call_operand.vmem [shape: bf16[576,128], index: 7, kind: input, shape index: {}]
  %s8 = inlined_call_operand.hbm [shape: f32[1,128], index: 8, kind: input, shape index: {}]
  %s9 = inlined_call_operand.hbm [shape: f32[1,128], index: 9, kind: input, shape index: {}]
  %s10 = inlined_call_operand.vmem [shape: bf16[1152,256], index: 10, kind: input, shape index: {}]
  %s11 = inlined_call_operand.vmem [shape: f32[1,256], index: 11, kind: input, shape index: {}]
  %s12 = inlined_call_operand.hbm [shape: f32[1,256], index: 12, kind: input, shape index: {}]
  %s13 = inlined_call_operand.hbm [shape: bf16[256,512], index: 13, kind: input, shape index: {}]
  %s14 = inlined_call_operand.vmem [shape: f32[1,512], index: 14, kind: input, shape index: {}]
  %s15 = inlined_call_operand.vmem [shape: bf16[512,1], index: 15, kind: input, shape index: {}]
  %s16 = inlined_call_operand.<no memory space> [shape: f32[1,1], index: 16, kind: input, shape index: {}]
  %s17 = inlined_call_operand.vmem [shape: f32[2,1], index: 17, kind: output, shape index: {}]
  %s18 = sld [smem:[#allocation0]]
  $region110: #{enhanced_cnn_forward.1} parent=0
    _
  %s20 = ssub.s32 1, %s18
  %s21 = scalar_select 0, %s20, %s18
  %v22 = vstv %s16
  %23 = vst [vmem:[#allocation5] sm:$0x1] %v22
  $region1: #{enhanced_cnn_forward.1} parent=0
    #allocation6 [shape = 'u8[512]{0}', space=vmem, size = 0x400, scoped, tag = 'input window, operand 2, single buffered']
    #allocation7 [shape = 's32[1]{0}', space=sflag, size = 0x4, scoped, tag = 'scoped memory for enhanced_cnn_forward.1']
    #allocation8 [shape = 'u8[512]{0}', space=vmem, size = 0x400, scoped, tag = 'input window, operand 3, single buffered']
    #allocation9 [shape = 's32[1]{0}', space=sflag, size = 0x4, scoped, tag = 'scoped memory for enhanced_cnn_forward.1']
    #allocation10 [shape = 'u8[512]{0}', space=vmem, size = 0x400, scoped, tag = 'input window, operand 5, single buffered']
    #allocation11 [shape = 'u8[512]{0}', space=vmem, size = 0x400, scoped, tag = 'input window, operand 6, single buffered']
    #allocation12 [shape = 's32[1]{0}', space=sflag, size = 0x4, scoped, tag = 'scoped memory for enhanced_cnn_forward.1']
    #allocation13 [shape = 'u8[512]{0}', space=vmem, size = 0x400, scoped, tag = 'input window, operand 8, single buffered']
    #allocation14 [shape = 'u8[512]{0}', space=vmem, size = 0x400, scoped, tag = 'input window, operand 9, single buffered']
    #allocation15 [shape = 's32[1]{0}', space=sflag, size = 0x4, scoped, tag = 'scoped memory for enhanced_cnn_forward.1']
    #allocation16 [shape = 'u8[1024]{0}', space=vmem, size = 0x400, scoped, tag = 'input window, operand 12, single buffered']
    #allocation17 [shape = 'u8[262144]{0}', space=vmem, size = 0x40000, scoped, tag = 'input window, operand 13, single buffered']
    #allocation18 [shape = 's32[1]{0}', space=sflag, size = 0x4, scoped, tag = 'scoped memory for enhanced_cnn_forward.1']
    %24 = vsyncpa [#allocation7], 0
    %25 = vsyncpa [#allocation9], 0
    %26 = vsyncpa [#allocation12], 0
    %27 = vsyncpa [#allocation15], 0
    %28 = vsyncpa [#allocation18], 0
    // Predicated region
    $region2: #{enhanced_cnn_forward.1} parent=1 // pred_check
      _
    $region3: #{enhanced_cnn_forward.1} parent=1 // pred_check_branch
      %30 = sbr.rel (0) target = $region5
    $region4: #{enhanced_cnn_forward.1} parent=1 // pred_region
      _
    $region5: #{enhanced_cnn_forward.1} parent=1 // pred_fallthru
      _
    // Predicated region
    $region6: #{enhanced_cnn_forward.1} parent=1 // pred_check
      _
    $region7: #{enhanced_cnn_forward.1} parent=1 // pred_check_branch
      %32 = sbr.rel (0) target = $region9
    $region8: #{enhanced_cnn_forward.1} parent=1 // pred_region
      _
    $region9: #{enhanced_cnn_forward.1} parent=1 // pred_fallthru
      _
    // Predicated region
    $region10: #{enhanced_cnn_forward.1} parent=1 // pred_check
      _
    $region11: #{enhanced_cnn_forward.1} parent=1 // pred_check_branch
      %34 = sbr.rel (0) target = $region13
    $region12: #{enhanced_cnn_forward.1} parent=1 // pred_region
      %s36 = ssub.s32 16, 16
      %37 = vsyncadd [#allocation7], %s36
      %s39 = sshll.u32 [#allocation6], 4
      %s40 = int_to_ptr.vmem [resolvable:$true] %s39
      %42 = dma.hbm_to_vmem [thread:$0]  %s2, 16, %s40, [#allocation7]
    $region13: #{enhanced_cnn_forward.1} parent=1 // pred_fallthru
      _
    // Predicated region
    $region14: #{enhanced_cnn_forward.1} parent=1 // pred_check
      _
    $region15: #{enhanced_cnn_forward.1} parent=1 // pred_check_branch
      %44 = sbr.rel (0) target = $region17
    $region16: #{enhanced_cnn_forward.1} parent=1 // pred_region
      %s46 = ssub.s32 16, 16
      %47 = vsyncadd [#allocation9], %s46
      %s49 = sshll.u32 [#allocation8], 4
      %s50 = int_to_ptr.vmem [resolvable:$true] %s49
      %52 = dma.hbm_to_vmem [thread:$0]  %s3, 16, %s50, [#allocation9]
    $region17: #{enhanced_cnn_forward.1} parent=1 // pred_fallthru
      _
    // Predicated region
    $region18: #{enhanced_cnn_forward.1} parent=1 // pred_check
      _
    $region19: #{enhanced_cnn_forward.1} parent=1 // pred_check_branch
      %54 = sbr.rel (0) target = $region21
    $region20: #{enhanced_cnn_forward.1} parent=1 // pred_region
      _
    $region21: #{enhanced_cnn_forward.1} parent=1 // pred_fallthru
      _
    // Predicated region
    $region22: #{enhanced_cnn_forward.1} parent=1 // pred_check
      _
    $region23: #{enhanced_cnn_forward.1} parent=1 // pred_check_branch
      %56 = sbr.rel (0) target = $region25
    $region24: #{enhanced_cnn_forward.1} parent=1 // pred_region
      %s58 = ssub.s32 16, 16
      %59 = vsyncadd [#allocation9], %s58
      %s61 = sshll.u32 [#allocation10], 4
      %s62 = int_to_ptr.vmem [resolvable:$true] %s61
      %64 = dma.hbm_to_vmem [thread:$0]  %s5, 16, %s62, [#allocation9]
    $region25: #{enhanced_cnn_forward.1} parent=1 // pred_fallthru
      _
    // Predicated region
    $region26: #{enhanced_cnn_forward.1} parent=1 // pred_check
      _
    $region27: #{enhanced_cnn_forward.1} parent=1 // pred_check_branch
      %66 = sbr.rel (0) target = $region29
    $region28: #{enhanced_cnn_forward.1} parent=1 // pred_region
      %s68 = ssub.s32 16, 16
      %69 = vsyncadd [#allocation12], %s68
      %s71 = sshll.u32 [#allocation11], 4
      %s72 = int_to_ptr.vmem [resolvable:$true] %s71
      %74 = dma.hbm_to_vmem [thread:$0]  %s6, 16, %s72, [#allocation12]
    $region29: #{enhanced_cnn_forward.1} parent=1 // pred_fallthru
      _
    // Predicated region
    $region30: #{enhanced_cnn_forward.1} parent=1 // pred_check
      _
    $region31: #{enhanced_cnn_forward.1} parent=1 // pred_check_branch
      %76 = sbr.rel (0) target = $region33
    $region32: #{enhanced_cnn_forward.1} parent=1 // pred_region
      _
    $region33: #{enhanced_cnn_forward.1} parent=1 // pred_fallthru
      _
    // Predicated region
    $region34: #{enhanced_cnn_forward.1} parent=1 // pred_check
      _
    $region35: #{enhanced_cnn_forward.1} parent=1 // pred_check_branch
      %78 = sbr.rel (0) target = $region37
    $region36: #{enhanced_cnn_forward.1} parent=1 // pred_region
      %s80 = ssub.s32 16, 16
      %81 = vsyncadd [#allocation12], %s80
      %s83 = sshll.u32 [#allocation13], 4
      %s84 = int_to_ptr.vmem [resolvable:$true] %s83
      %86 = dma.hbm_to_vmem [thread:$0]  %s8, 16, %s84, [#allocation12]
    $region37: #{enhanced_cnn_forward.1} parent=1 // pred_fallthru
      _
    // Predicated region
    $region38: #{enhanced_cnn_forward.1} parent=1 // pred_check
      _
    $region39: #{enhanced_cnn_forward.1} parent=1 // pred_check_branch
      %88 = sbr.rel (0) target = $region41
    $region40: #{enhanced_cnn_forward.1} parent=1 // pred_region
      %s90 = ssub.s32 16, 16
      %91 = vsyncadd [#allocation15], %s90
      %s93 = sshll.u32 [#allocation14], 4
      %s94 = int_to_ptr.vmem [resolvable:$true] %s93
      %96 = dma.hbm_to_vmem [thread:$0]  %s9, 16, %s94, [#allocation15]
    $region41: #{enhanced_cnn_forward.1} parent=1 // pred_fallthru
      _
    // Predicated region
    $region42: #{enhanced_cnn_forward.1} parent=1 // pred_check
      _
    $region43: #{enhanced_cnn_forward.1} parent=1 // pred_check_branch
      %98 = sbr.rel (0) target = $region45
    $region44: #{enhanced_cnn_forward.1} parent=1 // pred_region
      _
    $region45: #{enhanced_cnn_forward.1} parent=1 // pred_fallthru
      _
    // Predicated region
    $region46: #{enhanced_cnn_forward.1} parent=1 // pred_check
      _
    $region47: #{enhanced_cnn_forward.1} parent=1 // pred_check_branch
      %100 = sbr.rel (0) target = $region49
    $region48: #{enhanced_cnn_forward.1} parent=1 // pred_region
      _
    $region49: #{enhanced_cnn_forward.1} parent=1 // pred_fallthru
      _
    // Predicated region
    $region50: #{enhanced_cnn_forward.1} parent=1 // pred_check
      _
    $region51: #{enhanced_cnn_forward.1} parent=1 // pred_check_branch
      %102 = sbr.rel (0) target = $region53
    $region52: #{enhanced_cnn_forward.1} parent=1 // pred_region
      %s104 = ssub.s32 32, 32
      %105 = vsyncadd [#allocation15], %s104
      %s107 = sshll.u32 [#allocation16], 4
      %s108 = int_to_ptr.vmem [resolvable:$true] %s107
      %110 = dma.hbm_to_vmem [thread:$0]  %s12, 32, %s108, [#allocation15]
    $region53: #{enhanced_cnn_forward.1} parent=1 // pred_fallthru
      _
    // Predicated region
    $region54: #{enhanced_cnn_forward.1} parent=1 // pred_check
      _
    $region55: #{enhanced_cnn_forward.1} parent=1 // pred_check_branch
      %112 = sbr.rel (0) target = $region57
    $region56: #{enhanced_cnn_forward.1} parent=1 // pred_region
      %s114 = ssub.s32 8192, 8192
      %115 = vsyncadd [#allocation18], %s114
      %s116 = sshll.u32 [#allocation17], 4
      %s117 = int_to_ptr.vmem [resolvable:$true] %s116
      %122 = dma.hbm_to_vmem [thread:$0]  %s13, 8192, %s117, [#allocation18], 256, 256, 16
    $region57: #{enhanced_cnn_forward.1} parent=1 // pred_fallthru
      _
    // Predicated region
    $region58: #{enhanced_cnn_forward.1} parent=1 // pred_check
      _
    $region59: #{enhanced_cnn_forward.1} parent=1 // pred_check_branch
      %124 = sbr.rel (0) target = $region61
    $region60: #{enhanced_cnn_forward.1} parent=1 // pred_region
      _
    $region61: #{enhanced_cnn_forward.1} parent=1 // pred_fallthru
      _
    // Predicated region
    $region62: #{enhanced_cnn_forward.1} parent=1 // pred_check
      _
    $region63: #{enhanced_cnn_forward.1} parent=1 // pred_check_branch
      %126 = sbr.rel (0) target = $region65
    $region64: #{enhanced_cnn_forward.1} parent=1 // pred_region
      _
    $region65: #{enhanced_cnn_forward.1} parent=1 // pred_fallthru
      _
    // Predicated region
    $region66: #{enhanced_cnn_forward.1} parent=1 // pred_check
      _
    $region67: #{enhanced_cnn_forward.1} parent=1 // pred_check_branch
      %128 = sbr.rel (0) target = $region69
    $region68: #{enhanced_cnn_forward.1} parent=1 // pred_region
      _
    $region69: #{enhanced_cnn_forward.1} parent=1 // pred_fallthru
      _
    // Predicated region
    $region70: #{enhanced_cnn_forward.1} parent=1 // pred_check
      _
    $region71: #{enhanced_cnn_forward.1} parent=1 // pred_check_branch
      %130 = sbr.rel (0) target = $region73
    $region72: #{enhanced_cnn_forward.1} parent=1 // pred_region
      %131 = dma.done [#allocation7], 16
    $region73: #{enhanced_cnn_forward.1} parent=1 // pred_fallthru
      _
    // Predicated region
    $region74: #{enhanced_cnn_forward.1} parent=1 // pred_check
      _
    $region75: #{enhanced_cnn_forward.1} parent=1 // pred_check_branch
      %133 = sbr.rel (0) target = $region77
    $region76: #{enhanced_cnn_forward.1} parent=1 // pred_region
      %134 = dma.done [#allocation9], 16
    $region77: #{enhanced_cnn_forward.1} parent=1 // pred_fallthru
      _
    // Predicated region
    $region78: #{enhanced_cnn_forward.1} parent=1 // pred_check
      _
    $region79: #{enhanced_cnn_forward.1} parent=1 // pred_check_branch
      %136 = sbr.rel (0) target = $region81
    $region80: #{enhanced_cnn_forward.1} parent=1 // pred_region
      %137 = dma.done [#allocation9], 16
    $region81: #{enhanced_cnn_forward.1} parent=1 // pred_fallthru
      _
    // Predicated region
    $region82: #{enhanced_cnn_forward.1} parent=1 // pred_check
      _
    $region83: #{enhanced_cnn_forward.1} parent=1 // pred_check_branch
      %139 = sbr.rel (0) target = $region85
    $region84: #{enhanced_cnn_forward.1} parent=1 // pred_region
      %140 = dma.done [#allocation12], 16
    $region85: #{enhanced_cnn_forward.1} parent=1 // pred_fallthru
      _
    // Predicated region
    $region86: #{enhanced_cnn_forward.1} parent=1 // pred_check
      _
    $region87: #{enhanced_cnn_forward.1} parent=1 // pred_check_branch
      %142 = sbr.rel (0) target = $region89
    $region88: #{enhanced_cnn_forward.1} parent=1 // pred_region
      %143 = dma.done [#allocation12], 16
    $region89: #{enhanced_cnn_forward.1} parent=1 // pred_fallthru
      _
    // Predicated region
    $region90: #{enhanced_cnn_forward.1} parent=1 // pred_check
      _
    $region91: #{enhanced_cnn_forward.1} parent=1 // pred_check_branch
      %145 = sbr.rel (0) target = $region93
    $region92: #{enhanced_cnn_forward.1} parent=1 // pred_region
      %146 = dma.done [#allocation15], 16
    $region93: #{enhanced_cnn_forward.1} parent=1 // pred_fallthru
      _
    // Predicated region
    $region94: #{enhanced_cnn_forward.1} parent=1 // pred_check
      _
    $region95: #{enhanced_cnn_forward.1} parent=1 // pred_check_branch
      %148 = sbr.rel (0) target = $region97
    $region96: #{enhanced_cnn_forward.1} parent=1 // pred_region
      %149 = dma.done [#allocation15], 32
    $region97: #{enhanced_cnn_forward.1} parent=1 // pred_fallthru
      _
    // Predicated region
    $region98: #{enhanced_cnn_forward.1} parent=1 // pred_check
      _
    $region99: #{enhanced_cnn_forward.1} parent=1 // pred_check_branch
      %151 = sbr.rel (0) target = $region101
    $region100: #{enhanced_cnn_forward.1} parent=1 // pred_region
      %152 = dma.done [#allocation18], 8192
    $region101: #{enhanced_cnn_forward.1} parent=1 // pred_fallthru
      _
    %v154 = vld [vmem:[%s0] sm:$0xf]
    %v155 = vld [vmem:[%s0 + $0x4] sm:$0xf]
    %v156 = vld [vmem:[%s0 + $0x8] sm:$0xf]
    %v157 = vld [vmem:[%s0 + $0xc] sm:$0xf]
    %v158 = vld [vmem:[%s0 + $0x10] sm:$0xf]
    %v159 = vld [vmem:[%s0 + $0x14] sm:$0xf]
    %v160 = vld [vmem:[%s0 + $0x18] sm:$0xf]
    %v161 = vld [vmem:[%s0 + $0x1c] sm:$0xf]
    %v162 = vld [vmem:[%s0 + $0x20] sm:$0xf]
    %v163 = vld [vmem:[%s0 + $0x24] sm:$0xf]
    %v164 = vld [vmem:[%s0 + $0x28] sm:$0xf]
    %v165 = vld [vmem:[%s0 + $0x2c] sm:$0xf]
    %v166 = vld [vmem:[%s0 + $0x30] sm:$0xf]
    %v167 = vld [vmem:[%s0 + $0x34] sm:$0xf]
    %v168 = vld [vmem:[%s0 + $0x38] sm:$0xf]
    %v169 = vld [vmem:[%s0 + $0x3c] sm:$0xf]
    %v170 = vld [vmem:[%s0 + $0x40] sm:$0xf]
    %v171 = vld [vmem:[%s0 + $0x44] sm:$0xf]
    %v172 = vld [vmem:[%s0 + $0x48] sm:$0xf]
    %v173 = vld [vmem:[%s0 + $0x4c] sm:$0xf]
    %v174 = vld [vmem:[%s0 + $0x50] sm:$0xf]
    %v175 = vld [vmem:[%s0 + $0x54] sm:$0xf]
    %v176 = vld [vmem:[%s0 + $0x58] sm:$0xf]
    %v177 = vld [vmem:[%s0 + $0x5c] sm:$0xf]
    %v178 = vld [vmem:[%s0 + $0x60] sm:$0xf]
    %v179 = vld [vmem:[%s0 + $0x64] sm:$0xf]
    %v180 = vld [vmem:[%s0 + $0x68] sm:$0xf]
    %v181 = vld [vmem:[%s0 + $0x6c] sm:$0xf]
    %v182 = vld [vmem:[%s0 + $0x70] sm:$0xf]
    %v183 = vld [vmem:[%s0 + $0x74] sm:$0xf]
    %v184 = vld [vmem:[%s0 + $0x78] sm:$0xf]
    %v185 = vld [vmem:[%s0 + $0x7c] sm:$0xf]
    %v186 = vld [vmem:[%s0 + $0x80] sm:$0xf]
    %v187 = vld [vmem:[%s0 + $0x84] sm:$0xf]
    %v188 = vld [vmem:[%s0 + $0x88] sm:$0xf]
    %v189 = vld [vmem:[%s0 + $0x8c] sm:$0xf]
    %v190 = vld [vmem:[%s0 + $0x90] sm:$0xf]
    %v191 = vld [vmem:[%s0 + $0x94] sm:$0xf]
    %v192 = vld [vmem:[%s0 + $0x98] sm:$0xf]
    %v193 = vld [vmem:[%s0 + $0x9c] sm:$0xf]
    %v194 = vld [vmem:[%s0 + $0xa0] sm:$0xf]
    %v195 = vld [vmem:[%s0 + $0xa4] sm:$0xf]
    %v196 = vld [vmem:[%s0 + $0xa8] sm:$0xf]
    %v197 = vld [vmem:[%s0 + $0xac] sm:$0xf]
    %v198 = vld [vmem:[%s0 + $0xb0] sm:$0xf]
    %v199 = vld [vmem:[%s0 + $0xb4] sm:$0xf]
    %v200 = vld [vmem:[%s0 + $0xb8] sm:$0xf]
    %v201 = vld [vmem:[%s0 + $0xbc] sm:$0xf]
    %v202 = vld [vmem:[%s0 + $0xc0] sm:$0xf]
    %v203 = vld [vmem:[%s0 + $0xc4] sm:$0xf]
    %v204 = vld [vmem:[%s0 + $0xc8] sm:$0xf]
    %v205 = vld [vmem:[%s0 + $0xcc] sm:$0xf]
    %v206 = vld [vmem:[%s0 + $0xd0] sm:$0xf]
    %v207 = vld [vmem:[%s0 + $0xd4] sm:$0xf]
    %v208 = vld [vmem:[%s0 + $0xd8] sm:$0xf]
    %v209 = vld [vmem:[%s0 + $0xdc] sm:$0xf]
    %v210 = vld [vmem:[%s0 + $0xe0] sm:$0xf]
    %v211 = vld [vmem:[%s0 + $0xe4] sm:$0xf]
    %v212 = vld [vmem:[%s0 + $0xe8] sm:$0xf]
    %v213 = vld [vmem:[%s0 + $0xec] sm:$0xf]
    %v214 = vld [vmem:[%s0 + $0xf0] sm:$0xf]
    %v215 = vld [vmem:[%s0 + $0xf4] sm:$0xf]
    %v216 = vld [vmem:[%s0 + $0xf8] sm:$0xf]
    %v217 = vld [vmem:[%s0 + $0xfc] sm:$0xf]
    %v218 = vld [vmem:[%s1] sm:$0xf]
    %v219 = vld [vmem:[%s1 + $0x4] sm:$0x1]
    %v284 = vunpack.c.l.b16 %v154
    %v285 = vunpack.c.l.b16 %v155
    %v286 = vunpack.c.l.b16 %v156
    %v287 = vunpack.c.l.b16 %v157
    %v288 = vunpack.c.l.b16 %v158
    %v289 = vunpack.c.l.b16 %v159
    %v290 = vunpack.c.l.b16 %v160
    %v291 = vunpack.c.l.b16 %v161
    %v292 = vunpack.c.l.b16 %v162
    %v293 = vunpack.c.l.b16 %v163
    %v294 = vunpack.c.l.b16 %v164
    %v295 = vunpack.c.l.b16 %v165
    %v296 = vunpack.c.l.b16 %v166
    %v297 = vunpack.c.l.b16 %v167
    %v298 = vunpack.c.l.b16 %v168
    %v299 = vunpack.c.l.b16 %v169
    %v300 = vunpack.c.l.b16 %v170
    %v301 = vunpack.c.l.b16 %v171
    %v302 = vunpack.c.l.b16 %v172
    %v303 = vunpack.c.l.b16 %v173
    %v304 = vunpack.c.l.b16 %v174
    %v305 = vunpack.c.l.b16 %v175
    %v306 = vunpack.c.l.b16 %v176
    %v307 = vunpack.c.l.b16 %v177
    %v308 = vunpack.c.l.b16 %v178
    %v309 = vunpack.c.l.b16 %v179
    %v310 = vunpack.c.l.b16 %v180
    %v311 = vunpack.c.l.b16 %v181
    %v312 = vunpack.c.l.b16 %v182
    %v313 = vunpack.c.l.b16 %v183
    %v314 = vunpack.c.l.b16 %v184
    %v315 = vunpack.c.l.b16 %v185
    %v316 = vunpack.c.l.b16 %v186
    %v317 = vunpack.c.l.b16 %v187
    %v318 = vunpack.c.l.b16 %v188
    %v319 = vunpack.c.l.b16 %v189
    %v320 = vunpack.c.l.b16 %v190
    %v321 = vunpack.c.l.b16 %v191
    %v322 = vunpack.c.l.b16 %v192
    %v323 = vunpack.c.l.b16 %v193
    %v324 = vunpack.c.l.b16 %v194
    %v325 = vunpack.c.l.b16 %v195
    %v326 = vunpack.c.l.b16 %v196
    %v327 = vunpack.c.l.b16 %v197
    %v328 = vunpack.c.l.b16 %v198
    %v329 = vunpack.c.l.b16 %v199
    %v330 = vunpack.c.l.b16 %v200
    %v331 = vunpack.c.l.b16 %v201
    %v332 = vunpack.c.l.b16 %v202
    %v333 = vunpack.c.l.b16 %v203
    %v334 = vunpack.c.l.b16 %v204
    %v335 = vunpack.c.l.b16 %v205
    %v336 = vunpack.c.l.b16 %v206
    %v337 = vunpack.c.l.b16 %v207
    %v338 = vunpack.c.l.b16 %v208
    %v339 = vunpack.c.l.b16 %v209
    %v340 = vunpack.c.l.b16 %v210
    %v341 = vunpack.c.l.b16 %v211
    %v342 = vunpack.c.l.b16 %v212
    %v343 = vunpack.c.l.b16 %v213
    %v344 = vunpack.c.l.b16 %v214
    %v345 = vunpack.c.l.b16 %v215
    %v346 = vunpack.c.l.b16 %v216
    %v347 = vunpack.c.l.b16 %v217
    %v348 = vpack.c.b16 %v285, %v284
    %v349 = vpack.c.b16 %v287, %v286
    %v350 = vpack.c.b16 %v289, %v288
    %v351 = vpack.c.b16 %v291, %v290
    %v352 = vpack.c.b16 %v293, %v292
    %v353 = vpack.c.b16 %v295, %v294
    %v354 = vpack.c.b16 %v297, %v296
    %v355 = vpack.c.b16 %v299, %v298
    %v356 = vpack.c.b16 %v301, %v300
    %v357 = vpack.c.b16 %v303, %v302
    %v358 = vpack.c.b16 %v305, %v304
    %v359 = vpack.c.b16 %v307, %v306
    %v360 = vpack.c.b16 %v309, %v308
    %v361 = vpack.c.b16 %v311, %v310
    %v362 = vpack.c.b16 %v313, %v312
    %v363 = vpack.c.b16 %v315, %v314
    %v364 = vpack.c.b16 %v317, %v316
    %v365 = vpack.c.b16 %v319, %v318
    %v366 = vpack.c.b16 %v321, %v320
    %v367 = vpack.c.b16 %v323, %v322
    %v368 = vpack.c.b16 %v325, %v324
    %v369 = vpack.c.b16 %v327, %v326
    %v370 = vpack.c.b16 %v329, %v328
    %v371 = vpack.c.b16 %v331, %v330
    %v372 = vpack.c.b16 %v333, %v332
    %v373 = vpack.c.b16 %v335, %v334
    %v374 = vpack.c.b16 %v337, %v336
    %v375 = vpack.c.b16 %v339, %v338
    %v376 = vpack.c.b16 %v341, %v340
    %v377 = vpack.c.b16 %v343, %v342
    %v378 = vpack.c.b16 %v345, %v344
    %v379 = vpack.c.b16 %v347, %v346
    %v382 = vunpack.c.l.b16 %v218
    %v383 = vunpack.c.l.b16 %v219
    %v384 = vpack.c.b16 %v383, %v382
    %vm385 = vcmask 72704
    %v387 = vsel %vm385, %v348, 0
    %v390 = vsel %vm385, %v349, 0
    %v393 = vsel %vm385, %v350, 0
    %v396 = vsel %vm385, %v351, 0
    %v399 = vsel %vm385, %v352, 0
    %v402 = vsel %vm385, %v353, 0
    %v405 = vsel %vm385, %v354, 0
    %v408 = vsel %vm385, %v355, 0
    %v411 = vsel %vm385, %v356, 0
    %v414 = vsel %vm385, %v357, 0
    %v417 = vsel %vm385, %v358, 0
    %v420 = vsel %vm385, %v359, 0
    %v423 = vsel %vm385, %v360, 0
    %v426 = vsel %vm385, %v361, 0
    %v429 = vsel %vm385, %v362, 0
    %v432 = vsel %vm385, %v363, 0
    %v435 = vsel %vm385, %v364, 0
    %v438 = vsel %vm385, %v365, 0
    %v441 = vsel %vm385, %v366, 0
    %v444 = vsel %vm385, %v367, 0
    %v447 = vsel %vm385, %v368, 0
    %v450 = vsel %vm385, %v369, 0
    %v453 = vsel %vm385, %v370, 0
    %v456 = vsel %vm385, %v371, 0
    %v459 = vsel %vm385, %v372, 0
    %v462 = vsel %vm385, %v373, 0
    %v465 = vsel %vm385, %v374, 0
    %v468 = vsel %vm385, %v375, 0
    %v471 = vsel %vm385, %v376, 0
    %v474 = vsel %vm385, %v377, 0
    %v477 = vsel %vm385, %v378, 0
    %v480 = vsel %vm385, %v379, 0
    %vm482 = vcmask 1043456
    %vm483 = vcmask 1044480
    %v484 = vsel %vm482, 4294967295, 65535
    %v485 = vsel %vm483, %v484, 0
    %v487 = vand.u32 %v384, %v485
    %489 = vmatprep.subr.bf16.mxu0 0
    %490 = vmatpush1.bf16.msra.mxu0 %v487
    %491 = vmatprep.subr.bf16.mxu0 0
    %492 = vmatpush1.bf16.msra.mxu0 0
    %493 = vmatprep.subr.bf16.mxu0 0
    %494 = vmatpush1.bf16.msra.mxu0 0
    %495 = vmatprep.subr.bf16.mxu0 0
    %496 = vmatpush1.bf16.msra.mxu0 0
    %497 = vmatprep.subr.bf16.mxu0 0
    %498 = vmatpush1.bf16.msra.mxu0 0
    %499 = vmatprep.subr.bf16.mxu0 0
    %500 = vmatpush1.bf16.msra.mxu0 0
    %501 = vmatprep.subr.bf16.mxu0 0
    %502 = vmatpush1.bf16.msra.mxu0 0
    %503 = vmatprep.subr.bf16.mxu0 0
    %504 = vmatpush1.bf16.msra.mxu0 0
    %505 = vmatprep.subr.bf16.mxu0 0
    %506 = vmatpush1.bf16.msra.mxu0 0
    %507 = vmatprep.subr.bf16.mxu0 0
    %508 = vmatpush1.bf16.msra.mxu0 0
    %509 = vmatprep.subr.bf16.mxu0 0
    %510 = vmatpush1.bf16.msra.mxu0 0
    %511 = vmatprep.subr.bf16.mxu0 0
    %512 = vmatpush1.bf16.msra.mxu0 0
    %513 = vmatprep.subr.bf16.mxu0 0
    %514 = vmatpush1.bf16.msra.mxu0 0
    %515 = vmatprep.subr.bf16.mxu0 0
    %516 = vmatpush1.bf16.msra.mxu0 0
    %517 = vmatprep.subr.bf16.mxu0 0
    %518 = vmatpush1.bf16.msra.mxu0 0
    %519 = vmatprep.subr.bf16.mxu0 0
    %520 = vmatpush1.bf16.msra.mxu0 0
    %521 = vmatprep.mubr.bf16.mxu0 0
    %522 = vmatmul.mubr.bf16.gmra.mrb[0].mxu0 %v387
    %v523 = vpop.f32.mrb[0].mxu0
    %v524 = vadd.f32 0.0, %v523
    %v525 = vpop.f32.mrb[0].mxu0
    %v526 = vpop.f32.mrb[0].mxu0
    %v527 = vadd.f32 0.0, %v526
    %v528 = vpop.f32.mrb[0].mxu0
    %529 = vmatprep.mubr.bf16.mxu0 0
    %530 = vmatmul.mubr.bf16.gmra.mrb[0].mxu0 %v390
    %v531 = vpop.f32.mrb[0].mxu0
    %v532 = vadd.f32 0.0, %v531
    %v533 = vpop.f32.mrb[0].mxu0
    %v534 = vpop.f32.mrb[0].mxu0
    %v535 = vadd.f32 0.0, %v534
    %v536 = vpop.f32.mrb[0].mxu0
    %537 = vmatprep.mubr.bf16.mxu0 0
    %538 = vmatmul.mubr.bf16.gmra.mrb[0].mxu0 %v393
    %v539 = vpop.f32.mrb[0].mxu0
    %v540 = vadd.f32 0.0, %v539
    %v541 = vpop.f32.mrb[0].mxu0
    %v542 = vpop.f32.mrb[0].mxu0
    %v543 = vadd.f32 0.0, %v542
    %v544 = vpop.f32.mrb[0].mxu0
    %545 = vmatprep.mubr.bf16.mxu0 0
    %546 = vmatmul.mubr.bf16.gmra.mrb[0].mxu0 %v396
    %v547 = vpop.f32.mrb[0].mxu0
    %v548 = vadd.f32 0.0, %v547
    %v549 = vpop.f32.mrb[0].mxu0
    %v550 = vpop.f32.mrb[0].mxu0
    %v551 = vadd.f32 0.0, %v550
    %v552 = vpop.f32.mrb[0].mxu0
    %553 = vmatprep.mubr.bf16.mxu0 0
    %554 = vmatmul.mubr.bf16.gmra.mrb[0].mxu0 %v399
    %v555 = vpop.f32.mrb[0].mxu0
    %v556 = vadd.f32 0.0, %v555
    %v557 = vpop.f32.mrb[0].mxu0
    %v558 = vpop.f32.mrb[0].mxu0
    %v559 = vadd.f32 0.0, %v558
    %v560 = vpop.f32.mrb[0].mxu0
    %561 = vmatprep.mubr.bf16.mxu0 0
    %562 = vmatmul.mubr.bf16.gmra.mrb[0].mxu0 %v402
    %v563 = vpop.f32.mrb[0].mxu0
    %v564 = vadd.f32 0.0, %v563
    %v565 = vpop.f32.mrb[0].mxu0
    %v566 = vpop.f32.mrb[0].mxu0
    %v567 = vadd.f32 0.0, %v566
    %v568 = vpop.f32.mrb[0].mxu0
    %569 = vmatprep.mubr.bf16.mxu0 0
    %570 = vmatmul.mubr.bf16.gmra.mrb[0].mxu0 %v405
    %v571 = vpop.f32.mrb[0].mxu0
    %v572 = vadd.f32 0.0, %v571
    %v573 = vpop.f32.mrb[0].mxu0
    %v574 = vpop.f32.mrb[0].mxu0
    %v575 = vadd.f32 0.0, %v574
    %v576 = vpop.f32.mrb[0].mxu0
    %577 = vmatprep.mubr.bf16.mxu0 0
    %578 = vmatmul.mubr.bf16.gmra.mrb[0].mxu0 %v408
    %v579 = vpop.f32.mrb[0].mxu0
    %v580 = vadd.f32 0.0, %v579
    %v581 = vpop.f32.mrb[0].mxu0
    %v582 = vpop.f32.mrb[0].mxu0
    %v583 = vadd.f32 0.0, %v582
    %v584 = vpop.f32.mrb[0].mxu0
    %585 = vmatprep.mubr.bf16.mxu0 0
    %586 = vmatmul.mubr.bf16.gmra.mrb[0].mxu0 %v411
    %v587 = vpop.f32.mrb[0].mxu0
    %v588 = vadd.f32 0.0, %v587
    %v589 = vpop.f32.mrb[0].mxu0
    %v590 = vpop.f32.mrb[0].mxu0
    %v591 = vadd.f32 0.0, %v590
    %v592 = vpop.f32.mrb[0].mxu0
    %593 = vmatprep.mubr.bf16.mxu0 0
    %594 = vmatmul.mubr.bf16.gmra.mrb[0].mxu0 %v414
    %v595 = vpop.f32.mrb[0].mxu0
    %v596 = vadd.f32 0.0, %v595
    %v597 = vpop.f32.mrb[0].mxu0
    %v598 = vpop.f32.mrb[0].mxu0
    %v599 = vadd.f32 0.0, %v598
    %v600 = vpop.f32.mrb[0].mxu0
    %601 = vmatprep.mubr.bf16.mxu0 0
    %602 = vmatmul.mubr.bf16.gmra.mrb[0].mxu0 %v417
    %v603 = vpop.f32.mrb[0].mxu0
    %v604 = vadd.f32 0.0, %v603
    %v605 = vpop.f32.mrb[0].mxu0
    %v606 = vpop.f32.mrb[0].mxu0
    %v607 = vadd.f32 0.0, %v606
    %v608 = vpop.f32.mrb[0].mxu0
    %609 = vmatprep.mubr.bf16.mxu0 0
    %610 = vmatmul.mubr.bf16.gmra.mrb[0].mxu0 %v420
    %v611 = vpop.f32.mrb[0].mxu0
    %v612 = vadd.f32 0.0, %v611
    %v613 = vpop.f32.mrb[0].mxu0
    %v614 = vpop.f32.mrb[0].mxu0
    %v615 = vadd.f32 0.0, %v614
    %v616 = vpop.f32.mrb[0].mxu0
    %617 = vmatprep.mubr.bf16.mxu0 0
    %618 = vmatmul.mubr.bf16.gmra.mrb[0].mxu0 %v423
    %v619 = vpop.f32.mrb[0].mxu0
    %v620 = vadd.f32 0.0, %v619
    %v621 = vpop.f32.mrb[0].mxu0
    %v622 = vpop.f32.mrb[0].mxu0
    %v623 = vadd.f32 0.0, %v622
    %v624 = vpop.f32.mrb[0].mxu0
    %625 = vmatprep.mubr.bf16.mxu0 0
    %626 = vmatmul.mubr.bf16.gmra.mrb[0].mxu0 %v426
    %v627 = vpop.f32.mrb[0].mxu0
    %v628 = vadd.f32 0.0, %v627
    %v629 = vpop.f32.mrb[0].mxu0
    %v630 = vpop.f32.mrb[0].mxu0
    %v631 = vadd.f32 0.0, %v630
    %v632 = vpop.f32.mrb[0].mxu0
    %633 = vmatprep.mubr.bf16.mxu0 0
    %634 = vmatmul.mubr.bf16.gmra.mrb[0].mxu0 %v429
    %v635 = vpop.f32.mrb[0].mxu0
    %v636 = vadd.f32 0.0, %v635
    %v637 = vpop.f32.mrb[0].mxu0
    %v638 = vpop.f32.mrb[0].mxu0
    %v639 = vadd.f32 0.0, %v638
    %v640 = vpop.f32.mrb[0].mxu0
    %641 = vmatprep.mubr.bf16.mxu0 0
    %642 = vmatmul.mubr.bf16.gmra.mrb[0].mxu0 %v432
    %v643 = vpop.f32.mrb[0].mxu0
    %v644 = vadd.f32 0.0, %v643
    %v645 = vpop.f32.mrb[0].mxu0
    %v646 = vpop.f32.mrb[0].mxu0
    %v647 = vadd.f32 0.0, %v646
    %v648 = vpop.f32.mrb[0].mxu0
    %649 = vmatprep.mubr.bf16.mxu0 0
    %650 = vmatmul.mubr.bf16.gmra.mrb[0].mxu0 %v435
    %v651 = vpop.f32.mrb[0].mxu0
    %v652 = vadd.f32 0.0, %v651
    %v653 = vpop.f32.mrb[0].mxu0
    %v654 = vpop.f32.mrb[0].mxu0
    %v655 = vadd.f32 0.0, %v654
    %v656 = vpop.f32.mrb[0].mxu0
    %657 = vmatprep.mubr.bf16.mxu0 0
    %658 = vmatmul.mubr.bf16.gmra.mrb[0].mxu0 %v438
    %v659 = vpop.f32.mrb[0].mxu0
    %v660 = vadd.f32 0.0, %v659
    %v661 = vpop.f32.mrb[0].mxu0
    %v662 = vpop.f32.mrb[0].mxu0
    %v663 = vadd.f32 0.0, %v662
    %v664 = vpop.f32.mrb[0].mxu0
    %665 = vmatprep.mubr.bf16.mxu0 0
    %666 = vmatmul.mubr.bf16.gmra.mrb[0].mxu0 %v441
    %v667 = vpop.f32.mrb[0].mxu0
    %v668 = vadd.f32 0.0, %v667
    %v669 = vpop.f32.mrb[0].mxu0
    %v670 = vpop.f32.mrb[0].mxu0
    %v671 = vadd.f32 0.0, %v670
    %v672 = vpop.f32.mrb[0].mxu0
    %673 = vmatprep.mubr.bf16.mxu0 0
    %674 = vmatmul.mubr.bf16.gmra.mrb[0].mxu0 %v444
    %v675 = vpop.f32.mrb[0].mxu0
    %v676 = vadd.f32 0.0, %v675
    %v677 = vpop.f32.mrb[0].mxu0
    %v678 = vpop.f32.mrb[0].mxu0
    %v679 = vadd.f32 0.0, %v678
    %v680 = vpop.f32.mrb[0].mxu0
    %681 = vmatprep.mubr.bf16.mxu0 0
    %682 = vmatmul.mubr.bf16.gmra.mrb[0].mxu0 %v447
    %v683 = vpop.f32.mrb[0].mxu0
    %v684 = vadd.f32 0.0, %v683
    %v685 = vpop.f32.mrb[0].mxu0
    %v686 = vpop.f32.mrb[0].mxu0
    %v687 = vadd.f32 0.0, %v686
    %v688 = vpop.f32.mrb[0].mxu0
    %689 = vmatprep.mubr.bf16.mxu0 0
    %690 = vmatmul.mubr.bf16.gmra.mrb[0].mxu0 %v450
    %v691 = vpop.f32.mrb[0].mxu0
    %v692 = vadd.f32 0.0, %v691
    %v693 = vpop.f32.mrb[0].mxu0
    %v694 = vpop.f32.mrb[0].mxu0
    %v695 = vadd.f32 0.0, %v694
    %v696 = vpop.f32.mrb[0].mxu0
    %697 = vmatprep.mubr.bf16.mxu0 0
    %698 = vmatmul.mubr.bf16.gmra.mrb[0].mxu0 %v453
    %v699 = vpop.f32.mrb[0].mxu0
    %v700 = vadd.f32 0.0, %v699
    %v701 = vpop.f32.mrb[0].mxu0
    %v702 = vpop.f32.mrb[0].mxu0
    %v703 = vadd.f32 0.0, %v702
    %v704 = vpop.f32.mrb[0].mxu0
    %705 = vmatprep.mubr.bf16.mxu0 0
    %706 = vmatmul.mubr.bf16.gmra.mrb[0].mxu0 %v456
    %v707 = vpop.f32.mrb[0].mxu0
    %v708 = vadd.f32 0.0, %v707
    %v709 = vpop.f32.mrb[0].mxu0
    %v710 = vpop.f32.mrb[0].mxu0
    %v711 = vadd.f32 0.0, %v710
    %v712 = vpop.f32.mrb[0].mxu0
    %713 = vmatprep.mubr.bf16.mxu0 0
    %714 = vmatmul.mubr.bf16.gmra.mrb[0].mxu0 %v459
    %v715 = vpop.f32.mrb[0].mxu0
    %v716 = vadd.f32 0.0, %v715
    %v717 = vpop.f32.mrb[0].mxu0
    %v718 = vpop.f32.mrb[0].mxu0
    %v719 = vadd.f32 0.0, %v718
    %v720 = vpop.f32.mrb[0].mxu0
    %721 = vmatprep.mubr.bf16.mxu0 0
    %722 = vmatmul.mubr.bf16.gmra.mrb[0].mxu0 %v462
    %v723 = vpop.f32.mrb[0].mxu0
    %v724 = vadd.f32 0.0, %v723
    %v725 = vpop.f32.mrb[0].mxu0
    %v726 = vpop.f32.mrb[0].mxu0
    %v727 = vadd.f32 0.0, %v726
    %v728 = vpop.f32.mrb[0].mxu0
    %729 = vmatprep.mubr.bf16.mxu0 0
    %730 = vmatmul.mubr.bf16.gmra.mrb[0].mxu0 %v465
    %v731 = vpop.f32.mrb[0].mxu0
    %v732 = vadd.f32 0.0, %v731
    %v733 = vpop.f32.mrb[0].mxu0
    %v734 = vpop.f32.mrb[0].mxu0
    %v735 = vadd.f32 0.0, %v734
    %v736 = vpop.f32.mrb[0].mxu0
    %737 = vmatprep.mubr.bf16.mxu0 0
    %738 = vmatmul.mubr.bf16.gmra.mrb[0].mxu0 %v468
    %v739 = vpop.f32.mrb[0].mxu0
    %v740 = vadd.f32 0.0, %v739
    %v741 = vpop.f32.mrb[0].mxu0
    %v742 = vpop.f32.mrb[0].mxu0
    %v743 = vadd.f32 0.0, %v742
    %v744 = vpop.f32.mrb[0].mxu0
    %745 = vmatprep.mubr.bf16.mxu0 0
    %746 = vmatmul.mubr.bf16.gmra.mrb[0].mxu0 %v471
    %v747 = vpop.f32.mrb[0].mxu0
    %v748 = vadd.f32 0.0, %v747
    %v749 = vpop.f32.mrb[0].mxu0
    %v750 = vpop.f32.mrb[0].mxu0
    %v751 = vadd.f32 0.0, %v750
    %v752 = vpop.f32.mrb[0].mxu0
    %753 = vmatprep.mubr.bf16.mxu0 0
    %754 = vmatmul.mubr.bf16.gmra.mrb[0].mxu0 %v474
    %v755 = vpop.f32.mrb[0].mxu0
    %v756 = vadd.f32 0.0, %v755
    %v757 = vpop.f32.mrb[0].mxu0
    %v758 = vpop.f32.mrb[0].mxu0
    %v759 = vadd.f32 0.0, %v758
    %v760 = vpop.f32.mrb[0].mxu0
    %761 = vmatprep.mubr.bf16.mxu0 0
    %762 = vmatmul.mubr.bf16.gmra.mrb[0].mxu0 %v477
    %v763 = vpop.f32.mrb[0].mxu0
    %v764 = vadd.f32 0.0, %v763
    %v765 = vpop.f32.mrb[0].mxu0
    %v766 = vpop.f32.mrb[0].mxu0
    %v767 = vadd.f32 0.0, %v766
    %v768 = vpop.f32.mrb[0].mxu0
    %769 = vmatprep.mubr.bf16.mxu0 0
    %770 = vmatmul.mubr.bf16.gmra.mrb[0].mxu0 %v480
    %v771 = vpop.f32.mrb[0].mxu0
    %v772 = vadd.f32 0.0, %v771
    %v773 = vpop.f32.mrb[0].mxu0
    %v774 = vpop.f32.mrb[0].mxu0
    %v775 = vadd.f32 0.0, %v774
    %v776 = vpop.f32.mrb[0].mxu0
    %777 = vdwg.mxu0
    %v778 = vld [vmem:[#allocation6] sm:$0x1]
    %v780 = vlaneseq
    %v781 = vshrl.u32 %v780, 7
    %v782 = vsub.s32 0, %v781
    %v783 = vrot.slane %v778, %v782
    %v785 = vmul.f32 %v524, %v783
    %v786 = vmul.f32 %v527, %v783
    %v787 = vmul.f32 %v532, %v783
    %v788 = vmul.f32 %v535, %v783
    %v789 = vmul.f32 %v540, %v783
    %v790 = vmul.f32 %v543, %v783
    %v791 = vmul.f32 %v548, %v783
    %v792 = vmul.f32 %v551, %v783
    %v793 = vmul.f32 %v556, %v783
    %v794 = vmul.f32 %v559, %v783
    %v795 = vmul.f32 %v564, %v783
    %v796 = vmul.f32 %v567, %v783
    %v797 = vmul.f32 %v572, %v783
    %v798 = vmul.f32 %v575, %v783
    %v799 = vmul.f32 %v580, %v783
    %v800 = vmul.f32 %v583, %v783
    %v801 = vmul.f32 %v588, %v783
    %v802 = vmul.f32 %v591, %v783
    %v803 = vmul.f32 %v596, %v783
    %v804 = vmul.f32 %v599, %v783
    %v805 = vmul.f32 %v604, %v783
    %v806 = vmul.f32 %v607, %v783
    %v807 = vmul.f32 %v612, %v783
    %v808 = vmul.f32 %v615, %v783
    %v809 = vmul.f32 %v620, %v783
    %v810 = vmul.f32 %v623, %v783
    %v811 = vmul.f32 %v628, %v783
    %v812 = vmul.f32 %v631, %v783
    %v813 = vmul.f32 %v636, %v783
    %v814 = vmul.f32 %v639, %v783
    %v815 = vmul.f32 %v644, %v783
    %v816 = vmul.f32 %v647, %v783
    %v817 = vmul.f32 %v652, %v783
    %v818 = vmul.f32 %v655, %v783
    %v819 = vmul.f32 %v660, %v783
    %v820 = vmul.f32 %v663, %v783
    %v821 = vmul.f32 %v668, %v783
    %v822 = vmul.f32 %v671, %v783
    %v823 = vmul.f32 %v676, %v783
    %v824 = vmul.f32 %v679, %v783
    %v825 = vmul.f32 %v684, %v783
    %v826 = vmul.f32 %v687, %v783
    %v827 = vmul.f32 %v692, %v783
    %v828 = vmul.f32 %v695, %v783
    %v829 = vmul.f32 %v700, %v783
    %v830 = vmul.f32 %v703, %v783
    %v831 = vmul.f32 %v708, %v783
    %v832 = vmul.f32 %v711, %v783
    %v833 = vmul.f32 %v716, %v783
    %v834 = vmul.f32 %v719, %v783
    %v835 = vmul.f32 %v724, %v783
    %v836 = vmul.f32 %v727, %v783
    %v837 = vmul.f32 %v732, %v783
    %v838 = vmul.f32 %v735, %v783
    %v839 = vmul.f32 %v740, %v783
    %v840 = vmul.f32 %v743, %v783
    %v841 = vmul.f32 %v748, %v783
    %v842 = vmul.f32 %v751, %v783
    %v843 = vmul.f32 %v756, %v783
    %v844 = vmul.f32 %v759, %v783
    %v845 = vmul.f32 %v764, %v783
    %v846 = vmul.f32 %v767, %v783
    %v847 = vmul.f32 %v772, %v783
    %v848 = vmul.f32 %v775, %v783
    %v849 = vld [vmem:[#allocation8] sm:$0x1]
    %v851 = vlaneseq
    %v852 = vshrl.u32 %v851, 7
    %v853 = vsub.s32 0, %v852
    %v854 = vrot.slane %v849, %v853
    %v856 = vadd.f32 %v785, %v854
    %v857 = vadd.f32 %v786, %v854
    %v858 = vadd.f32 %v787, %v854
    %v859 = vadd.f32 %v788, %v854
    %v860 = vadd.f32 %v789, %v854
    %v861 = vadd.f32 %v790, %v854
    %v862 = vadd.f32 %v791, %v854
    %v863 = vadd.f32 %v792, %v854
    %v864 = vadd.f32 %v793, %v854
    %v865 = vadd.f32 %v794, %v854
    %v866 = vadd.f32 %v795, %v854
    %v867 = vadd.f32 %v796, %v854
    %v868 = vadd.f32 %v797, %v854
    %v869 = vadd.f32 %v798, %v854
    %v870 = vadd.f32 %v799, %v854
    %v871 = vadd.f32 %v800, %v854
    %v872 = vadd.f32 %v801, %v854
    %v873 = vadd.f32 %v802, %v854
    %v874 = vadd.f32 %v803, %v854
    %v875 = vadd.f32 %v804, %v854
    %v876 = vadd.f32 %v805, %v854
    %v877 = vadd.f32 %v806, %v854
    %v878 = vadd.f32 %v807, %v854
    %v879 = vadd.f32 %v808, %v854
    %v880 = vadd.f32 %v809, %v854
    %v881 = vadd.f32 %v810, %v854
    %v882 = vadd.f32 %v811, %v854
    %v883 = vadd.f32 %v812, %v854
    %v884 = vadd.f32 %v813, %v854
    %v885 = vadd.f32 %v814, %v854
    %v886 = vadd.f32 %v815, %v854
    %v887 = vadd.f32 %v816, %v854
    %v888 = vadd.f32 %v817, %v854
    %v889 = vadd.f32 %v818, %v854
    %v890 = vadd.f32 %v819, %v854
    %v891 = vadd.f32 %v820, %v854
    %v892 = vadd.f32 %v821, %v854
    %v893 = vadd.f32 %v822, %v854
    %v894 = vadd.f32 %v823, %v854
    %v895 = vadd.f32 %v824, %v854
    %v896 = vadd.f32 %v825, %v854
    %v897 = vadd.f32 %v826, %v854
    %v898 = vadd.f32 %v827, %v854
    %v899 = vadd.f32 %v828, %v854
    %v900 = vadd.f32 %v829, %v854
    %v901 = vadd.f32 %v830, %v854
    %v902 = vadd.f32 %v831, %v854
    %v903 = vadd.f32 %v832, %v854
    %v904 = vadd.f32 %v833, %v854
    %v905 = vadd.f32 %v834, %v854
    %v906 = vadd.f32 %v835, %v854
    %v907 = vadd.f32 %v836, %v854
    %v908 = vadd.f32 %v837, %v854
    %v909 = vadd.f32 %v838, %v854
    %v910 = vadd.f32 %v839, %v854
    %v911 = vadd.f32 %v840, %v854
    %v912 = vadd.f32 %v841, %v854
    %v913 = vadd.f32 %v842, %v854
    %v914 = vadd.f32 %v843, %v854
    %v915 = vadd.f32 %v844, %v854
    %v916 = vadd.f32 %v845, %v854
    %v917 = vadd.f32 %v846, %v854
    %v918 = vadd.f32 %v847, %v854
    %v919 = vadd.f32 %v848, %v854
    %v920 = vmax.f32 %v856, 0.0
    %v921 = vmax.f32 %v857, 0.0
    %v922 = vmax.f32 %v858, 0.0
    %v923 = vmax.f32 %v859, 0.0
    %v924 = vmax.f32 %v860, 0.0
    %v925 = vmax.f32 %v861, 0.0
    %v926 = vmax.f32 %v862, 0.0
    %v927 = vmax.f32 %v863, 0.0
    %v928 = vmax.f32 %v864, 0.0
    %v929 = vmax.f32 %v865, 0.0
    %v930 = vmax.f32 %v866, 0.0
    %v931 = vmax.f32 %v867, 0.0
    %v932 = vmax.f32 %v868, 0.0
    %v933 = vmax.f32 %v869, 0.0
    %v934 = vmax.f32 %v870, 0.0
    %v935 = vmax.f32 %v871, 0.0
    %v936 = vmax.f32 %v872, 0.0
    %v937 = vmax.f32 %v873, 0.0
    %v938 = vmax.f32 %v874, 0.0
    %v939 = vmax.f32 %v875, 0.0
    %v940 = vmax.f32 %v876, 0.0
    %v941 = vmax.f32 %v877, 0.0
    %v942 = vmax.f32 %v878, 0.0
    %v943 = vmax.f32 %v879, 0.0
    %v944 = vmax.f32 %v880, 0.0
    %v945 = vmax.f32 %v881, 0.0
    %v946 = vmax.f32 %v882, 0.0
    %v947 = vmax.f32 %v883, 0.0
    %v948 = vmax.f32 %v884, 0.0
    %v949 = vmax.f32 %v885, 0.0
    %v950 = vmax.f32 %v886, 0.0
    %v951 = vmax.f32 %v887, 0.0
    %v952 = vmax.f32 %v888, 0.0
    %v953 = vmax.f32 %v889, 0.0
    %v954 = vmax.f32 %v890, 0.0
    %v955 = vmax.f32 %v891, 0.0
    %v956 = vmax.f32 %v892, 0.0
    %v957 = vmax.f32 %v893, 0.0
    %v958 = vmax.f32 %v894, 0.0
    %v959 = vmax.f32 %v895, 0.0
    %v960 = vmax.f32 %v896, 0.0
    %v961 = vmax.f32 %v897, 0.0
    %v962 = vmax.f32 %v898, 0.0
    %v963 = vmax.f32 %v899, 0.0
    %v964 = vmax.f32 %v900, 0.0
    %v965 = vmax.f32 %v901, 0.0
    %v966 = vmax.f32 %v902, 0.0
    %v967 = vmax.f32 %v903, 0.0
    %v968 = vmax.f32 %v904, 0.0
    %v969 = vmax.f32 %v905, 0.0
    %v970 = vmax.f32 %v906, 0.0
    %v971 = vmax.f32 %v907, 0.0
    %v972 = vmax.f32 %v908, 0.0
    %v973 = vmax.f32 %v909, 0.0
    %v974 = vmax.f32 %v910, 0.0
    %v975 = vmax.f32 %v911, 0.0
    %v976 = vmax.f32 %v912, 0.0
    %v977 = vmax.f32 %v913, 0.0
    %v978 = vmax.f32 %v914, 0.0
    %v979 = vmax.f32 %v915, 0.0
    %v980 = vmax.f32 %v916, 0.0
    %v981 = vmax.f32 %v917, 0.0
    %v982 = vmax.f32 %v918, 0.0
    %v983 = vmax.f32 %v919, 0.0
    %v1048 = vcombine.high %v920, %v920
    %v1050 = vunpack.c.l.s4 1983009808
    %v1051 = vunpack.c.0.s8 %v1050
    %v1052 = vlaneseq
    %v1053 = vshrl.u32 %v1052, 7
    %v1054 = vsub.s32 %v1051, %v1053
    %v1055 = vrot.slane %v920, %v1054
    %v1057 = vunpack.c.l.s4 1983009808
    %v1058 = vunpack.c.0.s8 %v1057
    %v1059 = vlaneseq
    %v1060 = vshrl.u32 %v1059, 7
    %v1061 = vsub.s32 %v1058, %v1060
    %v1062 = vrot.slane %v1048, %v1061
    %v1063 = vcombine.high %v1055, %v1055
    %v1064 = vcombine.high %v1062, %v1062
    %v1065 = vcombine.high %v921, %v921
    %v1067 = vunpack.c.l.s4 1983009808
    %v1068 = vunpack.c.0.s8 %v1067
    %v1069 = vlaneseq
    %v1070 = vshrl.u32 %v1069, 7
    %v1071 = vsub.s32 %v1068, %v1070
    %v1072 = vrot.slane %v921, %v1071
    %v1074 = vunpack.c.l.s4 1983009808
    %v1075 = vunpack.c.0.s8 %v1074
    %v1076 = vlaneseq
    %v1077 = vshrl.u32 %v1076, 7
    %v1078 = vsub.s32 %v1075, %v1077
    %v1079 = vrot.slane %v1065, %v1078
    %v1080 = vcombine.high %v1072, %v1072
    %v1081 = vcombine.high %v1079, %v1079
    %v1082 = vcombine.high %v922, %v922
    %v1084 = vunpack.c.l.s4 1983009808
    %v1085 = vunpack.c.0.s8 %v1084
    %v1086 = vlaneseq
    %v1087 = vshrl.u32 %v1086, 7
    %v1088 = vsub.s32 %v1085, %v1087
    %v1089 = vrot.slane %v922, %v1088
    %v1091 = vunpack.c.l.s4 1983009808
    %v1092 = vunpack.c.0.s8 %v1091
    %v1093 = vlaneseq
    %v1094 = vshrl.u32 %v1093, 7
    %v1095 = vsub.s32 %v1092, %v1094
    %v1096 = vrot.slane %v1082, %v1095
    %v1097 = vcombine.high %v1089, %v1089
    %v1098 = vcombine.high %v1096, %v1096
    %v1099 = vcombine.high %v923, %v923
    %v1101 = vunpack.c.l.s4 1983009808
    %v1102 = vunpack.c.0.s8 %v1101
    %v1103 = vlaneseq
    %v1104 = vshrl.u32 %v1103, 7
    %v1105 = vsub.s32 %v1102, %v1104
    %v1106 = vrot.slane %v923, %v1105
    %v1108 = vunpack.c.l.s4 1983009808
    %v1109 = vunpack.c.0.s8 %v1108
    %v1110 = vlaneseq
    %v1111 = vshrl.u32 %v1110, 7
    %v1112 = vsub.s32 %v1109, %v1111
    %v1113 = vrot.slane %v1099, %v1112
    %v1114 = vcombine.high %v1106, %v1106
    %v1115 = vcombine.high %v1113, %v1113
    %v1116 = vcombine.high %v924, %v924
    %v1118 = vunpack.c.l.s4 1983009808
    %v1119 = vunpack.c.0.s8 %v1118
    %v1120 = vlaneseq
    %v1121 = vshrl.u32 %v1120, 7
    %v1122 = vsub.s32 %v1119, %v1121
    %v1123 = vrot.slane %v924, %v1122
    %v1125 = vunpack.c.l.s4 1983009808
    %v1126 = vunpack.c.0.s8 %v1125
    %v1127 = vlaneseq
    %v1128 = vshrl.u32 %v1127, 7
    %v1129 = vsub.s32 %v1126, %v1128
    %v1130 = vrot.slane %v1116, %v1129
    %v1131 = vcombine.high %v1123, %v1123
    %v1132 = vcombine.high %v1130, %v1130
    %v1133 = vcombine.high %v925, %v925
    %v1135 = vunpack.c.l.s4 1983009808
    %v1136 = vunpack.c.0.s8 %v1135
    %v1137 = vlaneseq
    %v1138 = vshrl.u32 %v1137, 7
    %v1139 = vsub.s32 %v1136, %v1138
    %v1140 = vrot.slane %v925, %v1139
    %v1142 = vunpack.c.l.s4 1983009808
    %v1143 = vunpack.c.0.s8 %v1142
    %v1144 = vlaneseq
    %v1145 = vshrl.u32 %v1144, 7
    %v1146 = vsub.s32 %v1143, %v1145
    %v1147 = vrot.slane %v1133, %v1146
    %v1148 = vcombine.high %v1140, %v1140
    %v1149 = vcombine.high %v1147, %v1147
    %v1150 = vcombine.high %v926, %v926
    %v1152 = vunpack.c.l.s4 1983009808
    %v1153 = vunpack.c.0.s8 %v1152
    %v1154 = vlaneseq
    %v1155 = vshrl.u32 %v1154, 7
    %v1156 = vsub.s32 %v1153, %v1155
    %v1157 = vrot.slane %v926, %v1156
    %v1159 = vunpack.c.l.s4 1983009808
    %v1160 = vunpack.c.0.s8 %v1159
    %v1161 = vlaneseq
    %v1162 = vshrl.u32 %v1161, 7
    %v1163 = vsub.s32 %v1160, %v1162
    %v1164 = vrot.slane %v1150, %v1163
    %v1165 = vcombine.high %v1157, %v1157
    %v1166 = vcombine.high %v1164, %v1164
    %v1167 = vcombine.high %v927, %v927
    %v1169 = vunpack.c.l.s4 1983009808
    %v1170 = vunpack.c.0.s8 %v1169
    %v1171 = vlaneseq
    %v1172 = vshrl.u32 %v1171, 7
    %v1173 = vsub.s32 %v1170, %v1172
    %v1174 = vrot.slane %v927, %v1173
    %v1176 = vunpack.c.l.s4 1983009808
    %v1177 = vunpack.c.0.s8 %v1176
    %v1178 = vlaneseq
    %v1179 = vshrl.u32 %v1178, 7
    %v1180 = vsub.s32 %v1177, %v1179
    %v1181 = vrot.slane %v1167, %v1180
    %v1182 = vcombine.high %v1174, %v1174
    %v1183 = vcombine.high %v1181, %v1181
    %v1184 = vcombine.high %v928, %v928
    %v1186 = vunpack.c.l.s4 1983009808
    %v1187 = vunpack.c.0.s8 %v1186
    %v1188 = vlaneseq
    %v1189 = vshrl.u32 %v1188, 7
    %v1190 = vsub.s32 %v1187, %v1189
    %v1191 = vrot.slane %v928, %v1190
    %v1193 = vunpack.c.l.s4 1983009808
    %v1194 = vunpack.c.0.s8 %v1193
    %v1195 = vlaneseq
    %v1196 = vshrl.u32 %v1195, 7
    %v1197 = vsub.s32 %v1194, %v1196
    %v1198 = vrot.slane %v1184, %v1197
    %v1199 = vcombine.high %v1191, %v1191
    %v1200 = vcombine.high %v1198, %v1198
    %v1201 = vcombine.high %v929, %v929
    %v1203 = vunpack.c.l.s4 1983009808
    %v1204 = vunpack.c.0.s8 %v1203
    %v1205 = vlaneseq
    %v1206 = vshrl.u32 %v1205, 7
    %v1207 = vsub.s32 %v1204, %v1206
    %v1208 = vrot.slane %v929, %v1207
    %v1210 = vunpack.c.l.s4 1983009808
    %v1211 = vunpack.c.0.s8 %v1210
    %v1212 = vlaneseq
    %v1213 = vshrl.u32 %v1212, 7
    %v1214 = vsub.s32 %v1211, %v1213
    %v1215 = vrot.slane %v1201, %v1214
    %v1216 = vcombine.high %v1208, %v1208
    %v1217 = vcombine.high %v1215, %v1215
    %v1218 = vcombine.high %v930, %v930
    %v1220 = vunpack.c.l.s4 1983009808
    %v1221 = vunpack.c.0.s8 %v1220
    %v1222 = vlaneseq
    %v1223 = vshrl.u32 %v1222, 7
    %v1224 = vsub.s32 %v1221, %v1223
    %v1225 = vrot.slane %v930, %v1224
    %v1227 = vunpack.c.l.s4 1983009808
    %v1228 = vunpack.c.0.s8 %v1227
    %v1229 = vlaneseq
    %v1230 = vshrl.u32 %v1229, 7
    %v1231 = vsub.s32 %v1228, %v1230
    %v1232 = vrot.slane %v1218, %v1231
    %v1233 = vcombine.high %v1225, %v1225
    %v1234 = vcombine.high %v1232, %v1232
    %v1235 = vcombine.high %v931, %v931
    %v1237 = vunpack.c.l.s4 1983009808
    %v1238 = vunpack.c.0.s8 %v1237
    %v1239 = vlaneseq
    %v1240 = vshrl.u32 %v1239, 7
    %v1241 = vsub.s32 %v1238, %v1240
    %v1242 = vrot.slane %v931, %v1241
    %v1244 = vunpack.c.l.s4 1983009808
    %v1245 = vunpack.c.0.s8 %v1244
    %v1246 = vlaneseq
    %v1247 = vshrl.u32 %v1246, 7
    %v1248 = vsub.s32 %v1245, %v1247
    %v1249 = vrot.slane %v1235, %v1248
    %v1250 = vcombine.high %v1242, %v1242
    %v1251 = vcombine.high %v1249, %v1249
    %v1252 = vcombine.high %v932, %v932
    %v1254 = vunpack.c.l.s4 1983009808
    %v1255 = vunpack.c.0.s8 %v1254
    %v1256 = vlaneseq
    %v1257 = vshrl.u32 %v1256, 7
    %v1258 = vsub.s32 %v1255, %v1257
    %v1259 = vrot.slane %v932, %v1258
    %v1261 = vunpack.c.l.s4 1983009808
    %v1262 = vunpack.c.0.s8 %v1261
    %v1263 = vlaneseq
    %v1264 = vshrl.u32 %v1263, 7
    %v1265 = vsub.s32 %v1262, %v1264
    %v1266 = vrot.slane %v1252, %v1265
    %v1267 = vcombine.high %v1259, %v1259
    %v1268 = vcombine.high %v1266, %v1266
    %v1269 = vcombine.high %v933, %v933
    %v1271 = vunpack.c.l.s4 1983009808
    %v1272 = vunpack.c.0.s8 %v1271
    %v1273 = vlaneseq
    %v1274 = vshrl.u32 %v1273, 7
    %v1275 = vsub.s32 %v1272, %v1274
    %v1276 = vrot.slane %v933, %v1275
    %v1278 = vunpack.c.l.s4 1983009808
    %v1279 = vunpack.c.0.s8 %v1278
    %v1280 = vlaneseq
    %v1281 = vshrl.u32 %v1280, 7
    %v1282 = vsub.s32 %v1279, %v1281
    %v1283 = vrot.slane %v1269, %v1282
    %v1284 = vcombine.high %v1276, %v1276
    %v1285 = vcombine.high %v1283, %v1283
    %v1286 = vcombine.high %v934, %v934
    %v1288 = vunpack.c.l.s4 1983009808
    %v1289 = vunpack.c.0.s8 %v1288
    %v1290 = vlaneseq
    %v1291 = vshrl.u32 %v1290, 7
    %v1292 = vsub.s32 %v1289, %v1291
    %v1293 = vrot.slane %v934, %v1292
    %v1295 = vunpack.c.l.s4 1983009808
    %v1296 = vunpack.c.0.s8 %v1295
    %v1297 = vlaneseq
    %v1298 = vshrl.u32 %v1297, 7
    %v1299 = vsub.s32 %v1296, %v1298
    %v1300 = vrot.slane %v1286, %v1299
    %v1301 = vcombine.high %v1293, %v1293
    %v1302 = vcombine.high %v1300, %v1300
    %v1303 = vcombine.high %v935, %v935
    %v1305 = vunpack.c.l.s4 1983009808
    %v1306 = vunpack.c.0.s8 %v1305
    %v1307 = vlaneseq
    %v1308 = vshrl.u32 %v1307, 7
    %v1309 = vsub.s32 %v1306, %v1308
    %v1310 = vrot.slane %v935, %v1309
    %v1312 = vunpack.c.l.s4 1983009808
    %v1313 = vunpack.c.0.s8 %v1312
    %v1314 = vlaneseq
    %v1315 = vshrl.u32 %v1314, 7
    %v1316 = vsub.s32 %v1313, %v1315
    %v1317 = vrot.slane %v1303, %v1316
    %v1318 = vcombine.high %v1310, %v1310
    %v1319 = vcombine.high %v1317, %v1317
    %v1320 = vcombine.high %v936, %v936
    %v1322 = vunpack.c.l.s4 1983009808
    %v1323 = vunpack.c.0.s8 %v1322
    %v1324 = vlaneseq
    %v1325 = vshrl.u32 %v1324, 7
    %v1326 = vsub.s32 %v1323, %v1325
    %v1327 = vrot.slane %v936, %v1326
    %v1329 = vunpack.c.l.s4 1983009808
    %v1330 = vunpack.c.0.s8 %v1329
    %v1331 = vlaneseq
    %v1332 = vshrl.u32 %v1331, 7
    %v1333 = vsub.s32 %v1330, %v1332
    %v1334 = vrot.slane %v1320, %v1333
    %v1335 = vcombine.high %v1327, %v1327
    %v1336 = vcombine.high %v1334, %v1334
    %v1337 = vcombine.high %v937, %v937
    %v1339 = vunpack.c.l.s4 1983009808
    %v1340 = vunpack.c.0.s8 %v1339
    %v1341 = vlaneseq
    %v1342 = vshrl.u32 %v1341, 7
    %v1343 = vsub.s32 %v1340, %v1342
    %v1344 = vrot.slane %v937, %v1343
    %v1346 = vunpack.c.l.s4 1983009808
    %v1347 = vunpack.c.0.s8 %v1346
    %v1348 = vlaneseq
    %v1349 = vshrl.u32 %v1348, 7
    %v1350 = vsub.s32 %v1347, %v1349
    %v1351 = vrot.slane %v1337, %v1350
    %v1352 = vcombine.high %v1344, %v1344
    %v1353 = vcombine.high %v1351, %v1351
    %v1354 = vcombine.high %v938, %v938
    %v1356 = vunpack.c.l.s4 1983009808
    %v1357 = vunpack.c.0.s8 %v1356
    %v1358 = vlaneseq
    %v1359 = vshrl.u32 %v1358, 7
    %v1360 = vsub.s32 %v1357, %v1359
    %v1361 = vrot.slane %v938, %v1360
    %v1363 = vunpack.c.l.s4 1983009808
    %v1364 = vunpack.c.0.s8 %v1363
    %v1365 = vlaneseq
    %v1366 = vshrl.u32 %v1365, 7
    %v1367 = vsub.s32 %v1364, %v1366
    %v1368 = vrot.slane %v1354, %v1367
    %v1369 = vcombine.high %v1361, %v1361
    %v1370 = vcombine.high %v1368, %v1368
    %v1371 = vcombine.high %v939, %v939
    %v1373 = vunpack.c.l.s4 1983009808
    %v1374 = vunpack.c.0.s8 %v1373
    %v1375 = vlaneseq
    %v1376 = vshrl.u32 %v1375, 7
    %v1377 = vsub.s32 %v1374, %v1376
    %v1378 = vrot.slane %v939, %v1377
    %v1380 = vunpack.c.l.s4 1983009808
    %v1381 = vunpack.c.0.s8 %v1380
    %v1382 = vlaneseq
    %v1383 = vshrl.u32 %v1382, 7
    %v1384 = vsub.s32 %v1381, %v1383
    %v1385 = vrot.slane %v1371, %v1384
    %v1386 = vcombine.high %v1378, %v1378
    %v1387 = vcombine.high %v1385, %v1385
    %v1388 = vcombine.high %v940, %v940
    %v1390 = vunpack.c.l.s4 1983009808
    %v1391 = vunpack.c.0.s8 %v1390
    %v1392 = vlaneseq
    %v1393 = vshrl.u32 %v1392, 7
    %v1394 = vsub.s32 %v1391, %v1393
    %v1395 = vrot.slane %v940, %v1394
    %v1397 = vunpack.c.l.s4 1983009808
    %v1398 = vunpack.c.0.s8 %v1397
    %v1399 = vlaneseq
    %v1400 = vshrl.u32 %v1399, 7
    %v1401 = vsub.s32 %v1398, %v1400
    %v1402 = vrot.slane %v1388, %v1401
    %v1403 = vcombine.high %v1395, %v1395
    %v1404 = vcombine.high %v1402, %v1402
    %v1405 = vcombine.high %v941, %v941
    %v1407 = vunpack.c.l.s4 1983009808
    %v1408 = vunpack.c.0.s8 %v1407
    %v1409 = vlaneseq
    %v1410 = vshrl.u32 %v1409, 7
    %v1411 = vsub.s32 %v1408, %v1410
    %v1412 = vrot.slane %v941, %v1411
    %v1414 = vunpack.c.l.s4 1983009808
    %v1415 = vunpack.c.0.s8 %v1414
    %v1416 = vlaneseq
    %v1417 = vshrl.u32 %v1416, 7
    %v1418 = vsub.s32 %v1415, %v1417
    %v1419 = vrot.slane %v1405, %v1418
    %v1420 = vcombine.high %v1412, %v1412
    %v1421 = vcombine.high %v1419, %v1419
    %v1422 = vcombine.high %v942, %v942
    %v1424 = vunpack.c.l.s4 1983009808
    %v1425 = vunpack.c.0.s8 %v1424
    %v1426 = vlaneseq
    %v1427 = vshrl.u32 %v1426, 7
    %v1428 = vsub.s32 %v1425, %v1427
    %v1429 = vrot.slane %v942, %v1428
    %v1431 = vunpack.c.l.s4 1983009808
    %v1432 = vunpack.c.0.s8 %v1431
    %v1433 = vlaneseq
    %v1434 = vshrl.u32 %v1433, 7
    %v1435 = vsub.s32 %v1432, %v1434
    %v1436 = vrot.slane %v1422, %v1435
    %v1437 = vcombine.high %v1429, %v1429
    %v1438 = vcombine.high %v1436, %v1436
    %v1439 = vcombine.high %v943, %v943
    %v1441 = vunpack.c.l.s4 1983009808
    %v1442 = vunpack.c.0.s8 %v1441
    %v1443 = vlaneseq
    %v1444 = vshrl.u32 %v1443, 7
    %v1445 = vsub.s32 %v1442, %v1444
    %v1446 = vrot.slane %v943, %v1445
    %v1448 = vunpack.c.l.s4 1983009808
    %v1449 = vunpack.c.0.s8 %v1448
    %v1450 = vlaneseq
    %v1451 = vshrl.u32 %v1450, 7
    %v1452 = vsub.s32 %v1449, %v1451
    %v1453 = vrot.slane %v1439, %v1452
    %v1454 = vcombine.high %v1446, %v1446
    %v1455 = vcombine.high %v1453, %v1453
    %v1456 = vcombine.high %v944, %v944
    %v1458 = vunpack.c.l.s4 1983009808
    %v1459 = vunpack.c.0.s8 %v1458
    %v1460 = vlaneseq
    %v1461 = vshrl.u32 %v1460, 7
    %v1462 = vsub.s32 %v1459, %v1461
    %v1463 = vrot.slane %v944, %v1462
    %v1465 = vunpack.c.l.s4 1983009808
    %v1466 = vunpack.c.0.s8 %v1465
    %v1467 = vlaneseq
    %v1468 = vshrl.u32 %v1467, 7
    %v1469 = vsub.s32 %v1466, %v1468
    %v1470 = vrot.slane %v1456, %v1469
    %v1471 = vcombine.high %v1463, %v1463
    %v1472 = vcombine.high %v1470, %v1470
    %v1473 = vcombine.high %v945, %v945
    %v1475 = vunpack.c.l.s4 1983009808
    %v1476 = vunpack.c.0.s8 %v1475
    %v1477 = vlaneseq
    %v1478 = vshrl.u32 %v1477, 7
    %v1479 = vsub.s32 %v1476, %v1478
    %v1480 = vrot.slane %v945, %v1479
    %v1482 = vunpack.c.l.s4 1983009808
    %v1483 = vunpack.c.0.s8 %v1482
    %v1484 = vlaneseq
    %v1485 = vshrl.u32 %v1484, 7
    %v1486 = vsub.s32 %v1483, %v1485
    %v1487 = vrot.slane %v1473, %v1486
    %v1488 = vcombine.high %v1480, %v1480
    %v1489 = vcombine.high %v1487, %v1487
    %v1490 = vcombine.high %v946, %v946
    %v1492 = vunpack.c.l.s4 1983009808
    %v1493 = vunpack.c.0.s8 %v1492
    %v1494 = vlaneseq
    %v1495 = vshrl.u32 %v1494, 7
    %v1496 = vsub.s32 %v1493, %v1495
    %v1497 = vrot.slane %v946, %v1496
    %v1499 = vunpack.c.l.s4 1983009808
    %v1500 = vunpack.c.0.s8 %v1499
    %v1501 = vlaneseq
    %v1502 = vshrl.u32 %v1501, 7
    %v1503 = vsub.s32 %v1500, %v1502
    %v1504 = vrot.slane %v1490, %v1503
    %v1505 = vcombine.high %v1497, %v1497
    %v1506 = vcombine.high %v1504, %v1504
    %v1507 = vcombine.high %v947, %v947
    %v1509 = vunpack.c.l.s4 1983009808
    %v1510 = vunpack.c.0.s8 %v1509
    %v1511 = vlaneseq
    %v1512 = vshrl.u32 %v1511, 7
    %v1513 = vsub.s32 %v1510, %v1512
    %v1514 = vrot.slane %v947, %v1513
    %v1516 = vunpack.c.l.s4 1983009808
    %v1517 = vunpack.c.0.s8 %v1516
    %v1518 = vlaneseq
    %v1519 = vshrl.u32 %v1518, 7
    %v1520 = vsub.s32 %v1517, %v1519
    %v1521 = vrot.slane %v1507, %v1520
    %v1522 = vcombine.high %v1514, %v1514
    %v1523 = vcombine.high %v1521, %v1521
    %v1524 = vcombine.high %v948, %v948
    %v1526 = vunpack.c.l.s4 1983009808
    %v1527 = vunpack.c.0.s8 %v1526
    %v1528 = vlaneseq
    %v1529 = vshrl.u32 %v1528, 7
    %v1530 = vsub.s32 %v1527, %v1529
    %v1531 = vrot.slane %v948, %v1530
    %v1533 = vunpack.c.l.s4 1983009808
    %v1534 = vunpack.c.0.s8 %v1533
    %v1535 = vlaneseq
    %v1536 = vshrl.u32 %v1535, 7
    %v1537 = vsub.s32 %v1534, %v1536
    %v1538 = vrot.slane %v1524, %v1537
    %v1539 = vcombine.high %v1531, %v1531
    %v1540 = vcombine.high %v1538, %v1538
    %v1541 = vcombine.high %v949, %v949
    %v1543 = vunpack.c.l.s4 1983009808
    %v1544 = vunpack.c.0.s8 %v1543
    %v1545 = vlaneseq
    %v1546 = vshrl.u32 %v1545, 7
    %v1547 = vsub.s32 %v1544, %v1546
    %v1548 = vrot.slane %v949, %v1547
    %v1550 = vunpack.c.l.s4 1983009808
    %v1551 = vunpack.c.0.s8 %v1550
    %v1552 = vlaneseq
    %v1553 = vshrl.u32 %v1552, 7
    %v1554 = vsub.s32 %v1551, %v1553
    %v1555 = vrot.slane %v1541, %v1554
    %v1556 = vcombine.high %v1548, %v1548
    %v1557 = vcombine.high %v1555, %v1555
    %v1558 = vcombine.high %v950, %v950
    %v1560 = vunpack.c.l.s4 1983009808
    %v1561 = vunpack.c.0.s8 %v1560
    %v1562 = vlaneseq
    %v1563 = vshrl.u32 %v1562, 7
    %v1564 = vsub.s32 %v1561, %v1563
    %v1565 = vrot.slane %v950, %v1564
    %v1567 = vunpack.c.l.s4 1983009808
    %v1568 = vunpack.c.0.s8 %v1567
    %v1569 = vlaneseq
    %v1570 = vshrl.u32 %v1569, 7
    %v1571 = vsub.s32 %v1568, %v1570
    %v1572 = vrot.slane %v1558, %v1571
    %v1573 = vcombine.high %v1565, %v1565
    %v1574 = vcombine.high %v1572, %v1572
    %v1575 = vcombine.high %v951, %v951
    %v1577 = vunpack.c.l.s4 1983009808
    %v1578 = vunpack.c.0.s8 %v1577
    %v1579 = vlaneseq
    %v1580 = vshrl.u32 %v1579, 7
    %v1581 = vsub.s32 %v1578, %v1580
    %v1582 = vrot.slane %v951, %v1581
    %v1584 = vunpack.c.l.s4 1983009808
    %v1585 = vunpack.c.0.s8 %v1584
    %v1586 = vlaneseq
    %v1587 = vshrl.u32 %v1586, 7
    %v1588 = vsub.s32 %v1585, %v1587
    %v1589 = vrot.slane %v1575, %v1588
    %v1590 = vcombine.high %v1582, %v1582
    %v1591 = vcombine.high %v1589, %v1589
    %v1592 = vcombine.high %v952, %v952
    %v1594 = vunpack.c.l.s4 1983009808
    %v1595 = vunpack.c.0.s8 %v1594
    %v1596 = vlaneseq
    %v1597 = vshrl.u32 %v1596, 7
    %v1598 = vsub.s32 %v1595, %v1597
    %v1599 = vrot.slane %v952, %v1598
    %v1601 = vunpack.c.l.s4 1983009808
    %v1602 = vunpack.c.0.s8 %v1601
    %v1603 = vlaneseq
    %v1604 = vshrl.u32 %v1603, 7
    %v1605 = vsub.s32 %v1602, %v1604
    %v1606 = vrot.slane %v1592, %v1605
    %v1607 = vcombine.high %v1599, %v1599
    %v1608 = vcombine.high %v1606, %v1606
    %v1609 = vcombine.high %v953, %v953
    %v1611 = vunpack.c.l.s4 1983009808
    %v1612 = vunpack.c.0.s8 %v1611
    %v1613 = vlaneseq
    %v1614 = vshrl.u32 %v1613, 7
    %v1615 = vsub.s32 %v1612, %v1614
    %v1616 = vrot.slane %v953, %v1615
    %v1618 = vunpack.c.l.s4 1983009808
    %v1619 = vunpack.c.0.s8 %v1618
    %v1620 = vlaneseq
    %v1621 = vshrl.u32 %v1620, 7
    %v1622 = vsub.s32 %v1619, %v1621
    %v1623 = vrot.slane %v1609, %v1622
    %v1624 = vcombine.high %v1616, %v1616
    %v1625 = vcombine.high %v1623, %v1623
    %v1626 = vcombine.high %v954, %v954
    %v1628 = vunpack.c.l.s4 1983009808
    %v1629 = vunpack.c.0.s8 %v1628
    %v1630 = vlaneseq
    %v1631 = vshrl.u32 %v1630, 7
    %v1632 = vsub.s32 %v1629, %v1631
    %v1633 = vrot.slane %v954, %v1632
    %v1635 = vunpack.c.l.s4 1983009808
    %v1636 = vunpack.c.0.s8 %v1635
    %v1637 = vlaneseq
    %v1638 = vshrl.u32 %v1637, 7
    %v1639 = vsub.s32 %v1636, %v1638
    %v1640 = vrot.slane %v1626, %v1639
    %v1641 = vcombine.high %v1633, %v1633
    %v1642 = vcombine.high %v1640, %v1640
    %v1643 = vcombine.high %v955, %v955
    %v1645 = vunpack.c.l.s4 1983009808
    %v1646 = vunpack.c.0.s8 %v1645
    %v1647 = vlaneseq
    %v1648 = vshrl.u32 %v1647, 7
    %v1649 = vsub.s32 %v1646, %v1648
    %v1650 = vrot.slane %v955, %v1649
    %v1652 = vunpack.c.l.s4 1983009808
    %v1653 = vunpack.c.0.s8 %v1652
    %v1654 = vlaneseq
    %v1655 = vshrl.u32 %v1654, 7
    %v1656 = vsub.s32 %v1653, %v1655
    %v1657 = vrot.slane %v1643, %v1656
    %v1658 = vcombine.high %v1650, %v1650
    %v1659 = vcombine.high %v1657, %v1657
    %v1660 = vcombine.high %v956, %v956
    %v1662 = vunpack.c.l.s4 1983009808
    %v1663 = vunpack.c.0.s8 %v1662
    %v1664 = vlaneseq
    %v1665 = vshrl.u32 %v1664, 7
    %v1666 = vsub.s32 %v1663, %v1665
    %v1667 = vrot.slane %v956, %v1666
    %v1669 = vunpack.c.l.s4 1983009808
    %v1670 = vunpack.c.0.s8 %v1669
    %v1671 = vlaneseq
    %v1672 = vshrl.u32 %v1671, 7
    %v1673 = vsub.s32 %v1670, %v1672
    %v1674 = vrot.slane %v1660, %v1673
    %v1675 = vcombine.high %v1667, %v1667
    %v1676 = vcombine.high %v1674, %v1674
    %v1677 = vcombine.high %v957, %v957
    %v1679 = vunpack.c.l.s4 1983009808
    %v1680 = vunpack.c.0.s8 %v1679
    %v1681 = vlaneseq
    %v1682 = vshrl.u32 %v1681, 7
    %v1683 = vsub.s32 %v1680, %v1682
    %v1684 = vrot.slane %v957, %v1683
    %v1686 = vunpack.c.l.s4 1983009808
    %v1687 = vunpack.c.0.s8 %v1686
    %v1688 = vlaneseq
    %v1689 = vshrl.u32 %v1688, 7
    %v1690 = vsub.s32 %v1687, %v1689
    %v1691 = vrot.slane %v1677, %v1690
    %v1692 = vcombine.high %v1684, %v1684
    %v1693 = vcombine.high %v1691, %v1691
    %v1694 = vcombine.high %v958, %v958
    %v1696 = vunpack.c.l.s4 1983009808
    %v1697 = vunpack.c.0.s8 %v1696
    %v1698 = vlaneseq
    %v1699 = vshrl.u32 %v1698, 7
    %v1700 = vsub.s32 %v1697, %v1699
    %v1701 = vrot.slane %v958, %v1700
    %v1703 = vunpack.c.l.s4 1983009808
    %v1704 = vunpack.c.0.s8 %v1703
    %v1705 = vlaneseq
    %v1706 = vshrl.u32 %v1705, 7
    %v1707 = vsub.s32 %v1704, %v1706
    %v1708 = vrot.slane %v1694, %v1707
    %v1709 = vcombine.high %v1701, %v1701
    %v1710 = vcombine.high %v1708, %v1708
    %v1711 = vcombine.high %v959, %v959
    %v1713 = vunpack.c.l.s4 1983009808
    %v1714 = vunpack.c.0.s8 %v1713
    %v1715 = vlaneseq
    %v1716 = vshrl.u32 %v1715, 7
    %v1717 = vsub.s32 %v1714, %v1716
    %v1718 = vrot.slane %v959, %v1717
    %v1720 = vunpack.c.l.s4 1983009808
    %v1721 = vunpack.c.0.s8 %v1720
    %v1722 = vlaneseq
    %v1723 = vshrl.u32 %v1722, 7
    %v1724 = vsub.s32 %v1721, %v1723
    %v1725 = vrot.slane %v1711, %v1724
    %v1726 = vcombine.high %v1718, %v1718
    %v1727 = vcombine.high %v1725, %v1725
    %v1728 = vcombine.high %v960, %v960
    %v1730 = vunpack.c.l.s4 1983009808
    %v1731 = vunpack.c.0.s8 %v1730
    %v1732 = vlaneseq
    %v1733 = vshrl.u32 %v1732, 7
    %v1734 = vsub.s32 %v1731, %v1733
    %v1735 = vrot.slane %v960, %v1734
    %v1737 = vunpack.c.l.s4 1983009808
    %v1738 = vunpack.c.0.s8 %v1737
    %v1739 = vlaneseq
    %v1740 = vshrl.u32 %v1739, 7
    %v1741 = vsub.s32 %v1738, %v1740
    %v1742 = vrot.slane %v1728, %v1741
    %v1743 = vcombine.high %v1735, %v1735
    %v1744 = vcombine.high %v1742, %v1742
    %v1745 = vcombine.high %v961, %v961
    %v1747 = vunpack.c.l.s4 1983009808
    %v1748 = vunpack.c.0.s8 %v1747
    %v1749 = vlaneseq
    %v1750 = vshrl.u32 %v1749, 7
    %v1751 = vsub.s32 %v1748, %v1750
    %v1752 = vrot.slane %v961, %v1751
    %v1754 = vunpack.c.l.s4 1983009808
    %v1755 = vunpack.c.0.s8 %v1754
    %v1756 = vlaneseq
    %v1757 = vshrl.u32 %v1756, 7
    %v1758 = vsub.s32 %v1755, %v1757
    %v1759 = vrot.slane %v1745, %v1758
    %v1760 = vcombine.high %v1752, %v1752
    %v1761 = vcombine.high %v1759, %v1759
    %v1762 = vcombine.high %v962, %v962
    %v1764 = vunpack.c.l.s4 1983009808
    %v1765 = vunpack.c.0.s8 %v1764
    %v1766 = vlaneseq
    %v1767 = vshrl.u32 %v1766, 7
    %v1768 = vsub.s32 %v1765, %v1767
    %v1769 = vrot.slane %v962, %v1768
    %v1771 = vunpack.c.l.s4 1983009808
    %v1772 = vunpack.c.0.s8 %v1771
    %v1773 = vlaneseq
    %v1774 = vshrl.u32 %v1773, 7
    %v1775 = vsub.s32 %v1772, %v1774
    %v1776 = vrot.slane %v1762, %v1775
    %v1777 = vcombine.high %v1769, %v1769
    %v1778 = vcombine.high %v1776, %v1776
    %v1779 = vcombine.high %v963, %v963
    %v1781 = vunpack.c.l.s4 1983009808
    %v1782 = vunpack.c.0.s8 %v1781
    %v1783 = vlaneseq
    %v1784 = vshrl.u32 %v1783, 7
    %v1785 = vsub.s32 %v1782, %v1784
    %v1786 = vrot.slane %v963, %v1785
    %v1788 = vunpack.c.l.s4 1983009808
    %v1789 = vunpack.c.0.s8 %v1788
    %v1790 = vlaneseq
    %v1791 = vshrl.u32 %v1790, 7
    %v1792 = vsub.s32 %v1789, %v1791
    %v1793 = vrot.slane %v1779, %v1792
    %v1794 = vcombine.high %v1786, %v1786
    %v1795 = vcombine.high %v1793, %v1793
    %v1796 = vcombine.high %v964, %v964
    %v1798 = vunpack.c.l.s4 1983009808
    %v1799 = vunpack.c.0.s8 %v1798
    %v1800 = vlaneseq
    %v1801 = vshrl.u32 %v1800, 7
    %v1802 = vsub.s32 %v1799, %v1801
    %v1803 = vrot.slane %v964, %v1802
    %v1805 = vunpack.c.l.s4 1983009808
    %v1806 = vunpack.c.0.s8 %v1805
    %v1807 = vlaneseq
    %v1808 = vshrl.u32 %v1807, 7
    %v1809 = vsub.s32 %v1806, %v1808
    %v1810 = vrot.slane %v1796, %v1809
    %v1811 = vcombine.high %v1803, %v1803
    %v1812 = vcombine.high %v1810, %v1810
    %v1813 = vcombine.high %v965, %v965
    %v1815 = vunpack.c.l.s4 1983009808
    %v1816 = vunpack.c.0.s8 %v1815
    %v1817 = vlaneseq
    %v1818 = vshrl.u32 %v1817, 7
    %v1819 = vsub.s32 %v1816, %v1818
    %v1820 = vrot.slane %v965, %v1819
    %v1822 = vunpack.c.l.s4 1983009808
    %v1823 = vunpack.c.0.s8 %v1822
    %v1824 = vlaneseq
    %v1825 = vshrl.u32 %v1824, 7
    %v1826 = vsub.s32 %v1823, %v1825
    %v1827 = vrot.slane %v1813, %v1826
    %v1828 = vcombine.high %v1820, %v1820
    %v1829 = vcombine.high %v1827, %v1827
    %v1830 = vcombine.high %v966, %v966
    %v1832 = vunpack.c.l.s4 1983009808
    %v1833 = vunpack.c.0.s8 %v1832
    %v1834 = vlaneseq
    %v1835 = vshrl.u32 %v1834, 7
    %v1836 = vsub.s32 %v1833, %v1835
    %v1837 = vrot.slane %v966, %v1836
    %v1839 = vunpack.c.l.s4 1983009808
    %v1840 = vunpack.c.0.s8 %v1839
    %v1841 = vlaneseq
    %v1842 = vshrl.u32 %v1841, 7
    %v1843 = vsub.s32 %v1840, %v1842
    %v1844 = vrot.slane %v1830, %v1843
    %v1845 = vcombine.high %v1837, %v1837
    %v1846 = vcombine.high %v1844, %v1844
    %v1847 = vcombine.high %v967, %v967
    %v1849 = vunpack.c.l.s4 1983009808
    %v1850 = vunpack.c.0.s8 %v1849
    %v1851 = vlaneseq
    %v1852 = vshrl.u32 %v1851, 7
    %v1853 = vsub.s32 %v1850, %v1852
    %v1854 = vrot.slane %v967, %v1853
    %v1856 = vunpack.c.l.s4 1983009808
    %v1857 = vunpack.c.0.s8 %v1856
    %v1858 = vlaneseq
    %v1859 = vshrl.u32 %v1858, 7
    %v1860 = vsub.s32 %v1857, %v1859
    %v1861 = vrot.slane %v1847, %v1860
    %v1862 = vcombine.high %v1854, %v1854
    %v1863 = vcombine.high %v1861, %v1861
    %v1864 = vcombine.high %v968, %v968
    %v1866 = vunpack.c.l.s4 1983009808
    %v1867 = vunpack.c.0.s8 %v1866
    %v1868 = vlaneseq
    %v1869 = vshrl.u32 %v1868, 7
    %v1870 = vsub.s32 %v1867, %v1869
    %v1871 = vrot.slane %v968, %v1870
    %v1873 = vunpack.c.l.s4 1983009808
    %v1874 = vunpack.c.0.s8 %v1873
    %v1875 = vlaneseq
    %v1876 = vshrl.u32 %v1875, 7
    %v1877 = vsub.s32 %v1874, %v1876
    %v1878 = vrot.slane %v1864, %v1877
    %v1879 = vcombine.high %v1871, %v1871
    %v1880 = vcombine.high %v1878, %v1878
    %v1881 = vcombine.high %v969, %v969
    %v1883 = vunpack.c.l.s4 1983009808
    %v1884 = vunpack.c.0.s8 %v1883
    %v1885 = vlaneseq
    %v1886 = vshrl.u32 %v1885, 7
    %v1887 = vsub.s32 %v1884, %v1886
    %v1888 = vrot.slane %v969, %v1887
    %v1890 = vunpack.c.l.s4 1983009808
    %v1891 = vunpack.c.0.s8 %v1890
    %v1892 = vlaneseq
    %v1893 = vshrl.u32 %v1892, 7
    %v1894 = vsub.s32 %v1891, %v1893
    %v1895 = vrot.slane %v1881, %v1894
    %v1896 = vcombine.high %v1888, %v1888
    %v1897 = vcombine.high %v1895, %v1895
    %v1898 = vcombine.high %v970, %v970
    %v1900 = vunpack.c.l.s4 1983009808
    %v1901 = vunpack.c.0.s8 %v1900
    %v1902 = vlaneseq
    %v1903 = vshrl.u32 %v1902, 7
    %v1904 = vsub.s32 %v1901, %v1903
    %v1905 = vrot.slane %v970, %v1904
    %v1907 = vunpack.c.l.s4 1983009808
    %v1908 = vunpack.c.0.s8 %v1907
    %v1909 = vlaneseq
    %v1910 = vshrl.u32 %v1909, 7
    %v1911 = vsub.s32 %v1908, %v1910
    %v1912 = vrot.slane %v1898, %v1911
    %v1913 = vcombine.high %v1905, %v1905
    %v1914 = vcombine.high %v1912, %v1912
    %v1915 = vcombine.high %v971, %v971
    %v1917 = vunpack.c.l.s4 1983009808
    %v1918 = vunpack.c.0.s8 %v1917
    %v1919 = vlaneseq
    %v1920 = vshrl.u32 %v1919, 7
    %v1921 = vsub.s32 %v1918, %v1920
    %v1922 = vrot.slane %v971, %v1921
    %v1924 = vunpack.c.l.s4 1983009808
    %v1925 = vunpack.c.0.s8 %v1924
    %v1926 = vlaneseq
    %v1927 = vshrl.u32 %v1926, 7
    %v1928 = vsub.s32 %v1925, %v1927
    %v1929 = vrot.slane %v1915, %v1928
    %v1930 = vcombine.high %v1922, %v1922
    %v1931 = vcombine.high %v1929, %v1929
    %v1932 = vcombine.high %v972, %v972
    %v1934 = vunpack.c.l.s4 1983009808
    %v1935 = vunpack.c.0.s8 %v1934
    %v1936 = vlaneseq
    %v1937 = vshrl.u32 %v1936, 7
    %v1938 = vsub.s32 %v1935, %v1937
    %v1939 = vrot.slane %v972, %v1938
    %v1941 = vunpack.c.l.s4 1983009808
    %v1942 = vunpack.c.0.s8 %v1941
    %v1943 = vlaneseq
    %v1944 = vshrl.u32 %v1943, 7
    %v1945 = vsub.s32 %v1942, %v1944
    %v1946 = vrot.slane %v1932, %v1945
    %v1947 = vcombine.high %v1939, %v1939
    %v1948 = vcombine.high %v1946, %v1946
    %v1949 = vcombine.high %v973, %v973
    %v1951 = vunpack.c.l.s4 1983009808
    %v1952 = vunpack.c.0.s8 %v1951
    %v1953 = vlaneseq
    %v1954 = vshrl.u32 %v1953, 7
    %v1955 = vsub.s32 %v1952, %v1954
    %v1956 = vrot.slane %v973, %v1955
    %v1958 = vunpack.c.l.s4 1983009808
    %v1959 = vunpack.c.0.s8 %v1958
    %v1960 = vlaneseq
    %v1961 = vshrl.u32 %v1960, 7
    %v1962 = vsub.s32 %v1959, %v1961
    %v1963 = vrot.slane %v1949, %v1962
    %v1964 = vcombine.high %v1956, %v1956
    %v1965 = vcombine.high %v1963, %v1963
    %v1966 = vcombine.high %v974, %v974
    %v1968 = vunpack.c.l.s4 1983009808
    %v1969 = vunpack.c.0.s8 %v1968
    %v1970 = vlaneseq
    %v1971 = vshrl.u32 %v1970, 7
    %v1972 = vsub.s32 %v1969, %v1971
    %v1973 = vrot.slane %v974, %v1972
    %v1975 = vunpack.c.l.s4 1983009808
    %v1976 = vunpack.c.0.s8 %v1975
    %v1977 = vlaneseq
    %v1978 = vshrl.u32 %v1977, 7
    %v1979 = vsub.s32 %v1976, %v1978
    %v1980 = vrot.slane %v1966, %v1979
    %v1981 = vcombine.high %v1973, %v1973
    %v1982 = vcombine.high %v1980, %v1980
    %v1983 = vcombine.high %v975, %v975
    %v1985 = vunpack.c.l.s4 1983009808
    %v1986 = vunpack.c.0.s8 %v1985
    %v1987 = vlaneseq
    %v1988 = vshrl.u32 %v1987, 7
    %v1989 = vsub.s32 %v1986, %v1988
    %v1990 = vrot.slane %v975, %v1989
    %v1992 = vunpack.c.l.s4 1983009808
    %v1993 = vunpack.c.0.s8 %v1992
    %v1994 = vlaneseq
    %v1995 = vshrl.u32 %v1994, 7
    %v1996 = vsub.s32 %v1993, %v1995
    %v1997 = vrot.slane %v1983, %v1996
    %v1998 = vcombine.high %v1990, %v1990
    %v1999 = vcombine.high %v1997, %v1997
    %v2000 = vcombine.high %v976, %v976
    %v2002 = vunpack.c.l.s4 1983009808
    %v2003 = vunpack.c.0.s8 %v2002
    %v2004 = vlaneseq
    %v2005 = vshrl.u32 %v2004, 7
    %v2006 = vsub.s32 %v2003, %v2005
    %v2007 = vrot.slane %v976, %v2006
    %v2009 = vunpack.c.l.s4 1983009808
    %v2010 = vunpack.c.0.s8 %v2009
    %v2011 = vlaneseq
    %v2012 = vshrl.u32 %v2011, 7
    %v2013 = vsub.s32 %v2010, %v2012
    %v2014 = vrot.slane %v2000, %v2013
    %v2015 = vcombine.high %v2007, %v2007
    %v2016 = vcombine.high %v2014, %v2014
    %v2017 = vcombine.high %v977, %v977
    %v2019 = vunpack.c.l.s4 1983009808
    %v2020 = vunpack.c.0.s8 %v2019
    %v2021 = vlaneseq
    %v2022 = vshrl.u32 %v2021, 7
    %v2023 = vsub.s32 %v2020, %v2022
    %v2024 = vrot.slane %v977, %v2023
    %v2026 = vunpack.c.l.s4 1983009808
    %v2027 = vunpack.c.0.s8 %v2026
    %v2028 = vlaneseq
    %v2029 = vshrl.u32 %v2028, 7
    %v2030 = vsub.s32 %v2027, %v2029
    %v2031 = vrot.slane %v2017, %v2030
    %v2032 = vcombine.high %v2024, %v2024
    %v2033 = vcombine.high %v2031, %v2031
    %v2034 = vcombine.high %v978, %v978
    %v2036 = vunpack.c.l.s4 1983009808
    %v2037 = vunpack.c.0.s8 %v2036
    %v2038 = vlaneseq
    %v2039 = vshrl.u32 %v2038, 7
    %v2040 = vsub.s32 %v2037, %v2039
    %v2041 = vrot.slane %v978, %v2040
    %v2043 = vunpack.c.l.s4 1983009808
    %v2044 = vunpack.c.0.s8 %v2043
    %v2045 = vlaneseq
    %v2046 = vshrl.u32 %v2045, 7
    %v2047 = vsub.s32 %v2044, %v2046
    %v2048 = vrot.slane %v2034, %v2047
    %v2049 = vcombine.high %v2041, %v2041
    %v2050 = vcombine.high %v2048, %v2048
    %v2051 = vcombine.high %v979, %v979
    %v2053 = vunpack.c.l.s4 1983009808
    %v2054 = vunpack.c.0.s8 %v2053
    %v2055 = vlaneseq
    %v2056 = vshrl.u32 %v2055, 7
    %v2057 = vsub.s32 %v2054, %v2056
    %v2058 = vrot.slane %v979, %v2057
    %v2060 = vunpack.c.l.s4 1983009808
    %v2061 = vunpack.c.0.s8 %v2060
    %v2062 = vlaneseq
    %v2063 = vshrl.u32 %v2062, 7
    %v2064 = vsub.s32 %v2061, %v2063
    %v2065 = vrot.slane %v2051, %v2064
    %v2066 = vcombine.high %v2058, %v2058
    %v2067 = vcombine.high %v2065, %v2065
    %v2068 = vcombine.high %v980, %v980
    %v2070 = vunpack.c.l.s4 1983009808
    %v2071 = vunpack.c.0.s8 %v2070
    %v2072 = vlaneseq
    %v2073 = vshrl.u32 %v2072, 7
    %v2074 = vsub.s32 %v2071, %v2073
    %v2075 = vrot.slane %v980, %v2074
    %v2077 = vunpack.c.l.s4 1983009808
    %v2078 = vunpack.c.0.s8 %v2077
    %v2079 = vlaneseq
    %v2080 = vshrl.u32 %v2079, 7
    %v2081 = vsub.s32 %v2078, %v2080
    %v2082 = vrot.slane %v2068, %v2081
    %v2083 = vcombine.high %v2075, %v2075
    %v2084 = vcombine.high %v2082, %v2082
    %v2085 = vcombine.high %v981, %v981
    %v2087 = vunpack.c.l.s4 1983009808
    %v2088 = vunpack.c.0.s8 %v2087
    %v2089 = vlaneseq
    %v2090 = vshrl.u32 %v2089, 7
    %v2091 = vsub.s32 %v2088, %v2090
    %v2092 = vrot.slane %v981, %v2091
    %v2094 = vunpack.c.l.s4 1983009808
    %v2095 = vunpack.c.0.s8 %v2094
    %v2096 = vlaneseq
    %v2097 = vshrl.u32 %v2096, 7
    %v2098 = vsub.s32 %v2095, %v2097
    %v2099 = vrot.slane %v2085, %v2098
    %v2100 = vcombine.high %v2092, %v2092
    %v2101 = vcombine.high %v2099, %v2099
    %v2102 = vcombine.high %v982, %v982
    %v2104 = vunpack.c.l.s4 1983009808
    %v2105 = vunpack.c.0.s8 %v2104
    %v2106 = vlaneseq
    %v2107 = vshrl.u32 %v2106, 7
    %v2108 = vsub.s32 %v2105, %v2107
    %v2109 = vrot.slane %v982, %v2108
    %v2111 = vunpack.c.l.s4 1983009808
    %v2112 = vunpack.c.0.s8 %v2111
    %v2113 = vlaneseq
    %v2114 = vshrl.u32 %v2113, 7
    %v2115 = vsub.s32 %v2112, %v2114
    %v2116 = vrot.slane %v2102, %v2115
    %v2117 = vcombine.high %v2109, %v2109
    %v2118 = vcombine.high %v2116, %v2116
    %v2119 = vcombine.high %v983, %v983
    %v2121 = vunpack.c.l.s4 1983009808
    %v2122 = vunpack.c.0.s8 %v2121
    %v2123 = vlaneseq
    %v2124 = vshrl.u32 %v2123, 7
    %v2125 = vsub.s32 %v2122, %v2124
    %v2126 = vrot.slane %v983, %v2125
    %v2128 = vunpack.c.l.s4 1983009808
    %v2129 = vunpack.c.0.s8 %v2128
    %v2130 = vlaneseq
    %v2131 = vshrl.u32 %v2130, 7
    %v2132 = vsub.s32 %v2129, %v2131
    %v2133 = vrot.slane %v2119, %v2132
    %v2134 = vcombine.high %v2126, %v2126
    %v2135 = vcombine.high %v2133, %v2133
    %v2392 = vrot.slane %v1055, 7
    %v2393 = vrot.slane %v2392, 2
    %v2394 = vrot.slane %v1063, 7
    %v2395 = vrot.slane %v2394, 2
    %v2396 = vrot.slane %v1062, 7
    %v2397 = vrot.slane %v2396, 2
    %v2398 = vrot.slane %v1064, 7
    %v2399 = vrot.slane %v2398, 2
    %v2400 = vrot.slane %v1072, 7
    %v2401 = vrot.slane %v2400, 2
    %v2402 = vrot.slane %v1080, 7
    %v2403 = vrot.slane %v2402, 2
    %v2404 = vrot.slane %v1079, 7
    %v2405 = vrot.slane %v2404, 2
    %v2406 = vrot.slane %v1081, 7
    %v2407 = vrot.slane %v2406, 2
    %v2408 = vrot.slane %v1089, 7
    %v2409 = vrot.slane %v2408, 2
    %v2410 = vrot.slane %v1097, 7
    %v2411 = vrot.slane %v2410, 2
    %v2412 = vrot.slane %v1096, 7
    %v2413 = vrot.slane %v2412, 2
    %v2414 = vrot.slane %v1098, 7
    %v2415 = vrot.slane %v2414, 2
    %v2416 = vrot.slane %v1106, 7
    %v2417 = vrot.slane %v2416, 2
    %v2418 = vrot.slane %v1114, 7
    %v2419 = vrot.slane %v2418, 2
    %v2420 = vrot.slane %v1113, 7
    %v2421 = vrot.slane %v2420, 2
    %v2422 = vrot.slane %v1115, 7
    %v2423 = vrot.slane %v2422, 2
    %v2424 = vrot.slane %v1123, 7
    %v2425 = vrot.slane %v2424, 2
    %v2426 = vrot.slane %v1131, 7
    %v2427 = vrot.slane %v2426, 2
    %v2428 = vrot.slane %v1130, 7
    %v2429 = vrot.slane %v2428, 2
    %v2430 = vrot.slane %v1132, 7
    %v2431 = vrot.slane %v2430, 2
    %v2432 = vrot.slane %v1140, 7
    %v2433 = vrot.slane %v2432, 2
    %v2434 = vrot.slane %v1148, 7
    %v2435 = vrot.slane %v2434, 2
    %v2436 = vrot.slane %v1147, 7
    %v2437 = vrot.slane %v2436, 2
    %v2438 = vrot.slane %v1149, 7
    %v2439 = vrot.slane %v2438, 2
    %v2440 = vrot.slane %v1157, 7
    %v2441 = vrot.slane %v2440, 2
    %v2442 = vrot.slane %v1165, 7
    %v2443 = vrot.slane %v2442, 2
    %v2444 = vrot.slane %v1164, 7
    %v2445 = vrot.slane %v2444, 2
    %v2446 = vrot.slane %v1166, 7
    %v2447 = vrot.slane %v2446, 2
    %v2448 = vrot.slane %v1174, 7
    %v2449 = vrot.slane %v2448, 2
    %v2450 = vrot.slane %v1182, 7
    %v2451 = vrot.slane %v2450, 2
    %v2452 = vrot.slane %v1181, 7
    %v2453 = vrot.slane %v2452, 2
    %v2454 = vrot.slane %v1183, 7
    %v2455 = vrot.slane %v2454, 2
    %v2456 = vrot.slane %v1191, 7
    %v2457 = vrot.slane %v2456, 2
    %v2458 = vrot.slane %v1199, 7
    %v2459 = vrot.slane %v2458, 2
    %v2460 = vrot.slane %v1198, 7
    %v2461 = vrot.slane %v2460, 2
    %v2462 = vrot.slane %v1200, 7
    %v2463 = vrot.slane %v2462, 2
    %v2464 = vrot.slane %v1208, 7
    %v2465 = vrot.slane %v2464, 2
    %v2466 = vrot.slane %v1216, 7
    %v2467 = vrot.slane %v2466, 2
    %v2468 = vrot.slane %v1215, 7
    %v2469 = vrot.slane %v2468, 2
    %v2470 = vrot.slane %v1217, 7
    %v2471 = vrot.slane %v2470, 2
    %v2472 = vrot.slane %v1225, 7
    %v2473 = vrot.slane %v2472, 2
    %v2474 = vrot.slane %v1233, 7
    %v2475 = vrot.slane %v2474, 2
    %v2476 = vrot.slane %v1232, 7
    %v2477 = vrot.slane %v2476, 2
    %v2478 = vrot.slane %v1234, 7
    %v2479 = vrot.slane %v2478, 2
    %v2480 = vrot.slane %v1242, 7
    %v2481 = vrot.slane %v2480, 2
    %v2482 = vrot.slane %v1250, 7
    %v2483 = vrot.slane %v2482, 2
    %v2484 = vrot.slane %v1249, 7
    %v2485 = vrot.slane %v2484, 2
    %v2486 = vrot.slane %v1251, 7
    %v2487 = vrot.slane %v2486, 2
    %v2488 = vrot.slane %v1259, 7
    %v2489 = vrot.slane %v2488, 2
    %v2490 = vrot.slane %v1267, 7
    %v2491 = vrot.slane %v2490, 2
    %v2492 = vrot.slane %v1266, 7
    %v2493 = vrot.slane %v2492, 2
    %v2494 = vrot.slane %v1268, 7
    %v2495 = vrot.slane %v2494, 2
    %v2496 = vrot.slane %v1276, 7
    %v2497 = vrot.slane %v2496, 2
    %v2498 = vrot.slane %v1284, 7
    %v2499 = vrot.slane %v2498, 2
    %v2500 = vrot.slane %v1283, 7
    %v2501 = vrot.slane %v2500, 2
    %v2502 = vrot.slane %v1285, 7
    %v2503 = vrot.slane %v2502, 2
    %v2504 = vrot.slane %v1293, 7
    %v2505 = vrot.slane %v2504, 2
    %v2506 = vrot.slane %v1301, 7
    %v2507 = vrot.slane %v2506, 2
    %v2508 = vrot.slane %v1300, 7
    %v2509 = vrot.slane %v2508, 2
    %v2510 = vrot.slane %v1302, 7
    %v2511 = vrot.slane %v2510, 2
    %v2512 = vrot.slane %v1310, 7
    %v2513 = vrot.slane %v2512, 2
    %v2514 = vrot.slane %v1318, 7
    %v2515 = vrot.slane %v2514, 2
    %v2516 = vrot.slane %v1317, 7
    %v2517 = vrot.slane %v2516, 2
    %v2518 = vrot.slane %v1319, 7
    %v2519 = vrot.slane %v2518, 2
    %v2520 = vrot.slane %v1327, 7
    %v2521 = vrot.slane %v2520, 2
    %v2522 = vrot.slane %v1335, 7
    %v2523 = vrot.slane %v2522, 2
    %v2524 = vrot.slane %v1334, 7
    %v2525 = vrot.slane %v2524, 2
    %v2526 = vrot.slane %v1336, 7
    %v2527 = vrot.slane %v2526, 2
    %v2528 = vrot.slane %v1344, 7
    %v2529 = vrot.slane %v2528, 2
    %v2530 = vrot.slane %v1352, 7
    %v2531 = vrot.slane %v2530, 2
    %v2532 = vrot.slane %v1351, 7
    %v2533 = vrot.slane %v2532, 2
    %v2534 = vrot.slane %v1353, 7
    %v2535 = vrot.slane %v2534, 2
    %v2536 = vrot.slane %v1361, 7
    %v2537 = vrot.slane %v2536, 2
    %v2538 = vrot.slane %v1369, 7
    %v2539 = vrot.slane %v2538, 2
    %v2540 = vrot.slane %v1368, 7
    %v2541 = vrot.slane %v2540, 2
    %v2542 = vrot.slane %v1370, 7
    %v2543 = vrot.slane %v2542, 2
    %v2544 = vrot.slane %v1378, 7
    %v2545 = vrot.slane %v2544, 2
    %v2546 = vrot.slane %v1386, 7
    %v2547 = vrot.slane %v2546, 2
    %v2548 = vrot.slane %v1385, 7
    %v2549 = vrot.slane %v2548, 2
    %v2550 = vrot.slane %v1387, 7
    %v2551 = vrot.slane %v2550, 2
    %v2552 = vrot.slane %v1395, 7
    %v2553 = vrot.slane %v2552, 2
    %v2554 = vrot.slane %v1403, 7
    %v2555 = vrot.slane %v2554, 2
    %v2556 = vrot.slane %v1402, 7
    %v2557 = vrot.slane %v2556, 2
    %v2558 = vrot.slane %v1404, 7
    %v2559 = vrot.slane %v2558, 2
    %v2560 = vrot.slane %v1412, 7
    %v2561 = vrot.slane %v2560, 2
    %v2562 = vrot.slane %v1420, 7
    %v2563 = vrot.slane %v2562, 2
    %v2564 = vrot.slane %v1419, 7
    %v2565 = vrot.slane %v2564, 2
    %v2566 = vrot.slane %v1421, 7
    %v2567 = vrot.slane %v2566, 2
    %v2568 = vrot.slane %v1429, 7
    %v2569 = vrot.slane %v2568, 2
    %v2570 = vrot.slane %v1437, 7
    %v2571 = vrot.slane %v2570, 2
    %v2572 = vrot.slane %v1436, 7
    %v2573 = vrot.slane %v2572, 2
    %v2574 = vrot.slane %v1438, 7
    %v2575 = vrot.slane %v2574, 2
    %v2576 = vrot.slane %v1446, 7
    %v2577 = vrot.slane %v2576, 2
    %v2578 = vrot.slane %v1454, 7
    %v2579 = vrot.slane %v2578, 2
    %v2580 = vrot.slane %v1453, 7
    %v2581 = vrot.slane %v2580, 2
    %v2582 = vrot.slane %v1455, 7
    %v2583 = vrot.slane %v2582, 2
    %v2584 = vrot.slane %v1463, 7
    %v2585 = vrot.slane %v2584, 2
    %v2586 = vrot.slane %v1471, 7
    %v2587 = vrot.slane %v2586, 2
    %v2588 = vrot.slane %v1470, 7
    %v2589 = vrot.slane %v2588, 2
    %v2590 = vrot.slane %v1472, 7
    %v2591 = vrot.slane %v2590, 2
    %v2592 = vrot.slane %v1480, 7
    %v2593 = vrot.slane %v2592, 2
    %v2594 = vrot.slane %v1488, 7
    %v2595 = vrot.slane %v2594, 2
    %v2596 = vrot.slane %v1487, 7
    %v2597 = vrot.slane %v2596, 2
    %v2598 = vrot.slane %v1489, 7
    %v2599 = vrot.slane %v2598, 2
    %v2600 = vrot.slane %v1497, 7
    %v2601 = vrot.slane %v2600, 2
    %v2602 = vrot.slane %v1505, 7
    %v2603 = vrot.slane %v2602, 2
    %v2604 = vrot.slane %v1504, 7
    %v2605 = vrot.slane %v2604, 2
    %v2606 = vrot.slane %v1506, 7
    %v2607 = vrot.slane %v2606, 2
    %v2608 = vrot.slane %v1514, 7
    %v2609 = vrot.slane %v2608, 2
    %v2610 = vrot.slane %v1522, 7
    %v2611 = vrot.slane %v2610, 2
    %v2612 = vrot.slane %v1521, 7
    %v2613 = vrot.slane %v2612, 2
    %v2614 = vrot.slane %v1523, 7
    %v2615 = vrot.slane %v2614, 2
    %v2616 = vrot.slane %v1531, 7
    %v2617 = vrot.slane %v2616, 2
    %v2618 = vrot.slane %v1539, 7
    %v2619 = vrot.slane %v2618, 2
    %v2620 = vrot.slane %v1538, 7
    %v2621 = vrot.slane %v2620, 2
    %v2622 = vrot.slane %v1540, 7
    %v2623 = vrot.slane %v2622, 2
    %v2624 = vrot.slane %v1548, 7
    %v2625 = vrot.slane %v2624, 2
    %v2626 = vrot.slane %v1556, 7
    %v2627 = vrot.slane %v2626, 2
    %v2628 = vrot.slane %v1555, 7
    %v2629 = vrot.slane %v2628, 2
    %v2630 = vrot.slane %v1557, 7
    %v2631 = vrot.slane %v2630, 2
    %v2632 = vrot.slane %v1565, 7
    %v2633 = vrot.slane %v2632, 2
    %v2634 = vrot.slane %v1573, 7
    %v2635 = vrot.slane %v2634, 2
    %v2636 = vrot.slane %v1572, 7
    %v2637 = vrot.slane %v2636, 2
    %v2638 = vrot.slane %v1574, 7
    %v2639 = vrot.slane %v2638, 2
    %v2640 = vrot.slane %v1582, 7
    %v2641 = vrot.slane %v2640, 2
    %v2642 = vrot.slane %v1590, 7
    %v2643 = vrot.slane %v2642, 2
    %v2644 = vrot.slane %v1589, 7
    %v2645 = vrot.slane %v2644, 2
    %v2646 = vrot.slane %v1591, 7
    %v2647 = vrot.slane %v2646, 2
    %v2648 = vrot.slane %v1599, 7
    %v2649 = vrot.slane %v2648, 2
    %v2650 = vrot.slane %v1607, 7
    %v2651 = vrot.slane %v2650, 2
    %v2652 = vrot.slane %v1606, 7
    %v2653 = vrot.slane %v2652, 2
    %v2654 = vrot.slane %v1608, 7
    %v2655 = vrot.slane %v2654, 2
    %v2656 = vrot.slane %v1616, 7
    %v2657 = vrot.slane %v2656, 2
    %v2658 = vrot.slane %v1624, 7
    %v2659 = vrot.slane %v2658, 2
    %v2660 = vrot.slane %v1623, 7
    %v2661 = vrot.slane %v2660, 2
    %v2662 = vrot.slane %v1625, 7
    %v2663 = vrot.slane %v2662, 2
    %v2664 = vrot.slane %v1633, 7
    %v2665 = vrot.slane %v2664, 2
    %v2666 = vrot.slane %v1641, 7
    %v2667 = vrot.slane %v2666, 2
    %v2668 = vrot.slane %v1640, 7
    %v2669 = vrot.slane %v2668, 2
    %v2670 = vrot.slane %v1642, 7
    %v2671 = vrot.slane %v2670, 2
    %v2672 = vrot.slane %v1650, 7
    %v2673 = vrot.slane %v2672, 2
    %v2674 = vrot.slane %v1658, 7
    %v2675 = vrot.slane %v2674, 2
    %v2676 = vrot.slane %v1657, 7
    %v2677 = vrot.slane %v2676, 2
    %v2678 = vrot.slane %v1659, 7
    %v2679 = vrot.slane %v2678, 2
    %v2680 = vrot.slane %v1667, 7
    %v2681 = vrot.slane %v2680, 2
    %v2682 = vrot.slane %v1675, 7
    %v2683 = vrot.slane %v2682, 2
    %v2684 = vrot.slane %v1674, 7
    %v2685 = vrot.slane %v2684, 2
    %v2686 = vrot.slane %v1676, 7
    %v2687 = vrot.slane %v2686, 2
    %v2688 = vrot.slane %v1684, 7
    %v2689 = vrot.slane %v2688, 2
    %v2690 = vrot.slane %v1692, 7
    %v2691 = vrot.slane %v2690, 2
    %v2692 = vrot.slane %v1691, 7
    %v2693 = vrot.slane %v2692, 2
    %v2694 = vrot.slane %v1693, 7
    %v2695 = vrot.slane %v2694, 2
    %v2696 = vrot.slane %v1701, 7
    %v2697 = vrot.slane %v2696, 2
    %v2698 = vrot.slane %v1709, 7
    %v2699 = vrot.slane %v2698, 2
    %v2700 = vrot.slane %v1708, 7
    %v2701 = vrot.slane %v2700, 2
    %v2702 = vrot.slane %v1710, 7
    %v2703 = vrot.slane %v2702, 2
    %v2704 = vrot.slane %v1718, 7
    %v2705 = vrot.slane %v2704, 2
    %v2706 = vrot.slane %v1726, 7
    %v2707 = vrot.slane %v2706, 2
    %v2708 = vrot.slane %v1725, 7
    %v2709 = vrot.slane %v2708, 2
    %v2710 = vrot.slane %v1727, 7
    %v2711 = vrot.slane %v2710, 2
    %v2712 = vrot.slane %v1735, 7
    %v2713 = vrot.slane %v2712, 2
    %v2714 = vrot.slane %v1743, 7
    %v2715 = vrot.slane %v2714, 2
    %v2716 = vrot.slane %v1742, 7
    %v2717 = vrot.slane %v2716, 2
    %v2718 = vrot.slane %v1744, 7
    %v2719 = vrot.slane %v2718, 2
    %v2720 = vrot.slane %v1752, 7
    %v2721 = vrot.slane %v2720, 2
    %v2722 = vrot.slane %v1760, 7
    %v2723 = vrot.slane %v2722, 2
    %v2724 = vrot.slane %v1759, 7
    %v2725 = vrot.slane %v2724, 2
    %v2726 = vrot.slane %v1761, 7
    %v2727 = vrot.slane %v2726, 2
    %v2728 = vrot.slane %v1769, 7
    %v2729 = vrot.slane %v2728, 2
    %v2730 = vrot.slane %v1777, 7
    %v2731 = vrot.slane %v2730, 2
    %v2732 = vrot.slane %v1776, 7
    %v2733 = vrot.slane %v2732, 2
    %v2734 = vrot.slane %v1778, 7
    %v2735 = vrot.slane %v2734, 2
    %v2736 = vrot.slane %v1786, 7
    %v2737 = vrot.slane %v2736, 2
    %v2738 = vrot.slane %v1794, 7
    %v2739 = vrot.slane %v2738, 2
    %v2740 = vrot.slane %v1793, 7
    %v2741 = vrot.slane %v2740, 2
    %v2742 = vrot.slane %v1795, 7
    %v2743 = vrot.slane %v2742, 2
    %v2744 = vrot.slane %v1803, 7
    %v2745 = vrot.slane %v2744, 2
    %v2746 = vrot.slane %v1811, 7
    %v2747 = vrot.slane %v2746, 2
    %v2748 = vrot.slane %v1810, 7
    %v2749 = vrot.slane %v2748, 2
    %v2750 = vrot.slane %v1812, 7
    %v2751 = vrot.slane %v2750, 2
    %v2752 = vrot.slane %v1820, 7
    %v2753 = vrot.slane %v2752, 2
    %v2754 = vrot.slane %v1828, 7
    %v2755 = vrot.slane %v2754, 2
    %v2756 = vrot.slane %v1827, 7
    %v2757 = vrot.slane %v2756, 2
    %v2758 = vrot.slane %v1829, 7
    %v2759 = vrot.slane %v2758, 2
    %v2760 = vrot.slane %v1837, 7
    %v2761 = vrot.slane %v2760, 2
    %v2762 = vrot.slane %v1845, 7
    %v2763 = vrot.slane %v2762, 2
    %v2764 = vrot.slane %v1844, 7
    %v2765 = vrot.slane %v2764, 2
    %v2766 = vrot.slane %v1846, 7
    %v2767 = vrot.slane %v2766, 2
    %v2768 = vrot.slane %v1854, 7
    %v2769 = vrot.slane %v2768, 2
    %v2770 = vrot.slane %v1862, 7
    %v2771 = vrot.slane %v2770, 2
    %v2772 = vrot.slane %v1861, 7
    %v2773 = vrot.slane %v2772, 2
    %v2774 = vrot.slane %v1863, 7
    %v2775 = vrot.slane %v2774, 2
    %v2776 = vrot.slane %v1871, 7
    %v2777 = vrot.slane %v2776, 2
    %v2778 = vrot.slane %v1879, 7
    %v2779 = vrot.slane %v2778, 2
    %v2780 = vrot.slane %v1878, 7
    %v2781 = vrot.slane %v2780, 2
    %v2782 = vrot.slane %v1880, 7
    %v2783 = vrot.slane %v2782, 2
    %v2784 = vrot.slane %v1888, 7
    %v2785 = vrot.slane %v2784, 2
    %v2786 = vrot.slane %v1896, 7
    %v2787 = vrot.slane %v2786, 2
    %v2788 = vrot.slane %v1895, 7
    %v2789 = vrot.slane %v2788, 2
    %v2790 = vrot.slane %v1897, 7
    %v2791 = vrot.slane %v2790, 2
    %v2792 = vrot.slane %v1905, 7
    %v2793 = vrot.slane %v2792, 2
    %v2794 = vrot.slane %v1913, 7
    %v2795 = vrot.slane %v2794, 2
    %v2796 = vrot.slane %v1912, 7
    %v2797 = vrot.slane %v2796, 2
    %v2798 = vrot.slane %v1914, 7
    %v2799 = vrot.slane %v2798, 2
    %v2800 = vrot.slane %v1922, 7
    %v2801 = vrot.slane %v2800, 2
    %v2802 = vrot.slane %v1930, 7
    %v2803 = vrot.slane %v2802, 2
    %v2804 = vrot.slane %v1929, 7
    %v2805 = vrot.slane %v2804, 2
    %v2806 = vrot.slane %v1931, 7
    %v2807 = vrot.slane %v2806, 2
    %v2808 = vrot.slane %v1939, 7
    %v2809 = vrot.slane %v2808, 2
    %v2810 = vrot.slane %v1947, 7
    %v2811 = vrot.slane %v2810, 2
    %v2812 = vrot.slane %v1946, 7
    %v2813 = vrot.slane %v2812, 2
    %v2814 = vrot.slane %v1948, 7
    %v2815 = vrot.slane %v2814, 2
    %v2816 = vrot.slane %v1956, 7
    %v2817 = vrot.slane %v2816, 2
    %v2818 = vrot.slane %v1964, 7
    %v2819 = vrot.slane %v2818, 2
    %v2820 = vrot.slane %v1963, 7
    %v2821 = vrot.slane %v2820, 2
    %v2822 = vrot.slane %v1965, 7
    %v2823 = vrot.slane %v2822, 2
    %v2824 = vrot.slane %v1973, 7
    %v2825 = vrot.slane %v2824, 2
    %v2826 = vrot.slane %v1981, 7
    %v2827 = vrot.slane %v2826, 2
    %v2828 = vrot.slane %v1980, 7
    %v2829 = vrot.slane %v2828, 2
    %v2830 = vrot.slane %v1982, 7
    %v2831 = vrot.slane %v2830, 2
    %v2832 = vrot.slane %v1990, 7
    %v2833 = vrot.slane %v2832, 2
    %v2834 = vrot.slane %v1998, 7
    %v2835 = vrot.slane %v2834, 2
    %v2836 = vrot.slane %v1997, 7
    %v2837 = vrot.slane %v2836, 2
    %v2838 = vrot.slane %v1999, 7
    %v2839 = vrot.slane %v2838, 2
    %v2840 = vrot.slane %v2007, 7
    %v2841 = vrot.slane %v2840, 2
    %v2842 = vrot.slane %v2015, 7
    %v2843 = vrot.slane %v2842, 2
    %v2844 = vrot.slane %v2014, 7
    %v2845 = vrot.slane %v2844, 2
    %v2846 = vrot.slane %v2016, 7
    %v2847 = vrot.slane %v2846, 2
    %v2848 = vrot.slane %v2024, 7
    %v2849 = vrot.slane %v2848, 2
    %v2850 = vrot.slane %v2032, 7
    %v2851 = vrot.slane %v2850, 2
    %v2852 = vrot.slane %v2031, 7
    %v2853 = vrot.slane %v2852, 2
    %v2854 = vrot.slane %v2033, 7
    %v2855 = vrot.slane %v2854, 2
    %v2856 = vrot.slane %v2041, 7
    %v2857 = vrot.slane %v2856, 2
    %v2858 = vrot.slane %v2049, 7
    %v2859 = vrot.slane %v2858, 2
    %v2860 = vrot.slane %v2048, 7
    %v2861 = vrot.slane %v2860, 2
    %v2862 = vrot.slane %v2050, 7
    %v2863 = vrot.slane %v2862, 2
    %v2864 = vrot.slane %v2058, 7
    %v2865 = vrot.slane %v2864, 2
    %v2866 = vrot.slane %v2066, 7
    %v2867 = vrot.slane %v2866, 2
    %v2868 = vrot.slane %v2065, 7
    %v2869 = vrot.slane %v2868, 2
    %v2870 = vrot.slane %v2067, 7
    %v2871 = vrot.slane %v2870, 2
    %v2872 = vrot.slane %v2075, 7
    %v2873 = vrot.slane %v2872, 2
    %v2874 = vrot.slane %v2083, 7
    %v2875 = vrot.slane %v2874, 2
    %v2876 = vrot.slane %v2082, 7
    %v2877 = vrot.slane %v2876, 2
    %v2878 = vrot.slane %v2084, 7
    %v2879 = vrot.slane %v2878, 2
    %v2880 = vrot.slane %v2092, 7
    %v2881 = vrot.slane %v2880, 2
    %v2882 = vrot.slane %v2100, 7
    %v2883 = vrot.slane %v2882, 2
    %v2884 = vrot.slane %v2099, 7
    %v2885 = vrot.slane %v2884, 2
    %v2886 = vrot.slane %v2101, 7
    %v2887 = vrot.slane %v2886, 2
    %v2888 = vrot.slane %v2109, 7
    %v2889 = vrot.slane %v2888, 2
    %v2890 = vrot.slane %v2117, 7
    %v2891 = vrot.slane %v2890, 2
    %v2892 = vrot.slane %v2116, 7
    %v2893 = vrot.slane %v2892, 2
    %v2894 = vrot.slane %v2118, 7
    %v2895 = vrot.slane %v2894, 2
    %v2896 = vrot.slane %v2126, 7
    %v2897 = vrot.slane %v2896, 2
    %v2898 = vrot.slane %v2134, 7
    %v2899 = vrot.slane %v2898, 2
    %v2900 = vrot.slane %v2133, 7
    %v2901 = vrot.slane %v2900, 2
    %v2902 = vrot.slane %v2135, 7
    %v2903 = vrot.slane %v2902, 2
    %v3160 = vmax.f32 %v1055, %v2393
    %v3161 = vmax.f32 %v1063, %v2395
    %v3162 = vmax.f32 %v1062, %v2397
    %v3163 = vmax.f32 %v1064, %v2399
    %v3164 = vmax.f32 %v1072, %v2401
    %v3165 = vmax.f32 %v1080, %v2403
    %v3166 = vmax.f32 %v1079, %v2405
    %v3167 = vmax.f32 %v1081, %v2407
    %v3168 = vmax.f32 %v1089, %v2409
    %v3169 = vmax.f32 %v1097, %v2411
    %v3170 = vmax.f32 %v1096, %v2413
    %v3171 = vmax.f32 %v1098, %v2415
    %v3172 = vmax.f32 %v1106, %v2417
    %v3173 = vmax.f32 %v1114, %v2419
    %v3174 = vmax.f32 %v1113, %v2421
    %v3175 = vmax.f32 %v1115, %v2423
    %v3176 = vmax.f32 %v1123, %v2425
    %v3177 = vmax.f32 %v1131, %v2427
    %v3178 = vmax.f32 %v1130, %v2429
    %v3179 = vmax.f32 %v1132, %v2431
    %v3180 = vmax.f32 %v1140, %v2433
    %v3181 = vmax.f32 %v1148, %v2435
    %v3182 = vmax.f32 %v1147, %v2437
    %v3183 = vmax.f32 %v1149, %v2439
    %v3184 = vmax.f32 %v1157, %v2441
    %v3185 = vmax.f32 %v1165, %v2443
    %v3186 = vmax.f32 %v1164, %v2445
    %v3187 = vmax.f32 %v1166, %v2447
    %v3188 = vmax.f32 %v1174, %v2449
    %v3189 = vmax.f32 %v1182, %v2451
    %v3190 = vmax.f32 %v1181, %v2453
    %v3191 = vmax.f32 %v1183, %v2455
    %v3192 = vmax.f32 %v1191, %v2457
    %v3193 = vmax.f32 %v1199, %v2459
    %v3194 = vmax.f32 %v1198, %v2461
    %v3195 = vmax.f32 %v1200, %v2463
    %v3196 = vmax.f32 %v1208, %v2465
    %v3197 = vmax.f32 %v1216, %v2467
    %v3198 = vmax.f32 %v1215, %v2469
    %v3199 = vmax.f32 %v1217, %v2471
    %v3200 = vmax.f32 %v1225, %v2473
    %v3201 = vmax.f32 %v1233, %v2475
    %v3202 = vmax.f32 %v1232, %v2477
    %v3203 = vmax.f32 %v1234, %v2479
    %v3204 = vmax.f32 %v1242, %v2481
    %v3205 = vmax.f32 %v1250, %v2483
    %v3206 = vmax.f32 %v1249, %v2485
    %v3207 = vmax.f32 %v1251, %v2487
    %v3208 = vmax.f32 %v1259, %v2489
    %v3209 = vmax.f32 %v1267, %v2491
    %v3210 = vmax.f32 %v1266, %v2493
    %v3211 = vmax.f32 %v1268, %v2495
    %v3212 = vmax.f32 %v1276, %v2497
    %v3213 = vmax.f32 %v1284, %v2499
    %v3214 = vmax.f32 %v1283, %v2501
    %v3215 = vmax.f32 %v1285, %v2503
    %v3216 = vmax.f32 %v1293, %v2505
    %v3217 = vmax.f32 %v1301, %v2507
    %v3218 = vmax.f32 %v1300, %v2509
    %v3219 = vmax.f32 %v1302, %v2511
    %v3220 = vmax.f32 %v1310, %v2513
    %v3221 = vmax.f32 %v1318, %v2515
    %v3222 = vmax.f32 %v1317, %v2517
    %v3223 = vmax.f32 %v1319, %v2519
    %v3224 = vmax.f32 %v1327, %v2521
    %v3225 = vmax.f32 %v1335, %v2523
    %v3226 = vmax.f32 %v1334, %v2525
    %v3227 = vmax.f32 %v1336, %v2527
    %v3228 = vmax.f32 %v1344, %v2529
    %v3229 = vmax.f32 %v1352, %v2531
    %v3230 = vmax.f32 %v1351, %v2533
    %v3231 = vmax.f32 %v1353, %v2535
    %v3232 = vmax.f32 %v1361, %v2537
    %v3233 = vmax.f32 %v1369, %v2539
    %v3234 = vmax.f32 %v1368, %v2541
    %v3235 = vmax.f32 %v1370, %v2543
    %v3236 = vmax.f32 %v1378, %v2545
    %v3237 = vmax.f32 %v1386, %v2547
    %v3238 = vmax.f32 %v1385, %v2549
    %v3239 = vmax.f32 %v1387, %v2551
    %v3240 = vmax.f32 %v1395, %v2553
    %v3241 = vmax.f32 %v1403, %v2555
    %v3242 = vmax.f32 %v1402, %v2557
    %v3243 = vmax.f32 %v1404, %v2559
    %v3244 = vmax.f32 %v1412, %v2561
    %v3245 = vmax.f32 %v1420, %v2563
    %v3246 = vmax.f32 %v1419, %v2565
    %v3247 = vmax.f32 %v1421, %v2567
    %v3248 = vmax.f32 %v1429, %v2569
    %v3249 = vmax.f32 %v1437, %v2571
    %v3250 = vmax.f32 %v1436, %v2573
    %v3251 = vmax.f32 %v1438, %v2575
    %v3252 = vmax.f32 %v1446, %v2577
    %v3253 = vmax.f32 %v1454, %v2579
    %v3254 = vmax.f32 %v1453, %v2581
    %v3255 = vmax.f32 %v1455, %v2583
    %v3256 = vmax.f32 %v1463, %v2585
    %v3257 = vmax.f32 %v1471, %v2587
    %v3258 = vmax.f32 %v1470, %v2589
    %v3259 = vmax.f32 %v1472, %v2591
    %v3260 = vmax.f32 %v1480, %v2593
    %v3261 = vmax.f32 %v1488, %v2595
    %v3262 = vmax.f32 %v1487, %v2597
    %v3263 = vmax.f32 %v1489, %v2599
    %v3264 = vmax.f32 %v1497, %v2601
    %v3265 = vmax.f32 %v1505, %v2603
    %v3266 = vmax.f32 %v1504, %v2605
    %v3267 = vmax.f32 %v1506, %v2607
    %v3268 = vmax.f32 %v1514, %v2609
    %v3269 = vmax.f32 %v1522, %v2611
    %v3270 = vmax.f32 %v1521, %v2613
    %v3271 = vmax.f32 %v1523, %v2615
    %v3272 = vmax.f32 %v1531, %v2617
    %v3273 = vmax.f32 %v1539, %v2619
    %v3274 = vmax.f32 %v1538, %v2621
    %v3275 = vmax.f32 %v1540, %v2623
    %v3276 = vmax.f32 %v1548, %v2625
    %v3277 = vmax.f32 %v1556, %v2627
    %v3278 = vmax.f32 %v1555, %v2629
    %v3279 = vmax.f32 %v1557, %v2631
    %v3280 = vmax.f32 %v1565, %v2633
    %v3281 = vmax.f32 %v1573, %v2635
    %v3282 = vmax.f32 %v1572, %v2637
    %v3283 = vmax.f32 %v1574, %v2639
    %v3284 = vmax.f32 %v1582, %v2641
    %v3285 = vmax.f32 %v1590, %v2643
    %v3286 = vmax.f32 %v1589, %v2645
    %v3287 = vmax.f32 %v1591, %v2647
    %v3288 = vmax.f32 %v1599, %v2649
    %v3289 = vmax.f32 %v1607, %v2651
    %v3290 = vmax.f32 %v1606, %v2653
    %v3291 = vmax.f32 %v1608, %v2655
    %v3292 = vmax.f32 %v1616, %v2657
    %v3293 = vmax.f32 %v1624, %v2659
    %v3294 = vmax.f32 %v1623, %v2661
    %v3295 = vmax.f32 %v1625, %v2663
    %v3296 = vmax.f32 %v1633, %v2665
    %v3297 = vmax.f32 %v1641, %v2667
    %v3298 = vmax.f32 %v1640, %v2669
    %v3299 = vmax.f32 %v1642, %v2671
    %v3300 = vmax.f32 %v1650, %v2673
    %v3301 = vmax.f32 %v1658, %v2675
    %v3302 = vmax.f32 %v1657, %v2677
    %v3303 = vmax.f32 %v1659, %v2679
    %v3304 = vmax.f32 %v1667, %v2681
    %v3305 = vmax.f32 %v1675, %v2683
    %v3306 = vmax.f32 %v1674, %v2685
    %v3307 = vmax.f32 %v1676, %v2687
    %v3308 = vmax.f32 %v1684, %v2689
    %v3309 = vmax.f32 %v1692, %v2691
    %v3310 = vmax.f32 %v1691, %v2693
    %v3311 = vmax.f32 %v1693, %v2695
    %v3312 = vmax.f32 %v1701, %v2697
    %v3313 = vmax.f32 %v1709, %v2699
    %v3314 = vmax.f32 %v1708, %v2701
    %v3315 = vmax.f32 %v1710, %v2703
    %v3316 = vmax.f32 %v1718, %v2705
    %v3317 = vmax.f32 %v1726, %v2707
    %v3318 = vmax.f32 %v1725, %v2709
    %v3319 = vmax.f32 %v1727, %v2711
    %v3320 = vmax.f32 %v1735, %v2713
    %v3321 = vmax.f32 %v1743, %v2715
    %v3322 = vmax.f32 %v1742, %v2717
    %v3323 = vmax.f32 %v1744, %v2719
    %v3324 = vmax.f32 %v1752, %v2721
    %v3325 = vmax.f32 %v1760, %v2723
    %v3326 = vmax.f32 %v1759, %v2725
    %v3327 = vmax.f32 %v1761, %v2727
    %v3328 = vmax.f32 %v1769, %v2729
    %v3329 = vmax.f32 %v1777, %v2731
    %v3330 = vmax.f32 %v1776, %v2733
    %v3331 = vmax.f32 %v1778, %v2735
    %v3332 = vmax.f32 %v1786, %v2737
    %v3333 = vmax.f32 %v1794, %v2739
    %v3334 = vmax.f32 %v1793, %v2741
    %v3335 = vmax.f32 %v1795, %v2743
    %v3336 = vmax.f32 %v1803, %v2745
    %v3337 = vmax.f32 %v1811, %v2747
    %v3338 = vmax.f32 %v1810, %v2749
    %v3339 = vmax.f32 %v1812, %v2751
    %v3340 = vmax.f32 %v1820, %v2753
    %v3341 = vmax.f32 %v1828, %v2755
    %v3342 = vmax.f32 %v1827, %v2757
    %v3343 = vmax.f32 %v1829, %v2759
    %v3344 = vmax.f32 %v1837, %v2761
    %v3345 = vmax.f32 %v1845, %v2763
    %v3346 = vmax.f32 %v1844, %v2765
    %v3347 = vmax.f32 %v1846, %v2767
    %v3348 = vmax.f32 %v1854, %v2769
    %v3349 = vmax.f32 %v1862, %v2771
    %v3350 = vmax.f32 %v1861, %v2773
    %v3351 = vmax.f32 %v1863, %v2775
    %v3352 = vmax.f32 %v1871, %v2777
    %v3353 = vmax.f32 %v1879, %v2779
    %v3354 = vmax.f32 %v1878, %v2781
    %v3355 = vmax.f32 %v1880, %v2783
    %v3356 = vmax.f32 %v1888, %v2785
    %v3357 = vmax.f32 %v1896, %v2787
    %v3358 = vmax.f32 %v1895, %v2789
    %v3359 = vmax.f32 %v1897, %v2791
    %v3360 = vmax.f32 %v1905, %v2793
    %v3361 = vmax.f32 %v1913, %v2795
    %v3362 = vmax.f32 %v1912, %v2797
    %v3363 = vmax.f32 %v1914, %v2799
    %v3364 = vmax.f32 %v1922, %v2801
    %v3365 = vmax.f32 %v1930, %v2803
    %v3366 = vmax.f32 %v1929, %v2805
    %v3367 = vmax.f32 %v1931, %v2807
    %v3368 = vmax.f32 %v1939, %v2809
    %v3369 = vmax.f32 %v1947, %v2811
    %v3370 = vmax.f32 %v1946, %v2813
    %v3371 = vmax.f32 %v1948, %v2815
    %v3372 = vmax.f32 %v1956, %v2817
    %v3373 = vmax.f32 %v1964, %v2819
    %v3374 = vmax.f32 %v1963, %v2821
    %v3375 = vmax.f32 %v1965, %v2823
    %v3376 = vmax.f32 %v1973, %v2825
    %v3377 = vmax.f32 %v1981, %v2827
    %v3378 = vmax.f32 %v1980, %v2829
    %v3379 = vmax.f32 %v1982, %v2831
    %v3380 = vmax.f32 %v1990, %v2833
    %v3381 = vmax.f32 %v1998, %v2835
    %v3382 = vmax.f32 %v1997, %v2837
    %v3383 = vmax.f32 %v1999, %v2839
    %v3384 = vmax.f32 %v2007, %v2841
    %v3385 = vmax.f32 %v2015, %v2843
    %v3386 = vmax.f32 %v2014, %v2845
    %v3387 = vmax.f32 %v2016, %v2847
    %v3388 = vmax.f32 %v2024, %v2849
    %v3389 = vmax.f32 %v2032, %v2851
    %v3390 = vmax.f32 %v2031, %v2853
    %v3391 = vmax.f32 %v2033, %v2855
    %v3392 = vmax.f32 %v2041, %v2857
    %v3393 = vmax.f32 %v2049, %v2859
    %v3394 = vmax.f32 %v2048, %v2861
    %v3395 = vmax.f32 %v2050, %v2863
    %v3396 = vmax.f32 %v2058, %v2865
    %v3397 = vmax.f32 %v2066, %v2867
    %v3398 = vmax.f32 %v2065, %v2869
    %v3399 = vmax.f32 %v2067, %v2871
    %v3400 = vmax.f32 %v2075, %v2873
    %v3401 = vmax.f32 %v2083, %v2875
    %v3402 = vmax.f32 %v2082, %v2877
    %v3403 = vmax.f32 %v2084, %v2879
    %v3404 = vmax.f32 %v2092, %v2881
    %v3405 = vmax.f32 %v2100, %v2883
    %v3406 = vmax.f32 %v2099, %v2885
    %v3407 = vmax.f32 %v2101, %v2887
    %v3408 = vmax.f32 %v2109, %v2889
    %v3409 = vmax.f32 %v2117, %v2891
    %v3410 = vmax.f32 %v2116, %v2893
    %v3411 = vmax.f32 %v2118, %v2895
    %v3412 = vmax.f32 %v2126, %v2897
    %v3413 = vmax.f32 %v2134, %v2899
    %v3414 = vmax.f32 %v2133, %v2901
    %v3415 = vmax.f32 %v2135, %v2903
    %v3416 = vmax.f32 %v3160, %v3168
    %v3417 = vmax.f32 %v3161, %v3169
    %v3418 = vmax.f32 %v3162, %v3170
    %v3419 = vmax.f32 %v3163, %v3171
    %v3420 = vmax.f32 %v3164, %v3172
    %v3421 = vmax.f32 %v3165, %v3173
    %v3422 = vmax.f32 %v3166, %v3174
    %v3423 = vmax.f32 %v3167, %v3175
    %v3424 = vmax.f32 %v3176, %v3184
    %v3425 = vmax.f32 %v3177, %v3185
    %v3426 = vmax.f32 %v3178, %v3186
    %v3427 = vmax.f32 %v3179, %v3187
    %v3428 = vmax.f32 %v3180, %v3188
    %v3429 = vmax.f32 %v3181, %v3189
    %v3430 = vmax.f32 %v3182, %v3190
    %v3431 = vmax.f32 %v3183, %v3191
    %v3432 = vmax.f32 %v3192, %v3200
    %v3433 = vmax.f32 %v3193, %v3201
    %v3434 = vmax.f32 %v3194, %v3202
    %v3435 = vmax.f32 %v3195, %v3203
    %v3436 = vmax.f32 %v3196, %v3204
    %v3437 = vmax.f32 %v3197, %v3205
    %v3438 = vmax.f32 %v3198, %v3206
    %v3439 = vmax.f32 %v3199, %v3207
    %v3440 = vmax.f32 %v3208, %v3216
    %v3441 = vmax.f32 %v3209, %v3217
    %v3442 = vmax.f32 %v3210, %v3218
    %v3443 = vmax.f32 %v3211, %v3219
    %v3444 = vmax.f32 %v3212, %v3220
    %v3445 = vmax.f32 %v3213, %v3221
    %v3446 = vmax.f32 %v3214, %v3222
    %v3447 = vmax.f32 %v3215, %v3223
    %v3448 = vmax.f32 %v3224, %v3232
    %v3449 = vmax.f32 %v3225, %v3233
    %v3450 = vmax.f32 %v3226, %v3234
    %v3451 = vmax.f32 %v3227, %v3235
    %v3452 = vmax.f32 %v3228, %v3236
    %v3453 = vmax.f32 %v3229, %v3237
    %v3454 = vmax.f32 %v3230, %v3238
    %v3455 = vmax.f32 %v3231, %v3239
    %v3456 = vmax.f32 %v3240, %v3248
    %v3457 = vmax.f32 %v3241, %v3249
    %v3458 = vmax.f32 %v3242, %v3250
    %v3459 = vmax.f32 %v3243, %v3251
    %v3460 = vmax.f32 %v3244, %v3252
    %v3461 = vmax.f32 %v3245, %v3253
    %v3462 = vmax.f32 %v3246, %v3254
    %v3463 = vmax.f32 %v3247, %v3255
    %v3464 = vmax.f32 %v3256, %v3264
    %v3465 = vmax.f32 %v3257, %v3265
    %v3466 = vmax.f32 %v3258, %v3266
    %v3467 = vmax.f32 %v3259, %v3267
    %v3468 = vmax.f32 %v3260, %v3268
    %v3469 = vmax.f32 %v3261, %v3269
    %v3470 = vmax.f32 %v3262, %v3270
    %v3471 = vmax.f32 %v3263, %v3271
    %v3472 = vmax.f32 %v3272, %v3280
    %v3473 = vmax.f32 %v3273, %v3281
    %v3474 = vmax.f32 %v3274, %v3282
    %v3475 = vmax.f32 %v3275, %v3283
    %v3476 = vmax.f32 %v3276, %v3284
    %v3477 = vmax.f32 %v3277, %v3285
    %v3478 = vmax.f32 %v3278, %v3286
    %v3479 = vmax.f32 %v3279, %v3287
    %v3480 = vmax.f32 %v3288, %v3296
    %v3481 = vmax.f32 %v3289, %v3297
    %v3482 = vmax.f32 %v3290, %v3298
    %v3483 = vmax.f32 %v3291, %v3299
    %v3484 = vmax.f32 %v3292, %v3300
    %v3485 = vmax.f32 %v3293, %v3301
    %v3486 = vmax.f32 %v3294, %v3302
    %v3487 = vmax.f32 %v3295, %v3303
    %v3488 = vmax.f32 %v3304, %v3312
    %v3489 = vmax.f32 %v3305, %v3313
    %v3490 = vmax.f32 %v3306, %v3314
    %v3491 = vmax.f32 %v3307, %v3315
    %v3492 = vmax.f32 %v3308, %v3316
    %v3493 = vmax.f32 %v3309, %v3317
    %v3494 = vmax.f32 %v3310, %v3318
    %v3495 = vmax.f32 %v3311, %v3319
    %v3496 = vmax.f32 %v3320, %v3328
    %v3497 = vmax.f32 %v3321, %v3329
    %v3498 = vmax.f32 %v3322, %v3330
    %v3499 = vmax.f32 %v3323, %v3331
    %v3500 = vmax.f32 %v3324, %v3332
    %v3501 = vmax.f32 %v3325, %v3333
    %v3502 = vmax.f32 %v3326, %v3334
    %v3503 = vmax.f32 %v3327, %v3335
    %v3504 = vmax.f32 %v3336, %v3344
    %v3505 = vmax.f32 %v3337, %v3345
    %v3506 = vmax.f32 %v3338, %v3346
    %v3507 = vmax.f32 %v3339, %v3347
    %v3508 = vmax.f32 %v3340, %v3348
    %v3509 = vmax.f32 %v3341, %v3349
    %v3510 = vmax.f32 %v3342, %v3350
    %v3511 = vmax.f32 %v3343, %v3351
    %v3512 = vmax.f32 %v3352, %v3360
    %v3513 = vmax.f32 %v3353, %v3361
    %v3514 = vmax.f32 %v3354, %v3362
    %v3515 = vmax.f32 %v3355, %v3363
    %v3516 = vmax.f32 %v3356, %v3364
    %v3517 = vmax.f32 %v3357, %v3365
    %v3518 = vmax.f32 %v3358, %v3366
    %v3519 = vmax.f32 %v3359, %v3367
    %v3520 = vmax.f32 %v3368, %v3376
    %v3521 = vmax.f32 %v3369, %v3377
    %v3522 = vmax.f32 %v3370, %v3378
    %v3523 = vmax.f32 %v3371, %v3379
    %v3524 = vmax.f32 %v3372, %v3380
    %v3525 = vmax.f32 %v3373, %v3381
    %v3526 = vmax.f32 %v3374, %v3382
    %v3527 = vmax.f32 %v3375, %v3383
    %v3528 = vmax.f32 %v3384, %v3392
    %v3529 = vmax.f32 %v3385, %v3393
    %v3530 = vmax.f32 %v3386, %v3394
    %v3531 = vmax.f32 %v3387, %v3395
    %v3532 = vmax.f32 %v3388, %v3396
    %v3533 = vmax.f32 %v3389, %v3397
    %v3534 = vmax.f32 %v3390, %v3398
    %v3535 = vmax.f32 %v3391, %v3399
    %v3536 = vmax.f32 %v3400, %v3408
    %v3537 = vmax.f32 %v3401, %v3409
    %v3538 = vmax.f32 %v3402, %v3410
    %v3539 = vmax.f32 %v3403, %v3411
    %v3540 = vmax.f32 %v3404, %v3412
    %v3541 = vmax.f32 %v3405, %v3413
    %v3542 = vmax.f32 %v3406, %v3414
    %v3543 = vmax.f32 %v3407, %v3415
    %vm3544 = vcmask 261120
    %3545 = vst.msk [vmem:[#allocation2] sm:$0xff] %vm3544, 0.0
    %vm3546 = vcmask 254976
    %3547 = vst.msk [vmem:[#allocation2 + $0x8] sm:$0x3] %vm3546, 0.0
    %3548 = vst.msk [vmem:[#allocation2 + $0x10] sm:$0xff] %vm3544, 0.0
    %3549 = vst.msk [vmem:[#allocation2 + $0x18] sm:$0x3] %vm3546, 0.0
    %3550 = vst.msk [vmem:[#allocation2 + $0x20] sm:$0xff] %vm3544, 0.0
    %3551 = vst.msk [vmem:[#allocation2 + $0x28] sm:$0x3] %vm3546, 0.0
    %3552 = vst.msk [vmem:[#allocation2 + $0x30] sm:$0xff] %vm3544, 0.0
    %3553 = vst.msk [vmem:[#allocation2 + $0x38] sm:$0x3] %vm3546, 0.0
    %3554 = vst.msk [vmem:[#allocation2 + $0x40] sm:$0xff] %vm3544, 0.0
    %3555 = vst.msk [vmem:[#allocation2 + $0x48] sm:$0x3] %vm3546, 0.0
    %3556 = vst.msk [vmem:[#allocation2 + $0x50] sm:$0xff] %vm3544, 0.0
    %3557 = vst.msk [vmem:[#allocation2 + $0x58] sm:$0x3] %vm3546, 0.0
    %3558 = vst.msk [vmem:[#allocation2 + $0x60] sm:$0xff] %vm3544, 0.0
    %3559 = vst.msk [vmem:[#allocation2 + $0x68] sm:$0x3] %vm3546, 0.0
    %3560 = vst.msk [vmem:[#allocation2 + $0x70] sm:$0xff] %vm3544, 0.0
    %3561 = vst.msk [vmem:[#allocation2 + $0x78] sm:$0x3] %vm3546, 0.0
    %3562 = vst.msk [vmem:[#allocation2 + $0x80] sm:$0xff] %vm3544, 0.0
    %3563 = vst.msk [vmem:[#allocation2 + $0x88] sm:$0x3] %vm3546, 0.0
    %3564 = vst.msk [vmem:[#allocation2 + $0x90] sm:$0xff] %vm3544, 0.0
    %3565 = vst.msk [vmem:[#allocation2 + $0x98] sm:$0x3] %vm3546, 0.0
    %3566 = vst.msk [vmem:[#allocation2 + $0xa0] sm:$0xff] %vm3544, 0.0
    %3567 = vst.msk [vmem:[#allocation2 + $0xa8] sm:$0x3] %vm3546, 0.0
    %3568 = vst.msk [vmem:[#allocation2 + $0xb0] sm:$0xff] %vm3544, 0.0
    %3569 = vst.msk [vmem:[#allocation2 + $0xb8] sm:$0x3] %vm3546, 0.0
    %3570 = vst.msk [vmem:[#allocation2 + $0xc0] sm:$0xff] %vm3544, 0.0
    %3571 = vst.msk [vmem:[#allocation2 + $0xc8] sm:$0x3] %vm3546, 0.0
    %3572 = vst.msk [vmem:[#allocation2 + $0xd0] sm:$0xff] %vm3544, 0.0
    %3573 = vst.msk [vmem:[#allocation2 + $0xd8] sm:$0x3] %vm3546, 0.0
    %3574 = vst.msk [vmem:[#allocation2 + $0xe0] sm:$0xff] %vm3544, 0.0
    %3575 = vst.msk [vmem:[#allocation2 + $0xe8] sm:$0x3] %vm3546, 0.0
    %3576 = vst.msk [vmem:[#allocation2 + $0xf0] sm:$0xff] %vm3544, 0.0
    %3577 = vst.msk [vmem:[#allocation2 + $0xf8] sm:$0x3] %vm3546, 0.0
    %3578 = vst.msk [vmem:[#allocation2 + $0x100] sm:$0xff] %vm3544, 0.0
    %3579 = vst.msk [vmem:[#allocation2 + $0x108] sm:$0x3] %vm3546, 0.0
    %3580 = vst.msk [vmem:[#allocation2 + $0x110] sm:$0xff] %vm3544, 0.0
    %3581 = vst.msk [vmem:[#allocation2 + $0x118] sm:$0x3] %vm3546, 0.0
    %3582 = vst.msk [vmem:[#allocation2 + $0x120] sm:$0xff] %vm3544, 0.0
    %3583 = vst.msk [vmem:[#allocation2 + $0x128] sm:$0x3] %vm3546, 0.0
    %3584 = vst.msk [vmem:[#allocation2 + $0x130] sm:$0xff] %vm3544, 0.0
    %3585 = vst.msk [vmem:[#allocation2 + $0x138] sm:$0x3] %vm3546, 0.0
    %v3714 = vlaneseq
    %v3715 = vshrl.u32 %v3714, 7
    %v3716 = vsub.s32 0, %v3715
    %v3717 = vrot.slane %v3416, %v3716
    %v3718 = vlaneseq
    %v3719 = vshrl.u32 %v3718, 7
    %v3720 = vsub.s32 0, %v3719
    %v3721 = vrot.slane %v3417, %v3720
    %v3722 = vlaneseq
    %v3723 = vshrl.u32 %v3722, 7
    %v3724 = vsub.s32 0, %v3723
    %v3725 = vrot.slane %v3418, %v3724
    %v3726 = vlaneseq
    %v3727 = vshrl.u32 %v3726, 7
    %v3728 = vsub.s32 0, %v3727
    %v3729 = vrot.slane %v3419, %v3728
    %v3730 = vlaneseq
    %v3731 = vshrl.u32 %v3730, 7
    %v3732 = vsub.s32 0, %v3731
    %v3733 = vrot.slane %v3420, %v3732
    %v3734 = vlaneseq
    %v3735 = vshrl.u32 %v3734, 7
    %v3736 = vsub.s32 0, %v3735
    %v3737 = vrot.slane %v3421, %v3736
    %v3738 = vlaneseq
    %v3739 = vshrl.u32 %v3738, 7
    %v3740 = vsub.s32 0, %v3739
    %v3741 = vrot.slane %v3422, %v3740
    %v3742 = vlaneseq
    %v3743 = vshrl.u32 %v3742, 7
    %v3744 = vsub.s32 0, %v3743
    %v3745 = vrot.slane %v3423, %v3744
    %v3746 = vlaneseq
    %v3747 = vshrl.u32 %v3746, 7
    %v3748 = vsub.s32 0, %v3747
    %v3749 = vrot.slane %v3424, %v3748
    %v3750 = vlaneseq
    %v3751 = vshrl.u32 %v3750, 7
    %v3752 = vsub.s32 0, %v3751
    %v3753 = vrot.slane %v3425, %v3752
    %v3754 = vlaneseq
    %v3755 = vshrl.u32 %v3754, 7
    %v3756 = vsub.s32 0, %v3755
    %v3757 = vrot.slane %v3426, %v3756
    %v3758 = vlaneseq
    %v3759 = vshrl.u32 %v3758, 7
    %v3760 = vsub.s32 0, %v3759
    %v3761 = vrot.slane %v3427, %v3760
    %v3762 = vlaneseq
    %v3763 = vshrl.u32 %v3762, 7
    %v3764 = vsub.s32 0, %v3763
    %v3765 = vrot.slane %v3428, %v3764
    %v3766 = vlaneseq
    %v3767 = vshrl.u32 %v3766, 7
    %v3768 = vsub.s32 0, %v3767
    %v3769 = vrot.slane %v3429, %v3768
    %v3770 = vlaneseq
    %v3771 = vshrl.u32 %v3770, 7
    %v3772 = vsub.s32 0, %v3771
    %v3773 = vrot.slane %v3430, %v3772
    %v3774 = vlaneseq
    %v3775 = vshrl.u32 %v3774, 7
    %v3776 = vsub.s32 0, %v3775
    %v3777 = vrot.slane %v3431, %v3776
    %v3778 = vlaneseq
    %v3779 = vshrl.u32 %v3778, 7
    %v3780 = vsub.s32 0, %v3779
    %v3781 = vrot.slane %v3432, %v3780
    %v3782 = vlaneseq
    %v3783 = vshrl.u32 %v3782, 7
    %v3784 = vsub.s32 0, %v3783
    %v3785 = vrot.slane %v3433, %v3784
    %v3786 = vlaneseq
    %v3787 = vshrl.u32 %v3786, 7
    %v3788 = vsub.s32 0, %v3787
    %v3789 = vrot.slane %v3434, %v3788
    %v3790 = vlaneseq
    %v3791 = vshrl.u32 %v3790, 7
    %v3792 = vsub.s32 0, %v3791
    %v3793 = vrot.slane %v3435, %v3792
    %v3794 = vlaneseq
    %v3795 = vshrl.u32 %v3794, 7
    %v3796 = vsub.s32 0, %v3795
    %v3797 = vrot.slane %v3436, %v3796
    %v3798 = vlaneseq
    %v3799 = vshrl.u32 %v3798, 7
    %v3800 = vsub.s32 0, %v3799
    %v3801 = vrot.slane %v3437, %v3800
    %v3802 = vlaneseq
    %v3803 = vshrl.u32 %v3802, 7
    %v3804 = vsub.s32 0, %v3803
    %v3805 = vrot.slane %v3438, %v3804
    %v3806 = vlaneseq
    %v3807 = vshrl.u32 %v3806, 7
    %v3808 = vsub.s32 0, %v3807
    %v3809 = vrot.slane %v3439, %v3808
    %v3810 = vlaneseq
    %v3811 = vshrl.u32 %v3810, 7
    %v3812 = vsub.s32 0, %v3811
    %v3813 = vrot.slane %v3440, %v3812
    %v3814 = vlaneseq
    %v3815 = vshrl.u32 %v3814, 7
    %v3816 = vsub.s32 0, %v3815
    %v3817 = vrot.slane %v3441, %v3816
    %v3818 = vlaneseq
    %v3819 = vshrl.u32 %v3818, 7
    %v3820 = vsub.s32 0, %v3819
    %v3821 = vrot.slane %v3442, %v3820
    %v3822 = vlaneseq
    %v3823 = vshrl.u32 %v3822, 7
    %v3824 = vsub.s32 0, %v3823
    %v3825 = vrot.slane %v3443, %v3824
    %v3826 = vlaneseq
    %v3827 = vshrl.u32 %v3826, 7
    %v3828 = vsub.s32 0, %v3827
    %v3829 = vrot.slane %v3444, %v3828
    %v3830 = vlaneseq
    %v3831 = vshrl.u32 %v3830, 7
    %v3832 = vsub.s32 0, %v3831
    %v3833 = vrot.slane %v3445, %v3832
    %v3834 = vlaneseq
    %v3835 = vshrl.u32 %v3834, 7
    %v3836 = vsub.s32 0, %v3835
    %v3837 = vrot.slane %v3446, %v3836
    %v3838 = vlaneseq
    %v3839 = vshrl.u32 %v3838, 7
    %v3840 = vsub.s32 0, %v3839
    %v3841 = vrot.slane %v3447, %v3840
    %v3842 = vlaneseq
    %v3843 = vshrl.u32 %v3842, 7
    %v3844 = vsub.s32 0, %v3843
    %v3845 = vrot.slane %v3448, %v3844
    %v3846 = vlaneseq
    %v3847 = vshrl.u32 %v3846, 7
    %v3848 = vsub.s32 0, %v3847
    %v3849 = vrot.slane %v3449, %v3848
    %v3850 = vlaneseq
    %v3851 = vshrl.u32 %v3850, 7
    %v3852 = vsub.s32 0, %v3851
    %v3853 = vrot.slane %v3450, %v3852
    %v3854 = vlaneseq
    %v3855 = vshrl.u32 %v3854, 7
    %v3856 = vsub.s32 0, %v3855
    %v3857 = vrot.slane %v3451, %v3856
    %v3858 = vlaneseq
    %v3859 = vshrl.u32 %v3858, 7
    %v3860 = vsub.s32 0, %v3859
    %v3861 = vrot.slane %v3452, %v3860
    %v3862 = vlaneseq
    %v3863 = vshrl.u32 %v3862, 7
    %v3864 = vsub.s32 0, %v3863
    %v3865 = vrot.slane %v3453, %v3864
    %v3866 = vlaneseq
    %v3867 = vshrl.u32 %v3866, 7
    %v3868 = vsub.s32 0, %v3867
    %v3869 = vrot.slane %v3454, %v3868
    %v3870 = vlaneseq
    %v3871 = vshrl.u32 %v3870, 7
    %v3872 = vsub.s32 0, %v3871
    %v3873 = vrot.slane %v3455, %v3872
    %v3874 = vlaneseq
    %v3875 = vshrl.u32 %v3874, 7
    %v3876 = vsub.s32 0, %v3875
    %v3877 = vrot.slane %v3456, %v3876
    %v3878 = vlaneseq
    %v3879 = vshrl.u32 %v3878, 7
    %v3880 = vsub.s32 0, %v3879
    %v3881 = vrot.slane %v3457, %v3880
    %v3882 = vlaneseq
    %v3883 = vshrl.u32 %v3882, 7
    %v3884 = vsub.s32 0, %v3883
    %v3885 = vrot.slane %v3458, %v3884
    %v3886 = vlaneseq
    %v3887 = vshrl.u32 %v3886, 7
    %v3888 = vsub.s32 0, %v3887
    %v3889 = vrot.slane %v3459, %v3888
    %v3890 = vlaneseq
    %v3891 = vshrl.u32 %v3890, 7
    %v3892 = vsub.s32 0, %v3891
    %v3893 = vrot.slane %v3460, %v3892
    %v3894 = vlaneseq
    %v3895 = vshrl.u32 %v3894, 7
    %v3896 = vsub.s32 0, %v3895
    %v3897 = vrot.slane %v3461, %v3896
    %v3898 = vlaneseq
    %v3899 = vshrl.u32 %v3898, 7
    %v3900 = vsub.s32 0, %v3899
    %v3901 = vrot.slane %v3462, %v3900
    %v3902 = vlaneseq
    %v3903 = vshrl.u32 %v3902, 7
    %v3904 = vsub.s32 0, %v3903
    %v3905 = vrot.slane %v3463, %v3904
    %v3906 = vlaneseq
    %v3907 = vshrl.u32 %v3906, 7
    %v3908 = vsub.s32 0, %v3907
    %v3909 = vrot.slane %v3464, %v3908
    %v3910 = vlaneseq
    %v3911 = vshrl.u32 %v3910, 7
    %v3912 = vsub.s32 0, %v3911
    %v3913 = vrot.slane %v3465, %v3912
    %v3914 = vlaneseq
    %v3915 = vshrl.u32 %v3914, 7
    %v3916 = vsub.s32 0, %v3915
    %v3917 = vrot.slane %v3466, %v3916
    %v3918 = vlaneseq
    %v3919 = vshrl.u32 %v3918, 7
    %v3920 = vsub.s32 0, %v3919
    %v3921 = vrot.slane %v3467, %v3920
    %v3922 = vlaneseq
    %v3923 = vshrl.u32 %v3922, 7
    %v3924 = vsub.s32 0, %v3923
    %v3925 = vrot.slane %v3468, %v3924
    %v3926 = vlaneseq
    %v3927 = vshrl.u32 %v3926, 7
    %v3928 = vsub.s32 0, %v3927
    %v3929 = vrot.slane %v3469, %v3928
    %v3930 = vlaneseq
    %v3931 = vshrl.u32 %v3930, 7
    %v3932 = vsub.s32 0, %v3931
    %v3933 = vrot.slane %v3470, %v3932
    %v3934 = vlaneseq
    %v3935 = vshrl.u32 %v3934, 7
    %v3936 = vsub.s32 0, %v3935
    %v3937 = vrot.slane %v3471, %v3936
    %v3938 = vlaneseq
    %v3939 = vshrl.u32 %v3938, 7
    %v3940 = vsub.s32 0, %v3939
    %v3941 = vrot.slane %v3472, %v3940
    %v3942 = vlaneseq
    %v3943 = vshrl.u32 %v3942, 7
    %v3944 = vsub.s32 0, %v3943
    %v3945 = vrot.slane %v3473, %v3944
    %v3946 = vlaneseq
    %v3947 = vshrl.u32 %v3946, 7
    %v3948 = vsub.s32 0, %v3947
    %v3949 = vrot.slane %v3474, %v3948
    %v3950 = vlaneseq
    %v3951 = vshrl.u32 %v3950, 7
    %v3952 = vsub.s32 0, %v3951
    %v3953 = vrot.slane %v3475, %v3952
    %v3954 = vlaneseq
    %v3955 = vshrl.u32 %v3954, 7
    %v3956 = vsub.s32 0, %v3955
    %v3957 = vrot.slane %v3476, %v3956
    %v3958 = vlaneseq
    %v3959 = vshrl.u32 %v3958, 7
    %v3960 = vsub.s32 0, %v3959
    %v3961 = vrot.slane %v3477, %v3960
    %v3962 = vlaneseq
    %v3963 = vshrl.u32 %v3962, 7
    %v3964 = vsub.s32 0, %v3963
    %v3965 = vrot.slane %v3478, %v3964
    %v3966 = vlaneseq
    %v3967 = vshrl.u32 %v3966, 7
    %v3968 = vsub.s32 0, %v3967
    %v3969 = vrot.slane %v3479, %v3968
    %v3970 = vlaneseq
    %v3971 = vshrl.u32 %v3970, 7
    %v3972 = vsub.s32 0, %v3971
    %v3973 = vrot.slane %v3480, %v3972
    %v3974 = vlaneseq
    %v3975 = vshrl.u32 %v3974, 7
    %v3976 = vsub.s32 0, %v3975
    %v3977 = vrot.slane %v3481, %v3976
    %v3978 = vlaneseq
    %v3979 = vshrl.u32 %v3978, 7
    %v3980 = vsub.s32 0, %v3979
    %v3981 = vrot.slane %v3482, %v3980
    %v3982 = vlaneseq
    %v3983 = vshrl.u32 %v3982, 7
    %v3984 = vsub.s32 0, %v3983
    %v3985 = vrot.slane %v3483, %v3984
    %v3986 = vlaneseq
    %v3987 = vshrl.u32 %v3986, 7
    %v3988 = vsub.s32 0, %v3987
    %v3989 = vrot.slane %v3484, %v3988
    %v3990 = vlaneseq
    %v3991 = vshrl.u32 %v3990, 7
    %v3992 = vsub.s32 0, %v3991
    %v3993 = vrot.slane %v3485, %v3992
    %v3994 = vlaneseq
    %v3995 = vshrl.u32 %v3994, 7
    %v3996 = vsub.s32 0, %v3995
    %v3997 = vrot.slane %v3486, %v3996
    %v3998 = vlaneseq
    %v3999 = vshrl.u32 %v3998, 7
    %v4000 = vsub.s32 0, %v3999
    %v4001 = vrot.slane %v3487, %v4000
    %v4002 = vlaneseq
    %v4003 = vshrl.u32 %v4002, 7
    %v4004 = vsub.s32 0, %v4003
    %v4005 = vrot.slane %v3488, %v4004
    %v4006 = vlaneseq
    %v4007 = vshrl.u32 %v4006, 7
    %v4008 = vsub.s32 0, %v4007
    %v4009 = vrot.slane %v3489, %v4008
    %v4010 = vlaneseq
    %v4011 = vshrl.u32 %v4010, 7
    %v4012 = vsub.s32 0, %v4011
    %v4013 = vrot.slane %v3490, %v4012
    %v4014 = vlaneseq
    %v4015 = vshrl.u32 %v4014, 7
    %v4016 = vsub.s32 0, %v4015
    %v4017 = vrot.slane %v3491, %v4016
    %v4018 = vlaneseq
    %v4019 = vshrl.u32 %v4018, 7
    %v4020 = vsub.s32 0, %v4019
    %v4021 = vrot.slane %v3492, %v4020
    %v4022 = vlaneseq
    %v4023 = vshrl.u32 %v4022, 7
    %v4024 = vsub.s32 0, %v4023
    %v4025 = vrot.slane %v3493, %v4024
    %v4026 = vlaneseq
    %v4027 = vshrl.u32 %v4026, 7
    %v4028 = vsub.s32 0, %v4027
    %v4029 = vrot.slane %v3494, %v4028
    %v4030 = vlaneseq
    %v4031 = vshrl.u32 %v4030, 7
    %v4032 = vsub.s32 0, %v4031
    %v4033 = vrot.slane %v3495, %v4032
    %v4034 = vlaneseq
    %v4035 = vshrl.u32 %v4034, 7
    %v4036 = vsub.s32 0, %v4035
    %v4037 = vrot.slane %v3496, %v4036
    %v4038 = vlaneseq
    %v4039 = vshrl.u32 %v4038, 7
    %v4040 = vsub.s32 0, %v4039
    %v4041 = vrot.slane %v3497, %v4040
    %v4042 = vlaneseq
    %v4043 = vshrl.u32 %v4042, 7
    %v4044 = vsub.s32 0, %v4043
    %v4045 = vrot.slane %v3498, %v4044
    %v4046 = vlaneseq
    %v4047 = vshrl.u32 %v4046, 7
    %v4048 = vsub.s32 0, %v4047
    %v4049 = vrot.slane %v3499, %v4048
    %v4050 = vlaneseq
    %v4051 = vshrl.u32 %v4050, 7
    %v4052 = vsub.s32 0, %v4051
    %v4053 = vrot.slane %v3500, %v4052
    %v4054 = vlaneseq
    %v4055 = vshrl.u32 %v4054, 7
    %v4056 = vsub.s32 0, %v4055
    %v4057 = vrot.slane %v3501, %v4056
    %v4058 = vlaneseq
    %v4059 = vshrl.u32 %v4058, 7
    %v4060 = vsub.s32 0, %v4059
    %v4061 = vrot.slane %v3502, %v4060
    %v4062 = vlaneseq
    %v4063 = vshrl.u32 %v4062, 7
    %v4064 = vsub.s32 0, %v4063
    %v4065 = vrot.slane %v3503, %v4064
    %v4066 = vlaneseq
    %v4067 = vshrl.u32 %v4066, 7
    %v4068 = vsub.s32 0, %v4067
    %v4069 = vrot.slane %v3504, %v4068
    %v4070 = vlaneseq
    %v4071 = vshrl.u32 %v4070, 7
    %v4072 = vsub.s32 0, %v4071
    %v4073 = vrot.slane %v3505, %v4072
    %v4074 = vlaneseq
    %v4075 = vshrl.u32 %v4074, 7
    %v4076 = vsub.s32 0, %v4075
    %v4077 = vrot.slane %v3506, %v4076
    %v4078 = vlaneseq
    %v4079 = vshrl.u32 %v4078, 7
    %v4080 = vsub.s32 0, %v4079
    %v4081 = vrot.slane %v3507, %v4080
    %v4082 = vlaneseq
    %v4083 = vshrl.u32 %v4082, 7
    %v4084 = vsub.s32 0, %v4083
    %v4085 = vrot.slane %v3508, %v4084
    %v4086 = vlaneseq
    %v4087 = vshrl.u32 %v4086, 7
    %v4088 = vsub.s32 0, %v4087
    %v4089 = vrot.slane %v3509, %v4088
    %v4090 = vlaneseq
    %v4091 = vshrl.u32 %v4090, 7
    %v4092 = vsub.s32 0, %v4091
    %v4093 = vrot.slane %v3510, %v4092
    %v4094 = vlaneseq
    %v4095 = vshrl.u32 %v4094, 7
    %v4096 = vsub.s32 0, %v4095
    %v4097 = vrot.slane %v3511, %v4096
    %v4098 = vlaneseq
    %v4099 = vshrl.u32 %v4098, 7
    %v4100 = vsub.s32 0, %v4099
    %v4101 = vrot.slane %v3512, %v4100
    %v4102 = vlaneseq
    %v4103 = vshrl.u32 %v4102, 7
    %v4104 = vsub.s32 0, %v4103
    %v4105 = vrot.slane %v3513, %v4104
    %v4106 = vlaneseq
    %v4107 = vshrl.u32 %v4106, 7
    %v4108 = vsub.s32 0, %v4107
    %v4109 = vrot.slane %v3514, %v4108
    %v4110 = vlaneseq
    %v4111 = vshrl.u32 %v4110, 7
    %v4112 = vsub.s32 0, %v4111
    %v4113 = vrot.slane %v3515, %v4112
    %v4114 = vlaneseq
    %v4115 = vshrl.u32 %v4114, 7
    %v4116 = vsub.s32 0, %v4115
    %v4117 = vrot.slane %v3516, %v4116
    %v4118 = vlaneseq
    %v4119 = vshrl.u32 %v4118, 7
    %v4120 = vsub.s32 0, %v4119
    %v4121 = vrot.slane %v3517, %v4120
    %v4122 = vlaneseq
    %v4123 = vshrl.u32 %v4122, 7
    %v4124 = vsub.s32 0, %v4123
    %v4125 = vrot.slane %v3518, %v4124
    %v4126 = vlaneseq
    %v4127 = vshrl.u32 %v4126, 7
    %v4128 = vsub.s32 0, %v4127
    %v4129 = vrot.slane %v3519, %v4128
    %v4130 = vlaneseq
    %v4131 = vshrl.u32 %v4130, 7
    %v4132 = vsub.s32 0, %v4131
    %v4133 = vrot.slane %v3520, %v4132
    %v4134 = vlaneseq
    %v4135 = vshrl.u32 %v4134, 7
    %v4136 = vsub.s32 0, %v4135
    %v4137 = vrot.slane %v3521, %v4136
    %v4138 = vlaneseq
    %v4139 = vshrl.u32 %v4138, 7
    %v4140 = vsub.s32 0, %v4139
    %v4141 = vrot.slane %v3522, %v4140
    %v4142 = vlaneseq
    %v4143 = vshrl.u32 %v4142, 7
    %v4144 = vsub.s32 0, %v4143
    %v4145 = vrot.slane %v3523, %v4144
    %v4146 = vlaneseq
    %v4147 = vshrl.u32 %v4146, 7
    %v4148 = vsub.s32 0, %v4147
    %v4149 = vrot.slane %v3524, %v4148
    %v4150 = vlaneseq
    %v4151 = vshrl.u32 %v4150, 7
    %v4152 = vsub.s32 0, %v4151
    %v4153 = vrot.slane %v3525, %v4152
    %v4154 = vlaneseq
    %v4155 = vshrl.u32 %v4154, 7
    %v4156 = vsub.s32 0, %v4155
    %v4157 = vrot.slane %v3526, %v4156
    %v4158 = vlaneseq
    %v4159 = vshrl.u32 %v4158, 7
    %v4160 = vsub.s32 0, %v4159
    %v4161 = vrot.slane %v3527, %v4160
    %v4162 = vlaneseq
    %v4163 = vshrl.u32 %v4162, 7
    %v4164 = vsub.s32 0, %v4163
    %v4165 = vrot.slane %v3528, %v4164
    %v4166 = vlaneseq
    %v4167 = vshrl.u32 %v4166, 7
    %v4168 = vsub.s32 0, %v4167
    %v4169 = vrot.slane %v3529, %v4168
    %v4170 = vlaneseq
    %v4171 = vshrl.u32 %v4170, 7
    %v4172 = vsub.s32 0, %v4171
    %v4173 = vrot.slane %v3530, %v4172
    %v4174 = vlaneseq
    %v4175 = vshrl.u32 %v4174, 7
    %v4176 = vsub.s32 0, %v4175
    %v4177 = vrot.slane %v3531, %v4176
    %v4178 = vlaneseq
    %v4179 = vshrl.u32 %v4178, 7
    %v4180 = vsub.s32 0, %v4179
    %v4181 = vrot.slane %v3532, %v4180
    %v4182 = vlaneseq
    %v4183 = vshrl.u32 %v4182, 7
    %v4184 = vsub.s32 0, %v4183
    %v4185 = vrot.slane %v3533, %v4184
    %v4186 = vlaneseq
    %v4187 = vshrl.u32 %v4186, 7
    %v4188 = vsub.s32 0, %v4187
    %v4189 = vrot.slane %v3534, %v4188
    %v4190 = vlaneseq
    %v4191 = vshrl.u32 %v4190, 7
    %v4192 = vsub.s32 0, %v4191
    %v4193 = vrot.slane %v3535, %v4192
    %v4194 = vlaneseq
    %v4195 = vshrl.u32 %v4194, 7
    %v4196 = vsub.s32 0, %v4195
    %v4197 = vrot.slane %v3536, %v4196
    %v4198 = vlaneseq
    %v4199 = vshrl.u32 %v4198, 7
    %v4200 = vsub.s32 0, %v4199
    %v4201 = vrot.slane %v3537, %v4200
    %v4202 = vlaneseq
    %v4203 = vshrl.u32 %v4202, 7
    %v4204 = vsub.s32 0, %v4203
    %v4205 = vrot.slane %v3538, %v4204
    %v4206 = vlaneseq
    %v4207 = vshrl.u32 %v4206, 7
    %v4208 = vsub.s32 0, %v4207
    %v4209 = vrot.slane %v3539, %v4208
    %v4210 = vlaneseq
    %v4211 = vshrl.u32 %v4210, 7
    %v4212 = vsub.s32 0, %v4211
    %v4213 = vrot.slane %v3540, %v4212
    %v4214 = vlaneseq
    %v4215 = vshrl.u32 %v4214, 7
    %v4216 = vsub.s32 0, %v4215
    %v4217 = vrot.slane %v3541, %v4216
    %v4218 = vlaneseq
    %v4219 = vshrl.u32 %v4218, 7
    %v4220 = vsub.s32 0, %v4219
    %v4221 = vrot.slane %v3542, %v4220
    %v4222 = vlaneseq
    %v4223 = vshrl.u32 %v4222, 7
    %v4224 = vsub.s32 0, %v4223
    %v4225 = vrot.slane %v3543, %v4224
    %vm4226 = vcmask 1041409
    %v4227 = vsel %vm4226, %v3721, %v3717
    %vm4228 = vcmask 1042434
    %v4229 = vsel %vm4228, %v3725, %v4227
    %vm4230 = vcmask 1043459
    %v4231 = vsel %vm4230, %v3729, %v4229
    %vm4232 = vcmask 1044484
    %v4233 = vsel %vm4232, %v3733, %v4231
    %vm4234 = vcmask 1045509
    %v4235 = vsel %vm4234, %v3737, %v4233
    %vm4236 = vcmask 1046534
    %v4237 = vsel %vm4236, %v3741, %v4235
    %vm4238 = vcmask 1047559
    %v4239 = vsel %vm4238, %v3745, %v4237
    %v4240 = vsel %vm4226, %v3753, %v3749
    %v4241 = vsel %vm4228, %v3757, %v4240
    %v4242 = vsel %vm4230, %v3761, %v4241
    %v4243 = vsel %vm4232, %v3765, %v4242
    %v4244 = vsel %vm4234, %v3769, %v4243
    %v4245 = vsel %vm4236, %v3773, %v4244
    %v4246 = vsel %vm4238, %v3777, %v4245
    %v4247 = vsel %vm4226, %v3785, %v3781
    %v4248 = vsel %vm4228, %v3789, %v4247
    %v4249 = vsel %vm4230, %v3793, %v4248
    %v4250 = vsel %vm4232, %v3797, %v4249
    %v4251 = vsel %vm4234, %v3801, %v4250
    %v4252 = vsel %vm4236, %v3805, %v4251
    %v4253 = vsel %vm4238, %v3809, %v4252
    %v4254 = vsel %vm4226, %v3817, %v3813
    %v4255 = vsel %vm4228, %v3821, %v4254
    %v4256 = vsel %vm4230, %v3825, %v4255
    %v4257 = vsel %vm4232, %v3829, %v4256
    %v4258 = vsel %vm4234, %v3833, %v4257
    %v4259 = vsel %vm4236, %v3837, %v4258
    %v4260 = vsel %vm4238, %v3841, %v4259
    %v4261 = vsel %vm4226, %v3849, %v3845
    %v4262 = vsel %vm4228, %v3853, %v4261
    %v4263 = vsel %vm4230, %v3857, %v4262
    %v4264 = vsel %vm4232, %v3861, %v4263
    %v4265 = vsel %vm4234, %v3865, %v4264
    %v4266 = vsel %vm4236, %v3869, %v4265
    %v4267 = vsel %vm4238, %v3873, %v4266
    %v4268 = vsel %vm4226, %v3881, %v3877
    %v4269 = vsel %vm4228, %v3885, %v4268
    %v4270 = vsel %vm4230, %v3889, %v4269
    %v4271 = vsel %vm4232, %v3893, %v4270
    %v4272 = vsel %vm4234, %v3897, %v4271
    %v4273 = vsel %vm4236, %v3901, %v4272
    %v4274 = vsel %vm4238, %v3905, %v4273
    %v4275 = vsel %vm4226, %v3913, %v3909
    %v4276 = vsel %vm4228, %v3917, %v4275
    %v4277 = vsel %vm4230, %v3921, %v4276
    %v4278 = vsel %vm4232, %v3925, %v4277
    %v4279 = vsel %vm4234, %v3929, %v4278
    %v4280 = vsel %vm4236, %v3933, %v4279
    %v4281 = vsel %vm4238, %v3937, %v4280
    %v4282 = vsel %vm4226, %v3945, %v3941
    %v4283 = vsel %vm4228, %v3949, %v4282
    %v4284 = vsel %vm4230, %v3953, %v4283
    %v4285 = vsel %vm4232, %v3957, %v4284
    %v4286 = vsel %vm4234, %v3961, %v4285
    %v4287 = vsel %vm4236, %v3965, %v4286
    %v4288 = vsel %vm4238, %v3969, %v4287
    %v4289 = vsel %vm4226, %v3977, %v3973
    %v4290 = vsel %vm4228, %v3981, %v4289
    %v4291 = vsel %vm4230, %v3985, %v4290
    %v4292 = vsel %vm4232, %v3989, %v4291
    %v4293 = vsel %vm4234, %v3993, %v4292
    %v4294 = vsel %vm4236, %v3997, %v4293
    %v4295 = vsel %vm4238, %v4001, %v4294
    %v4296 = vsel %vm4226, %v4009, %v4005
    %v4297 = vsel %vm4228, %v4013, %v4296
    %v4298 = vsel %vm4230, %v4017, %v4297
    %v4299 = vsel %vm4232, %v4021, %v4298
    %v4300 = vsel %vm4234, %v4025, %v4299
    %v4301 = vsel %vm4236, %v4029, %v4300
    %v4302 = vsel %vm4238, %v4033, %v4301
    %v4303 = vsel %vm4226, %v4041, %v4037
    %v4304 = vsel %vm4228, %v4045, %v4303
    %v4305 = vsel %vm4230, %v4049, %v4304
    %v4306 = vsel %vm4232, %v4053, %v4305
    %v4307 = vsel %vm4234, %v4057, %v4306
    %v4308 = vsel %vm4236, %v4061, %v4307
    %v4309 = vsel %vm4238, %v4065, %v4308
    %v4310 = vsel %vm4226, %v4073, %v4069
    %v4311 = vsel %vm4228, %v4077, %v4310
    %v4312 = vsel %vm4230, %v4081, %v4311
    %v4313 = vsel %vm4232, %v4085, %v4312
    %v4314 = vsel %vm4234, %v4089, %v4313
    %v4315 = vsel %vm4236, %v4093, %v4314
    %v4316 = vsel %vm4238, %v4097, %v4315
    %v4317 = vsel %vm4226, %v4105, %v4101
    %v4318 = vsel %vm4228, %v4109, %v4317
    %v4319 = vsel %vm4230, %v4113, %v4318
    %v4320 = vsel %vm4232, %v4117, %v4319
    %v4321 = vsel %vm4234, %v4121, %v4320
    %v4322 = vsel %vm4236, %v4125, %v4321
    %v4323 = vsel %vm4238, %v4129, %v4322
    %v4324 = vsel %vm4226, %v4137, %v4133
    %v4325 = vsel %vm4228, %v4141, %v4324
    %v4326 = vsel %vm4230, %v4145, %v4325
    %v4327 = vsel %vm4232, %v4149, %v4326
    %v4328 = vsel %vm4234, %v4153, %v4327
    %v4329 = vsel %vm4236, %v4157, %v4328
    %v4330 = vsel %vm4238, %v4161, %v4329
    %v4331 = vsel %vm4226, %v4169, %v4165
    %v4332 = vsel %vm4228, %v4173, %v4331
    %v4333 = vsel %vm4230, %v4177, %v4332
    %v4334 = vsel %vm4232, %v4181, %v4333
    %v4335 = vsel %vm4234, %v4185, %v4334
    %v4336 = vsel %vm4236, %v4189, %v4335
    %v4337 = vsel %vm4238, %v4193, %v4336
    %v4338 = vsel %vm4226, %v4201, %v4197
    %v4339 = vsel %vm4228, %v4205, %v4338
    %v4340 = vsel %vm4230, %v4209, %v4339
    %v4341 = vsel %vm4232, %v4213, %v4340
    %v4342 = vsel %vm4234, %v4217, %v4341
    %v4343 = vsel %vm4236, %v4221, %v4342
    %v4344 = vsel %vm4238, %v4225, %v4343
    %s4361 = scalar_lea.vmem [#allocation2], 16
    %4362 = vst.msk [vmem:[%s4361 + $0x1] sm:$0xff] %vm3544, %v4239
    %4363 = vst.msk [vmem:[%s4361 + $0x11] sm:$0xff] %vm3544, %v4246
    %4364 = vst.msk [vmem:[%s4361 + $0x21] sm:$0xff] %vm3544, %v4253
    %4365 = vst.msk [vmem:[%s4361 + $0x31] sm:$0xff] %vm3544, %v4260
    %4366 = vst.msk [vmem:[%s4361 + $0x41] sm:$0xff] %vm3544, %v4267
    %4367 = vst.msk [vmem:[%s4361 + $0x51] sm:$0xff] %vm3544, %v4274
    %4368 = vst.msk [vmem:[%s4361 + $0x61] sm:$0xff] %vm3544, %v4281
    %4369 = vst.msk [vmem:[%s4361 + $0x71] sm:$0xff] %vm3544, %v4288
    %4370 = vst.msk [vmem:[%s4361 + $0xa1] sm:$0xff] %vm3544, %v4295
    %4371 = vst.msk [vmem:[%s4361 + $0xb1] sm:$0xff] %vm3544, %v4302
    %4372 = vst.msk [vmem:[%s4361 + $0xc1] sm:$0xff] %vm3544, %v4309
    %4373 = vst.msk [vmem:[%s4361 + $0xd1] sm:$0xff] %vm3544, %v4316
    %4374 = vst.msk [vmem:[%s4361 + $0xe1] sm:$0xff] %vm3544, %v4323
    %4375 = vst.msk [vmem:[%s4361 + $0xf1] sm:$0xff] %vm3544, %v4330
    %4376 = vst.msk [vmem:[%s4361 + $0x101] sm:$0xff] %vm3544, %v4337
    %4377 = vst.msk [vmem:[%s4361 + $0x111] sm:$0xff] %vm3544, %v4344
    %v4378 = vld [vmem:[#allocation2] sm:$0xff]
    %v4379 = vld [vmem:[#allocation2 + $0x8] sm:$0x3]
    %v4380 = vld [vmem:[#allocation2 + $0x10] sm:$0xff]
    %v4381 = vld [vmem:[#allocation2 + $0x18] sm:$0x3]
    %v4382 = vld [vmem:[#allocation2 + $0x20] sm:$0xff]
    %v4383 = vld [vmem:[#allocation2 + $0x28] sm:$0x3]
    %v4384 = vld [vmem:[#allocation2 + $0x30] sm:$0xff]
    %v4385 = vld [vmem:[#allocation2 + $0x38] sm:$0x3]
    %v4386 = vld [vmem:[#allocation2 + $0x40] sm:$0xff]
    %v4387 = vld [vmem:[#allocation2 + $0x48] sm:$0x3]
    %v4388 = vld [vmem:[#allocation2 + $0x50] sm:$0xff]
    %v4389 = vld [vmem:[#allocation2 + $0x58] sm:$0x3]
    %v4390 = vld [vmem:[#allocation2 + $0x60] sm:$0xff]
    %v4391 = vld [vmem:[#allocation2 + $0x68] sm:$0x3]
    %v4392 = vld [vmem:[#allocation2 + $0x70] sm:$0xff]
    %v4393 = vld [vmem:[#allocation2 + $0x78] sm:$0x3]
    %v4394 = vld [vmem:[#allocation2 + $0x80] sm:$0xff]
    %v4395 = vld [vmem:[#allocation2 + $0x88] sm:$0x3]
    %v4396 = vld [vmem:[#allocation2 + $0x90] sm:$0xff]
    %v4397 = vld [vmem:[#allocation2 + $0x98] sm:$0x3]
    %v4398 = vld [vmem:[#allocation2 + $0xa0] sm:$0xff]
    %v4399 = vld [vmem:[#allocation2 + $0xa8] sm:$0x3]
    %v4400 = vld [vmem:[#allocation2 + $0xb0] sm:$0xff]
    %v4401 = vld [vmem:[#allocation2 + $0xb8] sm:$0x3]
    %v4402 = vld [vmem:[#allocation2 + $0xc0] sm:$0xff]
    %v4403 = vld [vmem:[#allocation2 + $0xc8] sm:$0x3]
    %v4404 = vld [vmem:[#allocation2 + $0xd0] sm:$0xff]
    %v4405 = vld [vmem:[#allocation2 + $0xd8] sm:$0x3]
    %v4406 = vld [vmem:[#allocation2 + $0xe0] sm:$0xff]
    %v4407 = vld [vmem:[#allocation2 + $0xe8] sm:$0x3]
    %v4408 = vld [vmem:[#allocation2 + $0xf0] sm:$0xff]
    %v4409 = vld [vmem:[#allocation2 + $0xf8] sm:$0x3]
    %v4410 = vld [vmem:[#allocation2 + $0x100] sm:$0xff]
    %v4411 = vld [vmem:[#allocation2 + $0x108] sm:$0x3]
    %v4412 = vld [vmem:[#allocation2 + $0x110] sm:$0xff]
    %v4413 = vld [vmem:[#allocation2 + $0x118] sm:$0x3]
    %v4414 = vld [vmem:[#allocation2 + $0x120] sm:$0xff]
    %v4415 = vld [vmem:[#allocation2 + $0x128] sm:$0x3]
    %v4416 = vld [vmem:[#allocation2 + $0x130] sm:$0xff]
    %v4417 = vld [vmem:[#allocation2 + $0x138] sm:$0x3]
    %vm4450 = vcmask 1046528
    %v4451 = vrot.slane %v4378, 1
    %v4452 = vrot.slane %v4379, 1
    %v4453 = vsel %vm4450, %v4451, %v4452
    %v4454 = vrot.slane %v4380, 1
    %v4455 = vrot.slane %v4381, 1
    %v4456 = vsel %vm4450, %v4454, %v4455
    %v4457 = vrot.slane %v4382, 1
    %v4458 = vrot.slane %v4383, 1
    %v4459 = vsel %vm4450, %v4457, %v4458
    %v4460 = vrot.slane %v4384, 1
    %v4461 = vrot.slane %v4385, 1
    %v4462 = vsel %vm4450, %v4460, %v4461
    %v4463 = vrot.slane %v4386, 1
    %v4464 = vrot.slane %v4387, 1
    %v4465 = vsel %vm4450, %v4463, %v4464
    %v4466 = vrot.slane %v4388, 1
    %v4467 = vrot.slane %v4389, 1
    %v4468 = vsel %vm4450, %v4466, %v4467
    %v4469 = vrot.slane %v4390, 1
    %v4470 = vrot.slane %v4391, 1
    %v4471 = vsel %vm4450, %v4469, %v4470
    %v4472 = vrot.slane %v4392, 1
    %v4473 = vrot.slane %v4393, 1
    %v4474 = vsel %vm4450, %v4472, %v4473
    %v4475 = vrot.slane %v4398, 1
    %v4476 = vrot.slane %v4399, 1
    %v4477 = vsel %vm4450, %v4475, %v4476
    %v4478 = vrot.slane %v4400, 1
    %v4479 = vrot.slane %v4401, 1
    %v4480 = vsel %vm4450, %v4478, %v4479
    %v4481 = vrot.slane %v4402, 1
    %v4482 = vrot.slane %v4403, 1
    %v4483 = vsel %vm4450, %v4481, %v4482
    %v4484 = vrot.slane %v4404, 1
    %v4485 = vrot.slane %v4405, 1
    %v4486 = vsel %vm4450, %v4484, %v4485
    %v4487 = vrot.slane %v4406, 1
    %v4488 = vrot.slane %v4407, 1
    %v4489 = vsel %vm4450, %v4487, %v4488
    %v4490 = vrot.slane %v4408, 1
    %v4491 = vrot.slane %v4409, 1
    %v4492 = vsel %vm4450, %v4490, %v4491
    %v4493 = vrot.slane %v4410, 1
    %v4494 = vrot.slane %v4411, 1
    %v4495 = vsel %vm4450, %v4493, %v4494
    %v4496 = vrot.slane %v4412, 1
    %v4497 = vrot.slane %v4413, 1
    %v4498 = vsel %vm4450, %v4496, %v4497
    %vm4499 = vcmask 1045504
    %v4500 = vrot.slane %v4378, 2
    %v4501 = vrot.slane %v4379, 2
    %v4502 = vsel %vm4499, %v4500, %v4501
    %v4503 = vrot.slane %v4380, 2
    %v4504 = vrot.slane %v4381, 2
    %v4505 = vsel %vm4499, %v4503, %v4504
    %v4506 = vrot.slane %v4382, 2
    %v4507 = vrot.slane %v4383, 2
    %v4508 = vsel %vm4499, %v4506, %v4507
    %v4509 = vrot.slane %v4384, 2
    %v4510 = vrot.slane %v4385, 2
    %v4511 = vsel %vm4499, %v4509, %v4510
    %v4512 = vrot.slane %v4386, 2
    %v4513 = vrot.slane %v4387, 2
    %v4514 = vsel %vm4499, %v4512, %v4513
    %v4515 = vrot.slane %v4388, 2
    %v4516 = vrot.slane %v4389, 2
    %v4517 = vsel %vm4499, %v4515, %v4516
    %v4518 = vrot.slane %v4390, 2
    %v4519 = vrot.slane %v4391, 2
    %v4520 = vsel %vm4499, %v4518, %v4519
    %v4521 = vrot.slane %v4392, 2
    %v4522 = vrot.slane %v4393, 2
    %v4523 = vsel %vm4499, %v4521, %v4522
    %v4524 = vrot.slane %v4398, 2
    %v4525 = vrot.slane %v4399, 2
    %v4526 = vsel %vm4499, %v4524, %v4525
    %v4527 = vrot.slane %v4400, 2
    %v4528 = vrot.slane %v4401, 2
    %v4529 = vsel %vm4499, %v4527, %v4528
    %v4530 = vrot.slane %v4402, 2
    %v4531 = vrot.slane %v4403, 2
    %v4532 = vsel %vm4499, %v4530, %v4531
    %v4533 = vrot.slane %v4404, 2
    %v4534 = vrot.slane %v4405, 2
    %v4535 = vsel %vm4499, %v4533, %v4534
    %v4536 = vrot.slane %v4406, 2
    %v4537 = vrot.slane %v4407, 2
    %v4538 = vsel %vm4499, %v4536, %v4537
    %v4539 = vrot.slane %v4408, 2
    %v4540 = vrot.slane %v4409, 2
    %v4541 = vsel %vm4499, %v4539, %v4540
    %v4542 = vrot.slane %v4410, 2
    %v4543 = vrot.slane %v4411, 2
    %v4544 = vsel %vm4499, %v4542, %v4543
    %v4545 = vrot.slane %v4412, 2
    %v4546 = vrot.slane %v4413, 2
    %v4547 = vsel %vm4499, %v4545, %v4546
    %v4552 = vrot.slane %v4394, 1
    %v4553 = vrot.slane %v4395, 1
    %v4554 = vsel %vm4450, %v4552, %v4553
    %v4555 = vrot.slane %v4414, 1
    %v4556 = vrot.slane %v4415, 1
    %v4557 = vsel %vm4450, %v4555, %v4556
    %v4574 = vrot.slane %v4394, 2
    %v4575 = vrot.slane %v4395, 2
    %v4576 = vsel %vm4499, %v4574, %v4575
    %v4577 = vrot.slane %v4414, 2
    %v4578 = vrot.slane %v4415, 2
    %v4579 = vsel %vm4499, %v4577, %v4578
    %v4584 = vrot.slane %v4396, 1
    %v4585 = vrot.slane %v4397, 1
    %v4586 = vsel %vm4450, %v4584, %v4585
    %v4587 = vrot.slane %v4416, 1
    %v4588 = vrot.slane %v4417, 1
    %v4589 = vsel %vm4450, %v4587, %v4588
    %v4590 = vrot.slane %v4396, 2
    %v4591 = vrot.slane %v4397, 2
    %v4592 = vsel %vm4499, %v4590, %v4591
    %v4593 = vrot.slane %v4416, 2
    %v4594 = vrot.slane %v4417, 2
    %v4595 = vsel %vm4499, %v4593, %v4594
    %4612 = vrot.lane.b32.xlu0 %v4453, 32
    %v4613 = vpop.permute.xlu0 %4612
    %4614 = vrot.lane.b32.xlu0 %v4456, 32
    %v4615 = vpop.permute.xlu0 %4614
    %4616 = vrot.lane.b32.xlu0 %v4459, 32
    %v4617 = vpop.permute.xlu0 %4616
    %4618 = vrot.lane.b32.xlu0 %v4462, 32
    %v4619 = vpop.permute.xlu0 %4618
    %4620 = vrot.lane.b32.xlu0 %v4465, 32
    %v4621 = vpop.permute.xlu0 %4620
    %4622 = vrot.lane.b32.xlu0 %v4468, 32
    %v4623 = vpop.permute.xlu0 %4622
    %4624 = vrot.lane.b32.xlu0 %v4471, 32
    %v4625 = vpop.permute.xlu0 %4624
    %4626 = vrot.lane.b32.xlu0 %v4474, 32
    %v4627 = vpop.permute.xlu0 %4626
    %4628 = vrot.lane.b32.xlu0 %v4477, 32
    %v4629 = vpop.permute.xlu0 %4628
    %4630 = vrot.lane.b32.xlu0 %v4480, 32
    %v4631 = vpop.permute.xlu0 %4630
    %4632 = vrot.lane.b32.xlu0 %v4483, 32
    %v4633 = vpop.permute.xlu0 %4632
    %4634 = vrot.lane.b32.xlu0 %v4486, 32
    %v4635 = vpop.permute.xlu0 %4634
    %4636 = vrot.lane.b32.xlu0 %v4489, 32
    %v4637 = vpop.permute.xlu0 %4636
    %4638 = vrot.lane.b32.xlu0 %v4492, 32
    %v4639 = vpop.permute.xlu0 %4638
    %4640 = vrot.lane.b32.xlu0 %v4495, 32
    %v4641 = vpop.permute.xlu0 %4640
    %4642 = vrot.lane.b32.xlu0 %v4498, 32
    %v4643 = vpop.permute.xlu0 %4642
    %4660 = vrot.lane.b32.xlu0 %v4502, 64
    %v4661 = vpop.permute.xlu0 %4660
    %4662 = vrot.lane.b32.xlu0 %v4505, 64
    %v4663 = vpop.permute.xlu0 %4662
    %4664 = vrot.lane.b32.xlu0 %v4508, 64
    %v4665 = vpop.permute.xlu0 %4664
    %4666 = vrot.lane.b32.xlu0 %v4511, 64
    %v4667 = vpop.permute.xlu0 %4666
    %4668 = vrot.lane.b32.xlu0 %v4514, 64
    %v4669 = vpop.permute.xlu0 %4668
    %4670 = vrot.lane.b32.xlu0 %v4517, 64
    %v4671 = vpop.permute.xlu0 %4670
    %4672 = vrot.lane.b32.xlu0 %v4520, 64
    %v4673 = vpop.permute.xlu0 %4672
    %4674 = vrot.lane.b32.xlu0 %v4523, 64
    %v4675 = vpop.permute.xlu0 %4674
    %4676 = vrot.lane.b32.xlu0 %v4526, 64
    %v4677 = vpop.permute.xlu0 %4676
    %4678 = vrot.lane.b32.xlu0 %v4529, 64
    %v4679 = vpop.permute.xlu0 %4678
    %4680 = vrot.lane.b32.xlu0 %v4532, 64
    %v4681 = vpop.permute.xlu0 %4680
    %4682 = vrot.lane.b32.xlu0 %v4535, 64
    %v4683 = vpop.permute.xlu0 %4682
    %4684 = vrot.lane.b32.xlu0 %v4538, 64
    %v4685 = vpop.permute.xlu0 %4684
    %4686 = vrot.lane.b32.xlu0 %v4541, 64
    %v4687 = vpop.permute.xlu0 %4686
    %4688 = vrot.lane.b32.xlu0 %v4544, 64
    %v4689 = vpop.permute.xlu0 %4688
    %4690 = vrot.lane.b32.xlu0 %v4547, 64
    %v4691 = vpop.permute.xlu0 %4690
    %4708 = vrot.lane.b32.xlu0 %v4380, 96
    %v4709 = vpop.permute.xlu0 %4708
    %4710 = vrot.lane.b32.xlu0 %v4382, 96
    %v4711 = vpop.permute.xlu0 %4710
    %4712 = vrot.lane.b32.xlu0 %v4384, 96
    %v4713 = vpop.permute.xlu0 %4712
    %4714 = vrot.lane.b32.xlu0 %v4386, 96
    %v4715 = vpop.permute.xlu0 %4714
    %4716 = vrot.lane.b32.xlu0 %v4388, 96
    %v4717 = vpop.permute.xlu0 %4716
    %4718 = vrot.lane.b32.xlu0 %v4390, 96
    %v4719 = vpop.permute.xlu0 %4718
    %4720 = vrot.lane.b32.xlu0 %v4392, 96
    %v4721 = vpop.permute.xlu0 %4720
    %4722 = vrot.lane.b32.xlu0 %v4394, 96
    %v4723 = vpop.permute.xlu0 %4722
    %4724 = vrot.lane.b32.xlu0 %v4400, 96
    %v4725 = vpop.permute.xlu0 %4724
    %4726 = vrot.lane.b32.xlu0 %v4402, 96
    %v4727 = vpop.permute.xlu0 %4726
    %4728 = vrot.lane.b32.xlu0 %v4404, 96
    %v4729 = vpop.permute.xlu0 %4728
    %4730 = vrot.lane.b32.xlu0 %v4406, 96
    %v4731 = vpop.permute.xlu0 %4730
    %4732 = vrot.lane.b32.xlu0 %v4408, 96
    %v4733 = vpop.permute.xlu0 %4732
    %4734 = vrot.lane.b32.xlu0 %v4410, 96
    %v4735 = vpop.permute.xlu0 %4734
    %4736 = vrot.lane.b32.xlu0 %v4412, 96
    %v4737 = vpop.permute.xlu0 %4736
    %4738 = vrot.lane.b32.xlu0 %v4414, 96
    %v4739 = vpop.permute.xlu0 %4738
    %4756 = vrot.lane.b32.xlu0 %v4505, 32
    %v4757 = vpop.permute.xlu0 %4756
    %4758 = vrot.lane.b32.xlu0 %v4508, 32
    %v4759 = vpop.permute.xlu0 %4758
    %4760 = vrot.lane.b32.xlu0 %v4511, 32
    %v4761 = vpop.permute.xlu0 %4760
    %4762 = vrot.lane.b32.xlu0 %v4514, 32
    %v4763 = vpop.permute.xlu0 %4762
    %4764 = vrot.lane.b32.xlu0 %v4517, 32
    %v4765 = vpop.permute.xlu0 %4764
    %4766 = vrot.lane.b32.xlu0 %v4520, 32
    %v4767 = vpop.permute.xlu0 %4766
    %4768 = vrot.lane.b32.xlu0 %v4523, 32
    %v4769 = vpop.permute.xlu0 %4768
    %4770 = vrot.lane.b32.xlu0 %v4576, 32
    %v4771 = vpop.permute.xlu0 %4770
    %4772 = vrot.lane.b32.xlu0 %v4529, 32
    %v4773 = vpop.permute.xlu0 %4772
    %4774 = vrot.lane.b32.xlu0 %v4532, 32
    %v4775 = vpop.permute.xlu0 %4774
    %4776 = vrot.lane.b32.xlu0 %v4535, 32
    %v4777 = vpop.permute.xlu0 %4776
    %4778 = vrot.lane.b32.xlu0 %v4538, 32
    %v4779 = vpop.permute.xlu0 %4778
    %4780 = vrot.lane.b32.xlu0 %v4541, 32
    %v4781 = vpop.permute.xlu0 %4780
    %4782 = vrot.lane.b32.xlu0 %v4544, 32
    %v4783 = vpop.permute.xlu0 %4782
    %4784 = vrot.lane.b32.xlu0 %v4547, 32
    %v4785 = vpop.permute.xlu0 %4784
    %4786 = vrot.lane.b32.xlu0 %v4579, 32
    %v4787 = vpop.permute.xlu0 %4786
    %4804 = vrot.lane.b32.xlu0 %v4382, 64
    %v4805 = vpop.permute.xlu0 %4804
    %4806 = vrot.lane.b32.xlu0 %v4384, 64
    %v4807 = vpop.permute.xlu0 %4806
    %4808 = vrot.lane.b32.xlu0 %v4386, 64
    %v4809 = vpop.permute.xlu0 %4808
    %4810 = vrot.lane.b32.xlu0 %v4388, 64
    %v4811 = vpop.permute.xlu0 %4810
    %4812 = vrot.lane.b32.xlu0 %v4390, 64
    %v4813 = vpop.permute.xlu0 %4812
    %4814 = vrot.lane.b32.xlu0 %v4392, 64
    %v4815 = vpop.permute.xlu0 %4814
    %4816 = vrot.lane.b32.xlu0 %v4394, 64
    %v4817 = vpop.permute.xlu0 %4816
    %4818 = vrot.lane.b32.xlu0 %v4396, 64
    %v4819 = vpop.permute.xlu0 %4818
    %4820 = vrot.lane.b32.xlu0 %v4402, 64
    %v4821 = vpop.permute.xlu0 %4820
    %4822 = vrot.lane.b32.xlu0 %v4404, 64
    %v4823 = vpop.permute.xlu0 %4822
    %4824 = vrot.lane.b32.xlu0 %v4406, 64
    %v4825 = vpop.permute.xlu0 %4824
    %4826 = vrot.lane.b32.xlu0 %v4408, 64
    %v4827 = vpop.permute.xlu0 %4826
    %4828 = vrot.lane.b32.xlu0 %v4410, 64
    %v4829 = vpop.permute.xlu0 %4828
    %4830 = vrot.lane.b32.xlu0 %v4412, 64
    %v4831 = vpop.permute.xlu0 %4830
    %4832 = vrot.lane.b32.xlu0 %v4414, 64
    %v4833 = vpop.permute.xlu0 %4832
    %4834 = vrot.lane.b32.xlu0 %v4416, 64
    %v4835 = vpop.permute.xlu0 %4834
    %4852 = vrot.lane.b32.xlu0 %v4459, 96
    %v4853 = vpop.permute.xlu0 %4852
    %4854 = vrot.lane.b32.xlu0 %v4462, 96
    %v4855 = vpop.permute.xlu0 %4854
    %4856 = vrot.lane.b32.xlu0 %v4465, 96
    %v4857 = vpop.permute.xlu0 %4856
    %4858 = vrot.lane.b32.xlu0 %v4468, 96
    %v4859 = vpop.permute.xlu0 %4858
    %4860 = vrot.lane.b32.xlu0 %v4471, 96
    %v4861 = vpop.permute.xlu0 %4860
    %4862 = vrot.lane.b32.xlu0 %v4474, 96
    %v4863 = vpop.permute.xlu0 %4862
    %4864 = vrot.lane.b32.xlu0 %v4554, 96
    %v4865 = vpop.permute.xlu0 %4864
    %4866 = vrot.lane.b32.xlu0 %v4586, 96
    %v4867 = vpop.permute.xlu0 %4866
    %4868 = vrot.lane.b32.xlu0 %v4483, 96
    %v4869 = vpop.permute.xlu0 %4868
    %4870 = vrot.lane.b32.xlu0 %v4486, 96
    %v4871 = vpop.permute.xlu0 %4870
    %4872 = vrot.lane.b32.xlu0 %v4489, 96
    %v4873 = vpop.permute.xlu0 %4872
    %4874 = vrot.lane.b32.xlu0 %v4492, 96
    %v4875 = vpop.permute.xlu0 %4874
    %4876 = vrot.lane.b32.xlu0 %v4495, 96
    %v4877 = vpop.permute.xlu0 %4876
    %4878 = vrot.lane.b32.xlu0 %v4498, 96
    %v4879 = vpop.permute.xlu0 %4878
    %4880 = vrot.lane.b32.xlu0 %v4557, 96
    %v4881 = vpop.permute.xlu0 %4880
    %4882 = vrot.lane.b32.xlu0 %v4589, 96
    %v4883 = vpop.permute.xlu0 %4882
    %v4900 = vsel %vm3544, %v4378, %v4613
    %v4901 = vsel %vm3544, %v4380, %v4615
    %v4902 = vsel %vm3544, %v4382, %v4617
    %v4903 = vsel %vm3544, %v4384, %v4619
    %v4904 = vsel %vm3544, %v4386, %v4621
    %v4905 = vsel %vm3544, %v4388, %v4623
    %v4906 = vsel %vm3544, %v4390, %v4625
    %v4907 = vsel %vm3544, %v4392, %v4627
    %v4908 = vsel %vm3544, %v4398, %v4629
    %v4909 = vsel %vm3544, %v4400, %v4631
    %v4910 = vsel %vm3544, %v4402, %v4633
    %v4911 = vsel %vm3544, %v4404, %v4635
    %v4912 = vsel %vm3544, %v4406, %v4637
    %v4913 = vsel %vm3544, %v4408, %v4639
    %v4914 = vsel %vm3544, %v4410, %v4641
    %v4915 = vsel %vm3544, %v4412, %v4643
    %vm4916 = vcmask 523264
    %v4917 = vsel %vm4916, %v4900, %v4661
    %v4918 = vsel %vm4916, %v4901, %v4663
    %v4919 = vsel %vm4916, %v4902, %v4665
    %v4920 = vsel %vm4916, %v4903, %v4667
    %v4921 = vsel %vm4916, %v4904, %v4669
    %v4922 = vsel %vm4916, %v4905, %v4671
    %v4923 = vsel %vm4916, %v4906, %v4673
    %v4924 = vsel %vm4916, %v4907, %v4675
    %v4925 = vsel %vm4916, %v4908, %v4677
    %v4926 = vsel %vm4916, %v4909, %v4679
    %v4927 = vsel %vm4916, %v4910, %v4681
    %v4928 = vsel %vm4916, %v4911, %v4683
    %v4929 = vsel %vm4916, %v4912, %v4685
    %v4930 = vsel %vm4916, %v4913, %v4687
    %v4931 = vsel %vm4916, %v4914, %v4689
    %v4932 = vsel %vm4916, %v4915, %v4691
    %vm4933 = vcmask 785408
    %v4934 = vsel %vm4933, %v4917, %v4709
    %v4935 = vsel %vm4933, %v4918, %v4711
    %v4936 = vsel %vm4933, %v4919, %v4713
    %v4937 = vsel %vm4933, %v4920, %v4715
    %v4938 = vsel %vm4933, %v4921, %v4717
    %v4939 = vsel %vm4933, %v4922, %v4719
    %v4940 = vsel %vm4933, %v4923, %v4721
    %v4941 = vsel %vm4933, %v4924, %v4723
    %v4942 = vsel %vm4933, %v4925, %v4725
    %v4943 = vsel %vm4933, %v4926, %v4727
    %v4944 = vsel %vm4933, %v4927, %v4729
    %v4945 = vsel %vm4933, %v4928, %v4731
    %v4946 = vsel %vm4933, %v4929, %v4733
    %v4947 = vsel %vm4933, %v4930, %v4735
    %v4948 = vsel %vm4933, %v4931, %v4737
    %v4949 = vsel %vm4933, %v4932, %v4739
    %v4950 = vsel %vm3544, %v4456, %v4757
    %v4951 = vsel %vm3544, %v4459, %v4759
    %v4952 = vsel %vm3544, %v4462, %v4761
    %v4953 = vsel %vm3544, %v4465, %v4763
    %v4954 = vsel %vm3544, %v4468, %v4765
    %v4955 = vsel %vm3544, %v4471, %v4767
    %v4956 = vsel %vm3544, %v4474, %v4769
    %v4957 = vsel %vm3544, %v4554, %v4771
    %v4958 = vsel %vm3544, %v4480, %v4773
    %v4959 = vsel %vm3544, %v4483, %v4775
    %v4960 = vsel %vm3544, %v4486, %v4777
    %v4961 = vsel %vm3544, %v4489, %v4779
    %v4962 = vsel %vm3544, %v4492, %v4781
    %v4963 = vsel %vm3544, %v4495, %v4783
    %v4964 = vsel %vm3544, %v4498, %v4785
    %v4965 = vsel %vm3544, %v4557, %v4787
    %v4966 = vsel %vm4916, %v4950, %v4805
    %v4967 = vsel %vm4916, %v4951, %v4807
    %v4968 = vsel %vm4916, %v4952, %v4809
    %v4969 = vsel %vm4916, %v4953, %v4811
    %v4970 = vsel %vm4916, %v4954, %v4813
    %v4971 = vsel %vm4916, %v4955, %v4815
    %v4972 = vsel %vm4916, %v4956, %v4817
    %v4973 = vsel %vm4916, %v4957, %v4819
    %v4974 = vsel %vm4916, %v4958, %v4821
    %v4975 = vsel %vm4916, %v4959, %v4823
    %v4976 = vsel %vm4916, %v4960, %v4825
    %v4977 = vsel %vm4916, %v4961, %v4827
    %v4978 = vsel %vm4916, %v4962, %v4829
    %v4979 = vsel %vm4916, %v4963, %v4831
    %v4980 = vsel %vm4916, %v4964, %v4833
    %v4981 = vsel %vm4916, %v4965, %v4835
    %v4982 = vsel %vm4933, %v4966, %v4853
    %v4983 = vsel %vm4933, %v4967, %v4855
    %v4984 = vsel %vm4933, %v4968, %v4857
    %v4985 = vsel %vm4933, %v4969, %v4859
    %v4986 = vsel %vm4933, %v4970, %v4861
    %v4987 = vsel %vm4933, %v4971, %v4863
    %v4988 = vsel %vm4933, %v4972, %v4865
    %v4989 = vsel %vm4933, %v4973, %v4867
    %v4990 = vsel %vm4933, %v4974, %v4869
    %v4991 = vsel %vm4933, %v4975, %v4871
    %v4992 = vsel %vm4933, %v4976, %v4873
    %v4993 = vsel %vm4933, %v4977, %v4875
    %v4994 = vsel %vm4933, %v4978, %v4877
    %v4995 = vsel %vm4933, %v4979, %v4879
    %v4996 = vsel %vm4933, %v4980, %v4881
    %v4997 = vsel %vm4933, %v4981, %v4883
    %v4998 = vpack.c.bf16 %v4935, %v4934
    %v4999 = vpack.c.bf16 %v4983, %v4982
    %v5000 = vpack.c.bf16 %v4511, %v4508
    %v5001 = vpack.c.bf16 %v4937, %v4936
    %v5002 = vpack.c.bf16 %v4985, %v4984
    %v5003 = vpack.c.bf16 %v4517, %v4514
    %v5004 = vpack.c.bf16 %v4939, %v4938
    %v5005 = vpack.c.bf16 %v4987, %v4986
    %v5006 = vpack.c.bf16 %v4523, %v4520
    %v5007 = vpack.c.bf16 %v4941, %v4940
    %v5008 = vpack.c.bf16 %v4989, %v4988
    %v5009 = vpack.c.bf16 %v4592, %v4576
    %v5010 = vpack.c.bf16 %v4943, %v4942
    %v5011 = vpack.c.bf16 %v4991, %v4990
    %v5012 = vpack.c.bf16 %v4535, %v4532
    %v5013 = vpack.c.bf16 %v4945, %v4944
    %v5014 = vpack.c.bf16 %v4993, %v4992
    %v5015 = vpack.c.bf16 %v4541, %v4538
    %v5016 = vpack.c.bf16 %v4947, %v4946
    %v5017 = vpack.c.bf16 %v4995, %v4994
    %v5018 = vpack.c.bf16 %v4547, %v4544
    %v5019 = vpack.c.bf16 %v4949, %v4948
    %v5020 = vpack.c.bf16 %v4997, %v4996
    %v5021 = vpack.c.bf16 %v4595, %v4579
    %v5022 = vld [vmem:[%s4] sm:$0xf]
    %v5023 = vld [vmem:[%s4 + $0x4] sm:$0xf]
    %v5024 = vld [vmem:[%s4 + $0x8] sm:$0xf]
    %v5025 = vld [vmem:[%s4 + $0xc] sm:$0xf]
    %v5026 = vld [vmem:[%s4 + $0x10] sm:$0xf]
    %v5027 = vld [vmem:[%s4 + $0x14] sm:$0xf]
    %v5028 = vld [vmem:[%s4 + $0x18] sm:$0xf]
    %v5029 = vld [vmem:[%s4 + $0x1c] sm:$0xf]
    %v5030 = vld [vmem:[%s4 + $0x20] sm:$0xf]
    %v5031 = vld [vmem:[%s4 + $0x24] sm:$0xf]
    %v5032 = vld [vmem:[%s4 + $0x28] sm:$0xf]
    %v5033 = vld [vmem:[%s4 + $0x2c] sm:$0xf]
    %v5034 = vld [vmem:[%s4 + $0x30] sm:$0xf]
    %v5035 = vld [vmem:[%s4 + $0x34] sm:$0xf]
    %v5036 = vld [vmem:[%s4 + $0x38] sm:$0xf]
    %v5037 = vld [vmem:[%s4 + $0x3c] sm:$0xf]
    %v5038 = vld [vmem:[%s4 + $0x40] sm:$0xf]
    %v5039 = vld [vmem:[%s4 + $0x44] sm:$0xf]
    %v5040 = vld [vmem:[%s4 + $0x48] sm:$0xf]
    %v5041 = vld [vmem:[%s4 + $0x4c] sm:$0xf]
    %v5042 = vld [vmem:[%s4 + $0x50] sm:$0xf]
    %v5043 = vld [vmem:[%s4 + $0x54] sm:$0xf]
    %v5044 = vld [vmem:[%s4 + $0x58] sm:$0xf]
    %v5045 = vld [vmem:[%s4 + $0x5c] sm:$0xf]
    %v5046 = vld [vmem:[%s4 + $0x60] sm:$0xf]
    %v5047 = vld [vmem:[%s4 + $0x64] sm:$0xf]
    %v5048 = vld [vmem:[%s4 + $0x68] sm:$0xf]
    %v5049 = vld [vmem:[%s4 + $0x6c] sm:$0xf]
    %v5050 = vld [vmem:[%s4 + $0x70] sm:$0xf]
    %v5051 = vld [vmem:[%s4 + $0x74] sm:$0xf]
    %v5052 = vld [vmem:[%s4 + $0x78] sm:$0xf]
    %v5053 = vld [vmem:[%s4 + $0x7c] sm:$0xf]
    %v5054 = vld [vmem:[%s4 + $0x80] sm:$0xf]
    %v5055 = vld [vmem:[%s4 + $0x84] sm:$0xf]
    %v5056 = vld [vmem:[%s4 + $0x88] sm:$0xf]
    %v5057 = vld [vmem:[%s4 + $0x8c] sm:$0xf]
    %v5094 = vunpack.c.l.b16 %v5022
    %v5095 = vunpack.c.l.b16 %v5023
    %v5096 = vunpack.c.l.b16 %v5024
    %v5097 = vunpack.c.l.b16 %v5025
    %v5098 = vunpack.c.l.b16 %v5026
    %v5099 = vunpack.c.l.b16 %v5027
    %v5100 = vunpack.c.l.b16 %v5028
    %v5101 = vunpack.c.l.b16 %v5029
    %v5102 = vunpack.c.l.b16 %v5030
    %v5103 = vunpack.c.l.b16 %v5031
    %v5104 = vunpack.c.l.b16 %v5032
    %v5105 = vunpack.c.l.b16 %v5033
    %v5106 = vunpack.c.l.b16 %v5034
    %v5107 = vunpack.c.l.b16 %v5035
    %v5108 = vunpack.c.l.b16 %v5036
    %v5109 = vunpack.c.l.b16 %v5037
    %v5110 = vunpack.c.l.b16 %v5038
    %v5111 = vunpack.c.l.b16 %v5039
    %v5112 = vunpack.c.l.b16 %v5040
    %v5113 = vunpack.c.l.b16 %v5041
    %v5114 = vunpack.c.l.b16 %v5042
    %v5115 = vunpack.c.l.b16 %v5043
    %v5116 = vunpack.c.l.b16 %v5044
    %v5117 = vunpack.c.l.b16 %v5045
    %v5118 = vunpack.c.l.b16 %v5046
    %v5119 = vunpack.c.l.b16 %v5047
    %v5120 = vunpack.c.l.b16 %v5048
    %v5121 = vunpack.c.l.b16 %v5049
    %v5122 = vunpack.c.l.b16 %v5050
    %v5123 = vunpack.c.l.b16 %v5051
    %v5124 = vunpack.c.l.b16 %v5052
    %v5125 = vunpack.c.l.b16 %v5053
    %v5126 = vunpack.c.l.b16 %v5054
    %v5127 = vunpack.c.l.b16 %v5055
    %v5128 = vunpack.c.l.b16 %v5056
    %v5129 = vunpack.c.l.b16 %v5057
    %v5130 = vpack.c.b16 %v5095, %v5094
    %v5131 = vpack.c.b16 %v5097, %v5096
    %v5132 = vpack.c.b16 %v5099, %v5098
    %v5133 = vpack.c.b16 %v5101, %v5100
    %v5134 = vpack.c.b16 %v5103, %v5102
    %v5135 = vpack.c.b16 %v5105, %v5104
    %v5136 = vpack.c.b16 %v5107, %v5106
    %v5137 = vpack.c.b16 %v5109, %v5108
    %v5138 = vpack.c.b16 %v5111, %v5110
    %v5139 = vpack.c.b16 %v5113, %v5112
    %v5140 = vpack.c.b16 %v5115, %v5114
    %v5141 = vpack.c.b16 %v5117, %v5116
    %v5142 = vpack.c.b16 %v5119, %v5118
    %v5143 = vpack.c.b16 %v5121, %v5120
    %v5144 = vpack.c.b16 %v5123, %v5122
    %v5145 = vpack.c.b16 %v5125, %v5124
    %v5146 = vpack.c.b16 %v5127, %v5126
    %v5147 = vpack.c.b16 %v5129, %v5128
    %v5167 = vsel %vm3544, %v5000, 0
    %v5170 = vsel %vm3544, %v5003, 0
    %v5173 = vsel %vm3544, %v5006, 0
    %v5176 = vsel %vm3544, %v5009, 0
    %v5179 = vsel %vm3544, %v5012, 0
    %v5182 = vsel %vm3544, %v5015, 0
    %v5185 = vsel %vm3544, %v5018, 0
    %v5188 = vsel %vm3544, %v5021, 0
    %5190 = vmatprep.subr.bf16.mxu0 0
    %5191 = vmatpush1.bf16.msra.mxu0 %v5130
    %5192 = vmatprep.subr.bf16.mxu0 0
    %5193 = vmatpush1.bf16.msra.mxu0 %v5131
    %5194 = vmatprep.subr.bf16.mxu0 0
    %5195 = vmatpush1.bf16.msra.mxu0 %v5132
    %5196 = vmatprep.subr.bf16.mxu0 0
    %5197 = vmatpush1.bf16.msra.mxu0 %v5133
    %5198 = vmatprep.subr.bf16.mxu0 0
    %5199 = vmatpush1.bf16.msra.mxu0 %v5134
    %5200 = vmatprep.subr.bf16.mxu0 0
    %5201 = vmatpush1.bf16.msra.mxu0 %v5135
    %5202 = vmatprep.subr.bf16.mxu0 0
    %5203 = vmatpush1.bf16.msra.mxu0 %v5136
    %5204 = vmatprep.subr.bf16.mxu0 0
    %5205 = vmatpush1.bf16.msra.mxu0 %v5137
    %5206 = vmatprep.subr.bf16.mxu0 0
    %5207 = vmatpush1.bf16.msra.mxu0 %v5138
    %5208 = vmatprep.subr.bf16.mxu0 0
    %5209 = vmatpush1.bf16.msra.mxu0 %v5139
    %5210 = vmatprep.subr.bf16.mxu0 0
    %5211 = vmatpush1.bf16.msra.mxu0 %v5140
    %5212 = vmatprep.subr.bf16.mxu0 0
    %5213 = vmatpush1.bf16.msra.mxu0 %v5141
    %5214 = vmatprep.subr.bf16.mxu0 0
    %5215 = vmatpush1.bf16.msra.mxu0 %v5142
    %5216 = vmatprep.subr.bf16.mxu0 0
    %5217 = vmatpush1.bf16.msra.mxu0 %v5143
    %5218 = vmatprep.subr.bf16.mxu0 0
    %5219 = vmatpush1.bf16.msra.mxu0 %v5144
    %5220 = vmatprep.subr.bf16.mxu0 0
    %5221 = vmatpush1.bf16.msra.mxu0 %v5145
    %5222 = vmatprep.mubr.bf16.mxu0 %v4999
    %5223 = vmatmul.mubr.bf16.gmra.mrb[0].mxu0 %v4998
    %v5224 = vpop.f32.mrb[0].mxu0
    %v5225 = vadd.f32 0.0, %v5224
    %v5226 = vpop.f32.mrb[0].mxu0
    %v5227 = vpop.f32.mrb[0].mxu0
    %v5228 = vadd.f32 0.0, %v5227
    %v5229 = vpop.f32.mrb[0].mxu0
    %5230 = vmatprep.mubr.bf16.mxu0 %v5002
    %5231 = vmatmul.mubr.bf16.gmra.mrb[0].mxu0 %v5001
    %v5232 = vpop.f32.mrb[0].mxu0
    %v5233 = vadd.f32 0.0, %v5232
    %v5234 = vpop.f32.mrb[0].mxu0
    %v5235 = vpop.f32.mrb[0].mxu0
    %v5236 = vadd.f32 0.0, %v5235
    %v5237 = vpop.f32.mrb[0].mxu0
    %5238 = vmatprep.mubr.bf16.mxu0 %v5005
    %5239 = vmatmul.mubr.bf16.gmra.mrb[0].mxu0 %v5004
    %v5240 = vpop.f32.mrb[0].mxu0
    %v5241 = vadd.f32 0.0, %v5240
    %v5242 = vpop.f32.mrb[0].mxu0
    %v5243 = vpop.f32.mrb[0].mxu0
    %v5244 = vadd.f32 0.0, %v5243
    %v5245 = vpop.f32.mrb[0].mxu0
    %5246 = vmatprep.mubr.bf16.mxu0 %v5008
    %5247 = vmatmul.mubr.bf16.gmra.mrb[0].mxu0 %v5007
    %v5248 = vpop.f32.mrb[0].mxu0
    %v5249 = vadd.f32 0.0, %v5248
    %v5250 = vpop.f32.mrb[0].mxu0
    %v5251 = vpop.f32.mrb[0].mxu0
    %v5252 = vadd.f32 0.0, %v5251
    %v5253 = vpop.f32.mrb[0].mxu0
    %5254 = vmatprep.mubr.bf16.mxu0 %v5011
    %5255 = vmatmul.mubr.bf16.gmra.mrb[0].mxu0 %v5010
    %v5256 = vpop.f32.mrb[0].mxu0
    %v5257 = vadd.f32 0.0, %v5256
    %v5258 = vpop.f32.mrb[0].mxu0
    %v5259 = vpop.f32.mrb[0].mxu0
    %v5260 = vadd.f32 0.0, %v5259
    %v5261 = vpop.f32.mrb[0].mxu0
    %5262 = vmatprep.mubr.bf16.mxu0 %v5014
    %5263 = vmatmul.mubr.bf16.gmra.mrb[0].mxu0 %v5013
    %v5264 = vpop.f32.mrb[0].mxu0
    %v5265 = vadd.f32 0.0, %v5264
    %v5266 = vpop.f32.mrb[0].mxu0
    %v5267 = vpop.f32.mrb[0].mxu0
    %v5268 = vadd.f32 0.0, %v5267
    %v5269 = vpop.f32.mrb[0].mxu0
    %5270 = vmatprep.mubr.bf16.mxu0 %v5017
    %5271 = vmatmul.mubr.bf16.gmra.mrb[0].mxu0 %v5016
    %v5272 = vpop.f32.mrb[0].mxu0
    %v5273 = vadd.f32 0.0, %v5272
    %v5274 = vpop.f32.mrb[0].mxu0
    %v5275 = vpop.f32.mrb[0].mxu0
    %v5276 = vadd.f32 0.0, %v5275
    %v5277 = vpop.f32.mrb[0].mxu0
    %5278 = vmatprep.mubr.bf16.mxu0 %v5020
    %5279 = vmatmul.mubr.bf16.gmra.mrb[0].mxu0 %v5019
    %v5280 = vpop.f32.mrb[0].mxu0
    %v5281 = vadd.f32 0.0, %v5280
    %v5282 = vpop.f32.mrb[0].mxu0
    %v5283 = vpop.f32.mrb[0].mxu0
    %v5284 = vadd.f32 0.0, %v5283
    %v5285 = vpop.f32.mrb[0].mxu0
    %5286 = vdwg.mxu0
    %5287 = vmatprep.subr.bf16.mxu0 0
    %5288 = vmatpush1.bf16.msra.mxu0 %v5146
    %5289 = vmatprep.subr.bf16.mxu0 0
    %5290 = vmatpush1.bf16.msra.mxu0 %v5147
    %5291 = vmatprep.subr.bf16.mxu0 0
    %5292 = vmatpush1.bf16.msra.mxu0 0
    %5293 = vmatprep.subr.bf16.mxu0 0
    %5294 = vmatpush1.bf16.msra.mxu0 0
    %5295 = vmatprep.subr.bf16.mxu0 0
    %5296 = vmatpush1.bf16.msra.mxu0 0
    %5297 = vmatprep.subr.bf16.mxu0 0
    %5298 = vmatpush1.bf16.msra.mxu0 0
    %5299 = vmatprep.subr.bf16.mxu0 0
    %5300 = vmatpush1.bf16.msra.mxu0 0
    %5301 = vmatprep.subr.bf16.mxu0 0
    %5302 = vmatpush1.bf16.msra.mxu0 0
    %5303 = vmatprep.subr.bf16.mxu0 0
    %5304 = vmatpush1.bf16.msra.mxu0 0
    %5305 = vmatprep.subr.bf16.mxu0 0
    %5306 = vmatpush1.bf16.msra.mxu0 0
    %5307 = vmatprep.subr.bf16.mxu0 0
    %5308 = vmatpush1.bf16.msra.mxu0 0
    %5309 = vmatprep.subr.bf16.mxu0 0
    %5310 = vmatpush1.bf16.msra.mxu0 0
    %5311 = vmatprep.subr.bf16.mxu0 0
    %5312 = vmatpush1.bf16.msra.mxu0 0
    %5313 = vmatprep.subr.bf16.mxu0 0
    %5314 = vmatpush1.bf16.msra.mxu0 0
    %5315 = vmatprep.subr.bf16.mxu0 0
    %5316 = vmatpush1.bf16.msra.mxu0 0
    %5317 = vmatprep.subr.bf16.mxu0 0
    %5318 = vmatpush1.bf16.msra.mxu0 0
    %5319 = vmatprep.mubr.bf16.mxu0 0
    %5320 = vmatmul.mubr.bf16.gmra.mrb[0].mxu0 %v5167
    %v5321 = vpop.f32.mrb[0].mxu0
    %v5322 = vadd.f32 %v5225, %v5321
    %v5323 = vpop.f32.mrb[0].mxu0
    %v5324 = vpop.f32.mrb[0].mxu0
    %v5325 = vadd.f32 %v5228, %v5324
    %v5326 = vpop.f32.mrb[0].mxu0
    %5327 = vmatprep.mubr.bf16.mxu0 0
    %5328 = vmatmul.mubr.bf16.gmra.mrb[0].mxu0 %v5170
    %v5329 = vpop.f32.mrb[0].mxu0
    %v5330 = vadd.f32 %v5233, %v5329
    %v5331 = vpop.f32.mrb[0].mxu0
    %v5332 = vpop.f32.mrb[0].mxu0
    %v5333 = vadd.f32 %v5236, %v5332
    %v5334 = vpop.f32.mrb[0].mxu0
    %5335 = vmatprep.mubr.bf16.mxu0 0
    %5336 = vmatmul.mubr.bf16.gmra.mrb[0].mxu0 %v5173
    %v5337 = vpop.f32.mrb[0].mxu0
    %v5338 = vadd.f32 %v5241, %v5337
    %v5339 = vpop.f32.mrb[0].mxu0
    %v5340 = vpop.f32.mrb[0].mxu0
    %v5341 = vadd.f32 %v5244, %v5340
    %v5342 = vpop.f32.mrb[0].mxu0
    %5343 = vmatprep.mubr.bf16.mxu0 0
    %5344 = vmatmul.mubr.bf16.gmra.mrb[0].mxu0 %v5176
    %v5345 = vpop.f32.mrb[0].mxu0
    %v5346 = vadd.f32 %v5249, %v5345
    %v5347 = vpop.f32.mrb[0].mxu0
    %v5348 = vpop.f32.mrb[0].mxu0
    %v5349 = vadd.f32 %v5252, %v5348
    %v5350 = vpop.f32.mrb[0].mxu0
    %5351 = vmatprep.mubr.bf16.mxu0 0
    %5352 = vmatmul.mubr.bf16.gmra.mrb[0].mxu0 %v5179
    %v5353 = vpop.f32.mrb[0].mxu0
    %v5354 = vadd.f32 %v5257, %v5353
    %v5355 = vpop.f32.mrb[0].mxu0
    %v5356 = vpop.f32.mrb[0].mxu0
    %v5357 = vadd.f32 %v5260, %v5356
    %v5358 = vpop.f32.mrb[0].mxu0
    %5359 = vmatprep.mubr.bf16.mxu0 0
    %5360 = vmatmul.mubr.bf16.gmra.mrb[0].mxu0 %v5182
    %v5361 = vpop.f32.mrb[0].mxu0
    %v5362 = vadd.f32 %v5265, %v5361
    %v5363 = vpop.f32.mrb[0].mxu0
    %v5364 = vpop.f32.mrb[0].mxu0
    %v5365 = vadd.f32 %v5268, %v5364
    %v5366 = vpop.f32.mrb[0].mxu0
    %5367 = vmatprep.mubr.bf16.mxu0 0
    %5368 = vmatmul.mubr.bf16.gmra.mrb[0].mxu0 %v5185
    %v5369 = vpop.f32.mrb[0].mxu0
    %v5370 = vadd.f32 %v5273, %v5369
    %v5371 = vpop.f32.mrb[0].mxu0
    %v5372 = vpop.f32.mrb[0].mxu0
    %v5373 = vadd.f32 %v5276, %v5372
    %v5374 = vpop.f32.mrb[0].mxu0
    %5375 = vmatprep.mubr.bf16.mxu0 0
    %5376 = vmatmul.mubr.bf16.gmra.mrb[0].mxu0 %v5188
    %v5377 = vpop.f32.mrb[0].mxu0
    %v5378 = vadd.f32 %v5281, %v5377
    %v5379 = vpop.f32.mrb[0].mxu0
    %v5380 = vpop.f32.mrb[0].mxu0
    %v5381 = vadd.f32 %v5284, %v5380
    %v5382 = vpop.f32.mrb[0].mxu0
    %5383 = vdwg.mxu0
    %v5384 = vld [vmem:[#allocation10] sm:$0x1]
    %v5386 = vlaneseq
    %v5387 = vshrl.u32 %v5386, 7
    %v5388 = vsub.s32 0, %v5387
    %v5389 = vrot.slane %v5384, %v5388
    %v5391 = vmul.f32 %v5322, %v5389
    %v5392 = vmul.f32 %v5325, %v5389
    %v5393 = vmul.f32 %v5330, %v5389
    %v5394 = vmul.f32 %v5333, %v5389
    %v5395 = vmul.f32 %v5338, %v5389
    %v5396 = vmul.f32 %v5341, %v5389
    %v5397 = vmul.f32 %v5346, %v5389
    %v5398 = vmul.f32 %v5349, %v5389
    %v5399 = vmul.f32 %v5354, %v5389
    %v5400 = vmul.f32 %v5357, %v5389
    %v5401 = vmul.f32 %v5362, %v5389
    %v5402 = vmul.f32 %v5365, %v5389
    %v5403 = vmul.f32 %v5370, %v5389
    %v5404 = vmul.f32 %v5373, %v5389
    %v5405 = vmul.f32 %v5378, %v5389
    %v5406 = vmul.f32 %v5381, %v5389
    %v5407 = vld [vmem:[#allocation11] sm:$0x1]
    %v5409 = vlaneseq
    %v5410 = vshrl.u32 %v5409, 7
    %v5411 = vsub.s32 0, %v5410
    %v5412 = vrot.slane %v5407, %v5411
    %v5414 = vadd.f32 %v5391, %v5412
    %v5415 = vadd.f32 %v5392, %v5412
    %v5416 = vadd.f32 %v5393, %v5412
    %v5417 = vadd.f32 %v5394, %v5412
    %v5418 = vadd.f32 %v5395, %v5412
    %v5419 = vadd.f32 %v5396, %v5412
    %v5420 = vadd.f32 %v5397, %v5412
    %v5421 = vadd.f32 %v5398, %v5412
    %v5422 = vadd.f32 %v5399, %v5412
    %v5423 = vadd.f32 %v5400, %v5412
    %v5424 = vadd.f32 %v5401, %v5412
    %v5425 = vadd.f32 %v5402, %v5412
    %v5426 = vadd.f32 %v5403, %v5412
    %v5427 = vadd.f32 %v5404, %v5412
    %v5428 = vadd.f32 %v5405, %v5412
    %v5429 = vadd.f32 %v5406, %v5412
    %v5430 = vmax.f32 %v5414, 0.0
    %v5431 = vmax.f32 %v5415, 0.0
    %v5432 = vmax.f32 %v5416, 0.0
    %v5433 = vmax.f32 %v5417, 0.0
    %v5434 = vmax.f32 %v5418, 0.0
    %v5435 = vmax.f32 %v5419, 0.0
    %v5436 = vmax.f32 %v5420, 0.0
    %v5437 = vmax.f32 %v5421, 0.0
    %v5438 = vmax.f32 %v5422, 0.0
    %v5439 = vmax.f32 %v5423, 0.0
    %v5440 = vmax.f32 %v5424, 0.0
    %v5441 = vmax.f32 %v5425, 0.0
    %v5442 = vmax.f32 %v5426, 0.0
    %v5443 = vmax.f32 %v5427, 0.0
    %v5444 = vmax.f32 %v5428, 0.0
    %v5445 = vmax.f32 %v5429, 0.0
    %v5462 = vcombine.high %v5430, %v5430
    %v5464 = vunpack.c.l.s4 1983009808
    %v5465 = vunpack.c.0.s8 %v5464
    %v5466 = vlaneseq
    %v5467 = vshrl.u32 %v5466, 7
    %v5468 = vsub.s32 %v5465, %v5467
    %v5469 = vrot.slane %v5430, %v5468
    %v5471 = vunpack.c.l.s4 1983009808
    %v5472 = vunpack.c.0.s8 %v5471
    %v5473 = vlaneseq
    %v5474 = vshrl.u32 %v5473, 7
    %v5475 = vsub.s32 %v5472, %v5474
    %v5476 = vrot.slane %v5462, %v5475
    %v5477 = vcombine.high %v5469, %v5469
    %v5478 = vcombine.high %v5476, %v5476
    %v5479 = vcombine.high %v5431, %v5431
    %v5481 = vunpack.c.l.s4 1983009808
    %v5482 = vunpack.c.0.s8 %v5481
    %v5483 = vlaneseq
    %v5484 = vshrl.u32 %v5483, 7
    %v5485 = vsub.s32 %v5482, %v5484
    %v5486 = vrot.slane %v5431, %v5485
    %v5488 = vunpack.c.l.s4 1983009808
    %v5489 = vunpack.c.0.s8 %v5488
    %v5490 = vlaneseq
    %v5491 = vshrl.u32 %v5490, 7
    %v5492 = vsub.s32 %v5489, %v5491
    %v5493 = vrot.slane %v5479, %v5492
    %v5494 = vcombine.high %v5486, %v5486
    %v5495 = vcombine.high %v5493, %v5493
    %v5496 = vcombine.high %v5432, %v5432
    %v5498 = vunpack.c.l.s4 1983009808
    %v5499 = vunpack.c.0.s8 %v5498
    %v5500 = vlaneseq
    %v5501 = vshrl.u32 %v5500, 7
    %v5502 = vsub.s32 %v5499, %v5501
    %v5503 = vrot.slane %v5432, %v5502
    %v5505 = vunpack.c.l.s4 1983009808
    %v5506 = vunpack.c.0.s8 %v5505
    %v5507 = vlaneseq
    %v5508 = vshrl.u32 %v5507, 7
    %v5509 = vsub.s32 %v5506, %v5508
    %v5510 = vrot.slane %v5496, %v5509
    %v5511 = vcombine.high %v5503, %v5503
    %v5512 = vcombine.high %v5510, %v5510
    %v5513 = vcombine.high %v5433, %v5433
    %v5515 = vunpack.c.l.s4 1983009808
    %v5516 = vunpack.c.0.s8 %v5515
    %v5517 = vlaneseq
    %v5518 = vshrl.u32 %v5517, 7
    %v5519 = vsub.s32 %v5516, %v5518
    %v5520 = vrot.slane %v5433, %v5519
    %v5522 = vunpack.c.l.s4 1983009808
    %v5523 = vunpack.c.0.s8 %v5522
    %v5524 = vlaneseq
    %v5525 = vshrl.u32 %v5524, 7
    %v5526 = vsub.s32 %v5523, %v5525
    %v5527 = vrot.slane %v5513, %v5526
    %v5528 = vcombine.high %v5520, %v5520
    %v5529 = vcombine.high %v5527, %v5527
    %v5530 = vcombine.high %v5434, %v5434
    %v5532 = vunpack.c.l.s4 1983009808
    %v5533 = vunpack.c.0.s8 %v5532
    %v5534 = vlaneseq
    %v5535 = vshrl.u32 %v5534, 7
    %v5536 = vsub.s32 %v5533, %v5535
    %v5537 = vrot.slane %v5434, %v5536
    %v5539 = vunpack.c.l.s4 1983009808
    %v5540 = vunpack.c.0.s8 %v5539
    %v5541 = vlaneseq
    %v5542 = vshrl.u32 %v5541, 7
    %v5543 = vsub.s32 %v5540, %v5542
    %v5544 = vrot.slane %v5530, %v5543
    %v5545 = vcombine.high %v5537, %v5537
    %v5546 = vcombine.high %v5544, %v5544
    %v5547 = vcombine.high %v5435, %v5435
    %v5549 = vunpack.c.l.s4 1983009808
    %v5550 = vunpack.c.0.s8 %v5549
    %v5551 = vlaneseq
    %v5552 = vshrl.u32 %v5551, 7
    %v5553 = vsub.s32 %v5550, %v5552
    %v5554 = vrot.slane %v5435, %v5553
    %v5556 = vunpack.c.l.s4 1983009808
    %v5557 = vunpack.c.0.s8 %v5556
    %v5558 = vlaneseq
    %v5559 = vshrl.u32 %v5558, 7
    %v5560 = vsub.s32 %v5557, %v5559
    %v5561 = vrot.slane %v5547, %v5560
    %v5562 = vcombine.high %v5554, %v5554
    %v5563 = vcombine.high %v5561, %v5561
    %v5564 = vcombine.high %v5436, %v5436
    %v5566 = vunpack.c.l.s4 1983009808
    %v5567 = vunpack.c.0.s8 %v5566
    %v5568 = vlaneseq
    %v5569 = vshrl.u32 %v5568, 7
    %v5570 = vsub.s32 %v5567, %v5569
    %v5571 = vrot.slane %v5436, %v5570
    %v5573 = vunpack.c.l.s4 1983009808
    %v5574 = vunpack.c.0.s8 %v5573
    %v5575 = vlaneseq
    %v5576 = vshrl.u32 %v5575, 7
    %v5577 = vsub.s32 %v5574, %v5576
    %v5578 = vrot.slane %v5564, %v5577
    %v5579 = vcombine.high %v5571, %v5571
    %v5580 = vcombine.high %v5578, %v5578
    %v5581 = vcombine.high %v5437, %v5437
    %v5583 = vunpack.c.l.s4 1983009808
    %v5584 = vunpack.c.0.s8 %v5583
    %v5585 = vlaneseq
    %v5586 = vshrl.u32 %v5585, 7
    %v5587 = vsub.s32 %v5584, %v5586
    %v5588 = vrot.slane %v5437, %v5587
    %v5590 = vunpack.c.l.s4 1983009808
    %v5591 = vunpack.c.0.s8 %v5590
    %v5592 = vlaneseq
    %v5593 = vshrl.u32 %v5592, 7
    %v5594 = vsub.s32 %v5591, %v5593
    %v5595 = vrot.slane %v5581, %v5594
    %v5596 = vcombine.high %v5588, %v5588
    %v5597 = vcombine.high %v5595, %v5595
    %v5598 = vcombine.high %v5438, %v5438
    %v5600 = vunpack.c.l.s4 1983009808
    %v5601 = vunpack.c.0.s8 %v5600
    %v5602 = vlaneseq
    %v5603 = vshrl.u32 %v5602, 7
    %v5604 = vsub.s32 %v5601, %v5603
    %v5605 = vrot.slane %v5438, %v5604
    %v5607 = vunpack.c.l.s4 1983009808
    %v5608 = vunpack.c.0.s8 %v5607
    %v5609 = vlaneseq
    %v5610 = vshrl.u32 %v5609, 7
    %v5611 = vsub.s32 %v5608, %v5610
    %v5612 = vrot.slane %v5598, %v5611
    %v5613 = vcombine.high %v5605, %v5605
    %v5614 = vcombine.high %v5612, %v5612
    %v5615 = vcombine.high %v5439, %v5439
    %v5617 = vunpack.c.l.s4 1983009808
    %v5618 = vunpack.c.0.s8 %v5617
    %v5619 = vlaneseq
    %v5620 = vshrl.u32 %v5619, 7
    %v5621 = vsub.s32 %v5618, %v5620
    %v5622 = vrot.slane %v5439, %v5621
    %v5624 = vunpack.c.l.s4 1983009808
    %v5625 = vunpack.c.0.s8 %v5624
    %v5626 = vlaneseq
    %v5627 = vshrl.u32 %v5626, 7
    %v5628 = vsub.s32 %v5625, %v5627
    %v5629 = vrot.slane %v5615, %v5628
    %v5630 = vcombine.high %v5622, %v5622
    %v5631 = vcombine.high %v5629, %v5629
    %v5632 = vcombine.high %v5440, %v5440
    %v5634 = vunpack.c.l.s4 1983009808
    %v5635 = vunpack.c.0.s8 %v5634
    %v5636 = vlaneseq
    %v5637 = vshrl.u32 %v5636, 7
    %v5638 = vsub.s32 %v5635, %v5637
    %v5639 = vrot.slane %v5440, %v5638
    %v5641 = vunpack.c.l.s4 1983009808
    %v5642 = vunpack.c.0.s8 %v5641
    %v5643 = vlaneseq
    %v5644 = vshrl.u32 %v5643, 7
    %v5645 = vsub.s32 %v5642, %v5644
    %v5646 = vrot.slane %v5632, %v5645
    %v5647 = vcombine.high %v5639, %v5639
    %v5648 = vcombine.high %v5646, %v5646
    %v5649 = vcombine.high %v5441, %v5441
    %v5651 = vunpack.c.l.s4 1983009808
    %v5652 = vunpack.c.0.s8 %v5651
    %v5653 = vlaneseq
    %v5654 = vshrl.u32 %v5653, 7
    %v5655 = vsub.s32 %v5652, %v5654
    %v5656 = vrot.slane %v5441, %v5655
    %v5658 = vunpack.c.l.s4 1983009808
    %v5659 = vunpack.c.0.s8 %v5658
    %v5660 = vlaneseq
    %v5661 = vshrl.u32 %v5660, 7
    %v5662 = vsub.s32 %v5659, %v5661
    %v5663 = vrot.slane %v5649, %v5662
    %v5664 = vcombine.high %v5656, %v5656
    %v5665 = vcombine.high %v5663, %v5663
    %v5666 = vcombine.high %v5442, %v5442
    %v5668 = vunpack.c.l.s4 1983009808
    %v5669 = vunpack.c.0.s8 %v5668
    %v5670 = vlaneseq
    %v5671 = vshrl.u32 %v5670, 7
    %v5672 = vsub.s32 %v5669, %v5671
    %v5673 = vrot.slane %v5442, %v5672
    %v5675 = vunpack.c.l.s4 1983009808
    %v5676 = vunpack.c.0.s8 %v5675
    %v5677 = vlaneseq
    %v5678 = vshrl.u32 %v5677, 7
    %v5679 = vsub.s32 %v5676, %v5678
    %v5680 = vrot.slane %v5666, %v5679
    %v5681 = vcombine.high %v5673, %v5673
    %v5682 = vcombine.high %v5680, %v5680
    %v5683 = vcombine.high %v5443, %v5443
    %v5685 = vunpack.c.l.s4 1983009808
    %v5686 = vunpack.c.0.s8 %v5685
    %v5687 = vlaneseq
    %v5688 = vshrl.u32 %v5687, 7
    %v5689 = vsub.s32 %v5686, %v5688
    %v5690 = vrot.slane %v5443, %v5689
    %v5692 = vunpack.c.l.s4 1983009808
    %v5693 = vunpack.c.0.s8 %v5692
    %v5694 = vlaneseq
    %v5695 = vshrl.u32 %v5694, 7
    %v5696 = vsub.s32 %v5693, %v5695
    %v5697 = vrot.slane %v5683, %v5696
    %v5698 = vcombine.high %v5690, %v5690
    %v5699 = vcombine.high %v5697, %v5697
    %v5700 = vcombine.high %v5444, %v5444
    %v5702 = vunpack.c.l.s4 1983009808
    %v5703 = vunpack.c.0.s8 %v5702
    %v5704 = vlaneseq
    %v5705 = vshrl.u32 %v5704, 7
    %v5706 = vsub.s32 %v5703, %v5705
    %v5707 = vrot.slane %v5444, %v5706
    %v5709 = vunpack.c.l.s4 1983009808
    %v5710 = vunpack.c.0.s8 %v5709
    %v5711 = vlaneseq
    %v5712 = vshrl.u32 %v5711, 7
    %v5713 = vsub.s32 %v5710, %v5712
    %v5714 = vrot.slane %v5700, %v5713
    %v5715 = vcombine.high %v5707, %v5707
    %v5716 = vcombine.high %v5714, %v5714
    %v5717 = vcombine.high %v5445, %v5445
    %v5719 = vunpack.c.l.s4 1983009808
    %v5720 = vunpack.c.0.s8 %v5719
    %v5721 = vlaneseq
    %v5722 = vshrl.u32 %v5721, 7
    %v5723 = vsub.s32 %v5720, %v5722
    %v5724 = vrot.slane %v5445, %v5723
    %v5726 = vunpack.c.l.s4 1983009808
    %v5727 = vunpack.c.0.s8 %v5726
    %v5728 = vlaneseq
    %v5729 = vshrl.u32 %v5728, 7
    %v5730 = vsub.s32 %v5727, %v5729
    %v5731 = vrot.slane %v5717, %v5730
    %v5732 = vcombine.high %v5724, %v5724
    %v5733 = vcombine.high %v5731, %v5731
    %v5798 = vrot.slane %v5469, 7
    %v5799 = vrot.slane %v5798, 2
    %v5800 = vrot.slane %v5477, 7
    %v5801 = vrot.slane %v5800, 2
    %v5802 = vrot.slane %v5476, 7
    %v5803 = vrot.slane %v5802, 2
    %v5804 = vrot.slane %v5478, 7
    %v5805 = vrot.slane %v5804, 2
    %v5806 = vrot.slane %v5486, 7
    %v5807 = vrot.slane %v5806, 2
    %v5808 = vrot.slane %v5494, 7
    %v5809 = vrot.slane %v5808, 2
    %v5810 = vrot.slane %v5493, 7
    %v5811 = vrot.slane %v5810, 2
    %v5812 = vrot.slane %v5495, 7
    %v5813 = vrot.slane %v5812, 2
    %v5814 = vrot.slane %v5503, 7
    %v5815 = vrot.slane %v5814, 2
    %v5816 = vrot.slane %v5511, 7
    %v5817 = vrot.slane %v5816, 2
    %v5818 = vrot.slane %v5510, 7
    %v5819 = vrot.slane %v5818, 2
    %v5820 = vrot.slane %v5512, 7
    %v5821 = vrot.slane %v5820, 2
    %v5822 = vrot.slane %v5520, 7
    %v5823 = vrot.slane %v5822, 2
    %v5824 = vrot.slane %v5528, 7
    %v5825 = vrot.slane %v5824, 2
    %v5826 = vrot.slane %v5527, 7
    %v5827 = vrot.slane %v5826, 2
    %v5828 = vrot.slane %v5529, 7
    %v5829 = vrot.slane %v5828, 2
    %v5830 = vrot.slane %v5537, 7
    %v5831 = vrot.slane %v5830, 2
    %v5832 = vrot.slane %v5545, 7
    %v5833 = vrot.slane %v5832, 2
    %v5834 = vrot.slane %v5544, 7
    %v5835 = vrot.slane %v5834, 2
    %v5836 = vrot.slane %v5546, 7
    %v5837 = vrot.slane %v5836, 2
    %v5838 = vrot.slane %v5554, 7
    %v5839 = vrot.slane %v5838, 2
    %v5840 = vrot.slane %v5562, 7
    %v5841 = vrot.slane %v5840, 2
    %v5842 = vrot.slane %v5561, 7
    %v5843 = vrot.slane %v5842, 2
    %v5844 = vrot.slane %v5563, 7
    %v5845 = vrot.slane %v5844, 2
    %v5846 = vrot.slane %v5571, 7
    %v5847 = vrot.slane %v5846, 2
    %v5848 = vrot.slane %v5579, 7
    %v5849 = vrot.slane %v5848, 2
    %v5850 = vrot.slane %v5578, 7
    %v5851 = vrot.slane %v5850, 2
    %v5852 = vrot.slane %v5580, 7
    %v5853 = vrot.slane %v5852, 2
    %v5854 = vrot.slane %v5588, 7
    %v5855 = vrot.slane %v5854, 2
    %v5856 = vrot.slane %v5596, 7
    %v5857 = vrot.slane %v5856, 2
    %v5858 = vrot.slane %v5595, 7
    %v5859 = vrot.slane %v5858, 2
    %v5860 = vrot.slane %v5597, 7
    %v5861 = vrot.slane %v5860, 2
    %v5862 = vrot.slane %v5605, 7
    %v5863 = vrot.slane %v5862, 2
    %v5864 = vrot.slane %v5613, 7
    %v5865 = vrot.slane %v5864, 2
    %v5866 = vrot.slane %v5612, 7
    %v5867 = vrot.slane %v5866, 2
    %v5868 = vrot.slane %v5614, 7
    %v5869 = vrot.slane %v5868, 2
    %v5870 = vrot.slane %v5622, 7
    %v5871 = vrot.slane %v5870, 2
    %v5872 = vrot.slane %v5630, 7
    %v5873 = vrot.slane %v5872, 2
    %v5874 = vrot.slane %v5629, 7
    %v5875 = vrot.slane %v5874, 2
    %v5876 = vrot.slane %v5631, 7
    %v5877 = vrot.slane %v5876, 2
    %v5878 = vrot.slane %v5639, 7
    %v5879 = vrot.slane %v5878, 2
    %v5880 = vrot.slane %v5647, 7
    %v5881 = vrot.slane %v5880, 2
    %v5882 = vrot.slane %v5646, 7
    %v5883 = vrot.slane %v5882, 2
    %v5884 = vrot.slane %v5648, 7
    %v5885 = vrot.slane %v5884, 2
    %v5886 = vrot.slane %v5656, 7
    %v5887 = vrot.slane %v5886, 2
    %v5888 = vrot.slane %v5664, 7
    %v5889 = vrot.slane %v5888, 2
    %v5890 = vrot.slane %v5663, 7
    %v5891 = vrot.slane %v5890, 2
    %v5892 = vrot.slane %v5665, 7
    %v5893 = vrot.slane %v5892, 2
    %v5894 = vrot.slane %v5673, 7
    %v5895 = vrot.slane %v5894, 2
    %v5896 = vrot.slane %v5681, 7
    %v5897 = vrot.slane %v5896, 2
    %v5898 = vrot.slane %v5680, 7
    %v5899 = vrot.slane %v5898, 2
    %v5900 = vrot.slane %v5682, 7
    %v5901 = vrot.slane %v5900, 2
    %v5902 = vrot.slane %v5690, 7
    %v5903 = vrot.slane %v5902, 2
    %v5904 = vrot.slane %v5698, 7
    %v5905 = vrot.slane %v5904, 2
    %v5906 = vrot.slane %v5697, 7
    %v5907 = vrot.slane %v5906, 2
    %v5908 = vrot.slane %v5699, 7
    %v5909 = vrot.slane %v5908, 2
    %v5910 = vrot.slane %v5707, 7
    %v5911 = vrot.slane %v5910, 2
    %v5912 = vrot.slane %v5715, 7
    %v5913 = vrot.slane %v5912, 2
    %v5914 = vrot.slane %v5714, 7
    %v5915 = vrot.slane %v5914, 2
    %v5916 = vrot.slane %v5716, 7
    %v5917 = vrot.slane %v5916, 2
    %v5918 = vrot.slane %v5724, 7
    %v5919 = vrot.slane %v5918, 2
    %v5920 = vrot.slane %v5732, 7
    %v5921 = vrot.slane %v5920, 2
    %v5922 = vrot.slane %v5731, 7
    %v5923 = vrot.slane %v5922, 2
    %v5924 = vrot.slane %v5733, 7
    %v5925 = vrot.slane %v5924, 2
    %v5990 = vmax.f32 %v5469, %v5799
    %v5991 = vmax.f32 %v5477, %v5801
    %v5992 = vmax.f32 %v5476, %v5803
    %v5993 = vmax.f32 %v5478, %v5805
    %v5994 = vmax.f32 %v5486, %v5807
    %v5995 = vmax.f32 %v5494, %v5809
    %v5996 = vmax.f32 %v5493, %v5811
    %v5997 = vmax.f32 %v5495, %v5813
    %v5998 = vmax.f32 %v5503, %v5815
    %v5999 = vmax.f32 %v5511, %v5817
    %v6000 = vmax.f32 %v5510, %v5819
    %v6001 = vmax.f32 %v5512, %v5821
    %v6002 = vmax.f32 %v5520, %v5823
    %v6003 = vmax.f32 %v5528, %v5825
    %v6004 = vmax.f32 %v5527, %v5827
    %v6005 = vmax.f32 %v5529, %v5829
    %v6006 = vmax.f32 %v5537, %v5831
    %v6007 = vmax.f32 %v5545, %v5833
    %v6008 = vmax.f32 %v5544, %v5835
    %v6009 = vmax.f32 %v5546, %v5837
    %v6010 = vmax.f32 %v5554, %v5839
    %v6011 = vmax.f32 %v5562, %v5841
    %v6012 = vmax.f32 %v5561, %v5843
    %v6013 = vmax.f32 %v5563, %v5845
    %v6014 = vmax.f32 %v5571, %v5847
    %v6015 = vmax.f32 %v5579, %v5849
    %v6016 = vmax.f32 %v5578, %v5851
    %v6017 = vmax.f32 %v5580, %v5853
    %v6018 = vmax.f32 %v5588, %v5855
    %v6019 = vmax.f32 %v5596, %v5857
    %v6020 = vmax.f32 %v5595, %v5859
    %v6021 = vmax.f32 %v5597, %v5861
    %v6022 = vmax.f32 %v5605, %v5863
    %v6023 = vmax.f32 %v5613, %v5865
    %v6024 = vmax.f32 %v5612, %v5867
    %v6025 = vmax.f32 %v5614, %v5869
    %v6026 = vmax.f32 %v5622, %v5871
    %v6027 = vmax.f32 %v5630, %v5873
    %v6028 = vmax.f32 %v5629, %v5875
    %v6029 = vmax.f32 %v5631, %v5877
    %v6030 = vmax.f32 %v5639, %v5879
    %v6031 = vmax.f32 %v5647, %v5881
    %v6032 = vmax.f32 %v5646, %v5883
    %v6033 = vmax.f32 %v5648, %v5885
    %v6034 = vmax.f32 %v5656, %v5887
    %v6035 = vmax.f32 %v5664, %v5889
    %v6036 = vmax.f32 %v5663, %v5891
    %v6037 = vmax.f32 %v5665, %v5893
    %v6038 = vmax.f32 %v5673, %v5895
    %v6039 = vmax.f32 %v5681, %v5897
    %v6040 = vmax.f32 %v5680, %v5899
    %v6041 = vmax.f32 %v5682, %v5901
    %v6042 = vmax.f32 %v5690, %v5903
    %v6043 = vmax.f32 %v5698, %v5905
    %v6044 = vmax.f32 %v5697, %v5907
    %v6045 = vmax.f32 %v5699, %v5909
    %v6046 = vmax.f32 %v5707, %v5911
    %v6047 = vmax.f32 %v5715, %v5913
    %v6048 = vmax.f32 %v5714, %v5915
    %v6049 = vmax.f32 %v5716, %v5917
    %v6050 = vmax.f32 %v5724, %v5919
    %v6051 = vmax.f32 %v5732, %v5921
    %v6052 = vmax.f32 %v5731, %v5923
    %v6053 = vmax.f32 %v5733, %v5925
    %v6054 = vmax.f32 %v5990, %v5994
    %v6055 = vmax.f32 %v5991, %v5995
    %v6056 = vmax.f32 %v5992, %v5996
    %v6057 = vmax.f32 %v5993, %v5997
    %v6058 = vmax.f32 %v5998, %v6002
    %v6059 = vmax.f32 %v5999, %v6003
    %v6060 = vmax.f32 %v6000, %v6004
    %v6061 = vmax.f32 %v6001, %v6005
    %v6062 = vmax.f32 %v6006, %v6010
    %v6063 = vmax.f32 %v6007, %v6011
    %v6064 = vmax.f32 %v6008, %v6012
    %v6065 = vmax.f32 %v6009, %v6013
    %v6066 = vmax.f32 %v6014, %v6018
    %v6067 = vmax.f32 %v6015, %v6019
    %v6068 = vmax.f32 %v6016, %v6020
    %v6069 = vmax.f32 %v6017, %v6021
    %v6070 = vmax.f32 %v6022, %v6026
    %v6071 = vmax.f32 %v6023, %v6027
    %v6072 = vmax.f32 %v6024, %v6028
    %v6073 = vmax.f32 %v6025, %v6029
    %v6074 = vmax.f32 %v6030, %v6034
    %v6075 = vmax.f32 %v6031, %v6035
    %v6076 = vmax.f32 %v6032, %v6036
    %v6077 = vmax.f32 %v6033, %v6037
    %v6078 = vmax.f32 %v6038, %v6042
    %v6079 = vmax.f32 %v6039, %v6043
    %v6080 = vmax.f32 %v6040, %v6044
    %v6081 = vmax.f32 %v6041, %v6045
    %v6082 = vmax.f32 %v6046, %v6050
    %v6083 = vmax.f32 %v6047, %v6051
    %v6084 = vmax.f32 %v6048, %v6052
    %v6085 = vmax.f32 %v6049, %v6053
    %vm6086 = vcmask 521216
    %6087 = vst.msk [vmem:[#allocation3] sm:$0x3f] %vm6086, 0.0
    %6088 = vst.msk [vmem:[#allocation3 + $0x8] sm:$0x3f] %vm6086, 0.0
    %6089 = vst.msk [vmem:[#allocation3 + $0x10] sm:$0x3f] %vm6086, 0.0
    %6090 = vst.msk [vmem:[#allocation3 + $0x18] sm:$0x3f] %vm6086, 0.0
    %6091 = vst.msk [vmem:[#allocation3 + $0x20] sm:$0x3f] %vm6086, 0.0
    %6092 = vst.msk [vmem:[#allocation3 + $0x28] sm:$0x3f] %vm6086, 0.0
    %6093 = vst.msk [vmem:[#allocation3 + $0x30] sm:$0x3f] %vm6086, 0.0
    %6094 = vst.msk [vmem:[#allocation3 + $0x38] sm:$0x3f] %vm6086, 0.0
    %6095 = vst.msk [vmem:[#allocation3 + $0x40] sm:$0x3f] %vm6086, 0.0
    %6096 = vst.msk [vmem:[#allocation3 + $0x48] sm:$0x3f] %vm6086, 0.0
    %6097 = vst.msk [vmem:[#allocation3 + $0x50] sm:$0x3f] %vm6086, 0.0
    %6098 = vst.msk [vmem:[#allocation3 + $0x58] sm:$0x3f] %vm6086, 0.0
    %v6131 = vlaneseq
    %v6132 = vshrl.u32 %v6131, 7
    %v6133 = vsub.s32 0, %v6132
    %v6134 = vrot.slane %v6054, %v6133
    %v6135 = vlaneseq
    %v6136 = vshrl.u32 %v6135, 7
    %v6137 = vsub.s32 0, %v6136
    %v6138 = vrot.slane %v6055, %v6137
    %v6139 = vlaneseq
    %v6140 = vshrl.u32 %v6139, 7
    %v6141 = vsub.s32 0, %v6140
    %v6142 = vrot.slane %v6056, %v6141
    %v6143 = vlaneseq
    %v6144 = vshrl.u32 %v6143, 7
    %v6145 = vsub.s32 0, %v6144
    %v6146 = vrot.slane %v6057, %v6145
    %v6147 = vlaneseq
    %v6148 = vshrl.u32 %v6147, 7
    %v6149 = vsub.s32 0, %v6148
    %v6150 = vrot.slane %v6058, %v6149
    %v6151 = vlaneseq
    %v6152 = vshrl.u32 %v6151, 7
    %v6153 = vsub.s32 0, %v6152
    %v6154 = vrot.slane %v6059, %v6153
    %v6155 = vlaneseq
    %v6156 = vshrl.u32 %v6155, 7
    %v6157 = vsub.s32 0, %v6156
    %v6158 = vrot.slane %v6060, %v6157
    %v6159 = vlaneseq
    %v6160 = vshrl.u32 %v6159, 7
    %v6161 = vsub.s32 0, %v6160
    %v6162 = vrot.slane %v6061, %v6161
    %v6163 = vlaneseq
    %v6164 = vshrl.u32 %v6163, 7
    %v6165 = vsub.s32 0, %v6164
    %v6166 = vrot.slane %v6062, %v6165
    %v6167 = vlaneseq
    %v6168 = vshrl.u32 %v6167, 7
    %v6169 = vsub.s32 0, %v6168
    %v6170 = vrot.slane %v6063, %v6169
    %v6171 = vlaneseq
    %v6172 = vshrl.u32 %v6171, 7
    %v6173 = vsub.s32 0, %v6172
    %v6174 = vrot.slane %v6064, %v6173
    %v6175 = vlaneseq
    %v6176 = vshrl.u32 %v6175, 7
    %v6177 = vsub.s32 0, %v6176
    %v6178 = vrot.slane %v6065, %v6177
    %v6179 = vlaneseq
    %v6180 = vshrl.u32 %v6179, 7
    %v6181 = vsub.s32 0, %v6180
    %v6182 = vrot.slane %v6066, %v6181
    %v6183 = vlaneseq
    %v6184 = vshrl.u32 %v6183, 7
    %v6185 = vsub.s32 0, %v6184
    %v6186 = vrot.slane %v6067, %v6185
    %v6187 = vlaneseq
    %v6188 = vshrl.u32 %v6187, 7
    %v6189 = vsub.s32 0, %v6188
    %v6190 = vrot.slane %v6068, %v6189
    %v6191 = vlaneseq
    %v6192 = vshrl.u32 %v6191, 7
    %v6193 = vsub.s32 0, %v6192
    %v6194 = vrot.slane %v6069, %v6193
    %v6195 = vlaneseq
    %v6196 = vshrl.u32 %v6195, 7
    %v6197 = vsub.s32 0, %v6196
    %v6198 = vrot.slane %v6070, %v6197
    %v6199 = vlaneseq
    %v6200 = vshrl.u32 %v6199, 7
    %v6201 = vsub.s32 0, %v6200
    %v6202 = vrot.slane %v6071, %v6201
    %v6203 = vlaneseq
    %v6204 = vshrl.u32 %v6203, 7
    %v6205 = vsub.s32 0, %v6204
    %v6206 = vrot.slane %v6072, %v6205
    %v6207 = vlaneseq
    %v6208 = vshrl.u32 %v6207, 7
    %v6209 = vsub.s32 0, %v6208
    %v6210 = vrot.slane %v6073, %v6209
    %v6211 = vlaneseq
    %v6212 = vshrl.u32 %v6211, 7
    %v6213 = vsub.s32 0, %v6212
    %v6214 = vrot.slane %v6074, %v6213
    %v6215 = vlaneseq
    %v6216 = vshrl.u32 %v6215, 7
    %v6217 = vsub.s32 0, %v6216
    %v6218 = vrot.slane %v6075, %v6217
    %v6219 = vlaneseq
    %v6220 = vshrl.u32 %v6219, 7
    %v6221 = vsub.s32 0, %v6220
    %v6222 = vrot.slane %v6076, %v6221
    %v6223 = vlaneseq
    %v6224 = vshrl.u32 %v6223, 7
    %v6225 = vsub.s32 0, %v6224
    %v6226 = vrot.slane %v6077, %v6225
    %v6227 = vlaneseq
    %v6228 = vshrl.u32 %v6227, 7
    %v6229 = vsub.s32 0, %v6228
    %v6230 = vrot.slane %v6078, %v6229
    %v6231 = vlaneseq
    %v6232 = vshrl.u32 %v6231, 7
    %v6233 = vsub.s32 0, %v6232
    %v6234 = vrot.slane %v6079, %v6233
    %v6235 = vlaneseq
    %v6236 = vshrl.u32 %v6235, 7
    %v6237 = vsub.s32 0, %v6236
    %v6238 = vrot.slane %v6080, %v6237
    %v6239 = vlaneseq
    %v6240 = vshrl.u32 %v6239, 7
    %v6241 = vsub.s32 0, %v6240
    %v6242 = vrot.slane %v6081, %v6241
    %v6243 = vlaneseq
    %v6244 = vshrl.u32 %v6243, 7
    %v6245 = vsub.s32 0, %v6244
    %v6246 = vrot.slane %v6082, %v6245
    %v6247 = vlaneseq
    %v6248 = vshrl.u32 %v6247, 7
    %v6249 = vsub.s32 0, %v6248
    %v6250 = vrot.slane %v6083, %v6249
    %v6251 = vlaneseq
    %v6252 = vshrl.u32 %v6251, 7
    %v6253 = vsub.s32 0, %v6252
    %v6254 = vrot.slane %v6084, %v6253
    %v6255 = vlaneseq
    %v6256 = vshrl.u32 %v6255, 7
    %v6257 = vsub.s32 0, %v6256
    %v6258 = vrot.slane %v6085, %v6257
    %v6259 = vsel %vm4226, %v6138, %v6134
    %v6260 = vsel %vm4228, %v6142, %v6259
    %v6261 = vsel %vm4230, %v6146, %v6260
    %v6262 = vsel %vm4226, %v6154, %v6150
    %v6263 = vsel %vm4228, %v6158, %v6262
    %v6264 = vsel %vm4230, %v6162, %v6263
    %v6265 = vsel %vm4226, %v6170, %v6166
    %v6266 = vsel %vm4228, %v6174, %v6265
    %v6267 = vsel %vm4230, %v6178, %v6266
    %v6268 = vsel %vm4226, %v6186, %v6182
    %v6269 = vsel %vm4228, %v6190, %v6268
    %v6270 = vsel %vm4230, %v6194, %v6269
    %v6271 = vsel %vm4226, %v6202, %v6198
    %v6272 = vsel %vm4228, %v6206, %v6271
    %v6273 = vsel %vm4230, %v6210, %v6272
    %v6274 = vsel %vm4226, %v6218, %v6214
    %v6275 = vsel %vm4228, %v6222, %v6274
    %v6276 = vsel %vm4230, %v6226, %v6275
    %v6277 = vsel %vm4226, %v6234, %v6230
    %v6278 = vsel %vm4228, %v6238, %v6277
    %v6279 = vsel %vm4230, %v6242, %v6278
    %v6280 = vsel %vm4226, %v6250, %v6246
    %v6281 = vsel %vm4228, %v6254, %v6280
    %v6282 = vsel %vm4230, %v6258, %v6281
    %s6291 = scalar_lea.vmem [#allocation3], 8
    %vm6292 = vcmask 519168
    %6293 = vst.msk [vmem:[%s6291 + $0x1] sm:$0xf] %vm6292, %v6261
    %6294 = vst.msk [vmem:[%s6291 + $0x9] sm:$0xf] %vm6292, %v6264
    %6295 = vst.msk [vmem:[%s6291 + $0x11] sm:$0xf] %vm6292, %v6267
    %6296 = vst.msk [vmem:[%s6291 + $0x19] sm:$0xf] %vm6292, %v6270
    %6297 = vst.msk [vmem:[%s6291 + $0x31] sm:$0xf] %vm6292, %v6273
    %6298 = vst.msk [vmem:[%s6291 + $0x39] sm:$0xf] %vm6292, %v6276
    %6299 = vst.msk [vmem:[%s6291 + $0x41] sm:$0xf] %vm6292, %v6279
    %6300 = vst.msk [vmem:[%s6291 + $0x49] sm:$0xf] %vm6292, %v6282
    %v6301 = vld [vmem:[#allocation3] sm:$0x3f]
    %v6302 = vld [vmem:[#allocation3 + $0x8] sm:$0x3f]
    %v6303 = vld [vmem:[#allocation3 + $0x10] sm:$0x3f]
    %v6304 = vld [vmem:[#allocation3 + $0x18] sm:$0x3f]
    %v6305 = vld [vmem:[#allocation3 + $0x20] sm:$0x3f]
    %v6306 = vld [vmem:[#allocation3 + $0x28] sm:$0x3f]
    %v6307 = vld [vmem:[#allocation3 + $0x30] sm:$0x3f]
    %v6308 = vld [vmem:[#allocation3 + $0x38] sm:$0x3f]
    %v6309 = vld [vmem:[#allocation3 + $0x40] sm:$0x3f]
    %v6310 = vld [vmem:[#allocation3 + $0x48] sm:$0x3f]
    %v6311 = vld [vmem:[#allocation3 + $0x50] sm:$0x3f]
    %v6312 = vld [vmem:[#allocation3 + $0x58] sm:$0x3f]
    %v6321 = vcombine.high %v6301, %v6301
    %v6322 = vcombine.high %v6302, %v6302
    %v6323 = vcombine.high %v6303, %v6303
    %v6324 = vcombine.high %v6304, %v6304
    %v6325 = vcombine.high %v6307, %v6307
    %v6326 = vcombine.high %v6308, %v6308
    %v6327 = vcombine.high %v6309, %v6309
    %v6328 = vcombine.high %v6310, %v6310
    %vm6329 = vcmask 1042432
    %vm6330 = vcmask 1046532
    %vm6331 = vmor %vm6329, %vm6330
    %v6332 = vrot.slane %v6301, 5
    %v6333 = vrot.slane %v6332, 4
    %v6334 = vrot.slane %v6321, 5
    %v6335 = vsel %vm6331, %v6333, %v6334
    %v6336 = vrot.slane %v6302, 5
    %v6337 = vrot.slane %v6336, 4
    %v6338 = vrot.slane %v6322, 5
    %v6339 = vsel %vm6331, %v6337, %v6338
    %v6340 = vrot.slane %v6303, 5
    %v6341 = vrot.slane %v6340, 4
    %v6342 = vrot.slane %v6323, 5
    %v6343 = vsel %vm6331, %v6341, %v6342
    %v6344 = vrot.slane %v6304, 5
    %v6345 = vrot.slane %v6344, 4
    %v6346 = vrot.slane %v6324, 5
    %v6347 = vsel %vm6331, %v6345, %v6346
    %v6348 = vrot.slane %v6307, 5
    %v6349 = vrot.slane %v6348, 4
    %v6350 = vrot.slane %v6325, 5
    %v6351 = vsel %vm6331, %v6349, %v6350
    %v6352 = vrot.slane %v6308, 5
    %v6353 = vrot.slane %v6352, 4
    %v6354 = vrot.slane %v6326, 5
    %v6355 = vsel %vm6331, %v6353, %v6354
    %v6356 = vrot.slane %v6309, 5
    %v6357 = vrot.slane %v6356, 4
    %v6358 = vrot.slane %v6327, 5
    %v6359 = vsel %vm6331, %v6357, %v6358
    %v6360 = vrot.slane %v6310, 5
    %v6361 = vrot.slane %v6360, 4
    %v6362 = vrot.slane %v6328, 5
    %v6363 = vsel %vm6331, %v6361, %v6362
    %vm6364 = vcmask 1041408
    %vm6365 = vcmask 1045508
    %vm6366 = vmor %vm6364, %vm6365
    %v6367 = vrot.slane %v6301, 6
    %v6368 = vrot.slane %v6367, 4
    %v6369 = vrot.slane %v6321, 6
    %v6370 = vsel %vm6366, %v6368, %v6369
    %v6371 = vrot.slane %v6302, 6
    %v6372 = vrot.slane %v6371, 4
    %v6373 = vrot.slane %v6322, 6
    %v6374 = vsel %vm6366, %v6372, %v6373
    %v6375 = vrot.slane %v6303, 6
    %v6376 = vrot.slane %v6375, 4
    %v6377 = vrot.slane %v6323, 6
    %v6378 = vsel %vm6366, %v6376, %v6377
    %v6379 = vrot.slane %v6304, 6
    %v6380 = vrot.slane %v6379, 4
    %v6381 = vrot.slane %v6324, 6
    %v6382 = vsel %vm6366, %v6380, %v6381
    %v6383 = vrot.slane %v6307, 6
    %v6384 = vrot.slane %v6383, 4
    %v6385 = vrot.slane %v6325, 6
    %v6386 = vsel %vm6366, %v6384, %v6385
    %v6387 = vrot.slane %v6308, 6
    %v6388 = vrot.slane %v6387, 4
    %v6389 = vrot.slane %v6326, 6
    %v6390 = vsel %vm6366, %v6388, %v6389
    %v6391 = vrot.slane %v6309, 6
    %v6392 = vrot.slane %v6391, 4
    %v6393 = vrot.slane %v6327, 6
    %v6394 = vsel %vm6366, %v6392, %v6393
    %v6395 = vrot.slane %v6310, 6
    %v6396 = vrot.slane %v6395, 4
    %v6397 = vrot.slane %v6328, 6
    %v6398 = vsel %vm6366, %v6396, %v6397
    %v6401 = vcombine.high %v6305, %v6305
    %v6402 = vcombine.high %v6311, %v6311
    %v6403 = vrot.slane %v6305, 5
    %v6404 = vrot.slane %v6403, 4
    %v6405 = vrot.slane %v6401, 5
    %v6406 = vsel %vm6331, %v6404, %v6405
    %v6407 = vrot.slane %v6311, 5
    %v6408 = vrot.slane %v6407, 4
    %v6409 = vrot.slane %v6402, 5
    %v6410 = vsel %vm6331, %v6408, %v6409
    %v6411 = vrot.slane %v6305, 6
    %v6412 = vrot.slane %v6411, 4
    %v6413 = vrot.slane %v6401, 6
    %v6414 = vsel %vm6366, %v6412, %v6413
    %v6415 = vrot.slane %v6311, 6
    %v6416 = vrot.slane %v6415, 4
    %v6417 = vrot.slane %v6402, 6
    %v6418 = vsel %vm6366, %v6416, %v6417
    %v6421 = vcombine.high %v6306, %v6306
    %v6422 = vcombine.high %v6312, %v6312
    %v6423 = vrot.slane %v6306, 5
    %v6424 = vrot.slane %v6423, 4
    %v6425 = vrot.slane %v6421, 5
    %v6426 = vsel %vm6331, %v6424, %v6425
    %v6427 = vrot.slane %v6312, 5
    %v6428 = vrot.slane %v6427, 4
    %v6429 = vrot.slane %v6422, 5
    %v6430 = vsel %vm6331, %v6428, %v6429
    %v6431 = vrot.slane %v6306, 6
    %v6432 = vrot.slane %v6431, 4
    %v6433 = vrot.slane %v6421, 6
    %v6434 = vsel %vm6366, %v6432, %v6433
    %v6435 = vrot.slane %v6312, 6
    %v6436 = vrot.slane %v6435, 4
    %v6437 = vrot.slane %v6422, 6
    %v6438 = vsel %vm6366, %v6436, %v6437
    %v6439 = vcombine.low %v6301, %v6302
    %v6440 = vcombine.low %v6303, %v6304
    %v6441 = vcombine.low %v6307, %v6308
    %v6442 = vcombine.low %v6309, %v6310
    %v6447 = vcombine.low %v6335, %v6339
    %v6448 = vcombine.low %v6343, %v6347
    %v6449 = vcombine.low %v6351, %v6355
    %v6450 = vcombine.low %v6359, %v6363
    %6451 = vrot.lane.b32.xlu0 %v6447, 64
    %v6452 = vpop.permute.xlu0 %6451
    %6453 = vrot.lane.b32.xlu0 %v6448, 64
    %v6454 = vpop.permute.xlu0 %6453
    %6455 = vrot.lane.b32.xlu0 %v6449, 64
    %v6456 = vpop.permute.xlu0 %6455
    %6457 = vrot.lane.b32.xlu0 %v6450, 64
    %v6458 = vpop.permute.xlu0 %6457
    %v6463 = vcombine.low %v6370, %v6374
    %v6464 = vcombine.low %v6378, %v6382
    %v6465 = vcombine.low %v6386, %v6390
    %v6466 = vcombine.low %v6394, %v6398
    %v6471 = vcombine.low %v6302, %v6303
    %v6472 = vcombine.low %v6304, %v6305
    %v6473 = vcombine.low %v6308, %v6309
    %v6474 = vcombine.low %v6310, %v6311
    %6475 = vrot.lane.b32.xlu0 %v6471, 64
    %v6476 = vpop.permute.xlu0 %6475
    %6477 = vrot.lane.b32.xlu0 %v6472, 64
    %v6478 = vpop.permute.xlu0 %6477
    %6479 = vrot.lane.b32.xlu0 %v6473, 64
    %v6480 = vpop.permute.xlu0 %6479
    %6481 = vrot.lane.b32.xlu0 %v6474, 64
    %v6482 = vpop.permute.xlu0 %6481
    %v6487 = vcombine.low %v6339, %v6343
    %v6488 = vcombine.low %v6347, %v6406
    %v6489 = vcombine.low %v6355, %v6359
    %v6490 = vcombine.low %v6363, %v6410
    %v6495 = vcombine.low %v6374, %v6378
    %v6496 = vcombine.low %v6382, %v6414
    %v6497 = vcombine.low %v6390, %v6394
    %v6498 = vcombine.low %v6398, %v6418
    %6499 = vrot.lane.b32.xlu0 %v6495, 64
    %v6500 = vpop.permute.xlu0 %6499
    %6501 = vrot.lane.b32.xlu0 %v6496, 64
    %v6502 = vpop.permute.xlu0 %6501
    %6503 = vrot.lane.b32.xlu0 %v6497, 64
    %v6504 = vpop.permute.xlu0 %6503
    %6505 = vrot.lane.b32.xlu0 %v6498, 64
    %v6506 = vpop.permute.xlu0 %6505
    %v6511 = vcombine.low %v6305, %v6306
    %v6512 = vcombine.low %v6311, %v6312
    %v6515 = vcombine.low %v6406, %v6426
    %v6516 = vcombine.low %v6410, %v6430
    %6517 = vrot.lane.b32.xlu0 %v6515, 64
    %v6518 = vpop.permute.xlu0 %6517
    %6519 = vrot.lane.b32.xlu0 %v6516, 64
    %v6520 = vpop.permute.xlu0 %6519
    %v6523 = vcombine.low %v6414, %v6434
    %v6524 = vcombine.low %v6418, %v6438
    %v6527 = vsel %vm4916, %v6439, %v6452
    %v6528 = vsel %vm4916, %v6440, %v6454
    %v6529 = vsel %vm4916, %v6441, %v6456
    %v6530 = vsel %vm4916, %v6442, %v6458
    %v6531 = vsel %vm4916, %v6463, %v6476
    %v6532 = vsel %vm4916, %v6464, %v6478
    %v6533 = vsel %vm4916, %v6465, %v6480
    %v6534 = vsel %vm4916, %v6466, %v6482
    %v6535 = vsel %vm4916, %v6487, %v6500
    %v6536 = vsel %vm4916, %v6488, %v6502
    %v6537 = vsel %vm4916, %v6489, %v6504
    %v6538 = vsel %vm4916, %v6490, %v6506
    %v6539 = vsel %vm4916, %v6511, %v6518
    %v6540 = vsel %vm4916, %v6512, %v6520
    %v6541 = vpack.c.bf16 %v6528, %v6527
    %v6542 = vpack.c.bf16 %v6532, %v6531
    %v6543 = vpack.c.bf16 %v6536, %v6535
    %v6544 = vpack.c.bf16 %v6539, %v6528
    %v6545 = vpack.c.bf16 %v6523, %v6464
    %v6546 = vpack.c.bf16 %v6530, %v6529
    %v6547 = vpack.c.bf16 %v6534, %v6533
    %v6548 = vpack.c.bf16 %v6538, %v6537
    %v6549 = vpack.c.bf16 %v6540, %v6530
    %v6550 = vpack.c.bf16 %v6524, %v6466
    %v6551 = vld [vmem:[%s7] sm:$0xf]
    %v6552 = vld [vmem:[%s7 + $0x4] sm:$0xf]
    %v6553 = vld [vmem:[%s7 + $0x8] sm:$0xf]
    %v6554 = vld [vmem:[%s7 + $0xc] sm:$0xf]
    %v6555 = vld [vmem:[%s7 + $0x10] sm:$0xf]
    %v6556 = vld [vmem:[%s7 + $0x14] sm:$0xf]
    %v6557 = vld [vmem:[%s7 + $0x18] sm:$0xf]
    %v6558 = vld [vmem:[%s7 + $0x1c] sm:$0xf]
    %v6559 = vld [vmem:[%s7 + $0x20] sm:$0xf]
    %v6560 = vld [vmem:[%s7 + $0x24] sm:$0xf]
    %v6561 = vld [vmem:[%s7 + $0x28] sm:$0xf]
    %v6562 = vld [vmem:[%s7 + $0x2c] sm:$0xf]
    %v6563 = vld [vmem:[%s7 + $0x30] sm:$0xf]
    %v6564 = vld [vmem:[%s7 + $0x34] sm:$0xf]
    %v6565 = vld [vmem:[%s7 + $0x38] sm:$0xf]
    %v6566 = vld [vmem:[%s7 + $0x3c] sm:$0xf]
    %v6567 = vld [vmem:[%s7 + $0x40] sm:$0xf]
    %v6568 = vld [vmem:[%s7 + $0x44] sm:$0xf]
    %v6569 = vld [vmem:[%s7 + $0x48] sm:$0xf]
    %v6570 = vld [vmem:[%s7 + $0x4c] sm:$0xf]
    %v6571 = vld [vmem:[%s7 + $0x50] sm:$0xf]
    %v6572 = vld [vmem:[%s7 + $0x54] sm:$0xf]
    %v6573 = vld [vmem:[%s7 + $0x58] sm:$0xf]
    %v6574 = vld [vmem:[%s7 + $0x5c] sm:$0xf]
    %v6575 = vld [vmem:[%s7 + $0x60] sm:$0xf]
    %v6576 = vld [vmem:[%s7 + $0x64] sm:$0xf]
    %v6577 = vld [vmem:[%s7 + $0x68] sm:$0xf]
    %v6578 = vld [vmem:[%s7 + $0x6c] sm:$0xf]
    %v6579 = vld [vmem:[%s7 + $0x70] sm:$0xf]
    %v6580 = vld [vmem:[%s7 + $0x74] sm:$0xf]
    %v6581 = vld [vmem:[%s7 + $0x78] sm:$0xf]
    %v6582 = vld [vmem:[%s7 + $0x7c] sm:$0xf]
    %v6583 = vld [vmem:[%s7 + $0x80] sm:$0xf]
    %v6584 = vld [vmem:[%s7 + $0x84] sm:$0xf]
    %v6585 = vld [vmem:[%s7 + $0x88] sm:$0xf]
    %v6586 = vld [vmem:[%s7 + $0x8c] sm:$0xf]
    %v6587 = vld [vmem:[%s7 + $0x90] sm:$0xf]
    %v6588 = vld [vmem:[%s7 + $0x94] sm:$0xf]
    %v6589 = vld [vmem:[%s7 + $0x98] sm:$0xf]
    %v6590 = vld [vmem:[%s7 + $0x9c] sm:$0xf]
    %v6591 = vld [vmem:[%s7 + $0xa0] sm:$0xf]
    %v6592 = vld [vmem:[%s7 + $0xa4] sm:$0xf]
    %v6593 = vld [vmem:[%s7 + $0xa8] sm:$0xf]
    %v6594 = vld [vmem:[%s7 + $0xac] sm:$0xf]
    %v6595 = vld [vmem:[%s7 + $0xb0] sm:$0xf]
    %v6596 = vld [vmem:[%s7 + $0xb4] sm:$0xf]
    %v6597 = vld [vmem:[%s7 + $0xb8] sm:$0xf]
    %v6598 = vld [vmem:[%s7 + $0xbc] sm:$0xf]
    %v6599 = vld [vmem:[%s7 + $0xc0] sm:$0xf]
    %v6600 = vld [vmem:[%s7 + $0xc4] sm:$0xf]
    %v6601 = vld [vmem:[%s7 + $0xc8] sm:$0xf]
    %v6602 = vld [vmem:[%s7 + $0xcc] sm:$0xf]
    %v6603 = vld [vmem:[%s7 + $0xd0] sm:$0xf]
    %v6604 = vld [vmem:[%s7 + $0xd4] sm:$0xf]
    %v6605 = vld [vmem:[%s7 + $0xd8] sm:$0xf]
    %v6606 = vld [vmem:[%s7 + $0xdc] sm:$0xf]
    %v6607 = vld [vmem:[%s7 + $0xe0] sm:$0xf]
    %v6608 = vld [vmem:[%s7 + $0xe4] sm:$0xf]
    %v6609 = vld [vmem:[%s7 + $0xe8] sm:$0xf]
    %v6610 = vld [vmem:[%s7 + $0xec] sm:$0xf]
    %v6611 = vld [vmem:[%s7 + $0xf0] sm:$0xf]
    %v6612 = vld [vmem:[%s7 + $0xf4] sm:$0xf]
    %v6613 = vld [vmem:[%s7 + $0xf8] sm:$0xf]
    %v6614 = vld [vmem:[%s7 + $0xfc] sm:$0xf]
    %v6615 = vld [vmem:[%s7 + $0x100] sm:$0xf]
    %v6616 = vld [vmem:[%s7 + $0x104] sm:$0xf]
    %v6617 = vld [vmem:[%s7 + $0x108] sm:$0xf]
    %v6618 = vld [vmem:[%s7 + $0x10c] sm:$0xf]
    %v6619 = vld [vmem:[%s7 + $0x110] sm:$0xf]
    %v6620 = vld [vmem:[%s7 + $0x114] sm:$0xf]
    %v6621 = vld [vmem:[%s7 + $0x118] sm:$0xf]
    %v6622 = vld [vmem:[%s7 + $0x11c] sm:$0xf]
    %v6695 = vunpack.c.l.b16 %v6551
    %v6696 = vunpack.c.l.b16 %v6552
    %v6697 = vunpack.c.l.b16 %v6553
    %v6698 = vunpack.c.l.b16 %v6554
    %v6699 = vunpack.c.l.b16 %v6555
    %v6700 = vunpack.c.l.b16 %v6556
    %v6701 = vunpack.c.l.b16 %v6557
    %v6702 = vunpack.c.l.b16 %v6558
    %v6703 = vunpack.c.l.b16 %v6559
    %v6704 = vunpack.c.l.b16 %v6560
    %v6705 = vunpack.c.l.b16 %v6561
    %v6706 = vunpack.c.l.b16 %v6562
    %v6707 = vunpack.c.l.b16 %v6563
    %v6708 = vunpack.c.l.b16 %v6564
    %v6709 = vunpack.c.l.b16 %v6565
    %v6710 = vunpack.c.l.b16 %v6566
    %v6711 = vunpack.c.l.b16 %v6567
    %v6712 = vunpack.c.l.b16 %v6568
    %v6713 = vunpack.c.l.b16 %v6569
    %v6714 = vunpack.c.l.b16 %v6570
    %v6715 = vunpack.c.l.b16 %v6571
    %v6716 = vunpack.c.l.b16 %v6572
    %v6717 = vunpack.c.l.b16 %v6573
    %v6718 = vunpack.c.l.b16 %v6574
    %v6719 = vunpack.c.l.b16 %v6575
    %v6720 = vunpack.c.l.b16 %v6576
    %v6721 = vunpack.c.l.b16 %v6577
    %v6722 = vunpack.c.l.b16 %v6578
    %v6723 = vunpack.c.l.b16 %v6579
    %v6724 = vunpack.c.l.b16 %v6580
    %v6725 = vunpack.c.l.b16 %v6581
    %v6726 = vunpack.c.l.b16 %v6582
    %v6727 = vunpack.c.l.b16 %v6583
    %v6728 = vunpack.c.l.b16 %v6584
    %v6729 = vunpack.c.l.b16 %v6585
    %v6730 = vunpack.c.l.b16 %v6586
    %v6731 = vunpack.c.l.b16 %v6587
    %v6732 = vunpack.c.l.b16 %v6588
    %v6733 = vunpack.c.l.b16 %v6589
    %v6734 = vunpack.c.l.b16 %v6590
    %v6735 = vunpack.c.l.b16 %v6591
    %v6736 = vunpack.c.l.b16 %v6592
    %v6737 = vunpack.c.l.b16 %v6593
    %v6738 = vunpack.c.l.b16 %v6594
    %v6739 = vunpack.c.l.b16 %v6595
    %v6740 = vunpack.c.l.b16 %v6596
    %v6741 = vunpack.c.l.b16 %v6597
    %v6742 = vunpack.c.l.b16 %v6598
    %v6743 = vunpack.c.l.b16 %v6599
    %v6744 = vunpack.c.l.b16 %v6600
    %v6745 = vunpack.c.l.b16 %v6601
    %v6746 = vunpack.c.l.b16 %v6602
    %v6747 = vunpack.c.l.b16 %v6603
    %v6748 = vunpack.c.l.b16 %v6604
    %v6749 = vunpack.c.l.b16 %v6605
    %v6750 = vunpack.c.l.b16 %v6606
    %v6751 = vunpack.c.l.b16 %v6607
    %v6752 = vunpack.c.l.b16 %v6608
    %v6753 = vunpack.c.l.b16 %v6609
    %v6754 = vunpack.c.l.b16 %v6610
    %v6755 = vunpack.c.l.b16 %v6611
    %v6756 = vunpack.c.l.b16 %v6612
    %v6757 = vunpack.c.l.b16 %v6613
    %v6758 = vunpack.c.l.b16 %v6614
    %v6759 = vunpack.c.l.b16 %v6615
    %v6760 = vunpack.c.l.b16 %v6616
    %v6761 = vunpack.c.l.b16 %v6617
    %v6762 = vunpack.c.l.b16 %v6618
    %v6763 = vunpack.c.l.b16 %v6619
    %v6764 = vunpack.c.l.b16 %v6620
    %v6765 = vunpack.c.l.b16 %v6621
    %v6766 = vunpack.c.l.b16 %v6622
    %v6767 = vpack.c.b16 %v6696, %v6695
    %v6768 = vpack.c.b16 %v6698, %v6697
    %v6769 = vpack.c.b16 %v6700, %v6699
    %v6770 = vpack.c.b16 %v6702, %v6701
    %v6771 = vpack.c.b16 %v6704, %v6703
    %v6772 = vpack.c.b16 %v6706, %v6705
    %v6773 = vpack.c.b16 %v6708, %v6707
    %v6774 = vpack.c.b16 %v6710, %v6709
    %v6775 = vpack.c.b16 %v6712, %v6711
    %v6776 = vpack.c.b16 %v6714, %v6713
    %v6777 = vpack.c.b16 %v6716, %v6715
    %v6778 = vpack.c.b16 %v6718, %v6717
    %v6779 = vpack.c.b16 %v6720, %v6719
    %v6780 = vpack.c.b16 %v6722, %v6721
    %v6781 = vpack.c.b16 %v6724, %v6723
    %v6782 = vpack.c.b16 %v6726, %v6725
    %v6783 = vpack.c.b16 %v6728, %v6727
    %v6784 = vpack.c.b16 %v6730, %v6729
    %v6785 = vpack.c.b16 %v6732, %v6731
    %v6786 = vpack.c.b16 %v6734, %v6733
    %v6787 = vpack.c.b16 %v6736, %v6735
    %v6788 = vpack.c.b16 %v6738, %v6737
    %v6789 = vpack.c.b16 %v6740, %v6739
    %v6790 = vpack.c.b16 %v6742, %v6741
    %v6791 = vpack.c.b16 %v6744, %v6743
    %v6792 = vpack.c.b16 %v6746, %v6745
    %v6793 = vpack.c.b16 %v6748, %v6747
    %v6794 = vpack.c.b16 %v6750, %v6749
    %v6795 = vpack.c.b16 %v6752, %v6751
    %v6796 = vpack.c.b16 %v6754, %v6753
    %v6797 = vpack.c.b16 %v6756, %v6755
    %v6798 = vpack.c.b16 %v6758, %v6757
    %v6799 = vpack.c.b16 %v6760, %v6759
    %v6800 = vpack.c.b16 %v6762, %v6761
    %v6801 = vpack.c.b16 %v6764, %v6763
    %v6802 = vpack.c.b16 %v6766, %v6765
    %v6840 = vsel %vm4916, %v6545, 0
    %v6843 = vsel %vm4916, %v6550, 0
    %6845 = vmatprep.subr.bf16.mxu0 0
    %6846 = vmatpush1.bf16.msra.mxu0 %v6767
    %6847 = vmatprep.subr.bf16.mxu0 0
    %6848 = vmatpush1.bf16.msra.mxu0 %v6768
    %6849 = vmatprep.subr.bf16.mxu0 0
    %6850 = vmatpush1.bf16.msra.mxu0 %v6769
    %6851 = vmatprep.subr.bf16.mxu0 0
    %6852 = vmatpush1.bf16.msra.mxu0 %v6770
    %6853 = vmatprep.subr.bf16.mxu0 0
    %6854 = vmatpush1.bf16.msra.mxu0 %v6771
    %6855 = vmatprep.subr.bf16.mxu0 0
    %6856 = vmatpush1.bf16.msra.mxu0 %v6772
    %6857 = vmatprep.subr.bf16.mxu0 0
    %6858 = vmatpush1.bf16.msra.mxu0 %v6773
    %6859 = vmatprep.subr.bf16.mxu0 0
    %6860 = vmatpush1.bf16.msra.mxu0 %v6774
    %6861 = vmatprep.subr.bf16.mxu0 0
    %6862 = vmatpush1.bf16.msra.mxu0 %v6775
    %6863 = vmatprep.subr.bf16.mxu0 0
    %6864 = vmatpush1.bf16.msra.mxu0 %v6776
    %6865 = vmatprep.subr.bf16.mxu0 0
    %6866 = vmatpush1.bf16.msra.mxu0 %v6777
    %6867 = vmatprep.subr.bf16.mxu0 0
    %6868 = vmatpush1.bf16.msra.mxu0 %v6778
    %6869 = vmatprep.subr.bf16.mxu0 0
    %6870 = vmatpush1.bf16.msra.mxu0 %v6779
    %6871 = vmatprep.subr.bf16.mxu0 0
    %6872 = vmatpush1.bf16.msra.mxu0 %v6780
    %6873 = vmatprep.subr.bf16.mxu0 0
    %6874 = vmatpush1.bf16.msra.mxu0 %v6781
    %6875 = vmatprep.subr.bf16.mxu0 0
    %6876 = vmatpush1.bf16.msra.mxu0 %v6782
    %6877 = vmatprep.mubr.bf16.mxu0 %v6542
    %6878 = vmatmul.mubr.bf16.gmra.mrb[0].mxu0 %v6541
    %v6879 = vpop.f32.mrb[0].mxu0
    %v6880 = vadd.f32 0.0, %v6879
    %v6881 = vpop.f32.mrb[0].mxu0
    %v6882 = vpop.f32.mrb[0].mxu0
    %v6883 = vadd.f32 0.0, %v6882
    %v6884 = vpop.f32.mrb[0].mxu0
    %6885 = vmatprep.mubr.bf16.mxu0 %v6547
    %6886 = vmatmul.mubr.bf16.gmra.mrb[0].mxu0 %v6546
    %v6887 = vpop.f32.mrb[0].mxu0
    %v6888 = vadd.f32 0.0, %v6887
    %v6889 = vpop.f32.mrb[0].mxu0
    %v6890 = vpop.f32.mrb[0].mxu0
    %v6891 = vadd.f32 0.0, %v6890
    %v6892 = vpop.f32.mrb[0].mxu0
    %6893 = vdwg.mxu0
    %6894 = vmatprep.subr.bf16.mxu0 0
    %6895 = vmatpush1.bf16.msra.mxu0 %v6783
    %6896 = vmatprep.subr.bf16.mxu0 0
    %6897 = vmatpush1.bf16.msra.mxu0 %v6784
    %6898 = vmatprep.subr.bf16.mxu0 0
    %6899 = vmatpush1.bf16.msra.mxu0 %v6785
    %6900 = vmatprep.subr.bf16.mxu0 0
    %6901 = vmatpush1.bf16.msra.mxu0 %v6786
    %6902 = vmatprep.subr.bf16.mxu0 0
    %6903 = vmatpush1.bf16.msra.mxu0 %v6787
    %6904 = vmatprep.subr.bf16.mxu0 0
    %6905 = vmatpush1.bf16.msra.mxu0 %v6788
    %6906 = vmatprep.subr.bf16.mxu0 0
    %6907 = vmatpush1.bf16.msra.mxu0 %v6789
    %6908 = vmatprep.subr.bf16.mxu0 0
    %6909 = vmatpush1.bf16.msra.mxu0 %v6790
    %6910 = vmatprep.subr.bf16.mxu0 0
    %6911 = vmatpush1.bf16.msra.mxu0 %v6791
    %6912 = vmatprep.subr.bf16.mxu0 0
    %6913 = vmatpush1.bf16.msra.mxu0 %v6792
    %6914 = vmatprep.subr.bf16.mxu0 0
    %6915 = vmatpush1.bf16.msra.mxu0 %v6793
    %6916 = vmatprep.subr.bf16.mxu0 0
    %6917 = vmatpush1.bf16.msra.mxu0 %v6794
    %6918 = vmatprep.subr.bf16.mxu0 0
    %6919 = vmatpush1.bf16.msra.mxu0 %v6795
    %6920 = vmatprep.subr.bf16.mxu0 0
    %6921 = vmatpush1.bf16.msra.mxu0 %v6796
    %6922 = vmatprep.subr.bf16.mxu0 0
    %6923 = vmatpush1.bf16.msra.mxu0 %v6797
    %6924 = vmatprep.subr.bf16.mxu0 0
    %6925 = vmatpush1.bf16.msra.mxu0 %v6798
    %6926 = vmatprep.mubr.bf16.mxu0 %v6544
    %6927 = vmatmul.mubr.bf16.gmra.mrb[0].mxu0 %v6543
    %v6928 = vpop.f32.mrb[0].mxu0
    %v6929 = vadd.f32 %v6880, %v6928
    %v6930 = vpop.f32.mrb[0].mxu0
    %v6931 = vpop.f32.mrb[0].mxu0
    %v6932 = vadd.f32 %v6883, %v6931
    %v6933 = vpop.f32.mrb[0].mxu0
    %6934 = vmatprep.mubr.bf16.mxu0 %v6549
    %6935 = vmatmul.mubr.bf16.gmra.mrb[0].mxu0 %v6548
    %v6936 = vpop.f32.mrb[0].mxu0
    %v6937 = vadd.f32 %v6888, %v6936
    %v6938 = vpop.f32.mrb[0].mxu0
    %v6939 = vpop.f32.mrb[0].mxu0
    %v6940 = vadd.f32 %v6891, %v6939
    %v6941 = vpop.f32.mrb[0].mxu0
    %6942 = vdwg.mxu0
    %6943 = vmatprep.subr.bf16.mxu0 0
    %6944 = vmatpush1.bf16.msra.mxu0 %v6799
    %6945 = vmatprep.subr.bf16.mxu0 0
    %6946 = vmatpush1.bf16.msra.mxu0 %v6800
    %6947 = vmatprep.subr.bf16.mxu0 0
    %6948 = vmatpush1.bf16.msra.mxu0 %v6801
    %6949 = vmatprep.subr.bf16.mxu0 0
    %6950 = vmatpush1.bf16.msra.mxu0 %v6802
    %6951 = vmatprep.subr.bf16.mxu0 0
    %6952 = vmatpush1.bf16.msra.mxu0 0
    %6953 = vmatprep.subr.bf16.mxu0 0
    %6954 = vmatpush1.bf16.msra.mxu0 0
    %6955 = vmatprep.subr.bf16.mxu0 0
    %6956 = vmatpush1.bf16.msra.mxu0 0
    %6957 = vmatprep.subr.bf16.mxu0 0
    %6958 = vmatpush1.bf16.msra.mxu0 0
    %6959 = vmatprep.subr.bf16.mxu0 0
    %6960 = vmatpush1.bf16.msra.mxu0 0
    %6961 = vmatprep.subr.bf16.mxu0 0
    %6962 = vmatpush1.bf16.msra.mxu0 0
    %6963 = vmatprep.subr.bf16.mxu0 0
    %6964 = vmatpush1.bf16.msra.mxu0 0
    %6965 = vmatprep.subr.bf16.mxu0 0
    %6966 = vmatpush1.bf16.msra.mxu0 0
    %6967 = vmatprep.subr.bf16.mxu0 0
    %6968 = vmatpush1.bf16.msra.mxu0 0
    %6969 = vmatprep.subr.bf16.mxu0 0
    %6970 = vmatpush1.bf16.msra.mxu0 0
    %6971 = vmatprep.subr.bf16.mxu0 0
    %6972 = vmatpush1.bf16.msra.mxu0 0
    %6973 = vmatprep.subr.bf16.mxu0 0
    %6974 = vmatpush1.bf16.msra.mxu0 0
    %6975 = vmatprep.mubr.bf16.mxu0 0
    %6976 = vmatmul.mubr.bf16.gmra.mrb[0].mxu0 %v6840
    %v6977 = vpop.f32.mrb[0].mxu0
    %v6978 = vadd.f32 %v6929, %v6977
    %v6979 = vpop.f32.mrb[0].mxu0
    %v6980 = vpop.f32.mrb[0].mxu0
    %v6981 = vadd.f32 %v6932, %v6980
    %v6982 = vpop.f32.mrb[0].mxu0
    %6983 = vmatprep.mubr.bf16.mxu0 0
    %6984 = vmatmul.mubr.bf16.gmra.mrb[0].mxu0 %v6843
    %v6985 = vpop.f32.mrb[0].mxu0
    %v6986 = vadd.f32 %v6937, %v6985
    %v6987 = vpop.f32.mrb[0].mxu0
    %v6988 = vpop.f32.mrb[0].mxu0
    %v6989 = vadd.f32 %v6940, %v6988
    %v6990 = vpop.f32.mrb[0].mxu0
    %6991 = vdwg.mxu0
    %v6992 = vld [vmem:[#allocation13] sm:$0x1]
    %v6994 = vlaneseq
    %v6995 = vshrl.u32 %v6994, 7
    %v6996 = vsub.s32 0, %v6995
    %v6997 = vrot.slane %v6992, %v6996
    %v6999 = vmul.f32 %v6978, %v6997
    %v7000 = vmul.f32 %v6981, %v6997
    %v7001 = vmul.f32 %v6986, %v6997
    %v7002 = vmul.f32 %v6989, %v6997
    %v7003 = vld [vmem:[#allocation14] sm:$0x1]
    %v7005 = vlaneseq
    %v7006 = vshrl.u32 %v7005, 7
    %v7007 = vsub.s32 0, %v7006
    %v7008 = vrot.slane %v7003, %v7007
    %v7010 = vadd.f32 %v6999, %v7008
    %v7011 = vadd.f32 %v7000, %v7008
    %v7012 = vadd.f32 %v7001, %v7008
    %v7013 = vadd.f32 %v7002, %v7008
    %v7014 = vmax.f32 %v7010, 0.0
    %v7015 = vmax.f32 %v7011, 0.0
    %v7016 = vmax.f32 %v7012, 0.0
    %v7017 = vmax.f32 %v7013, 0.0
    %v7022 = vcombine.high %v7014, %v7014
    %v7024 = vunpack.c.l.s4 1983009808
    %v7025 = vunpack.c.0.s8 %v7024
    %v7026 = vlaneseq
    %v7027 = vshrl.u32 %v7026, 7
    %v7028 = vsub.s32 %v7025, %v7027
    %v7029 = vrot.slane %v7014, %v7028
    %v7031 = vunpack.c.l.s4 1983009808
    %v7032 = vunpack.c.0.s8 %v7031
    %v7033 = vlaneseq
    %v7034 = vshrl.u32 %v7033, 7
    %v7035 = vsub.s32 %v7032, %v7034
    %v7036 = vrot.slane %v7022, %v7035
    %v7037 = vcombine.high %v7029, %v7029
    %v7038 = vcombine.high %v7036, %v7036
    %v7039 = vcombine.high %v7015, %v7015
    %v7041 = vunpack.c.l.s4 1983009808
    %v7042 = vunpack.c.0.s8 %v7041
    %v7043 = vlaneseq
    %v7044 = vshrl.u32 %v7043, 7
    %v7045 = vsub.s32 %v7042, %v7044
    %v7046 = vrot.slane %v7015, %v7045
    %v7048 = vunpack.c.l.s4 1983009808
    %v7049 = vunpack.c.0.s8 %v7048
    %v7050 = vlaneseq
    %v7051 = vshrl.u32 %v7050, 7
    %v7052 = vsub.s32 %v7049, %v7051
    %v7053 = vrot.slane %v7039, %v7052
    %v7054 = vcombine.high %v7046, %v7046
    %v7055 = vcombine.high %v7053, %v7053
    %v7056 = vcombine.high %v7016, %v7016
    %v7058 = vunpack.c.l.s4 1983009808
    %v7059 = vunpack.c.0.s8 %v7058
    %v7060 = vlaneseq
    %v7061 = vshrl.u32 %v7060, 7
    %v7062 = vsub.s32 %v7059, %v7061
    %v7063 = vrot.slane %v7016, %v7062
    %v7065 = vunpack.c.l.s4 1983009808
    %v7066 = vunpack.c.0.s8 %v7065
    %v7067 = vlaneseq
    %v7068 = vshrl.u32 %v7067, 7
    %v7069 = vsub.s32 %v7066, %v7068
    %v7070 = vrot.slane %v7056, %v7069
    %v7071 = vcombine.high %v7063, %v7063
    %v7072 = vcombine.high %v7070, %v7070
    %v7073 = vcombine.high %v7017, %v7017
    %v7075 = vunpack.c.l.s4 1983009808
    %v7076 = vunpack.c.0.s8 %v7075
    %v7077 = vlaneseq
    %v7078 = vshrl.u32 %v7077, 7
    %v7079 = vsub.s32 %v7076, %v7078
    %v7080 = vrot.slane %v7017, %v7079
    %v7082 = vunpack.c.l.s4 1983009808
    %v7083 = vunpack.c.0.s8 %v7082
    %v7084 = vlaneseq
    %v7085 = vshrl.u32 %v7084, 7
    %v7086 = vsub.s32 %v7083, %v7085
    %v7087 = vrot.slane %v7073, %v7086
    %v7088 = vcombine.high %v7080, %v7080
    %v7089 = vcombine.high %v7087, %v7087
    %v7106 = vrot.slane %v7029, 7
    %v7107 = vrot.slane %v7106, 2
    %v7108 = vrot.slane %v7037, 7
    %v7109 = vrot.slane %v7108, 2
    %v7110 = vrot.slane %v7036, 7
    %v7111 = vrot.slane %v7110, 2
    %v7112 = vrot.slane %v7038, 7
    %v7113 = vrot.slane %v7112, 2
    %v7114 = vrot.slane %v7046, 7
    %v7115 = vrot.slane %v7114, 2
    %v7116 = vrot.slane %v7054, 7
    %v7117 = vrot.slane %v7116, 2
    %v7118 = vrot.slane %v7053, 7
    %v7119 = vrot.slane %v7118, 2
    %v7120 = vrot.slane %v7055, 7
    %v7121 = vrot.slane %v7120, 2
    %v7122 = vrot.slane %v7063, 7
    %v7123 = vrot.slane %v7122, 2
    %v7124 = vrot.slane %v7071, 7
    %v7125 = vrot.slane %v7124, 2
    %v7126 = vrot.slane %v7070, 7
    %v7127 = vrot.slane %v7126, 2
    %v7128 = vrot.slane %v7072, 7
    %v7129 = vrot.slane %v7128, 2
    %v7130 = vrot.slane %v7080, 7
    %v7131 = vrot.slane %v7130, 2
    %v7132 = vrot.slane %v7088, 7
    %v7133 = vrot.slane %v7132, 2
    %v7134 = vrot.slane %v7087, 7
    %v7135 = vrot.slane %v7134, 2
    %v7136 = vrot.slane %v7089, 7
    %v7137 = vrot.slane %v7136, 2
    %v7154 = vmax.f32 %v7029, %v7107
    %v7155 = vmax.f32 %v7037, %v7109
    %v7156 = vmax.f32 %v7036, %v7111
    %v7157 = vmax.f32 %v7038, %v7113
    %v7158 = vmax.f32 %v7046, %v7115
    %v7159 = vmax.f32 %v7054, %v7117
    %v7160 = vmax.f32 %v7053, %v7119
    %v7161 = vmax.f32 %v7055, %v7121
    %v7162 = vmax.f32 %v7063, %v7123
    %v7163 = vmax.f32 %v7071, %v7125
    %v7164 = vmax.f32 %v7070, %v7127
    %v7165 = vmax.f32 %v7072, %v7129
    %v7166 = vmax.f32 %v7080, %v7131
    %v7167 = vmax.f32 %v7088, %v7133
    %v7168 = vmax.f32 %v7087, %v7135
    %v7169 = vmax.f32 %v7089, %v7137
    %v7170 = vmax.f32 %v7154, %v7156
    %v7171 = vmax.f32 %v7155, %v7157
    %v7172 = vmax.f32 %v7158, %v7160
    %v7173 = vmax.f32 %v7159, %v7161
    %v7174 = vmax.f32 %v7162, %v7164
    %v7175 = vmax.f32 %v7163, %v7165
    %v7176 = vmax.f32 %v7166, %v7168
    %v7177 = vmax.f32 %v7167, %v7169
    %7178 = vst [vmem:[#allocation4] sm:$0xf] 0.0
    %7179 = vst [vmem:[#allocation4 + $0x4] sm:$0xf] 0.0
    %7180 = vst [vmem:[#allocation4 + $0x8] sm:$0xf] 0.0
    %7181 = vst [vmem:[#allocation4 + $0xc] sm:$0xf] 0.0
    %7182 = vst [vmem:[#allocation4 + $0x10] sm:$0xf] 0.0
    %7183 = vst [vmem:[#allocation4 + $0x14] sm:$0xf] 0.0
    %7184 = vst [vmem:[#allocation4 + $0x18] sm:$0xf] 0.0
    %7185 = vst [vmem:[#allocation4 + $0x1c] sm:$0xf] 0.0
    %v7194 = vlaneseq
    %v7195 = vshrl.u32 %v7194, 7
    %v7196 = vsub.s32 0, %v7195
    %v7197 = vrot.slane %v7170, %v7196
    %v7198 = vlaneseq
    %v7199 = vshrl.u32 %v7198, 7
    %v7200 = vsub.s32 0, %v7199
    %v7201 = vrot.slane %v7171, %v7200
    %v7202 = vlaneseq
    %v7203 = vshrl.u32 %v7202, 7
    %v7204 = vsub.s32 0, %v7203
    %v7205 = vrot.slane %v7172, %v7204
    %v7206 = vlaneseq
    %v7207 = vshrl.u32 %v7206, 7
    %v7208 = vsub.s32 0, %v7207
    %v7209 = vrot.slane %v7173, %v7208
    %v7210 = vlaneseq
    %v7211 = vshrl.u32 %v7210, 7
    %v7212 = vsub.s32 0, %v7211
    %v7213 = vrot.slane %v7174, %v7212
    %v7214 = vlaneseq
    %v7215 = vshrl.u32 %v7214, 7
    %v7216 = vsub.s32 0, %v7215
    %v7217 = vrot.slane %v7175, %v7216
    %v7218 = vlaneseq
    %v7219 = vshrl.u32 %v7218, 7
    %v7220 = vsub.s32 0, %v7219
    %v7221 = vrot.slane %v7176, %v7220
    %v7222 = vlaneseq
    %v7223 = vshrl.u32 %v7222, 7
    %v7224 = vsub.s32 0, %v7223
    %v7225 = vrot.slane %v7177, %v7224
    %v7226 = vsel %vm4226, %v7201, %v7197
    %v7227 = vsel %vm4226, %v7209, %v7205
    %v7228 = vsel %vm4226, %v7217, %v7213
    %v7229 = vsel %vm4226, %v7225, %v7221
    %s7234 = scalar_lea.vmem [#allocation4], 4
    %7235 = vst [vmem:[%s7234 + $0x1] sm:$0x3] %v7226
    %7236 = vst [vmem:[%s7234 + $0x5] sm:$0x3] %v7227
    %7237 = vst [vmem:[%s7234 + $0x11] sm:$0x3] %v7228
    %7238 = vst [vmem:[%s7234 + $0x15] sm:$0x3] %v7229
    %v7239 = vld [vmem:[#allocation4] sm:$0xf]
    %v7240 = vld [vmem:[#allocation4 + $0x4] sm:$0xf]
    %v7241 = vld [vmem:[#allocation4 + $0x8] sm:$0xf]
    %v7242 = vld [vmem:[#allocation4 + $0xc] sm:$0xf]
    %v7243 = vld [vmem:[#allocation4 + $0x10] sm:$0xf]
    %v7244 = vld [vmem:[#allocation4 + $0x14] sm:$0xf]
    %v7245 = vld [vmem:[#allocation4 + $0x18] sm:$0xf]
    %v7246 = vld [vmem:[#allocation4 + $0x1c] sm:$0xf]
    %v7252 = vunpack.c.l.s4 1983009808
    %v7253 = vunpack.c.0.s8 %v7252
    %v7254 = vlaneseq
    %v7255 = vshrl.u32 %v7254, 7
    %v7256 = vsub.s32 %v7253, %v7255
    %v7257 = vrot.slane %v7239, %v7256
    %v7258 = vcombine.high %v7257, %v7257
    %v7260 = vunpack.c.l.s4 1983009808
    %v7261 = vunpack.c.0.s8 %v7260
    %v7262 = vlaneseq
    %v7263 = vshrl.u32 %v7262, 7
    %v7264 = vsub.s32 %v7261, %v7263
    %v7265 = vrot.slane %v7240, %v7264
    %v7266 = vcombine.high %v7265, %v7265
    %v7268 = vunpack.c.l.s4 1983009808
    %v7269 = vunpack.c.0.s8 %v7268
    %v7270 = vlaneseq
    %v7271 = vshrl.u32 %v7270, 7
    %v7272 = vsub.s32 %v7269, %v7271
    %v7273 = vrot.slane %v7243, %v7272
    %v7274 = vcombine.high %v7273, %v7273
    %v7276 = vunpack.c.l.s4 1983009808
    %v7277 = vunpack.c.0.s8 %v7276
    %v7278 = vlaneseq
    %v7279 = vshrl.u32 %v7278, 7
    %v7280 = vsub.s32 %v7277, %v7279
    %v7281 = vrot.slane %v7244, %v7280
    %v7282 = vcombine.high %v7281, %v7281
    %vm7283 = vcmask 1040384
    %vm7284 = vmor %vm7283, %vm4228
    %vm7285 = vmor %vm7284, %vm4232
    %vm7286 = vmor %vm7285, %vm4236
    %v7287 = vrot.slane %v7257, 7
    %v7288 = vrot.slane %v7287, 2
    %v7289 = vrot.slane %v7258, 7
    %v7290 = vsel %vm7286, %v7288, %v7289
    %v7291 = vrot.slane %v7265, 7
    %v7292 = vrot.slane %v7291, 2
    %v7293 = vrot.slane %v7266, 7
    %v7294 = vsel %vm7286, %v7292, %v7293
    %v7295 = vrot.slane %v7273, 7
    %v7296 = vrot.slane %v7295, 2
    %v7297 = vrot.slane %v7274, 7
    %v7298 = vsel %vm7286, %v7296, %v7297
    %v7299 = vrot.slane %v7281, 7
    %v7300 = vrot.slane %v7299, 2
    %v7301 = vrot.slane %v7282, 7
    %v7302 = vsel %vm7286, %v7300, %v7301
    %v7306 = vunpack.c.l.s4 1983009808
    %v7307 = vunpack.c.0.s8 %v7306
    %v7308 = vlaneseq
    %v7309 = vshrl.u32 %v7308, 7
    %v7310 = vsub.s32 %v7307, %v7309
    %v7311 = vrot.slane %v7241, %v7310
    %v7312 = vcombine.high %v7311, %v7311
    %v7314 = vunpack.c.l.s4 1983009808
    %v7315 = vunpack.c.0.s8 %v7314
    %v7316 = vlaneseq
    %v7317 = vshrl.u32 %v7316, 7
    %v7318 = vsub.s32 %v7315, %v7317
    %v7319 = vrot.slane %v7245, %v7318
    %v7320 = vcombine.high %v7319, %v7319
    %v7321 = vrot.slane %v7311, 7
    %v7322 = vrot.slane %v7321, 2
    %v7323 = vrot.slane %v7312, 7
    %v7324 = vsel %vm7286, %v7322, %v7323
    %v7325 = vrot.slane %v7319, 7
    %v7326 = vrot.slane %v7325, 2
    %v7327 = vrot.slane %v7320, 7
    %v7328 = vsel %vm7286, %v7326, %v7327
    %v7332 = vunpack.c.l.s4 1983009808
    %v7333 = vunpack.c.0.s8 %v7332
    %v7334 = vlaneseq
    %v7335 = vshrl.u32 %v7334, 7
    %v7336 = vsub.s32 %v7333, %v7335
    %v7337 = vrot.slane %v7242, %v7336
    %v7338 = vcombine.high %v7337, %v7337
    %v7340 = vunpack.c.l.s4 1983009808
    %v7341 = vunpack.c.0.s8 %v7340
    %v7342 = vlaneseq
    %v7343 = vshrl.u32 %v7342, 7
    %v7344 = vsub.s32 %v7341, %v7343
    %v7345 = vrot.slane %v7246, %v7344
    %v7346 = vcombine.high %v7345, %v7345
    %v7347 = vrot.slane %v7337, 7
    %v7348 = vrot.slane %v7347, 2
    %v7349 = vrot.slane %v7338, 7
    %v7350 = vsel %vm7286, %v7348, %v7349
    %v7351 = vrot.slane %v7345, 7
    %v7352 = vrot.slane %v7351, 2
    %v7353 = vrot.slane %v7346, 7
    %v7354 = vsel %vm7286, %v7352, %v7353
    %v7355 = vcombine.low %v7239, %v7240
    %v7356 = vcombine.low %v7243, %v7244
    %v7358 = vunpack.c.l.s4 1983009808
    %v7359 = vunpack.c.0.s8 %v7358
    %v7360 = vlaneseq
    %v7361 = vshrl.u32 %v7360, 7
    %v7362 = vsub.s32 %v7359, %v7361
    %v7363 = vrot.slane %v7355, %v7362
    %v7365 = vunpack.c.l.s4 1983009808
    %v7366 = vunpack.c.0.s8 %v7365
    %v7367 = vlaneseq
    %v7368 = vshrl.u32 %v7367, 7
    %v7369 = vsub.s32 %v7366, %v7368
    %v7370 = vrot.slane %v7356, %v7369
    %v7371 = vcombine.low %v7363, %v7370
    %v7373 = vcombine.low %v7290, %v7294
    %v7374 = vcombine.low %v7298, %v7302
    %v7376 = vunpack.c.l.s4 1983009808
    %v7377 = vunpack.c.0.s8 %v7376
    %v7378 = vlaneseq
    %v7379 = vshrl.u32 %v7378, 7
    %v7380 = vsub.s32 %v7377, %v7379
    %v7381 = vrot.slane %v7373, %v7380
    %v7383 = vunpack.c.l.s4 1983009808
    %v7384 = vunpack.c.0.s8 %v7383
    %v7385 = vlaneseq
    %v7386 = vshrl.u32 %v7385, 7
    %v7387 = vsub.s32 %v7384, %v7386
    %v7388 = vrot.slane %v7374, %v7387
    %v7389 = vcombine.low %v7381, %v7388
    %v7391 = vcombine.low %v7258, %v7266
    %v7392 = vcombine.low %v7274, %v7282
    %v7394 = vunpack.c.l.s4 1983009808
    %v7395 = vunpack.c.0.s8 %v7394
    %v7396 = vlaneseq
    %v7397 = vshrl.u32 %v7396, 7
    %v7398 = vsub.s32 %v7395, %v7397
    %v7399 = vrot.slane %v7391, %v7398
    %v7401 = vunpack.c.l.s4 1983009808
    %v7402 = vunpack.c.0.s8 %v7401
    %v7403 = vlaneseq
    %v7404 = vshrl.u32 %v7403, 7
    %v7405 = vsub.s32 %v7402, %v7404
    %v7406 = vrot.slane %v7392, %v7405
    %v7407 = vcombine.low %v7399, %v7406
    %v7409 = vcombine.low %v7240, %v7241
    %v7410 = vcombine.low %v7244, %v7245
    %v7412 = vunpack.c.l.s4 1983009808
    %v7413 = vunpack.c.0.s8 %v7412
    %v7414 = vlaneseq
    %v7415 = vshrl.u32 %v7414, 7
    %v7416 = vsub.s32 %v7413, %v7415
    %v7417 = vrot.slane %v7409, %v7416
    %v7419 = vunpack.c.l.s4 1983009808
    %v7420 = vunpack.c.0.s8 %v7419
    %v7421 = vlaneseq
    %v7422 = vshrl.u32 %v7421, 7
    %v7423 = vsub.s32 %v7420, %v7422
    %v7424 = vrot.slane %v7410, %v7423
    %v7425 = vcombine.low %v7417, %v7424
    %v7427 = vcombine.low %v7294, %v7324
    %v7428 = vcombine.low %v7302, %v7328
    %v7430 = vunpack.c.l.s4 1983009808
    %v7431 = vunpack.c.0.s8 %v7430
    %v7432 = vlaneseq
    %v7433 = vshrl.u32 %v7432, 7
    %v7434 = vsub.s32 %v7431, %v7433
    %v7435 = vrot.slane %v7427, %v7434
    %v7437 = vunpack.c.l.s4 1983009808
    %v7438 = vunpack.c.0.s8 %v7437
    %v7439 = vlaneseq
    %v7440 = vshrl.u32 %v7439, 7
    %v7441 = vsub.s32 %v7438, %v7440
    %v7442 = vrot.slane %v7428, %v7441
    %v7443 = vcombine.low %v7435, %v7442
    %v7445 = vcombine.low %v7266, %v7312
    %v7446 = vcombine.low %v7282, %v7320
    %v7448 = vunpack.c.l.s4 1983009808
    %v7449 = vunpack.c.0.s8 %v7448
    %v7450 = vlaneseq
    %v7451 = vshrl.u32 %v7450, 7
    %v7452 = vsub.s32 %v7449, %v7451
    %v7453 = vrot.slane %v7445, %v7452
    %v7455 = vunpack.c.l.s4 1983009808
    %v7456 = vunpack.c.0.s8 %v7455
    %v7457 = vlaneseq
    %v7458 = vshrl.u32 %v7457, 7
    %v7459 = vsub.s32 %v7456, %v7458
    %v7460 = vrot.slane %v7446, %v7459
    %v7461 = vcombine.low %v7453, %v7460
    %v7463 = vcombine.low %v7241, %v7242
    %v7464 = vcombine.low %v7245, %v7246
    %v7466 = vunpack.c.l.s4 1983009808
    %v7467 = vunpack.c.0.s8 %v7466
    %v7468 = vlaneseq
    %v7469 = vshrl.u32 %v7468, 7
    %v7470 = vsub.s32 %v7467, %v7469
    %v7471 = vrot.slane %v7463, %v7470
    %v7473 = vunpack.c.l.s4 1983009808
    %v7474 = vunpack.c.0.s8 %v7473
    %v7475 = vlaneseq
    %v7476 = vshrl.u32 %v7475, 7
    %v7477 = vsub.s32 %v7474, %v7476
    %v7478 = vrot.slane %v7464, %v7477
    %v7479 = vcombine.low %v7471, %v7478
    %v7481 = vcombine.low %v7324, %v7350
    %v7482 = vcombine.low %v7328, %v7354
    %v7484 = vunpack.c.l.s4 1983009808
    %v7485 = vunpack.c.0.s8 %v7484
    %v7486 = vlaneseq
    %v7487 = vshrl.u32 %v7486, 7
    %v7488 = vsub.s32 %v7485, %v7487
    %v7489 = vrot.slane %v7481, %v7488
    %v7491 = vunpack.c.l.s4 1983009808
    %v7492 = vunpack.c.0.s8 %v7491
    %v7493 = vlaneseq
    %v7494 = vshrl.u32 %v7493, 7
    %v7495 = vsub.s32 %v7492, %v7494
    %v7496 = vrot.slane %v7482, %v7495
    %v7497 = vcombine.low %v7489, %v7496
    %v7499 = vcombine.low %v7312, %v7338
    %v7500 = vcombine.low %v7320, %v7346
    %v7502 = vunpack.c.l.s4 1983009808
    %v7503 = vunpack.c.0.s8 %v7502
    %v7504 = vlaneseq
    %v7505 = vshrl.u32 %v7504, 7
    %v7506 = vsub.s32 %v7503, %v7505
    %v7507 = vrot.slane %v7499, %v7506
    %v7509 = vunpack.c.l.s4 1983009808
    %v7510 = vunpack.c.0.s8 %v7509
    %v7511 = vlaneseq
    %v7512 = vshrl.u32 %v7511, 7
    %v7513 = vsub.s32 %v7510, %v7512
    %v7514 = vrot.slane %v7500, %v7513
    %v7515 = vcombine.low %v7507, %v7514
    %v7517 = vpack.c.bf16 %v7371, %v7371
    %v7518 = vpack.c.bf16 %v7389, %v7389
    %v7519 = vpack.c.bf16 %v7407, %v7407
    %v7520 = vpack.c.bf16 %v7425, %v7425
    %v7521 = vpack.c.bf16 %v7443, %v7443
    %v7522 = vpack.c.bf16 %v7461, %v7461
    %v7523 = vpack.c.bf16 %v7479, %v7479
    %v7524 = vpack.c.bf16 %v7497, %v7497
    %v7525 = vpack.c.bf16 %v7515, %v7515
    %v7526 = vld [vmem:[%s10] sm:$0xff]
    %v7527 = vld [vmem:[%s10 + $0x8] sm:$0xff]
    %v7528 = vld [vmem:[%s10 + $0x10] sm:$0xff]
    %v7529 = vld [vmem:[%s10 + $0x18] sm:$0xff]
    %v7530 = vld [vmem:[%s10 + $0x20] sm:$0xff]
    %v7531 = vld [vmem:[%s10 + $0x28] sm:$0xff]
    %v7532 = vld [vmem:[%s10 + $0x30] sm:$0xff]
    %v7533 = vld [vmem:[%s10 + $0x38] sm:$0xff]
    %v7534 = vld [vmem:[%s10 + $0x40] sm:$0xff]
    %v7535 = vld [vmem:[%s10 + $0x48] sm:$0xff]
    %v7536 = vld [vmem:[%s10 + $0x50] sm:$0xff]
    %v7537 = vld [vmem:[%s10 + $0x58] sm:$0xff]
    %v7538 = vld [vmem:[%s10 + $0x60] sm:$0xff]
    %v7539 = vld [vmem:[%s10 + $0x68] sm:$0xff]
    %v7540 = vld [vmem:[%s10 + $0x70] sm:$0xff]
    %v7541 = vld [vmem:[%s10 + $0x78] sm:$0xff]
    %v7542 = vld [vmem:[%s10 + $0x80] sm:$0xff]
    %v7543 = vld [vmem:[%s10 + $0x88] sm:$0xff]
    %v7544 = vld [vmem:[%s10 + $0x90] sm:$0xff]
    %v7545 = vld [vmem:[%s10 + $0x98] sm:$0xff]
    %v7546 = vld [vmem:[%s10 + $0xa0] sm:$0xff]
    %v7547 = vld [vmem:[%s10 + $0xa8] sm:$0xff]
    %v7548 = vld [vmem:[%s10 + $0xb0] sm:$0xff]
    %v7549 = vld [vmem:[%s10 + $0xb8] sm:$0xff]
    %v7550 = vld [vmem:[%s10 + $0xc0] sm:$0xff]
    %v7551 = vld [vmem:[%s10 + $0xc8] sm:$0xff]
    %v7552 = vld [vmem:[%s10 + $0xd0] sm:$0xff]
    %v7553 = vld [vmem:[%s10 + $0xd8] sm:$0xff]
    %v7554 = vld [vmem:[%s10 + $0xe0] sm:$0xff]
    %v7555 = vld [vmem:[%s10 + $0xe8] sm:$0xff]
    %v7556 = vld [vmem:[%s10 + $0xf0] sm:$0xff]
    %v7557 = vld [vmem:[%s10 + $0xf8] sm:$0xff]
    %v7558 = vld [vmem:[%s10 + $0x100] sm:$0xff]
    %v7559 = vld [vmem:[%s10 + $0x108] sm:$0xff]
    %v7560 = vld [vmem:[%s10 + $0x110] sm:$0xff]
    %v7561 = vld [vmem:[%s10 + $0x118] sm:$0xff]
    %v7562 = vld [vmem:[%s10 + $0x120] sm:$0xff]
    %v7563 = vld [vmem:[%s10 + $0x128] sm:$0xff]
    %v7564 = vld [vmem:[%s10 + $0x130] sm:$0xff]
    %v7565 = vld [vmem:[%s10 + $0x138] sm:$0xff]
    %v7566 = vld [vmem:[%s10 + $0x140] sm:$0xff]
    %v7567 = vld [vmem:[%s10 + $0x148] sm:$0xff]
    %v7568 = vld [vmem:[%s10 + $0x150] sm:$0xff]
    %v7569 = vld [vmem:[%s10 + $0x158] sm:$0xff]
    %v7570 = vld [vmem:[%s10 + $0x160] sm:$0xff]
    %v7571 = vld [vmem:[%s10 + $0x168] sm:$0xff]
    %v7572 = vld [vmem:[%s10 + $0x170] sm:$0xff]
    %v7573 = vld [vmem:[%s10 + $0x178] sm:$0xff]
    %v7574 = vld [vmem:[%s10 + $0x180] sm:$0xff]
    %v7575 = vld [vmem:[%s10 + $0x188] sm:$0xff]
    %v7576 = vld [vmem:[%s10 + $0x190] sm:$0xff]
    %v7577 = vld [vmem:[%s10 + $0x198] sm:$0xff]
    %v7578 = vld [vmem:[%s10 + $0x1a0] sm:$0xff]
    %v7579 = vld [vmem:[%s10 + $0x1a8] sm:$0xff]
    %v7580 = vld [vmem:[%s10 + $0x1b0] sm:$0xff]
    %v7581 = vld [vmem:[%s10 + $0x1b8] sm:$0xff]
    %v7582 = vld [vmem:[%s10 + $0x1c0] sm:$0xff]
    %v7583 = vld [vmem:[%s10 + $0x1c8] sm:$0xff]
    %v7584 = vld [vmem:[%s10 + $0x1d0] sm:$0xff]
    %v7585 = vld [vmem:[%s10 + $0x1d8] sm:$0xff]
    %v7586 = vld [vmem:[%s10 + $0x1e0] sm:$0xff]
    %v7587 = vld [vmem:[%s10 + $0x1e8] sm:$0xff]
    %v7588 = vld [vmem:[%s10 + $0x1f0] sm:$0xff]
    %v7589 = vld [vmem:[%s10 + $0x1f8] sm:$0xff]
    %v7590 = vld [vmem:[%s10 + $0x200] sm:$0xff]
    %v7591 = vld [vmem:[%s10 + $0x208] sm:$0xff]
    %v7592 = vld [vmem:[%s10 + $0x210] sm:$0xff]
    %v7593 = vld [vmem:[%s10 + $0x218] sm:$0xff]
    %v7594 = vld [vmem:[%s10 + $0x220] sm:$0xff]
    %v7595 = vld [vmem:[%s10 + $0x228] sm:$0xff]
    %v7596 = vld [vmem:[%s10 + $0x230] sm:$0xff]
    %v7597 = vld [vmem:[%s10 + $0x238] sm:$0xff]
    %v7598 = vld [vmem:[%s10 + $0x240] sm:$0xff]
    %v7599 = vld [vmem:[%s10 + $0x248] sm:$0xff]
    %v7600 = vld [vmem:[%s10 + $0x250] sm:$0xff]
    %v7601 = vld [vmem:[%s10 + $0x258] sm:$0xff]
    %v7602 = vld [vmem:[%s10 + $0x260] sm:$0xff]
    %v7603 = vld [vmem:[%s10 + $0x268] sm:$0xff]
    %v7604 = vld [vmem:[%s10 + $0x270] sm:$0xff]
    %v7605 = vld [vmem:[%s10 + $0x278] sm:$0xff]
    %v7606 = vld [vmem:[%s10 + $0x280] sm:$0xff]
    %v7607 = vld [vmem:[%s10 + $0x288] sm:$0xff]
    %v7608 = vld [vmem:[%s10 + $0x290] sm:$0xff]
    %v7609 = vld [vmem:[%s10 + $0x298] sm:$0xff]
    %v7610 = vld [vmem:[%s10 + $0x2a0] sm:$0xff]
    %v7611 = vld [vmem:[%s10 + $0x2a8] sm:$0xff]
    %v7612 = vld [vmem:[%s10 + $0x2b0] sm:$0xff]
    %v7613 = vld [vmem:[%s10 + $0x2b8] sm:$0xff]
    %v7614 = vld [vmem:[%s10 + $0x2c0] sm:$0xff]
    %v7615 = vld [vmem:[%s10 + $0x2c8] sm:$0xff]
    %v7616 = vld [vmem:[%s10 + $0x2d0] sm:$0xff]
    %v7617 = vld [vmem:[%s10 + $0x2d8] sm:$0xff]
    %v7618 = vld [vmem:[%s10 + $0x2e0] sm:$0xff]
    %v7619 = vld [vmem:[%s10 + $0x2e8] sm:$0xff]
    %v7620 = vld [vmem:[%s10 + $0x2f0] sm:$0xff]
    %v7621 = vld [vmem:[%s10 + $0x2f8] sm:$0xff]
    %v7622 = vld [vmem:[%s10 + $0x300] sm:$0xff]
    %v7623 = vld [vmem:[%s10 + $0x308] sm:$0xff]
    %v7624 = vld [vmem:[%s10 + $0x310] sm:$0xff]
    %v7625 = vld [vmem:[%s10 + $0x318] sm:$0xff]
    %v7626 = vld [vmem:[%s10 + $0x320] sm:$0xff]
    %v7627 = vld [vmem:[%s10 + $0x328] sm:$0xff]
    %v7628 = vld [vmem:[%s10 + $0x330] sm:$0xff]
    %v7629 = vld [vmem:[%s10 + $0x338] sm:$0xff]
    %v7630 = vld [vmem:[%s10 + $0x340] sm:$0xff]
    %v7631 = vld [vmem:[%s10 + $0x348] sm:$0xff]
    %v7632 = vld [vmem:[%s10 + $0x350] sm:$0xff]
    %v7633 = vld [vmem:[%s10 + $0x358] sm:$0xff]
    %v7634 = vld [vmem:[%s10 + $0x360] sm:$0xff]
    %v7635 = vld [vmem:[%s10 + $0x368] sm:$0xff]
    %v7636 = vld [vmem:[%s10 + $0x370] sm:$0xff]
    %v7637 = vld [vmem:[%s10 + $0x378] sm:$0xff]
    %v7638 = vld [vmem:[%s10 + $0x380] sm:$0xff]
    %v7639 = vld [vmem:[%s10 + $0x388] sm:$0xff]
    %v7640 = vld [vmem:[%s10 + $0x390] sm:$0xff]
    %v7641 = vld [vmem:[%s10 + $0x398] sm:$0xff]
    %v7642 = vld [vmem:[%s10 + $0x3a0] sm:$0xff]
    %v7643 = vld [vmem:[%s10 + $0x3a8] sm:$0xff]
    %v7644 = vld [vmem:[%s10 + $0x3b0] sm:$0xff]
    %v7645 = vld [vmem:[%s10 + $0x3b8] sm:$0xff]
    %v7646 = vld [vmem:[%s10 + $0x3c0] sm:$0xff]
    %v7647 = vld [vmem:[%s10 + $0x3c8] sm:$0xff]
    %v7648 = vld [vmem:[%s10 + $0x3d0] sm:$0xff]
    %v7649 = vld [vmem:[%s10 + $0x3d8] sm:$0xff]
    %v7650 = vld [vmem:[%s10 + $0x3e0] sm:$0xff]
    %v7651 = vld [vmem:[%s10 + $0x3e8] sm:$0xff]
    %v7652 = vld [vmem:[%s10 + $0x3f0] sm:$0xff]
    %v7653 = vld [vmem:[%s10 + $0x3f8] sm:$0xff]
    %v7654 = vld [vmem:[%s10 + $0x400] sm:$0xff]
    %v7655 = vld [vmem:[%s10 + $0x408] sm:$0xff]
    %v7656 = vld [vmem:[%s10 + $0x410] sm:$0xff]
    %v7657 = vld [vmem:[%s10 + $0x418] sm:$0xff]
    %v7658 = vld [vmem:[%s10 + $0x420] sm:$0xff]
    %v7659 = vld [vmem:[%s10 + $0x428] sm:$0xff]
    %v7660 = vld [vmem:[%s10 + $0x430] sm:$0xff]
    %v7661 = vld [vmem:[%s10 + $0x438] sm:$0xff]
    %v7662 = vld [vmem:[%s10 + $0x440] sm:$0xff]
    %v7663 = vld [vmem:[%s10 + $0x448] sm:$0xff]
    %v7664 = vld [vmem:[%s10 + $0x450] sm:$0xff]
    %v7665 = vld [vmem:[%s10 + $0x458] sm:$0xff]
    %v7666 = vld [vmem:[%s10 + $0x460] sm:$0xff]
    %v7667 = vld [vmem:[%s10 + $0x468] sm:$0xff]
    %v7668 = vld [vmem:[%s10 + $0x470] sm:$0xff]
    %v7669 = vld [vmem:[%s10 + $0x478] sm:$0xff]
    %v7814 = vunpack.c.l.b16 %v7526
    %v7815 = vunpack.c.h.b16 %v7526
    %v7816 = vunpack.c.l.b16 %v7527
    %v7817 = vunpack.c.h.b16 %v7527
    %v7818 = vunpack.c.l.b16 %v7528
    %v7819 = vunpack.c.h.b16 %v7528
    %v7820 = vunpack.c.l.b16 %v7529
    %v7821 = vunpack.c.h.b16 %v7529
    %v7822 = vunpack.c.l.b16 %v7530
    %v7823 = vunpack.c.h.b16 %v7530
    %v7824 = vunpack.c.l.b16 %v7531
    %v7825 = vunpack.c.h.b16 %v7531
    %v7826 = vunpack.c.l.b16 %v7532
    %v7827 = vunpack.c.h.b16 %v7532
    %v7828 = vunpack.c.l.b16 %v7533
    %v7829 = vunpack.c.h.b16 %v7533
    %v7830 = vunpack.c.l.b16 %v7534
    %v7831 = vunpack.c.h.b16 %v7534
    %v7832 = vunpack.c.l.b16 %v7535
    %v7833 = vunpack.c.h.b16 %v7535
    %v7834 = vunpack.c.l.b16 %v7536
    %v7835 = vunpack.c.h.b16 %v7536
    %v7836 = vunpack.c.l.b16 %v7537
    %v7837 = vunpack.c.h.b16 %v7537
    %v7838 = vunpack.c.l.b16 %v7538
    %v7839 = vunpack.c.h.b16 %v7538
    %v7840 = vunpack.c.l.b16 %v7539
    %v7841 = vunpack.c.h.b16 %v7539
    %v7842 = vunpack.c.l.b16 %v7540
    %v7843 = vunpack.c.h.b16 %v7540
    %v7844 = vunpack.c.l.b16 %v7541
    %v7845 = vunpack.c.h.b16 %v7541
    %v7846 = vunpack.c.l.b16 %v7542
    %v7847 = vunpack.c.h.b16 %v7542
    %v7848 = vunpack.c.l.b16 %v7543
    %v7849 = vunpack.c.h.b16 %v7543
    %v7850 = vunpack.c.l.b16 %v7544
    %v7851 = vunpack.c.h.b16 %v7544
    %v7852 = vunpack.c.l.b16 %v7545
    %v7853 = vunpack.c.h.b16 %v7545
    %v7854 = vunpack.c.l.b16 %v7546
    %v7855 = vunpack.c.h.b16 %v7546
    %v7856 = vunpack.c.l.b16 %v7547
    %v7857 = vunpack.c.h.b16 %v7547
    %v7858 = vunpack.c.l.b16 %v7548
    %v7859 = vunpack.c.h.b16 %v7548
    %v7860 = vunpack.c.l.b16 %v7549
    %v7861 = vunpack.c.h.b16 %v7549
    %v7862 = vunpack.c.l.b16 %v7550
    %v7863 = vunpack.c.h.b16 %v7550
    %v7864 = vunpack.c.l.b16 %v7551
    %v7865 = vunpack.c.h.b16 %v7551
    %v7866 = vunpack.c.l.b16 %v7552
    %v7867 = vunpack.c.h.b16 %v7552
    %v7868 = vunpack.c.l.b16 %v7553
    %v7869 = vunpack.c.h.b16 %v7553
    %v7870 = vunpack.c.l.b16 %v7554
    %v7871 = vunpack.c.h.b16 %v7554
    %v7872 = vunpack.c.l.b16 %v7555
    %v7873 = vunpack.c.h.b16 %v7555
    %v7874 = vunpack.c.l.b16 %v7556
    %v7875 = vunpack.c.h.b16 %v7556
    %v7876 = vunpack.c.l.b16 %v7557
    %v7877 = vunpack.c.h.b16 %v7557
    %v7878 = vunpack.c.l.b16 %v7558
    %v7879 = vunpack.c.h.b16 %v7558
    %v7880 = vunpack.c.l.b16 %v7559
    %v7881 = vunpack.c.h.b16 %v7559
    %v7882 = vunpack.c.l.b16 %v7560
    %v7883 = vunpack.c.h.b16 %v7560
    %v7884 = vunpack.c.l.b16 %v7561
    %v7885 = vunpack.c.h.b16 %v7561
    %v7886 = vunpack.c.l.b16 %v7562
    %v7887 = vunpack.c.h.b16 %v7562
    %v7888 = vunpack.c.l.b16 %v7563
    %v7889 = vunpack.c.h.b16 %v7563
    %v7890 = vunpack.c.l.b16 %v7564
    %v7891 = vunpack.c.h.b16 %v7564
    %v7892 = vunpack.c.l.b16 %v7565
    %v7893 = vunpack.c.h.b16 %v7565
    %v7894 = vunpack.c.l.b16 %v7566
    %v7895 = vunpack.c.h.b16 %v7566
    %v7896 = vunpack.c.l.b16 %v7567
    %v7897 = vunpack.c.h.b16 %v7567
    %v7898 = vunpack.c.l.b16 %v7568
    %v7899 = vunpack.c.h.b16 %v7568
    %v7900 = vunpack.c.l.b16 %v7569
    %v7901 = vunpack.c.h.b16 %v7569
    %v7902 = vunpack.c.l.b16 %v7570
    %v7903 = vunpack.c.h.b16 %v7570
    %v7904 = vunpack.c.l.b16 %v7571
    %v7905 = vunpack.c.h.b16 %v7571
    %v7906 = vunpack.c.l.b16 %v7572
    %v7907 = vunpack.c.h.b16 %v7572
    %v7908 = vunpack.c.l.b16 %v7573
    %v7909 = vunpack.c.h.b16 %v7573
    %v7910 = vunpack.c.l.b16 %v7574
    %v7911 = vunpack.c.h.b16 %v7574
    %v7912 = vunpack.c.l.b16 %v7575
    %v7913 = vunpack.c.h.b16 %v7575
    %v7914 = vunpack.c.l.b16 %v7576
    %v7915 = vunpack.c.h.b16 %v7576
    %v7916 = vunpack.c.l.b16 %v7577
    %v7917 = vunpack.c.h.b16 %v7577
    %v7918 = vunpack.c.l.b16 %v7578
    %v7919 = vunpack.c.h.b16 %v7578
    %v7920 = vunpack.c.l.b16 %v7579
    %v7921 = vunpack.c.h.b16 %v7579
    %v7922 = vunpack.c.l.b16 %v7580
    %v7923 = vunpack.c.h.b16 %v7580
    %v7924 = vunpack.c.l.b16 %v7581
    %v7925 = vunpack.c.h.b16 %v7581
    %v7926 = vunpack.c.l.b16 %v7582
    %v7927 = vunpack.c.h.b16 %v7582
    %v7928 = vunpack.c.l.b16 %v7583
    %v7929 = vunpack.c.h.b16 %v7583
    %v7930 = vunpack.c.l.b16 %v7584
    %v7931 = vunpack.c.h.b16 %v7584
    %v7932 = vunpack.c.l.b16 %v7585
    %v7933 = vunpack.c.h.b16 %v7585
    %v7934 = vunpack.c.l.b16 %v7586
    %v7935 = vunpack.c.h.b16 %v7586
    %v7936 = vunpack.c.l.b16 %v7587
    %v7937 = vunpack.c.h.b16 %v7587
    %v7938 = vunpack.c.l.b16 %v7588
    %v7939 = vunpack.c.h.b16 %v7588
    %v7940 = vunpack.c.l.b16 %v7589
    %v7941 = vunpack.c.h.b16 %v7589
    %v7942 = vunpack.c.l.b16 %v7590
    %v7943 = vunpack.c.h.b16 %v7590
    %v7944 = vunpack.c.l.b16 %v7591
    %v7945 = vunpack.c.h.b16 %v7591
    %v7946 = vunpack.c.l.b16 %v7592
    %v7947 = vunpack.c.h.b16 %v7592
    %v7948 = vunpack.c.l.b16 %v7593
    %v7949 = vunpack.c.h.b16 %v7593
    %v7950 = vunpack.c.l.b16 %v7594
    %v7951 = vunpack.c.h.b16 %v7594
    %v7952 = vunpack.c.l.b16 %v7595
    %v7953 = vunpack.c.h.b16 %v7595
    %v7954 = vunpack.c.l.b16 %v7596
    %v7955 = vunpack.c.h.b16 %v7596
    %v7956 = vunpack.c.l.b16 %v7597
    %v7957 = vunpack.c.h.b16 %v7597
    %v7958 = vunpack.c.l.b16 %v7598
    %v7959 = vunpack.c.h.b16 %v7598
    %v7960 = vunpack.c.l.b16 %v7599
    %v7961 = vunpack.c.h.b16 %v7599
    %v7962 = vunpack.c.l.b16 %v7600
    %v7963 = vunpack.c.h.b16 %v7600
    %v7964 = vunpack.c.l.b16 %v7601
    %v7965 = vunpack.c.h.b16 %v7601
    %v7966 = vunpack.c.l.b16 %v7602
    %v7967 = vunpack.c.h.b16 %v7602
    %v7968 = vunpack.c.l.b16 %v7603
    %v7969 = vunpack.c.h.b16 %v7603
    %v7970 = vunpack.c.l.b16 %v7604
    %v7971 = vunpack.c.h.b16 %v7604
    %v7972 = vunpack.c.l.b16 %v7605
    %v7973 = vunpack.c.h.b16 %v7605
    %v7974 = vunpack.c.l.b16 %v7606
    %v7975 = vunpack.c.h.b16 %v7606
    %v7976 = vunpack.c.l.b16 %v7607
    %v7977 = vunpack.c.h.b16 %v7607
    %v7978 = vunpack.c.l.b16 %v7608
    %v7979 = vunpack.c.h.b16 %v7608
    %v7980 = vunpack.c.l.b16 %v7609
    %v7981 = vunpack.c.h.b16 %v7609
    %v7982 = vunpack.c.l.b16 %v7610
    %v7983 = vunpack.c.h.b16 %v7610
    %v7984 = vunpack.c.l.b16 %v7611
    %v7985 = vunpack.c.h.b16 %v7611
    %v7986 = vunpack.c.l.b16 %v7612
    %v7987 = vunpack.c.h.b16 %v7612
    %v7988 = vunpack.c.l.b16 %v7613
    %v7989 = vunpack.c.h.b16 %v7613
    %v7990 = vunpack.c.l.b16 %v7614
    %v7991 = vunpack.c.h.b16 %v7614
    %v7992 = vunpack.c.l.b16 %v7615
    %v7993 = vunpack.c.h.b16 %v7615
    %v7994 = vunpack.c.l.b16 %v7616
    %v7995 = vunpack.c.h.b16 %v7616
    %v7996 = vunpack.c.l.b16 %v7617
    %v7997 = vunpack.c.h.b16 %v7617
    %v7998 = vunpack.c.l.b16 %v7618
    %v7999 = vunpack.c.h.b16 %v7618
    %v8000 = vunpack.c.l.b16 %v7619
    %v8001 = vunpack.c.h.b16 %v7619
    %v8002 = vunpack.c.l.b16 %v7620
    %v8003 = vunpack.c.h.b16 %v7620
    %v8004 = vunpack.c.l.b16 %v7621
    %v8005 = vunpack.c.h.b16 %v7621
    %v8006 = vunpack.c.l.b16 %v7622
    %v8007 = vunpack.c.h.b16 %v7622
    %v8008 = vunpack.c.l.b16 %v7623
    %v8009 = vunpack.c.h.b16 %v7623
    %v8010 = vunpack.c.l.b16 %v7624
    %v8011 = vunpack.c.h.b16 %v7624
    %v8012 = vunpack.c.l.b16 %v7625
    %v8013 = vunpack.c.h.b16 %v7625
    %v8014 = vunpack.c.l.b16 %v7626
    %v8015 = vunpack.c.h.b16 %v7626
    %v8016 = vunpack.c.l.b16 %v7627
    %v8017 = vunpack.c.h.b16 %v7627
    %v8018 = vunpack.c.l.b16 %v7628
    %v8019 = vunpack.c.h.b16 %v7628
    %v8020 = vunpack.c.l.b16 %v7629
    %v8021 = vunpack.c.h.b16 %v7629
    %v8022 = vunpack.c.l.b16 %v7630
    %v8023 = vunpack.c.h.b16 %v7630
    %v8024 = vunpack.c.l.b16 %v7631
    %v8025 = vunpack.c.h.b16 %v7631
    %v8026 = vunpack.c.l.b16 %v7632
    %v8027 = vunpack.c.h.b16 %v7632
    %v8028 = vunpack.c.l.b16 %v7633
    %v8029 = vunpack.c.h.b16 %v7633
    %v8030 = vunpack.c.l.b16 %v7634
    %v8031 = vunpack.c.h.b16 %v7634
    %v8032 = vunpack.c.l.b16 %v7635
    %v8033 = vunpack.c.h.b16 %v7635
    %v8034 = vunpack.c.l.b16 %v7636
    %v8035 = vunpack.c.h.b16 %v7636
    %v8036 = vunpack.c.l.b16 %v7637
    %v8037 = vunpack.c.h.b16 %v7637
    %v8038 = vunpack.c.l.b16 %v7638
    %v8039 = vunpack.c.h.b16 %v7638
    %v8040 = vunpack.c.l.b16 %v7639
    %v8041 = vunpack.c.h.b16 %v7639
    %v8042 = vunpack.c.l.b16 %v7640
    %v8043 = vunpack.c.h.b16 %v7640
    %v8044 = vunpack.c.l.b16 %v7641
    %v8045 = vunpack.c.h.b16 %v7641
    %v8046 = vunpack.c.l.b16 %v7642
    %v8047 = vunpack.c.h.b16 %v7642
    %v8048 = vunpack.c.l.b16 %v7643
    %v8049 = vunpack.c.h.b16 %v7643
    %v8050 = vunpack.c.l.b16 %v7644
    %v8051 = vunpack.c.h.b16 %v7644
    %v8052 = vunpack.c.l.b16 %v7645
    %v8053 = vunpack.c.h.b16 %v7645
    %v8054 = vunpack.c.l.b16 %v7646
    %v8055 = vunpack.c.h.b16 %v7646
    %v8056 = vunpack.c.l.b16 %v7647
    %v8057 = vunpack.c.h.b16 %v7647
    %v8058 = vunpack.c.l.b16 %v7648
    %v8059 = vunpack.c.h.b16 %v7648
    %v8060 = vunpack.c.l.b16 %v7649
    %v8061 = vunpack.c.h.b16 %v7649
    %v8062 = vunpack.c.l.b16 %v7650
    %v8063 = vunpack.c.h.b16 %v7650
    %v8064 = vunpack.c.l.b16 %v7651
    %v8065 = vunpack.c.h.b16 %v7651
    %v8066 = vunpack.c.l.b16 %v7652
    %v8067 = vunpack.c.h.b16 %v7652
    %v8068 = vunpack.c.l.b16 %v7653
    %v8069 = vunpack.c.h.b16 %v7653
    %v8070 = vunpack.c.l.b16 %v7654
    %v8071 = vunpack.c.h.b16 %v7654
    %v8072 = vunpack.c.l.b16 %v7655
    %v8073 = vunpack.c.h.b16 %v7655
    %v8074 = vunpack.c.l.b16 %v7656
    %v8075 = vunpack.c.h.b16 %v7656
    %v8076 = vunpack.c.l.b16 %v7657
    %v8077 = vunpack.c.h.b16 %v7657
    %v8078 = vunpack.c.l.b16 %v7658
    %v8079 = vunpack.c.h.b16 %v7658
    %v8080 = vunpack.c.l.b16 %v7659
    %v8081 = vunpack.c.h.b16 %v7659
    %v8082 = vunpack.c.l.b16 %v7660
    %v8083 = vunpack.c.h.b16 %v7660
    %v8084 = vunpack.c.l.b16 %v7661
    %v8085 = vunpack.c.h.b16 %v7661
    %v8086 = vunpack.c.l.b16 %v7662
    %v8087 = vunpack.c.h.b16 %v7662
    %v8088 = vunpack.c.l.b16 %v7663
    %v8089 = vunpack.c.h.b16 %v7663
    %v8090 = vunpack.c.l.b16 %v7664
    %v8091 = vunpack.c.h.b16 %v7664
    %v8092 = vunpack.c.l.b16 %v7665
    %v8093 = vunpack.c.h.b16 %v7665
    %v8094 = vunpack.c.l.b16 %v7666
    %v8095 = vunpack.c.h.b16 %v7666
    %v8096 = vunpack.c.l.b16 %v7667
    %v8097 = vunpack.c.h.b16 %v7667
    %v8098 = vunpack.c.l.b16 %v7668
    %v8099 = vunpack.c.h.b16 %v7668
    %v8100 = vunpack.c.l.b16 %v7669
    %v8101 = vunpack.c.h.b16 %v7669
    %v8102 = vpack.c.b16 %v7816, %v7814
    %v8103 = vpack.c.b16 %v7817, %v7815
    %v8104 = vpack.c.b16 %v7820, %v7818
    %v8105 = vpack.c.b16 %v7821, %v7819
    %v8106 = vpack.c.b16 %v7824, %v7822
    %v8107 = vpack.c.b16 %v7825, %v7823
    %v8108 = vpack.c.b16 %v7828, %v7826
    %v8109 = vpack.c.b16 %v7829, %v7827
    %v8110 = vpack.c.b16 %v7832, %v7830
    %v8111 = vpack.c.b16 %v7833, %v7831
    %v8112 = vpack.c.b16 %v7836, %v7834
    %v8113 = vpack.c.b16 %v7837, %v7835
    %v8114 = vpack.c.b16 %v7840, %v7838
    %v8115 = vpack.c.b16 %v7841, %v7839
    %v8116 = vpack.c.b16 %v7844, %v7842
    %v8117 = vpack.c.b16 %v7845, %v7843
    %v8118 = vpack.c.b16 %v7848, %v7846
    %v8119 = vpack.c.b16 %v7849, %v7847
    %v8120 = vpack.c.b16 %v7852, %v7850
    %v8121 = vpack.c.b16 %v7853, %v7851
    %v8122 = vpack.c.b16 %v7856, %v7854
    %v8123 = vpack.c.b16 %v7857, %v7855
    %v8124 = vpack.c.b16 %v7860, %v7858
    %v8125 = vpack.c.b16 %v7861, %v7859
    %v8126 = vpack.c.b16 %v7864, %v7862
    %v8127 = vpack.c.b16 %v7865, %v7863
    %v8128 = vpack.c.b16 %v7868, %v7866
    %v8129 = vpack.c.b16 %v7869, %v7867
    %v8130 = vpack.c.b16 %v7872, %v7870
    %v8131 = vpack.c.b16 %v7873, %v7871
    %v8132 = vpack.c.b16 %v7876, %v7874
    %v8133 = vpack.c.b16 %v7877, %v7875
    %v8134 = vpack.c.b16 %v7880, %v7878
    %v8135 = vpack.c.b16 %v7881, %v7879
    %v8136 = vpack.c.b16 %v7884, %v7882
    %v8137 = vpack.c.b16 %v7885, %v7883
    %v8138 = vpack.c.b16 %v7888, %v7886
    %v8139 = vpack.c.b16 %v7889, %v7887
    %v8140 = vpack.c.b16 %v7892, %v7890
    %v8141 = vpack.c.b16 %v7893, %v7891
    %v8142 = vpack.c.b16 %v7896, %v7894
    %v8143 = vpack.c.b16 %v7897, %v7895
    %v8144 = vpack.c.b16 %v7900, %v7898
    %v8145 = vpack.c.b16 %v7901, %v7899
    %v8146 = vpack.c.b16 %v7904, %v7902
    %v8147 = vpack.c.b16 %v7905, %v7903
    %v8148 = vpack.c.b16 %v7908, %v7906
    %v8149 = vpack.c.b16 %v7909, %v7907
    %v8150 = vpack.c.b16 %v7912, %v7910
    %v8151 = vpack.c.b16 %v7913, %v7911
    %v8152 = vpack.c.b16 %v7916, %v7914
    %v8153 = vpack.c.b16 %v7917, %v7915
    %v8154 = vpack.c.b16 %v7920, %v7918
    %v8155 = vpack.c.b16 %v7921, %v7919
    %v8156 = vpack.c.b16 %v7924, %v7922
    %v8157 = vpack.c.b16 %v7925, %v7923
    %v8158 = vpack.c.b16 %v7928, %v7926
    %v8159 = vpack.c.b16 %v7929, %v7927
    %v8160 = vpack.c.b16 %v7932, %v7930
    %v8161 = vpack.c.b16 %v7933, %v7931
    %v8162 = vpack.c.b16 %v7936, %v7934
    %v8163 = vpack.c.b16 %v7937, %v7935
    %v8164 = vpack.c.b16 %v7940, %v7938
    %v8165 = vpack.c.b16 %v7941, %v7939
    %v8166 = vpack.c.b16 %v7944, %v7942
    %v8167 = vpack.c.b16 %v7945, %v7943
    %v8168 = vpack.c.b16 %v7948, %v7946
    %v8169 = vpack.c.b16 %v7949, %v7947
    %v8170 = vpack.c.b16 %v7952, %v7950
    %v8171 = vpack.c.b16 %v7953, %v7951
    %v8172 = vpack.c.b16 %v7956, %v7954
    %v8173 = vpack.c.b16 %v7957, %v7955
    %v8174 = vpack.c.b16 %v7960, %v7958
    %v8175 = vpack.c.b16 %v7961, %v7959
    %v8176 = vpack.c.b16 %v7964, %v7962
    %v8177 = vpack.c.b16 %v7965, %v7963
    %v8178 = vpack.c.b16 %v7968, %v7966
    %v8179 = vpack.c.b16 %v7969, %v7967
    %v8180 = vpack.c.b16 %v7972, %v7970
    %v8181 = vpack.c.b16 %v7973, %v7971
    %v8182 = vpack.c.b16 %v7976, %v7974
    %v8183 = vpack.c.b16 %v7977, %v7975
    %v8184 = vpack.c.b16 %v7980, %v7978
    %v8185 = vpack.c.b16 %v7981, %v7979
    %v8186 = vpack.c.b16 %v7984, %v7982
    %v8187 = vpack.c.b16 %v7985, %v7983
    %v8188 = vpack.c.b16 %v7988, %v7986
    %v8189 = vpack.c.b16 %v7989, %v7987
    %v8190 = vpack.c.b16 %v7992, %v7990
    %v8191 = vpack.c.b16 %v7993, %v7991
    %v8192 = vpack.c.b16 %v7996, %v7994
    %v8193 = vpack.c.b16 %v7997, %v7995
    %v8194 = vpack.c.b16 %v8000, %v7998
    %v8195 = vpack.c.b16 %v8001, %v7999
    %v8196 = vpack.c.b16 %v8004, %v8002
    %v8197 = vpack.c.b16 %v8005, %v8003
    %v8198 = vpack.c.b16 %v8008, %v8006
    %v8199 = vpack.c.b16 %v8009, %v8007
    %v8200 = vpack.c.b16 %v8012, %v8010
    %v8201 = vpack.c.b16 %v8013, %v8011
    %v8202 = vpack.c.b16 %v8016, %v8014
    %v8203 = vpack.c.b16 %v8017, %v8015
    %v8204 = vpack.c.b16 %v8020, %v8018
    %v8205 = vpack.c.b16 %v8021, %v8019
    %v8206 = vpack.c.b16 %v8024, %v8022
    %v8207 = vpack.c.b16 %v8025, %v8023
    %v8208 = vpack.c.b16 %v8028, %v8026
    %v8209 = vpack.c.b16 %v8029, %v8027
    %v8210 = vpack.c.b16 %v8032, %v8030
    %v8211 = vpack.c.b16 %v8033, %v8031
    %v8212 = vpack.c.b16 %v8036, %v8034
    %v8213 = vpack.c.b16 %v8037, %v8035
    %v8214 = vpack.c.b16 %v8040, %v8038
    %v8215 = vpack.c.b16 %v8041, %v8039
    %v8216 = vpack.c.b16 %v8044, %v8042
    %v8217 = vpack.c.b16 %v8045, %v8043
    %v8218 = vpack.c.b16 %v8048, %v8046
    %v8219 = vpack.c.b16 %v8049, %v8047
    %v8220 = vpack.c.b16 %v8052, %v8050
    %v8221 = vpack.c.b16 %v8053, %v8051
    %v8222 = vpack.c.b16 %v8056, %v8054
    %v8223 = vpack.c.b16 %v8057, %v8055
    %v8224 = vpack.c.b16 %v8060, %v8058
    %v8225 = vpack.c.b16 %v8061, %v8059
    %v8226 = vpack.c.b16 %v8064, %v8062
    %v8227 = vpack.c.b16 %v8065, %v8063
    %v8228 = vpack.c.b16 %v8068, %v8066
    %v8229 = vpack.c.b16 %v8069, %v8067
    %v8230 = vpack.c.b16 %v8072, %v8070
    %v8231 = vpack.c.b16 %v8073, %v8071
    %v8232 = vpack.c.b16 %v8076, %v8074
    %v8233 = vpack.c.b16 %v8077, %v8075
    %v8234 = vpack.c.b16 %v8080, %v8078
    %v8235 = vpack.c.b16 %v8081, %v8079
    %v8236 = vpack.c.b16 %v8084, %v8082
    %v8237 = vpack.c.b16 %v8085, %v8083
    %v8238 = vpack.c.b16 %v8088, %v8086
    %v8239 = vpack.c.b16 %v8089, %v8087
    %v8240 = vpack.c.b16 %v8092, %v8090
    %v8241 = vpack.c.b16 %v8093, %v8091
    %v8242 = vpack.c.b16 %v8096, %v8094
    %v8243 = vpack.c.b16 %v8097, %v8095
    %v8244 = vpack.c.b16 %v8100, %v8098
    %v8245 = vpack.c.b16 %v8101, %v8099
    %8390 = vmatprep.subr.bf16.mxu0 %v8103
    %8391 = vmatpush1.bf16.msra.mxu0 %v8102
    %8392 = vmatprep.subr.bf16.mxu0 %v8105
    %8393 = vmatpush1.bf16.msra.mxu0 %v8104
    %8394 = vmatprep.subr.bf16.mxu0 %v8107
    %8395 = vmatpush1.bf16.msra.mxu0 %v8106
    %8396 = vmatprep.subr.bf16.mxu0 %v8109
    %8397 = vmatpush1.bf16.msra.mxu0 %v8108
    %8398 = vmatprep.subr.bf16.mxu0 %v8111
    %8399 = vmatpush1.bf16.msra.mxu0 %v8110
    %8400 = vmatprep.subr.bf16.mxu0 %v8113
    %8401 = vmatpush1.bf16.msra.mxu0 %v8112
    %8402 = vmatprep.subr.bf16.mxu0 %v8115
    %8403 = vmatpush1.bf16.msra.mxu0 %v8114
    %8404 = vmatprep.subr.bf16.mxu0 %v8117
    %8405 = vmatpush1.bf16.msra.mxu0 %v8116
    %8406 = vmatprep.subr.bf16.mxu0 %v8119
    %8407 = vmatpush1.bf16.msra.mxu0 %v8118
    %8408 = vmatprep.subr.bf16.mxu0 %v8121
    %8409 = vmatpush1.bf16.msra.mxu0 %v8120
    %8410 = vmatprep.subr.bf16.mxu0 %v8123
    %8411 = vmatpush1.bf16.msra.mxu0 %v8122
    %8412 = vmatprep.subr.bf16.mxu0 %v8125
    %8413 = vmatpush1.bf16.msra.mxu0 %v8124
    %8414 = vmatprep.subr.bf16.mxu0 %v8127
    %8415 = vmatpush1.bf16.msra.mxu0 %v8126
    %8416 = vmatprep.subr.bf16.mxu0 %v8129
    %8417 = vmatpush1.bf16.msra.mxu0 %v8128
    %8418 = vmatprep.subr.bf16.mxu0 %v8131
    %8419 = vmatpush1.bf16.msra.mxu0 %v8130
    %8420 = vmatprep.subr.bf16.mxu0 %v8133
    %8421 = vmatpush1.bf16.msra.mxu0 %v8132
    %8422 = vmatprep.mubr.bf16.mxu0 %v7518
    %8423 = vmatmul.mubr.bf16.gmra.mrb[0].mxu0 %v7517
    %v8424 = vpop.f32.mrb[0].mxu0
    %v8425 = vadd.f32 0.0, %v8424
    %v8426 = vpop.f32.mrb[0].mxu0
    %v8427 = vadd.f32 0.0, %v8426
    %v8428 = vpop.f32.mrb[0].mxu0
    %v8429 = vpop.f32.mrb[0].mxu0
    %8430 = vdwg.mxu0
    %8431 = vmatprep.subr.bf16.mxu0 %v8135
    %8432 = vmatpush1.bf16.msra.mxu0 %v8134
    %8433 = vmatprep.subr.bf16.mxu0 %v8137
    %8434 = vmatpush1.bf16.msra.mxu0 %v8136
    %8435 = vmatprep.subr.bf16.mxu0 %v8139
    %8436 = vmatpush1.bf16.msra.mxu0 %v8138
    %8437 = vmatprep.subr.bf16.mxu0 %v8141
    %8438 = vmatpush1.bf16.msra.mxu0 %v8140
    %8439 = vmatprep.subr.bf16.mxu0 %v8143
    %8440 = vmatpush1.bf16.msra.mxu0 %v8142
    %8441 = vmatprep.subr.bf16.mxu0 %v8145
    %8442 = vmatpush1.bf16.msra.mxu0 %v8144
    %8443 = vmatprep.subr.bf16.mxu0 %v8147
    %8444 = vmatpush1.bf16.msra.mxu0 %v8146
    %8445 = vmatprep.subr.bf16.mxu0 %v8149
    %8446 = vmatpush1.bf16.msra.mxu0 %v8148
    %8447 = vmatprep.subr.bf16.mxu0 %v8151
    %8448 = vmatpush1.bf16.msra.mxu0 %v8150
    %8449 = vmatprep.subr.bf16.mxu0 %v8153
    %8450 = vmatpush1.bf16.msra.mxu0 %v8152
    %8451 = vmatprep.subr.bf16.mxu0 %v8155
    %8452 = vmatpush1.bf16.msra.mxu0 %v8154
    %8453 = vmatprep.subr.bf16.mxu0 %v8157
    %8454 = vmatpush1.bf16.msra.mxu0 %v8156
    %8455 = vmatprep.subr.bf16.mxu0 %v8159
    %8456 = vmatpush1.bf16.msra.mxu0 %v8158
    %8457 = vmatprep.subr.bf16.mxu0 %v8161
    %8458 = vmatpush1.bf16.msra.mxu0 %v8160
    %8459 = vmatprep.subr.bf16.mxu0 %v8163
    %8460 = vmatpush1.bf16.msra.mxu0 %v8162
    %8461 = vmatprep.subr.bf16.mxu0 %v8165
    %8462 = vmatpush1.bf16.msra.mxu0 %v8164
    %8463 = vmatprep.mubr.bf16.mxu0 %v7520
    %8464 = vmatmul.mubr.bf16.gmra.mrb[0].mxu0 %v7519
    %v8465 = vpop.f32.mrb[0].mxu0
    %v8466 = vadd.f32 %v8425, %v8465
    %v8467 = vpop.f32.mrb[0].mxu0
    %v8468 = vadd.f32 %v8427, %v8467
    %v8469 = vpop.f32.mrb[0].mxu0
    %v8470 = vpop.f32.mrb[0].mxu0
    %8471 = vdwg.mxu0
    %8472 = vmatprep.subr.bf16.mxu0 %v8167
    %8473 = vmatpush1.bf16.msra.mxu0 %v8166
    %8474 = vmatprep.subr.bf16.mxu0 %v8169
    %8475 = vmatpush1.bf16.msra.mxu0 %v8168
    %8476 = vmatprep.subr.bf16.mxu0 %v8171
    %8477 = vmatpush1.bf16.msra.mxu0 %v8170
    %8478 = vmatprep.subr.bf16.mxu0 %v8173
    %8479 = vmatpush1.bf16.msra.mxu0 %v8172
    %8480 = vmatprep.subr.bf16.mxu0 %v8175
    %8481 = vmatpush1.bf16.msra.mxu0 %v8174
    %8482 = vmatprep.subr.bf16.mxu0 %v8177
    %8483 = vmatpush1.bf16.msra.mxu0 %v8176
    %8484 = vmatprep.subr.bf16.mxu0 %v8179
    %8485 = vmatpush1.bf16.msra.mxu0 %v8178
    %8486 = vmatprep.subr.bf16.mxu0 %v8181
    %8487 = vmatpush1.bf16.msra.mxu0 %v8180
    %8488 = vmatprep.subr.bf16.mxu0 %v8183
    %8489 = vmatpush1.bf16.msra.mxu0 %v8182
    %8490 = vmatprep.subr.bf16.mxu0 %v8185
    %8491 = vmatpush1.bf16.msra.mxu0 %v8184
    %8492 = vmatprep.subr.bf16.mxu0 %v8187
    %8493 = vmatpush1.bf16.msra.mxu0 %v8186
    %8494 = vmatprep.subr.bf16.mxu0 %v8189
    %8495 = vmatpush1.bf16.msra.mxu0 %v8188
    %8496 = vmatprep.subr.bf16.mxu0 %v8191
    %8497 = vmatpush1.bf16.msra.mxu0 %v8190
    %8498 = vmatprep.subr.bf16.mxu0 %v8193
    %8499 = vmatpush1.bf16.msra.mxu0 %v8192
    %8500 = vmatprep.subr.bf16.mxu0 %v8195
    %8501 = vmatpush1.bf16.msra.mxu0 %v8194
    %8502 = vmatprep.subr.bf16.mxu0 %v8197
    %8503 = vmatpush1.bf16.msra.mxu0 %v8196
    %8504 = vmatprep.mubr.bf16.mxu0 %v7522
    %8505 = vmatmul.mubr.bf16.gmra.mrb[0].mxu0 %v7521
    %v8506 = vpop.f32.mrb[0].mxu0
    %v8507 = vadd.f32 %v8466, %v8506
    %v8508 = vpop.f32.mrb[0].mxu0
    %v8509 = vadd.f32 %v8468, %v8508
    %v8510 = vpop.f32.mrb[0].mxu0
    %v8511 = vpop.f32.mrb[0].mxu0
    %8512 = vdwg.mxu0
    %8513 = vmatprep.subr.bf16.mxu0 %v8199
    %8514 = vmatpush1.bf16.msra.mxu0 %v8198
    %8515 = vmatprep.subr.bf16.mxu0 %v8201
    %8516 = vmatpush1.bf16.msra.mxu0 %v8200
    %8517 = vmatprep.subr.bf16.mxu0 %v8203
    %8518 = vmatpush1.bf16.msra.mxu0 %v8202
    %8519 = vmatprep.subr.bf16.mxu0 %v8205
    %8520 = vmatpush1.bf16.msra.mxu0 %v8204
    %8521 = vmatprep.subr.bf16.mxu0 %v8207
    %8522 = vmatpush1.bf16.msra.mxu0 %v8206
    %8523 = vmatprep.subr.bf16.mxu0 %v8209
    %8524 = vmatpush1.bf16.msra.mxu0 %v8208
    %8525 = vmatprep.subr.bf16.mxu0 %v8211
    %8526 = vmatpush1.bf16.msra.mxu0 %v8210
    %8527 = vmatprep.subr.bf16.mxu0 %v8213
    %8528 = vmatpush1.bf16.msra.mxu0 %v8212
    %8529 = vmatprep.subr.bf16.mxu0 %v8215
    %8530 = vmatpush1.bf16.msra.mxu0 %v8214
    %8531 = vmatprep.subr.bf16.mxu0 %v8217
    %8532 = vmatpush1.bf16.msra.mxu0 %v8216
    %8533 = vmatprep.subr.bf16.mxu0 %v8219
    %8534 = vmatpush1.bf16.msra.mxu0 %v8218
    %8535 = vmatprep.subr.bf16.mxu0 %v8221
    %8536 = vmatpush1.bf16.msra.mxu0 %v8220
    %8537 = vmatprep.subr.bf16.mxu0 %v8223
    %8538 = vmatpush1.bf16.msra.mxu0 %v8222
    %8539 = vmatprep.subr.bf16.mxu0 %v8225
    %8540 = vmatpush1.bf16.msra.mxu0 %v8224
    %8541 = vmatprep.subr.bf16.mxu0 %v8227
    %8542 = vmatpush1.bf16.msra.mxu0 %v8226
    %8543 = vmatprep.subr.bf16.mxu0 %v8229
    %8544 = vmatpush1.bf16.msra.mxu0 %v8228
    %8545 = vmatprep.mubr.bf16.mxu0 %v7524
    %8546 = vmatmul.mubr.bf16.gmra.mrb[0].mxu0 %v7523
    %v8547 = vpop.f32.mrb[0].mxu0
    %v8548 = vadd.f32 %v8507, %v8547
    %v8549 = vpop.f32.mrb[0].mxu0
    %v8550 = vadd.f32 %v8509, %v8549
    %v8551 = vpop.f32.mrb[0].mxu0
    %v8552 = vpop.f32.mrb[0].mxu0
    %8553 = vdwg.mxu0
    %8554 = vmatprep.subr.bf16.mxu0 %v8231
    %8555 = vmatpush1.bf16.msra.mxu0 %v8230
    %8556 = vmatprep.subr.bf16.mxu0 %v8233
    %8557 = vmatpush1.bf16.msra.mxu0 %v8232
    %8558 = vmatprep.subr.bf16.mxu0 %v8235
    %8559 = vmatpush1.bf16.msra.mxu0 %v8234
    %8560 = vmatprep.subr.bf16.mxu0 %v8237
    %8561 = vmatpush1.bf16.msra.mxu0 %v8236
    %8562 = vmatprep.subr.bf16.mxu0 %v8239
    %8563 = vmatpush1.bf16.msra.mxu0 %v8238
    %8564 = vmatprep.subr.bf16.mxu0 %v8241
    %8565 = vmatpush1.bf16.msra.mxu0 %v8240
    %8566 = vmatprep.subr.bf16.mxu0 %v8243
    %8567 = vmatpush1.bf16.msra.mxu0 %v8242
    %8568 = vmatprep.subr.bf16.mxu0 %v8245
    %8569 = vmatpush1.bf16.msra.mxu0 %v8244
    %8570 = vmatprep.subr.bf16.mxu0 0
    %8571 = vmatpush1.bf16.msra.mxu0 0
    %8572 = vmatprep.subr.bf16.mxu0 0
    %8573 = vmatpush1.bf16.msra.mxu0 0
    %8574 = vmatprep.subr.bf16.mxu0 0
    %8575 = vmatpush1.bf16.msra.mxu0 0
    %8576 = vmatprep.subr.bf16.mxu0 0
    %8577 = vmatpush1.bf16.msra.mxu0 0
    %8578 = vmatprep.subr.bf16.mxu0 0
    %8579 = vmatpush1.bf16.msra.mxu0 0
    %8580 = vmatprep.subr.bf16.mxu0 0
    %8581 = vmatpush1.bf16.msra.mxu0 0
    %8582 = vmatprep.subr.bf16.mxu0 0
    %8583 = vmatpush1.bf16.msra.mxu0 0
    %8584 = vmatprep.subr.bf16.mxu0 0
    %8585 = vmatpush1.bf16.msra.mxu0 0
    %8586 = vmatprep.mubr.bf16.mxu0 0
    %8587 = vmatmul.mubr.bf16.gmra.mrb[0].mxu0 %v7525
    %v8588 = vpop.f32.mrb[0].mxu0
    %v8589 = vadd.f32 %v8548, %v8588
    %v8590 = vpop.f32.mrb[0].mxu0
    %v8591 = vadd.f32 %v8550, %v8590
    %v8592 = vpop.f32.mrb[0].mxu0
    %v8593 = vpop.f32.mrb[0].mxu0
    %8594 = vdwg.mxu0
    %v8595 = vld [vmem:[%s11] sm:$0x3]
    %v8597 = vlaneseq
    %v8598 = vshrl.u32 %v8597, 7
    %v8599 = vsub.s32 0, %v8598
    %v8600 = vrot.slane %v8595, %v8599
    %v8601 = vlaneseq
    %v8602 = vshrl.u32 %v8601, 7
    %v8603 = vsub.s32 1, %v8602
    %v8604 = vrot.slane %v8595, %v8603
    %v8607 = vmul.f32 %v8589, %v8600
    %v8608 = vmul.f32 %v8591, %v8604
    %v8609 = vld [vmem:[#allocation16] sm:$0x3]
    %v8611 = vlaneseq
    %v8612 = vshrl.u32 %v8611, 7
    %v8613 = vsub.s32 0, %v8612
    %v8614 = vrot.slane %v8609, %v8613
    %v8615 = vlaneseq
    %v8616 = vshrl.u32 %v8615, 7
    %v8617 = vsub.s32 1, %v8616
    %v8618 = vrot.slane %v8609, %v8617
    %v8621 = vadd.f32 %v8607, %v8614
    %v8622 = vadd.f32 %v8608, %v8618
    %v8623 = vmax.f32 %v8621, 0.0
    %v8624 = vmax.f32 %v8622, 0.0
    %v8627 = vcombine.low %v8623, %v8624
    %v8628 = vcombine.high %v8623, %v8624
    %v8631 = vrot.slane %v8627, 5
    %v8632 = vrot.slane %v8631, 4
    %v8633 = vrot.slane %v8628, 5
    %v8634 = vrot.slane %v8633, 4
    %v8637 = vmax.f32 %v8627, %v8632
    %v8638 = vmax.f32 %v8628, %v8634
    %v8641 = vrot.slane %v8637, 6
    %v8642 = vrot.slane %v8641, 4
    %v8643 = vrot.slane %v8638, 6
    %v8644 = vrot.slane %v8643, 4
    %v8647 = vmax.f32 %v8637, %v8642
    %v8648 = vmax.f32 %v8638, %v8644
    %v8651 = vlaneseq
    %v8652 = vshrl.u32 %v8651, 7
    %v8653 = vsub.s32 0, %v8652
    %v8654 = vrot.slane %v8647, %v8653
    %v8655 = vlaneseq
    %v8656 = vshrl.u32 %v8655, 7
    %v8657 = vsub.s32 4, %v8656
    %v8658 = vrot.slane %v8647, %v8657
    %v8659 = vlaneseq
    %v8660 = vshrl.u32 %v8659, 7
    %v8661 = vsub.s32 0, %v8660
    %v8662 = vrot.slane %v8648, %v8661
    %v8663 = vlaneseq
    %v8664 = vshrl.u32 %v8663, 7
    %v8665 = vsub.s32 4, %v8664
    %v8666 = vrot.slane %v8648, %v8665
    %v8671 = vpack.c.bf16 %v8654, %v8654
    %v8672 = vpack.c.bf16 %v8658, %v8658
    %v8673 = vpack.c.bf16 %v8662, %v8662
    %v8674 = vpack.c.bf16 %v8666, %v8666
    %v8675 = vld [vmem:[#allocation17] sm:$0xff]
    %v8676 = vld [vmem:[#allocation17 + $0x8] sm:$0xff]
    %v8677 = vld [vmem:[#allocation17 + $0x10] sm:$0xff]
    %v8678 = vld [vmem:[#allocation17 + $0x18] sm:$0xff]
    %v8679 = vld [vmem:[#allocation17 + $0x20] sm:$0xff]
    %v8680 = vld [vmem:[#allocation17 + $0x28] sm:$0xff]
    %v8681 = vld [vmem:[#allocation17 + $0x30] sm:$0xff]
    %v8682 = vld [vmem:[#allocation17 + $0x38] sm:$0xff]
    %v8683 = vld [vmem:[#allocation17 + $0x40] sm:$0xff]
    %v8684 = vld [vmem:[#allocation17 + $0x48] sm:$0xff]
    %v8685 = vld [vmem:[#allocation17 + $0x50] sm:$0xff]
    %v8686 = vld [vmem:[#allocation17 + $0x58] sm:$0xff]
    %v8687 = vld [vmem:[#allocation17 + $0x60] sm:$0xff]
    %v8688 = vld [vmem:[#allocation17 + $0x68] sm:$0xff]
    %v8689 = vld [vmem:[#allocation17 + $0x70] sm:$0xff]
    %v8690 = vld [vmem:[#allocation17 + $0x78] sm:$0xff]
    %v8691 = vld [vmem:[#allocation17 + $0x80] sm:$0xff]
    %v8692 = vld [vmem:[#allocation17 + $0x88] sm:$0xff]
    %v8693 = vld [vmem:[#allocation17 + $0x90] sm:$0xff]
    %v8694 = vld [vmem:[#allocation17 + $0x98] sm:$0xff]
    %v8695 = vld [vmem:[#allocation17 + $0xa0] sm:$0xff]
    %v8696 = vld [vmem:[#allocation17 + $0xa8] sm:$0xff]
    %v8697 = vld [vmem:[#allocation17 + $0xb0] sm:$0xff]
    %v8698 = vld [vmem:[#allocation17 + $0xb8] sm:$0xff]
    %v8699 = vld [vmem:[#allocation17 + $0xc0] sm:$0xff]
    %v8700 = vld [vmem:[#allocation17 + $0xc8] sm:$0xff]
    %v8701 = vld [vmem:[#allocation17 + $0xd0] sm:$0xff]
    %v8702 = vld [vmem:[#allocation17 + $0xd8] sm:$0xff]
    %v8703 = vld [vmem:[#allocation17 + $0xe0] sm:$0xff]
    %v8704 = vld [vmem:[#allocation17 + $0xe8] sm:$0xff]
    %v8705 = vld [vmem:[#allocation17 + $0xf0] sm:$0xff]
    %v8706 = vld [vmem:[#allocation17 + $0xf8] sm:$0xff]
    %v8707 = vld [vmem:[#allocation17 + $0x100] sm:$0xff]
    %v8708 = vld [vmem:[#allocation17 + $0x108] sm:$0xff]
    %v8709 = vld [vmem:[#allocation17 + $0x110] sm:$0xff]
    %v8710 = vld [vmem:[#allocation17 + $0x118] sm:$0xff]
    %v8711 = vld [vmem:[#allocation17 + $0x120] sm:$0xff]
    %v8712 = vld [vmem:[#allocation17 + $0x128] sm:$0xff]
    %v8713 = vld [vmem:[#allocation17 + $0x130] sm:$0xff]
    %v8714 = vld [vmem:[#allocation17 + $0x138] sm:$0xff]
    %v8715 = vld [vmem:[#allocation17 + $0x140] sm:$0xff]
    %v8716 = vld [vmem:[#allocation17 + $0x148] sm:$0xff]
    %v8717 = vld [vmem:[#allocation17 + $0x150] sm:$0xff]
    %v8718 = vld [vmem:[#allocation17 + $0x158] sm:$0xff]
    %v8719 = vld [vmem:[#allocation17 + $0x160] sm:$0xff]
    %v8720 = vld [vmem:[#allocation17 + $0x168] sm:$0xff]
    %v8721 = vld [vmem:[#allocation17 + $0x170] sm:$0xff]
    %v8722 = vld [vmem:[#allocation17 + $0x178] sm:$0xff]
    %v8723 = vld [vmem:[#allocation17 + $0x180] sm:$0xff]
    %v8724 = vld [vmem:[#allocation17 + $0x188] sm:$0xff]
    %v8725 = vld [vmem:[#allocation17 + $0x190] sm:$0xff]
    %v8726 = vld [vmem:[#allocation17 + $0x198] sm:$0xff]
    %v8727 = vld [vmem:[#allocation17 + $0x1a0] sm:$0xff]
    %v8728 = vld [vmem:[#allocation17 + $0x1a8] sm:$0xff]
    %v8729 = vld [vmem:[#allocation17 + $0x1b0] sm:$0xff]
    %v8730 = vld [vmem:[#allocation17 + $0x1b8] sm:$0xff]
    %v8731 = vld [vmem:[#allocation17 + $0x1c0] sm:$0xff]
    %v8732 = vld [vmem:[#allocation17 + $0x1c8] sm:$0xff]
    %v8733 = vld [vmem:[#allocation17 + $0x1d0] sm:$0xff]
    %v8734 = vld [vmem:[#allocation17 + $0x1d8] sm:$0xff]
    %v8735 = vld [vmem:[#allocation17 + $0x1e0] sm:$0xff]
    %v8736 = vld [vmem:[#allocation17 + $0x1e8] sm:$0xff]
    %v8737 = vld [vmem:[#allocation17 + $0x1f0] sm:$0xff]
    %v8738 = vld [vmem:[#allocation17 + $0x1f8] sm:$0xff]
    %v8739 = vld [vmem:[%s14] sm:$0xf]
    %v8741 = vlaneseq
    %v8742 = vshrl.u32 %v8741, 7
    %v8743 = vsub.s32 0, %v8742
    %v8744 = vrot.slane %v8739, %v8743
    %v8745 = vlaneseq
    %v8746 = vshrl.u32 %v8745, 7
    %v8747 = vsub.s32 1, %v8746
    %v8748 = vrot.slane %v8739, %v8747
    %v8749 = vlaneseq
    %v8750 = vshrl.u32 %v8749, 7
    %v8751 = vsub.s32 2, %v8750
    %v8752 = vrot.slane %v8739, %v8751
    %v8753 = vlaneseq
    %v8754 = vshrl.u32 %v8753, 7
    %v8755 = vsub.s32 3, %v8754
    %v8756 = vrot.slane %v8739, %v8755
    %v8765 = vunpack.c.l.b16 %v8671
    %v8766 = vunpack.c.l.b16 %v8672
    %v8767 = vunpack.c.l.b16 %v8673
    %v8768 = vunpack.c.l.b16 %v8674
    %v8769 = vrot.slane %v8767, 7
    %v8770 = vsel %vm4226, %v8769, %v8765
    %v8771 = vrot.slane %v8768, 7
    %v8772 = vsel %vm4226, %v8771, %v8766
    %v8773 = vpack.c.b16 %v8770, %v8770
    %v8774 = vpack.c.b16 %v8772, %v8772
    %v8841 = vunpack.c.l.b16 %v8675
    %v8842 = vunpack.c.h.b16 %v8675
    %v8843 = vunpack.c.l.b16 %v8676
    %v8844 = vunpack.c.h.b16 %v8676
    %v8845 = vunpack.c.l.b16 %v8677
    %v8846 = vunpack.c.h.b16 %v8677
    %v8847 = vunpack.c.l.b16 %v8678
    %v8848 = vunpack.c.h.b16 %v8678
    %v8849 = vunpack.c.l.b16 %v8679
    %v8850 = vunpack.c.h.b16 %v8679
    %v8851 = vunpack.c.l.b16 %v8680
    %v8852 = vunpack.c.h.b16 %v8680
    %v8853 = vunpack.c.l.b16 %v8681
    %v8854 = vunpack.c.h.b16 %v8681
    %v8855 = vunpack.c.l.b16 %v8682
    %v8856 = vunpack.c.h.b16 %v8682
    %v8857 = vunpack.c.l.b16 %v8683
    %v8858 = vunpack.c.h.b16 %v8683
    %v8859 = vunpack.c.l.b16 %v8684
    %v8860 = vunpack.c.h.b16 %v8684
    %v8861 = vunpack.c.l.b16 %v8685
    %v8862 = vunpack.c.h.b16 %v8685
    %v8863 = vunpack.c.l.b16 %v8686
    %v8864 = vunpack.c.h.b16 %v8686
    %v8865 = vunpack.c.l.b16 %v8687
    %v8866 = vunpack.c.h.b16 %v8687
    %v8867 = vunpack.c.l.b16 %v8688
    %v8868 = vunpack.c.h.b16 %v8688
    %v8869 = vunpack.c.l.b16 %v8689
    %v8870 = vunpack.c.h.b16 %v8689
    %v8871 = vunpack.c.l.b16 %v8690
    %v8872 = vunpack.c.h.b16 %v8690
    %v8873 = vunpack.c.l.b16 %v8691
    %v8874 = vunpack.c.h.b16 %v8691
    %v8875 = vunpack.c.l.b16 %v8692
    %v8876 = vunpack.c.h.b16 %v8692
    %v8877 = vunpack.c.l.b16 %v8693
    %v8878 = vunpack.c.h.b16 %v8693
    %v8879 = vunpack.c.l.b16 %v8694
    %v8880 = vunpack.c.h.b16 %v8694
    %v8881 = vunpack.c.l.b16 %v8695
    %v8882 = vunpack.c.h.b16 %v8695
    %v8883 = vunpack.c.l.b16 %v8696
    %v8884 = vunpack.c.h.b16 %v8696
    %v8885 = vunpack.c.l.b16 %v8697
    %v8886 = vunpack.c.h.b16 %v8697
    %v8887 = vunpack.c.l.b16 %v8698
    %v8888 = vunpack.c.h.b16 %v8698
    %v8889 = vunpack.c.l.b16 %v8699
    %v8890 = vunpack.c.h.b16 %v8699
    %v8891 = vunpack.c.l.b16 %v8700
    %v8892 = vunpack.c.h.b16 %v8700
    %v8893 = vunpack.c.l.b16 %v8701
    %v8894 = vunpack.c.h.b16 %v8701
    %v8895 = vunpack.c.l.b16 %v8702
    %v8896 = vunpack.c.h.b16 %v8702
    %v8897 = vunpack.c.l.b16 %v8703
    %v8898 = vunpack.c.h.b16 %v8703
    %v8899 = vunpack.c.l.b16 %v8704
    %v8900 = vunpack.c.h.b16 %v8704
    %v8901 = vunpack.c.l.b16 %v8705
    %v8902 = vunpack.c.h.b16 %v8705
    %v8903 = vunpack.c.l.b16 %v8706
    %v8904 = vunpack.c.h.b16 %v8706
    %v8905 = vunpack.c.l.b16 %v8707
    %v8906 = vunpack.c.h.b16 %v8707
    %v8907 = vunpack.c.l.b16 %v8708
    %v8908 = vunpack.c.h.b16 %v8708
    %v8909 = vunpack.c.l.b16 %v8709
    %v8910 = vunpack.c.h.b16 %v8709
    %v8911 = vunpack.c.l.b16 %v8710
    %v8912 = vunpack.c.h.b16 %v8710
    %v8913 = vunpack.c.l.b16 %v8711
    %v8914 = vunpack.c.h.b16 %v8711
    %v8915 = vunpack.c.l.b16 %v8712
    %v8916 = vunpack.c.h.b16 %v8712
    %v8917 = vunpack.c.l.b16 %v8713
    %v8918 = vunpack.c.h.b16 %v8713
    %v8919 = vunpack.c.l.b16 %v8714
    %v8920 = vunpack.c.h.b16 %v8714
    %v8921 = vunpack.c.l.b16 %v8715
    %v8922 = vunpack.c.h.b16 %v8715
    %v8923 = vunpack.c.l.b16 %v8716
    %v8924 = vunpack.c.h.b16 %v8716
    %v8925 = vunpack.c.l.b16 %v8717
    %v8926 = vunpack.c.h.b16 %v8717
    %v8927 = vunpack.c.l.b16 %v8718
    %v8928 = vunpack.c.h.b16 %v8718
    %v8929 = vunpack.c.l.b16 %v8719
    %v8930 = vunpack.c.h.b16 %v8719
    %v8931 = vunpack.c.l.b16 %v8720
    %v8932 = vunpack.c.h.b16 %v8720
    %v8933 = vunpack.c.l.b16 %v8721
    %v8934 = vunpack.c.h.b16 %v8721
    %v8935 = vunpack.c.l.b16 %v8722
    %v8936 = vunpack.c.h.b16 %v8722
    %v8937 = vunpack.c.l.b16 %v8723
    %v8938 = vunpack.c.h.b16 %v8723
    %v8939 = vunpack.c.l.b16 %v8724
    %v8940 = vunpack.c.h.b16 %v8724
    %v8941 = vunpack.c.l.b16 %v8725
    %v8942 = vunpack.c.h.b16 %v8725
    %v8943 = vunpack.c.l.b16 %v8726
    %v8944 = vunpack.c.h.b16 %v8726
    %v8945 = vunpack.c.l.b16 %v8727
    %v8946 = vunpack.c.h.b16 %v8727
    %v8947 = vunpack.c.l.b16 %v8728
    %v8948 = vunpack.c.h.b16 %v8728
    %v8949 = vunpack.c.l.b16 %v8729
    %v8950 = vunpack.c.h.b16 %v8729
    %v8951 = vunpack.c.l.b16 %v8730
    %v8952 = vunpack.c.h.b16 %v8730
    %v8953 = vunpack.c.l.b16 %v8731
    %v8954 = vunpack.c.h.b16 %v8731
    %v8955 = vunpack.c.l.b16 %v8732
    %v8956 = vunpack.c.h.b16 %v8732
    %v8957 = vunpack.c.l.b16 %v8733
    %v8958 = vunpack.c.h.b16 %v8733
    %v8959 = vunpack.c.l.b16 %v8734
    %v8960 = vunpack.c.h.b16 %v8734
    %v8961 = vunpack.c.l.b16 %v8735
    %v8962 = vunpack.c.h.b16 %v8735
    %v8963 = vunpack.c.l.b16 %v8736
    %v8964 = vunpack.c.h.b16 %v8736
    %v8965 = vunpack.c.l.b16 %v8737
    %v8966 = vunpack.c.h.b16 %v8737
    %v8967 = vunpack.c.l.b16 %v8738
    %v8968 = vunpack.c.h.b16 %v8738
    %v8969 = vpack.c.b16 %v8845, %v8841
    %v8970 = vpack.c.b16 %v8846, %v8842
    %v8971 = vpack.c.b16 %v8847, %v8843
    %v8972 = vpack.c.b16 %v8848, %v8844
    %v8973 = vpack.c.b16 %v8853, %v8849
    %v8974 = vpack.c.b16 %v8854, %v8850
    %v8975 = vpack.c.b16 %v8855, %v8851
    %v8976 = vpack.c.b16 %v8856, %v8852
    %v8977 = vpack.c.b16 %v8861, %v8857
    %v8978 = vpack.c.b16 %v8862, %v8858
    %v8979 = vpack.c.b16 %v8863, %v8859
    %v8980 = vpack.c.b16 %v8864, %v8860
    %v8981 = vpack.c.b16 %v8869, %v8865
    %v8982 = vpack.c.b16 %v8870, %v8866
    %v8983 = vpack.c.b16 %v8871, %v8867
    %v8984 = vpack.c.b16 %v8872, %v8868
    %v8985 = vpack.c.b16 %v8877, %v8873
    %v8986 = vpack.c.b16 %v8878, %v8874
    %v8987 = vpack.c.b16 %v8879, %v8875
    %v8988 = vpack.c.b16 %v8880, %v8876
    %v8989 = vpack.c.b16 %v8885, %v8881
    %v8990 = vpack.c.b16 %v8886, %v8882
    %v8991 = vpack.c.b16 %v8887, %v8883
    %v8992 = vpack.c.b16 %v8888, %v8884
    %v8993 = vpack.c.b16 %v8893, %v8889
    %v8994 = vpack.c.b16 %v8894, %v8890
    %v8995 = vpack.c.b16 %v8895, %v8891
    %v8996 = vpack.c.b16 %v8896, %v8892
    %v8997 = vpack.c.b16 %v8901, %v8897
    %v8998 = vpack.c.b16 %v8902, %v8898
    %v8999 = vpack.c.b16 %v8903, %v8899
    %v9000 = vpack.c.b16 %v8904, %v8900
    %v9001 = vpack.c.b16 %v8909, %v8905
    %v9002 = vpack.c.b16 %v8910, %v8906
    %v9003 = vpack.c.b16 %v8911, %v8907
    %v9004 = vpack.c.b16 %v8912, %v8908
    %v9005 = vpack.c.b16 %v8917, %v8913
    %v9006 = vpack.c.b16 %v8918, %v8914
    %v9007 = vpack.c.b16 %v8919, %v8915
    %v9008 = vpack.c.b16 %v8920, %v8916
    %v9009 = vpack.c.b16 %v8925, %v8921
    %v9010 = vpack.c.b16 %v8926, %v8922
    %v9011 = vpack.c.b16 %v8927, %v8923
    %v9012 = vpack.c.b16 %v8928, %v8924
    %v9013 = vpack.c.b16 %v8933, %v8929
    %v9014 = vpack.c.b16 %v8934, %v8930
    %v9015 = vpack.c.b16 %v8935, %v8931
    %v9016 = vpack.c.b16 %v8936, %v8932
    %v9017 = vpack.c.b16 %v8941, %v8937
    %v9018 = vpack.c.b16 %v8942, %v8938
    %v9019 = vpack.c.b16 %v8943, %v8939
    %v9020 = vpack.c.b16 %v8944, %v8940
    %v9021 = vpack.c.b16 %v8949, %v8945
    %v9022 = vpack.c.b16 %v8950, %v8946
    %v9023 = vpack.c.b16 %v8951, %v8947
    %v9024 = vpack.c.b16 %v8952, %v8948
    %v9025 = vpack.c.b16 %v8957, %v8953
    %v9026 = vpack.c.b16 %v8958, %v8954
    %v9027 = vpack.c.b16 %v8959, %v8955
    %v9028 = vpack.c.b16 %v8960, %v8956
    %v9029 = vpack.c.b16 %v8965, %v8961
    %v9030 = vpack.c.b16 %v8966, %v8962
    %v9031 = vpack.c.b16 %v8967, %v8963
    %v9032 = vpack.c.b16 %v8968, %v8964
    %9097 = vmatprep.subr.bf16.mxu0 %v8970
    %9098 = vmatpush1.bf16.msra.mxu0 %v8969
    %9099 = vmatprep.subr.bf16.mxu0 %v8974
    %9100 = vmatpush1.bf16.msra.mxu0 %v8973
    %9101 = vmatprep.subr.bf16.mxu0 %v8978
    %9102 = vmatpush1.bf16.msra.mxu0 %v8977
    %9103 = vmatprep.subr.bf16.mxu0 %v8982
    %9104 = vmatpush1.bf16.msra.mxu0 %v8981
    %9105 = vmatprep.subr.bf16.mxu0 %v8986
    %9106 = vmatpush1.bf16.msra.mxu0 %v8985
    %9107 = vmatprep.subr.bf16.mxu0 %v8990
    %9108 = vmatpush1.bf16.msra.mxu0 %v8989
    %9109 = vmatprep.subr.bf16.mxu0 %v8994
    %9110 = vmatpush1.bf16.msra.mxu0 %v8993
    %9111 = vmatprep.subr.bf16.mxu0 %v8998
    %9112 = vmatpush1.bf16.msra.mxu0 %v8997
    %9113 = vmatprep.subr.bf16.mxu0 %v9002
    %9114 = vmatpush1.bf16.msra.mxu0 %v9001
    %9115 = vmatprep.subr.bf16.mxu0 %v9006
    %9116 = vmatpush1.bf16.msra.mxu0 %v9005
    %9117 = vmatprep.subr.bf16.mxu0 %v9010
    %9118 = vmatpush1.bf16.msra.mxu0 %v9009
    %9119 = vmatprep.subr.bf16.mxu0 %v9014
    %9120 = vmatpush1.bf16.msra.mxu0 %v9013
    %9121 = vmatprep.subr.bf16.mxu0 %v9018
    %9122 = vmatpush1.bf16.msra.mxu0 %v9017
    %9123 = vmatprep.subr.bf16.mxu0 %v9022
    %9124 = vmatpush1.bf16.msra.mxu0 %v9021
    %9125 = vmatprep.subr.bf16.mxu0 %v9026
    %9126 = vmatpush1.bf16.msra.mxu0 %v9025
    %9127 = vmatprep.subr.bf16.mxu0 %v9030
    %9128 = vmatpush1.bf16.msra.mxu0 %v9029
    %9129 = vmatprep.mubr.bf16.mxu0 %v8774
    %9130 = vmatmul.mubr.bf16.gmra.mrb[0].mxu0 %v8773
    %v9131 = vpop.f32.mrb[0].mxu0
    %v9132 = vadd.f32 %v8744, %v9131
    %v9133 = vpop.f32.mrb[0].mxu0
    %v9134 = vadd.f32 %v8748, %v9133
    %v9135 = vpop.f32.mrb[0].mxu0
    %v9136 = vpop.f32.mrb[0].mxu0
    %9137 = vdwg.mxu0
    %9138 = vmatprep.subr.bf16.mxu0 %v8972
    %9139 = vmatpush1.bf16.msra.mxu0 %v8971
    %9140 = vmatprep.subr.bf16.mxu0 %v8976
    %9141 = vmatpush1.bf16.msra.mxu0 %v8975
    %9142 = vmatprep.subr.bf16.mxu0 %v8980
    %9143 = vmatpush1.bf16.msra.mxu0 %v8979
    %9144 = vmatprep.subr.bf16.mxu0 %v8984
    %9145 = vmatpush1.bf16.msra.mxu0 %v8983
    %9146 = vmatprep.subr.bf16.mxu0 %v8988
    %9147 = vmatpush1.bf16.msra.mxu0 %v8987
    %9148 = vmatprep.subr.bf16.mxu0 %v8992
    %9149 = vmatpush1.bf16.msra.mxu0 %v8991
    %9150 = vmatprep.subr.bf16.mxu0 %v8996
    %9151 = vmatpush1.bf16.msra.mxu0 %v8995
    %9152 = vmatprep.subr.bf16.mxu0 %v9000
    %9153 = vmatpush1.bf16.msra.mxu0 %v8999
    %9154 = vmatprep.subr.bf16.mxu0 %v9004
    %9155 = vmatpush1.bf16.msra.mxu0 %v9003
    %9156 = vmatprep.subr.bf16.mxu0 %v9008
    %9157 = vmatpush1.bf16.msra.mxu0 %v9007
    %9158 = vmatprep.subr.bf16.mxu0 %v9012
    %9159 = vmatpush1.bf16.msra.mxu0 %v9011
    %9160 = vmatprep.subr.bf16.mxu0 %v9016
    %9161 = vmatpush1.bf16.msra.mxu0 %v9015
    %9162 = vmatprep.subr.bf16.mxu0 %v9020
    %9163 = vmatpush1.bf16.msra.mxu0 %v9019
    %9164 = vmatprep.subr.bf16.mxu0 %v9024
    %9165 = vmatpush1.bf16.msra.mxu0 %v9023
    %9166 = vmatprep.subr.bf16.mxu0 %v9028
    %9167 = vmatpush1.bf16.msra.mxu0 %v9027
    %9168 = vmatprep.subr.bf16.mxu0 %v9032
    %9169 = vmatpush1.bf16.msra.mxu0 %v9031
    %9170 = vmatprep.mubr.bf16.mxu0 %v8774
    %9171 = vmatmul.mubr.bf16.gmra.mrb[0].mxu0 %v8773
    %v9172 = vpop.f32.mrb[0].mxu0
    %v9173 = vadd.f32 %v8752, %v9172
    %v9174 = vpop.f32.mrb[0].mxu0
    %v9175 = vadd.f32 %v8756, %v9174
    %v9176 = vpop.f32.mrb[0].mxu0
    %v9177 = vpop.f32.mrb[0].mxu0
    %9178 = vdwg.mxu0
    %v9179 = vmax.f32 %v9132, 0.0
    %v9180 = vmax.f32 %v9134, 0.0
    %v9181 = vmax.f32 %v9173, 0.0
    %v9182 = vmax.f32 %v9175, 0.0
    %v9183 = vpack.c.bf16 %v9179, %v9179
    %v9184 = vpack.c.bf16 %v9180, %v9180
    %v9185 = vpack.c.bf16 %v9181, %v9181
    %v9186 = vpack.c.bf16 %v9182, %v9182
    %v9187 = vld [vmem:[%s15] sm:$0xf]
    %v9188 = vld [vmem:[%s15 + $0x4] sm:$0xf]
    %v9189 = vld [vmem:[%s15 + $0x8] sm:$0xf]
    %v9190 = vld [vmem:[%s15 + $0xc] sm:$0xf]
    %v9191 = vld [vmem:[%s15 + $0x10] sm:$0xf]
    %v9192 = vld [vmem:[%s15 + $0x14] sm:$0xf]
    %v9193 = vld [vmem:[%s15 + $0x18] sm:$0xf]
    %v9194 = vld [vmem:[%s15 + $0x1c] sm:$0xf]
    %v9195 = vld [vmem:[%s15 + $0x20] sm:$0xf]
    %v9196 = vld [vmem:[%s15 + $0x24] sm:$0xf]
    %v9197 = vld [vmem:[%s15 + $0x28] sm:$0xf]
    %v9198 = vld [vmem:[%s15 + $0x2c] sm:$0xf]
    %v9199 = vld [vmem:[%s15 + $0x30] sm:$0xf]
    %v9200 = vld [vmem:[%s15 + $0x34] sm:$0xf]
    %v9201 = vld [vmem:[%s15 + $0x38] sm:$0xf]
    %v9202 = vld [vmem:[%s15 + $0x3c] sm:$0xf]
    %v9203 = vld [vmem:[%s15 + $0x40] sm:$0xf]
    %v9204 = vld [vmem:[%s15 + $0x44] sm:$0xf]
    %v9205 = vld [vmem:[%s15 + $0x48] sm:$0xf]
    %v9206 = vld [vmem:[%s15 + $0x4c] sm:$0xf]
    %v9207 = vld [vmem:[%s15 + $0x50] sm:$0xf]
    %v9208 = vld [vmem:[%s15 + $0x54] sm:$0xf]
    %v9209 = vld [vmem:[%s15 + $0x58] sm:$0xf]
    %v9210 = vld [vmem:[%s15 + $0x5c] sm:$0xf]
    %v9211 = vld [vmem:[%s15 + $0x60] sm:$0xf]
    %v9212 = vld [vmem:[%s15 + $0x64] sm:$0xf]
    %v9213 = vld [vmem:[%s15 + $0x68] sm:$0xf]
    %v9214 = vld [vmem:[%s15 + $0x6c] sm:$0xf]
    %v9215 = vld [vmem:[%s15 + $0x70] sm:$0xf]
    %v9216 = vld [vmem:[%s15 + $0x74] sm:$0xf]
    %v9217 = vld [vmem:[%s15 + $0x78] sm:$0xf]
    %v9218 = vld [vmem:[%s15 + $0x7c] sm:$0xf]
    %v9219 = vld [vmem:[%s15 + $0x80] sm:$0xf]
    %v9220 = vld [vmem:[%s15 + $0x84] sm:$0xf]
    %v9221 = vld [vmem:[%s15 + $0x88] sm:$0xf]
    %v9222 = vld [vmem:[%s15 + $0x8c] sm:$0xf]
    %v9223 = vld [vmem:[%s15 + $0x90] sm:$0xf]
    %v9224 = vld [vmem:[%s15 + $0x94] sm:$0xf]
    %v9225 = vld [vmem:[%s15 + $0x98] sm:$0xf]
    %v9226 = vld [vmem:[%s15 + $0x9c] sm:$0xf]
    %v9227 = vld [vmem:[%s15 + $0xa0] sm:$0xf]
    %v9228 = vld [vmem:[%s15 + $0xa4] sm:$0xf]
    %v9229 = vld [vmem:[%s15 + $0xa8] sm:$0xf]
    %v9230 = vld [vmem:[%s15 + $0xac] sm:$0xf]
    %v9231 = vld [vmem:[%s15 + $0xb0] sm:$0xf]
    %v9232 = vld [vmem:[%s15 + $0xb4] sm:$0xf]
    %v9233 = vld [vmem:[%s15 + $0xb8] sm:$0xf]
    %v9234 = vld [vmem:[%s15 + $0xbc] sm:$0xf]
    %v9235 = vld [vmem:[%s15 + $0xc0] sm:$0xf]
    %v9236 = vld [vmem:[%s15 + $0xc4] sm:$0xf]
    %v9237 = vld [vmem:[%s15 + $0xc8] sm:$0xf]
    %v9238 = vld [vmem:[%s15 + $0xcc] sm:$0xf]
    %v9239 = vld [vmem:[%s15 + $0xd0] sm:$0xf]
    %v9240 = vld [vmem:[%s15 + $0xd4] sm:$0xf]
    %v9241 = vld [vmem:[%s15 + $0xd8] sm:$0xf]
    %v9242 = vld [vmem:[%s15 + $0xdc] sm:$0xf]
    %v9243 = vld [vmem:[%s15 + $0xe0] sm:$0xf]
    %v9244 = vld [vmem:[%s15 + $0xe4] sm:$0xf]
    %v9245 = vld [vmem:[%s15 + $0xe8] sm:$0xf]
    %v9246 = vld [vmem:[%s15 + $0xec] sm:$0xf]
    %v9247 = vld [vmem:[%s15 + $0xf0] sm:$0xf]
    %v9248 = vld [vmem:[%s15 + $0xf4] sm:$0xf]
    %v9249 = vld [vmem:[%s15 + $0xf8] sm:$0xf]
    %v9250 = vld [vmem:[%s15 + $0xfc] sm:$0xf]
    %v9251 = vld [vmem:[#allocation5] sm:$0x1]
    %v9253 = vlaneseq
    %v9254 = vshrl.u32 %v9253, 7
    %v9255 = vsub.s32 0, %v9254
    %v9256 = vrot.slane %v9251, %v9255
    %v9322 = vunpack.c.l.b16 %v9187
    %v9323 = vunpack.c.l.b16 %v9188
    %v9324 = vunpack.c.l.b16 %v9189
    %v9325 = vunpack.c.l.b16 %v9190
    %v9326 = vunpack.c.l.b16 %v9191
    %v9327 = vunpack.c.l.b16 %v9192
    %v9328 = vunpack.c.l.b16 %v9193
    %v9329 = vunpack.c.l.b16 %v9194
    %v9330 = vunpack.c.l.b16 %v9195
    %v9331 = vunpack.c.l.b16 %v9196
    %v9332 = vunpack.c.l.b16 %v9197
    %v9333 = vunpack.c.l.b16 %v9198
    %v9334 = vunpack.c.l.b16 %v9199
    %v9335 = vunpack.c.l.b16 %v9200
    %v9336 = vunpack.c.l.b16 %v9201
    %v9337 = vunpack.c.l.b16 %v9202
    %v9338 = vunpack.c.l.b16 %v9203
    %v9339 = vunpack.c.l.b16 %v9204
    %v9340 = vunpack.c.l.b16 %v9205
    %v9341 = vunpack.c.l.b16 %v9206
    %v9342 = vunpack.c.l.b16 %v9207
    %v9343 = vunpack.c.l.b16 %v9208
    %v9344 = vunpack.c.l.b16 %v9209
    %v9345 = vunpack.c.l.b16 %v9210
    %v9346 = vunpack.c.l.b16 %v9211
    %v9347 = vunpack.c.l.b16 %v9212
    %v9348 = vunpack.c.l.b16 %v9213
    %v9349 = vunpack.c.l.b16 %v9214
    %v9350 = vunpack.c.l.b16 %v9215
    %v9351 = vunpack.c.l.b16 %v9216
    %v9352 = vunpack.c.l.b16 %v9217
    %v9353 = vunpack.c.l.b16 %v9218
    %v9354 = vunpack.c.l.b16 %v9219
    %v9355 = vunpack.c.l.b16 %v9220
    %v9356 = vunpack.c.l.b16 %v9221
    %v9357 = vunpack.c.l.b16 %v9222
    %v9358 = vunpack.c.l.b16 %v9223
    %v9359 = vunpack.c.l.b16 %v9224
    %v9360 = vunpack.c.l.b16 %v9225
    %v9361 = vunpack.c.l.b16 %v9226
    %v9362 = vunpack.c.l.b16 %v9227
    %v9363 = vunpack.c.l.b16 %v9228
    %v9364 = vunpack.c.l.b16 %v9229
    %v9365 = vunpack.c.l.b16 %v9230
    %v9366 = vunpack.c.l.b16 %v9231
    %v9367 = vunpack.c.l.b16 %v9232
    %v9368 = vunpack.c.l.b16 %v9233
    %v9369 = vunpack.c.l.b16 %v9234
    %v9370 = vunpack.c.l.b16 %v9235
    %v9371 = vunpack.c.l.b16 %v9236
    %v9372 = vunpack.c.l.b16 %v9237
    %v9373 = vunpack.c.l.b16 %v9238
    %v9374 = vunpack.c.l.b16 %v9239
    %v9375 = vunpack.c.l.b16 %v9240
    %v9376 = vunpack.c.l.b16 %v9241
    %v9377 = vunpack.c.l.b16 %v9242
    %v9378 = vunpack.c.l.b16 %v9243
    %v9379 = vunpack.c.l.b16 %v9244
    %v9380 = vunpack.c.l.b16 %v9245
    %v9381 = vunpack.c.l.b16 %v9246
    %v9382 = vunpack.c.l.b16 %v9247
    %v9383 = vunpack.c.l.b16 %v9248
    %v9384 = vunpack.c.l.b16 %v9249
    %v9385 = vunpack.c.l.b16 %v9250
    %v9386 = vpack.c.b16 %v9323, %v9322
    %v9387 = vpack.c.b16 %v9325, %v9324
    %v9388 = vpack.c.b16 %v9327, %v9326
    %v9389 = vpack.c.b16 %v9329, %v9328
    %v9390 = vpack.c.b16 %v9331, %v9330
    %v9391 = vpack.c.b16 %v9333, %v9332
    %v9392 = vpack.c.b16 %v9335, %v9334
    %v9393 = vpack.c.b16 %v9337, %v9336
    %v9394 = vpack.c.b16 %v9339, %v9338
    %v9395 = vpack.c.b16 %v9341, %v9340
    %v9396 = vpack.c.b16 %v9343, %v9342
    %v9397 = vpack.c.b16 %v9345, %v9344
    %v9398 = vpack.c.b16 %v9347, %v9346
    %v9399 = vpack.c.b16 %v9349, %v9348
    %v9400 = vpack.c.b16 %v9351, %v9350
    %v9401 = vpack.c.b16 %v9353, %v9352
    %v9402 = vpack.c.b16 %v9355, %v9354
    %v9403 = vpack.c.b16 %v9357, %v9356
    %v9404 = vpack.c.b16 %v9359, %v9358
    %v9405 = vpack.c.b16 %v9361, %v9360
    %v9406 = vpack.c.b16 %v9363, %v9362
    %v9407 = vpack.c.b16 %v9365, %v9364
    %v9408 = vpack.c.b16 %v9367, %v9366
    %v9409 = vpack.c.b16 %v9369, %v9368
    %v9410 = vpack.c.b16 %v9371, %v9370
    %v9411 = vpack.c.b16 %v9373, %v9372
    %v9412 = vpack.c.b16 %v9375, %v9374
    %v9413 = vpack.c.b16 %v9377, %v9376
    %v9414 = vpack.c.b16 %v9379, %v9378
    %v9415 = vpack.c.b16 %v9381, %v9380
    %v9416 = vpack.c.b16 %v9383, %v9382
    %v9417 = vpack.c.b16 %v9385, %v9384
    %9450 = vmatprep.subr.bf16.mxu0 0
    %9451 = vmatpush1.bf16.msra.mxu0 %v9386
    %9452 = vmatprep.subr.bf16.mxu0 0
    %9453 = vmatpush1.bf16.msra.mxu0 %v9387
    %9454 = vmatprep.subr.bf16.mxu0 0
    %9455 = vmatpush1.bf16.msra.mxu0 %v9388
    %9456 = vmatprep.subr.bf16.mxu0 0
    %9457 = vmatpush1.bf16.msra.mxu0 %v9389
    %9458 = vmatprep.subr.bf16.mxu0 0
    %9459 = vmatpush1.bf16.msra.mxu0 %v9390
    %9460 = vmatprep.subr.bf16.mxu0 0
    %9461 = vmatpush1.bf16.msra.mxu0 %v9391
    %9462 = vmatprep.subr.bf16.mxu0 0
    %9463 = vmatpush1.bf16.msra.mxu0 %v9392
    %9464 = vmatprep.subr.bf16.mxu0 0
    %9465 = vmatpush1.bf16.msra.mxu0 %v9393
    %9466 = vmatprep.subr.bf16.mxu0 0
    %9467 = vmatpush1.bf16.msra.mxu0 %v9394
    %9468 = vmatprep.subr.bf16.mxu0 0
    %9469 = vmatpush1.bf16.msra.mxu0 %v9395
    %9470 = vmatprep.subr.bf16.mxu0 0
    %9471 = vmatpush1.bf16.msra.mxu0 %v9396
    %9472 = vmatprep.subr.bf16.mxu0 0
    %9473 = vmatpush1.bf16.msra.mxu0 %v9397
    %9474 = vmatprep.subr.bf16.mxu0 0
    %9475 = vmatpush1.bf16.msra.mxu0 %v9398
    %9476 = vmatprep.subr.bf16.mxu0 0
    %9477 = vmatpush1.bf16.msra.mxu0 %v9399
    %9478 = vmatprep.subr.bf16.mxu0 0
    %9479 = vmatpush1.bf16.msra.mxu0 %v9400
    %9480 = vmatprep.subr.bf16.mxu0 0
    %9481 = vmatpush1.bf16.msra.mxu0 %v9401
    %9482 = vmatprep.mubr.bf16.mxu0 %v9184
    %9483 = vmatmul.mubr.bf16.gmra.mrb[0].mxu0 %v9183
    %v9484 = vpop.f32.mrb[0].mxu0
    %v9485 = vadd.f32 %v9256, %v9484
    %v9486 = vpop.f32.mrb[0].mxu0
    %v9487 = vpop.f32.mrb[0].mxu0
    %v9488 = vpop.f32.mrb[0].mxu0
    %9489 = vdwg.mxu0
    %9490 = vmatprep.subr.bf16.mxu0 0
    %9491 = vmatpush1.bf16.msra.mxu0 %v9402
    %9492 = vmatprep.subr.bf16.mxu0 0
    %9493 = vmatpush1.bf16.msra.mxu0 %v9403
    %9494 = vmatprep.subr.bf16.mxu0 0
    %9495 = vmatpush1.bf16.msra.mxu0 %v9404
    %9496 = vmatprep.subr.bf16.mxu0 0
    %9497 = vmatpush1.bf16.msra.mxu0 %v9405
    %9498 = vmatprep.subr.bf16.mxu0 0
    %9499 = vmatpush1.bf16.msra.mxu0 %v9406
    %9500 = vmatprep.subr.bf16.mxu0 0
    %9501 = vmatpush1.bf16.msra.mxu0 %v9407
    %9502 = vmatprep.subr.bf16.mxu0 0
    %9503 = vmatpush1.bf16.msra.mxu0 %v9408
    %9504 = vmatprep.subr.bf16.mxu0 0
    %9505 = vmatpush1.bf16.msra.mxu0 %v9409
    %9506 = vmatprep.subr.bf16.mxu0 0
    %9507 = vmatpush1.bf16.msra.mxu0 %v9410
    %9508 = vmatprep.subr.bf16.mxu0 0
    %9509 = vmatpush1.bf16.msra.mxu0 %v9411
    %9510 = vmatprep.subr.bf16.mxu0 0
    %9511 = vmatpush1.bf16.msra.mxu0 %v9412
    %9512 = vmatprep.subr.bf16.mxu0 0
    %9513 = vmatpush1.bf16.msra.mxu0 %v9413
    %9514 = vmatprep.subr.bf16.mxu0 0
    %9515 = vmatpush1.bf16.msra.mxu0 %v9414
    %9516 = vmatprep.subr.bf16.mxu0 0
    %9517 = vmatpush1.bf16.msra.mxu0 %v9415
    %9518 = vmatprep.subr.bf16.mxu0 0
    %9519 = vmatpush1.bf16.msra.mxu0 %v9416
    %9520 = vmatprep.subr.bf16.mxu0 0
    %9521 = vmatpush1.bf16.msra.mxu0 %v9417
    %9522 = vmatprep.mubr.bf16.mxu0 %v9186
    %9523 = vmatmul.mubr.bf16.gmra.mrb[0].mxu0 %v9185
    %v9524 = vpop.f32.mrb[0].mxu0
    %v9525 = vadd.f32 %v9485, %v9524
    %v9526 = vpop.f32.mrb[0].mxu0
    %v9527 = vpop.f32.mrb[0].mxu0
    %v9528 = vpop.f32.mrb[0].mxu0
    %9529 = vdwg.mxu0
    %v9530 = vsub.f32 0.0, %v9525
    %v9531 = vmul.f32 %v9530, 1.442695
    %v9532 = vpow.pop %v9531
    %v9533 = vadd.f32 %v9532, 1.0
    %v9534 = vrcp.pop %v9533
    %v9535 = vmul.f32 1.0, %v9534
    %vm9536 = vcmask 1024
    %9537 = vst.msk [vmem:[%s17] sm:$0x3] %vm9536, %v9535
    // Predicated region
    $region102: #{enhanced_cnn_forward.1} parent=1 // pred_check
      _
    $region103: #{enhanced_cnn_forward.1} parent=1 // pred_check_branch
      %9539 = sbr.rel (0) target = $region105
    $region104: #{enhanced_cnn_forward.1} parent=1 // pred_region
      _
    $region105: #{enhanced_cnn_forward.1} parent=1 // pred_fallthru
      _
    // Predicated region
    $region106: #{enhanced_cnn_forward.1} parent=1 // pred_check
      _
    $region107: #{enhanced_cnn_forward.1} parent=1 // pred_check_branch
      %9541 = sbr.rel (0) target = $region109
    $region108: #{enhanced_cnn_forward.1} parent=1 // pred_region
      _
    $region109: #{enhanced_cnn_forward.1} parent=1 // pred_fallthru
      _
    %9542 = vsyncpa [#allocation7], 1
    %9543 = vsyncpa [#allocation9], 1
    %9544 = vsyncpa [#allocation12], 1
    %9545 = vsyncpa [#allocation15], 1
    %9546 = vsyncpa [#allocation18], 1

</llo_original>
